<compile_context>
chip_gen: v5e
topology: v5e:2x2
jax: 0.10.0
libtpu: 0.0.40
codegen_flags: <defaults>
</compile_context>

<pallas_src>
from functools import partial

import jax
import jax.numpy as jnp
from jax import lax
from jax.experimental import pallas as pl
from jax.experimental.pallas import tpu as pltpu


# ----------------------------------------------------------------------------
# Band-matrix construction (wrapper side, tiny, traced once per call)
# ----------------------------------------------------------------------------
def _build_band_matrix(w, W):
    """w: (3,3,3,Cin,Cout) DHWIO -> (9*W*Cin, W*Cout) im2col-concatenated bands.

    Row ((kd*3+kh)*W*Cin + w_in*Cin + ci), col (w_out*Cout + co) holds
    w[kd, kh, w_in - w_out + 1, ci, co] when |w_in - w_out| <= 1, else 0.
    The zero band implements the W-axis zero padding for free; concatenating
    the 9 (kd,kh) taps along K matches the in-kernel im2col layout.
    """
    _, _, _, Cin, Cout = w.shape
    w_in = jnp.arange(W)[:, None]
    w_out = jnp.arange(W)[None, :]
    kw = w_in - w_out + 1                                     # (W, W)
    valid = (kw >= 0) & (kw <= 2)
    kw_c = jnp.clip(kw, 0, 2)
    B = w[:, :, kw_c, :, :]                                   # (3,3,Win,Wout,Cin,Cout)
    B = jnp.where(valid[None, None, :, :, None, None], B, 0.0)
    B = jnp.transpose(B, (0, 1, 2, 4, 3, 5))                  # (3,3,Win,Cin,Wout,Cout)
    B = B.reshape(3, 3, W * Cin, W * Cout)
    return B.reshape(9 * W * Cin, W * Cout)                   # taps concat along K


# ----------------------------------------------------------------------------
# Fully fused kernel: two stages of Conv3d(3x3x3,p=1)+bias+GroupNorm+PReLU
# ----------------------------------------------------------------------------
def _dmf_conv_block_kernel(x_ref, bmat1_ref, bmat2_ref, rows_ref, m_ref, mt_ref,
                           alpha_ref, o_ref,
                           xpad1_ref, col1_ref, xpad2_ref, col2_ref, *,
                           D, H, W, Cin, Cout, G, eps):
    # x_ref     : (1, D, H, W*Cin)        lane-dense input tile (one sample)
    # bmat1_ref : (9*W*Cin,  W*Cout)      stage-1 banded conv weights (im2col K)
    # bmat2_ref : (9*W*Cout, W*Cout)      stage-2 banded conv weights
    # rows_ref  : (6, W*Cout)             [b1, gamma1, beta1, b2, gamma2, beta2]
    # m_ref     : (W*Cout, G), mt_ref: (G, W*Cout)   group-membership matrices
    # alpha_ref : (2,) in SMEM            PReLU slopes for stage 1 / stage 2
    # o_ref     : (1, D, H, W*Cout)
    # xpad*_ref : (D+2, H+2, W*C)         zero-halo padded activations (VMEM)
    # col*_ref  : (D*H, 9*W*C)            im2col slabs (VMEM)
    WCin = W * Cin
    WCout = W * Cout
    n_per_group = jnp.float32(D * H * W * (Cout // G))

    def zero_halo(xpad_ref, WC):
        # Only the halo faces; the interior is fully overwritten right after.
        zplane = jnp.zeros((1, H + 2, WC), jnp.float32)
        xpad_ref[0:1, :, :] = zplane
        xpad_ref[D + 1:D + 2, :, :] = zplane
        zstrip = jnp.zeros((D, 1, WC), jnp.float32)
        xpad_ref[1:D + 1, 0:1, :] = zstrip
        xpad_ref[1:D + 1, H + 1:H + 2, :] = zstrip

    def im2col(xpad_ref, col_ref, WC):
        # 9 shifted slabs land once in a sublane/lane-aligned scratch; the MXU
        # is then fed from aligned memory with a single K=9*WC matmul.
        for kd in range(3):
            for kh in range(3):
                t = kd * 3 + kh
                col_ref[:, t * WC:(t + 1) * WC] = (
                    xpad_ref[kd:kd + D, kh:kh + H, :].reshape(D * H, WC))

    def gn_prelu(acc, gamma_row, beta_row, alpha):
        # Two-pass (mean-centered) GroupNorm: numerically safe, and the
        # centered tensor is reused for the affine so the big elementwise
        # epilogue is only sub / mul / add.
        s1 = jnp.sum(acc, axis=0, keepdims=True)                       # (1, WC)
        mean = jnp.dot(s1, m_ref[...],
                       preferred_element_type=jnp.float32) / n_per_group   # (1, G)
        mean_c = jnp.dot(mean, mt_ref[...],
                         preferred_element_type=jnp.float32)           # (1, WC)
        centered = acc - mean_c
        s2 = jnp.sum(centered * centered, axis=0, keepdims=True)       # (1, WC)
        var = jnp.dot(s2, m_ref[...],
                      preferred_element_type=jnp.float32) / n_per_group
        inv_c = jnp.dot(lax.rsqrt(var + eps), mt_ref[...],
                        preferred_element_type=jnp.float32)            # (1, WC)
        scale = inv_c * gamma_row                                      # (1, WC)
        y = centered * scale + beta_row
        return jnp.where(y >= 0, y, alpha * y)

    # ------------------ stage 1: Conv3d + bias + GN + PReLU ------------------
    zero_halo(xpad1_ref, WCin)
    xpad1_ref[1:D + 1, 1:H + 1, :] = x_ref[0]
    im2col(xpad1_ref, col1_ref, WCin)
    acc1 = jnp.dot(col1_ref[...], bmat1_ref[...],
                   preferred_element_type=jnp.float32) + rows_ref[0:1, :]
    y1 = gn_prelu(acc1, rows_ref[1:2, :], rows_ref[2:3, :], alpha_ref[0])

    # Dropout3d(0.3): identity in eval mode.
    # TODO(synk): training-mode whole-channel dropout not implemented.

    # ------------------ stage 2: Conv3d + bias + GN + PReLU ------------------
    zero_halo(xpad2_ref, WCout)
    xpad2_ref[1:D + 1, 1:H + 1, :] = y1.reshape(D, H, WCout)
    im2col(xpad2_ref, col2_ref, WCout)
    acc2 = jnp.dot(col2_ref[...], bmat2_ref[...],
                   preferred_element_type=jnp.float32) + rows_ref[3:4, :]
    y2 = gn_prelu(acc2, rows_ref[4:5, :], rows_ref[5:6, :], alpha_ref[1])

    o_ref[0] = y2.reshape(D, H, WCout)


# ----------------------------------------------------------------------------
# conv_block forward (inference semantics: Dropout3d == identity)
# ----------------------------------------------------------------------------
def conv_block_forward(x, p, *, groups=16, eps=1e-5):
    """x: (N, D, H, W, Cin) NDHWC -> (N, D, H, W, Cout)."""
    N, D, H, W, Cin = x.shape
    Cout = p["w1"].shape[-1]
    assert Cout % groups == 0
    WCout = W * Cout

    # Banded conv weights, im2col-concatenated along K (traced once per call).
    bmat1 = _build_band_matrix(p["w1"].astype(jnp.float32), W)   # (9*W*Cin,  W*Cout)
    bmat2 = _build_band_matrix(p["w2"].astype(jnp.float32), W)   # (9*W*Cout, W*Cout)

    # Per-channel row params tiled to the lane-dense (W*Cout) layout.
    def tile_row(v):
        return jnp.tile(v.astype(jnp.float32), (W,))
    rows = jnp.stack([tile_row(p["b1"]), tile_row(p["gn1_w"]), tile_row(p["gn1_b"]),
                      tile_row(p["b2"]), tile_row(p["gn2_w"]), tile_row(p["gn2_b"])])

    # GroupNorm group-membership matrices, precomputed once.
    Cg = Cout // groups
    col_grp = (jnp.arange(WCout) % Cout) // Cg
    M = (col_grp[:, None] == jnp.arange(groups)[None, :]).astype(jnp.float32)
    Mt = M.T

    alphas = jnp.stack([jnp.asarray(p["prelu1_a"], jnp.float32).reshape(()),
                        jnp.asarray(p["prelu2_a"], jnp.float32).reshape(())])

    x_flat = x.reshape(N, D, H, W * Cin).astype(jnp.float32)     # lane-dense carry

    kernel = partial(_dmf_conv_block_kernel, D=D, H=H, W=W, Cin=Cin, Cout=Cout,
                     G=groups, eps=eps)

    out = pl.pallas_call(
        kernel,
        out_shape=jax.ShapeDtypeStruct((N, D, H, WCout), jnp.float32),
        grid=(N,),
        in_specs=[
            pl.BlockSpec((1, D, H, W * Cin), lambda n: (n, 0, 0, 0)),
            pl.BlockSpec((9 * W * Cin, WCout), lambda n: (0, 0)),
            pl.BlockSpec((9 * WCout, WCout), lambda n: (0, 0)),
            pl.BlockSpec((6, WCout), lambda n: (0, 0)),
            pl.BlockSpec((WCout, groups), lambda n: (0, 0)),
            pl.BlockSpec((groups, WCout), lambda n: (0, 0)),
            pl.BlockSpec(memory_space=pltpu.MemorySpace.SMEM),
        ],
        out_specs=pl.BlockSpec((1, D, H, WCout), lambda n: (n, 0, 0, 0)),
        scratch_shapes=[
            pltpu.VMEM((D + 2, H + 2, W * Cin), jnp.float32),
            pltpu.VMEM((D * H, 9 * W * Cin), jnp.float32),
            pltpu.VMEM((D + 2, H + 2, WCout), jnp.float32),
            pltpu.VMEM((D * H, 9 * WCout), jnp.float32),
        ],
        compiler_params=pltpu.CompilerParams(
            dimension_semantics=("parallel",),
            vmem_limit_bytes=32 * 1024 * 1024),
    )(x_flat, bmat1, bmat2, rows, M, Mt, alphas)

    return out.reshape(N, D, H, W, Cout)


# ----------------------------------------------------------------------------
# Pure-JAX reference (for validation)
# ----------------------------------------------------------------------------
def _ref_conv3d(x, w, b):
    y = lax.conv_general_dilated(
        x, w, window_strides=(1, 1, 1), padding="SAME",
        dimension_numbers=("NDHWC", "DHWIO", "NDHWC"))
    return y + b


def _ref_gn_prelu(x, gamma, beta, alpha, groups=16, eps=1e-5):
    N, D, H, W, C = x.shape
    Cg = C // groups
    xr = x.reshape(N, D * H * W, groups, Cg)
    mean = xr.mean(axis=(1, 3), keepdims=True)
    var = ((xr - mean) ** 2).mean(axis=(1, 3), keepdims=True)
    y = ((xr - mean) / jnp.sqrt(var + eps)).reshape(N, D, H, W, C)
    y = y * gamma + beta
    return jnp.where(y >= 0, y, alpha * y)


def _ref_forward(x, p):
    y = _ref_conv3d(x, p["w1"], p["b1"])
    y = _ref_gn_prelu(y, p["gn1_w"], p["gn1_b"], p["prelu1_a"])
    y = _ref_conv3d(y, p["w2"], p["b2"])
    y = _ref_gn_prelu(y, p["gn2_w"], p["gn2_b"], p["prelu2_a"])
    return y


if __name__ == "__main__":
    key = jax.random.PRNGKey(0)
    N, D, H, W = 2, 8, 8, 8
    in_ch, out_ch = 16, 32  # out_ch must be divisible by 16 (GroupNorm groups)

    keys = jax.random.split(key, 10)
    x = jax.random.normal(keys[0], (N, D, H, W, in_ch), jnp.float32)

    params = {
        "w1": 0.1 * jax.random.normal(keys[1], (3, 3, 3, in_ch, out_ch), jnp.float32),
        "b1": 0.05 * jax.random.normal(keys[2], (out_ch,), jnp.float32),
        "gn1_w": 1.0 + 0.1 * jax.random.normal(keys[3], (out_ch,), jnp.float32),
        "gn1_b": 0.05 * jax.random.normal(keys[4], (out_ch,), jnp.float32),
        "prelu1_a": jnp.float32(0.25),
        "w2": 0.1 * jax.random.normal(keys[5], (3, 3, 3, out_ch, out_ch), jnp.float32),
        "b2": 0.05 * jax.random.normal(keys[6], (out_ch,), jnp.float32),
        "gn2_w": 1.0 + 0.1 * jax.random.normal(keys[7], (out_ch,), jnp.float32),
        "gn2_b": 0.05 * jax.random.normal(keys[8], (out_ch,), jnp.float32),
        "prelu2_a": jnp.float32(0.25),
    }

    out = jax.block_until_ready(jax.jit(conv_block_forward)(x, params))
    ref = jax.block_until_ready(_ref_forward(x, params))

    assert out.shape == (N, D, H, W, out_ch), out.shape
    assert jnp.allclose(out, ref, rtol=1e-4, atol=1e-4), float(jnp.abs(out - ref).max())
    print("KERNEL_OK")
</pallas_src>

<mosaic_0001>
module attributes {stable_mosaic.version = 11 : i64} {
  func.func @_dmf_conv_block_kernel(%arg0: i32, %arg1: memref<1x8x8x128xf32, #tpu.memory_space<vmem>>, %arg2: memref<1152x256xf32, #tpu.memory_space<vmem>>, %arg3: memref<2304x256xf32, #tpu.memory_space<vmem>>, %arg4: memref<6x256xf32, #tpu.memory_space<vmem>>, %arg5: memref<256x16xf32, #tpu.memory_space<vmem>>, %arg6: memref<16x256xf32, #tpu.memory_space<vmem>>, %arg7: memref<2xf32, #tpu.memory_space<smem>>, %arg8: memref<1x8x8x256xf32, #tpu.memory_space<vmem>>, %arg9: memref<10x10x128xf32, #tpu.memory_space<vmem>>, %arg10: memref<64x1152xf32, #tpu.memory_space<vmem>>, %arg11: memref<10x10x256xf32, #tpu.memory_space<vmem>>, %arg12: memref<64x2304xf32, #tpu.memory_space<vmem>>) attributes {dimension_semantics = [#tpu.dimension_semantics<parallel>], iteration_bounds = array<i64: 2>, scalar_prefetch = 0 : i64, scratch_operands = 4 : i64, tpu.core_type = #tpu.core_type<tc>, window_params = [{transform_indices = @transform_0, window_bounds = array<i64: 1, 8, 8, 128>}, {pipeline_mode = #tpu.pipeline_mode<synchronous>, transform_indices = @transform_1, window_bounds = array<i64: 1152, 256>}, {pipeline_mode = #tpu.pipeline_mode<synchronous>, transform_indices = @transform_2, window_bounds = array<i64: 2304, 256>}, {pipeline_mode = #tpu.pipeline_mode<synchronous>, transform_indices = @transform_3, window_bounds = array<i64: 6, 256>}, {pipeline_mode = #tpu.pipeline_mode<synchronous>, transform_indices = @transform_4, window_bounds = array<i64: 256, 16>}, {pipeline_mode = #tpu.pipeline_mode<synchronous>, transform_indices = @transform_5, window_bounds = array<i64: 16, 256>}, {transform_indices = @transform_6, window_bounds = array<i64: 2>}, {transform_indices = @transform_7, window_bounds = array<i64: 1, 8, 8, 256>}]} {
    %cst = arith.constant 0.000000e+00 : f32
    %0 = vector.broadcast %cst : f32 to vector<1x10x128xf32>
    %c0 = arith.constant 0 : index
    %c0_0 = arith.constant 0 : index
    %c0_1 = arith.constant 0 : index
    %1 = vector.load %arg9[%c0, %c0_0, %c0_1] : memref<10x10x128xf32, #tpu.memory_space<vmem>>, vector<1x10x128xf32>
    tpu.vector_store %arg9[%c0, %c0_0, %c0_1], %0 {strides = array<i32>} : memref<10x10x128xf32, #tpu.memory_space<vmem>>, vector<1x10x128xf32>,
    %c9 = arith.constant 9 : index
    %c0_2 = arith.constant 0 : index
    %c0_3 = arith.constant 0 : index
    %2 = vector.load %arg9[%c9, %c0_2, %c0_3] : memref<10x10x128xf32, #tpu.memory_space<vmem>>, vector<1x10x128xf32>
    tpu.vector_store %arg9[%c9, %c0_2, %c0_3], %0 {strides = array<i32>} : memref<10x10x128xf32, #tpu.memory_space<vmem>>, vector<1x10x128xf32>,
    %cst_4 = arith.constant 0.000000e+00 : f32
    %3 = vector.broadcast %cst_4 : f32 to vector<8x1x128xf32>
    %c1 = arith.constant 1 : index
    %c0_5 = arith.constant 0 : index
    %c0_6 = arith.constant 0 : index
    %4 = vector.load %arg9[%c1, %c0_5, %c0_6] : memref<10x10x128xf32, #tpu.memory_space<vmem>>, vector<8x1x128xf32>
    tpu.vector_store %arg9[%c1, %c0_5, %c0_6], %3 {strides = array<i32>} : memref<10x10x128xf32, #tpu.memory_space<vmem>>, vector<8x1x128xf32>,
    %c1_7 = arith.constant 1 : index
    %c9_8 = arith.constant 9 : index
    %c0_9 = arith.constant 0 : index
    %5 = vector.load %arg9[%c1_7, %c9_8, %c0_9] : memref<10x10x128xf32, #tpu.memory_space<vmem>>, vector<8x1x128xf32>
    tpu.vector_store %arg9[%c1_7, %c9_8, %c0_9], %3 {strides = array<i32>} : memref<10x10x128xf32, #tpu.memory_space<vmem>>, vector<8x1x128xf32>,
    %c0_10 = arith.constant 0 : index
    %c0_11 = arith.constant 0 : index
    %c0_12 = arith.constant 0 : index
    %c0_13 = arith.constant 0 : index
    %6 = vector.load %arg1[%c0_10, %c0_11, %c0_12, %c0_13] : memref<1x8x8x128xf32, #tpu.memory_space<vmem>>, vector<1x8x8x128xf32>
    %7 = vector.shape_cast %6 : vector<1x8x8x128xf32> to vector<8x8x128xf32>
    %c1_14 = arith.constant 1 : index
    %c1_15 = arith.constant 1 : index
    %c0_16 = arith.constant 0 : index
    %8 = vector.load %arg9[%c1_14, %c1_15, %c0_16] : memref<10x10x128xf32, #tpu.memory_space<vmem>>, vector<8x8x128xf32>
    tpu.vector_store %arg9[%c1_14, %c1_15, %c0_16], %7 {strides = array<i32>} : memref<10x10x128xf32, #tpu.memory_space<vmem>>, vector<8x8x128xf32>,
    %c0_17 = arith.constant 0 : index
    %c0_18 = arith.constant 0 : index
    %c0_19 = arith.constant 0 : index
    %9 = vector.load %arg9[%c0_17, %c0_18, %c0_19] : memref<10x10x128xf32, #tpu.memory_space<vmem>>, vector<8x8x128xf32>
    %10 = vector.shape_cast %9 : vector<8x8x128xf32> to vector<64x128xf32>
    %c0_20 = arith.constant 0 : index
    %c0_21 = arith.constant 0 : index
    %11 = vector.load %arg10[%c0_20, %c0_21] : memref<64x1152xf32, #tpu.memory_space<vmem>>, vector<64x128xf32>
    tpu.vector_store %arg10[%c0_20, %c0_21], %10 {strides = array<i32>} : memref<64x1152xf32, #tpu.memory_space<vmem>>, vector<64x128xf32>,
    %c0_22 = arith.constant 0 : index
    %c1_23 = arith.constant 1 : index
    %c0_24 = arith.constant 0 : index
    %12 = vector.load %arg9[%c0_22, %c1_23, %c0_24] : memref<10x10x128xf32, #tpu.memory_space<vmem>>, vector<8x8x128xf32>
    %13 = vector.shape_cast %12 : vector<8x8x128xf32> to vector<64x128xf32>
    %c0_25 = arith.constant 0 : index
    %c128 = arith.constant 128 : index
    %14 = vector.load %arg10[%c0_25, %c128] : memref<64x1152xf32, #tpu.memory_space<vmem>>, vector<64x128xf32>
    tpu.vector_store %arg10[%c0_25, %c128], %13 {strides = array<i32>} : memref<64x1152xf32, #tpu.memory_space<vmem>>, vector<64x128xf32>,
    %c0_26 = arith.constant 0 : index
    %c2 = arith.constant 2 : index
    %c0_27 = arith.constant 0 : index
    %15 = vector.load %arg9[%c0_26, %c2, %c0_27] : memref<10x10x128xf32, #tpu.memory_space<vmem>>, vector<8x8x128xf32>
    %16 = vector.shape_cast %15 : vector<8x8x128xf32> to vector<64x128xf32>
    %c0_28 = arith.constant 0 : index
    %c256 = arith.constant 256 : index
    %17 = vector.load %arg10[%c0_28, %c256] : memref<64x1152xf32, #tpu.memory_space<vmem>>, vector<64x128xf32>
    tpu.vector_store %arg10[%c0_28, %c256], %16 {strides = array<i32>} : memref<64x1152xf32, #tpu.memory_space<vmem>>, vector<64x128xf32>,
    %c1_29 = arith.constant 1 : index
    %c0_30 = arith.constant 0 : index
    %c0_31 = arith.constant 0 : index
    %18 = vector.load %arg9[%c1_29, %c0_30, %c0_31] : memref<10x10x128xf32, #tpu.memory_space<vmem>>, vector<8x8x128xf32>
    %19 = vector.shape_cast %18 : vector<8x8x128xf32> to vector<64x128xf32>
    %c0_32 = arith.constant 0 : index
    %c384 = arith.constant 384 : index
    %20 = vector.load %arg10[%c0_32, %c384] : memref<64x1152xf32, #tpu.memory_space<vmem>>, vector<64x128xf32>
    tpu.vector_store %arg10[%c0_32, %c384], %19 {strides = array<i32>} : memref<64x1152xf32, #tpu.memory_space<vmem>>, vector<64x128xf32>,
    %c1_33 = arith.constant 1 : index
    %c1_34 = arith.constant 1 : index
    %c0_35 = arith.constant 0 : index
    %21 = vector.load %arg9[%c1_33, %c1_34, %c0_35] : memref<10x10x128xf32, #tpu.memory_space<vmem>>, vector<8x8x128xf32>
    %22 = vector.shape_cast %21 : vector<8x8x128xf32> to vector<64x128xf32>
    %c0_36 = arith.constant 0 : index
    %c512 = arith.constant 512 : index
    %23 = vector.load %arg10[%c0_36, %c512] : memref<64x1152xf32, #tpu.memory_space<vmem>>, vector<64x128xf32>
    tpu.vector_store %arg10[%c0_36, %c512], %22 {strides = array<i32>} : memref<64x1152xf32, #tpu.memory_space<vmem>>, vector<64x128xf32>,
    %c1_37 = arith.constant 1 : index
    %c2_38 = arith.constant 2 : index
    %c0_39 = arith.constant 0 : index
    %24 = vector.load %arg9[%c1_37, %c2_38, %c0_39] : memref<10x10x128xf32, #tpu.memory_space<vmem>>, vector<8x8x128xf32>
    %25 = vector.shape_cast %24 : vector<8x8x128xf32> to vector<64x128xf32>
    %c0_40 = arith.constant 0 : index
    %c640 = arith.constant 640 : index
    %26 = vector.load %arg10[%c0_40, %c640] : memref<64x1152xf32, #tpu.memory_space<vmem>>, vector<64x128xf32>
    tpu.vector_store %arg10[%c0_40, %c640], %25 {strides = array<i32>} : memref<64x1152xf32, #tpu.memory_space<vmem>>, vector<64x128xf32>,
    %c2_41 = arith.constant 2 : index
    %c0_42 = arith.constant 0 : index
    %c0_43 = arith.constant 0 : index
    %27 = vector.load %arg9[%c2_41, %c0_42, %c0_43] : memref<10x10x128xf32, #tpu.memory_space<vmem>>, vector<8x8x128xf32>
    %28 = vector.shape_cast %27 : vector<8x8x128xf32> to vector<64x128xf32>
    %c0_44 = arith.constant 0 : index
    %c768 = arith.constant 768 : index
    %29 = vector.load %arg10[%c0_44, %c768] : memref<64x1152xf32, #tpu.memory_space<vmem>>, vector<64x128xf32>
    tpu.vector_store %arg10[%c0_44, %c768], %28 {strides = array<i32>} : memref<64x1152xf32, #tpu.memory_space<vmem>>, vector<64x128xf32>,
    %c2_45 = arith.constant 2 : index
    %c1_46 = arith.constant 1 : index
    %c0_47 = arith.constant 0 : index
    %30 = vector.load %arg9[%c2_45, %c1_46, %c0_47] : memref<10x10x128xf32, #tpu.memory_space<vmem>>, vector<8x8x128xf32>
    %31 = vector.shape_cast %30 : vector<8x8x128xf32> to vector<64x128xf32>
    %c0_48 = arith.constant 0 : index
    %c896 = arith.constant 896 : index
    %32 = vector.load %arg10[%c0_48, %c896] : memref<64x1152xf32, #tpu.memory_space<vmem>>, vector<64x128xf32>
    tpu.vector_store %arg10[%c0_48, %c896], %31 {strides = array<i32>} : memref<64x1152xf32, #tpu.memory_space<vmem>>, vector<64x128xf32>,
    %c2_49 = arith.constant 2 : index
    %c2_50 = arith.constant 2 : index
    %c0_51 = arith.constant 0 : index
    %33 = vector.load %arg9[%c2_49, %c2_50, %c0_51] : memref<10x10x128xf32, #tpu.memory_space<vmem>>, vector<8x8x128xf32>
    %34 = vector.shape_cast %33 : vector<8x8x128xf32> to vector<64x128xf32>
    %c0_52 = arith.constant 0 : index
    %c1024 = arith.constant 1024 : index
    %35 = vector.load %arg10[%c0_52, %c1024] : memref<64x1152xf32, #tpu.memory_space<vmem>>, vector<64x128xf32>
    tpu.vector_store %arg10[%c0_52, %c1024], %34 {strides = array<i32>} : memref<64x1152xf32, #tpu.memory_space<vmem>>, vector<64x128xf32>,
    %c0_53 = arith.constant 0 : index
    %c0_54 = arith.constant 0 : index
    %36 = vector.load %arg10[%c0_53, %c0_54] : memref<64x1152xf32, #tpu.memory_space<vmem>>, vector<64x1152xf32>
    %c0_55 = arith.constant 0 : index
    %c0_56 = arith.constant 0 : index
    %37 = vector.load %arg2[%c0_55, %c0_56] : memref<1152x256xf32, #tpu.memory_space<vmem>>, vector<1152x256xf32>
    %cst_57 = arith.constant dense<0.000000e+00> : vector<64x256xf32>
    %38 = tpu.matmul %36, %37, %cst_57 {dimension_numbers = #tpu.dot_dimension_numbers<[1], [0], [0], [1], [0, 0, 1, 1], [], []>} : vector<64x1152xf32>, vector<1152x256xf32>, vector<64x256xf32> -> vector<64x256xf32>
    %c0_58 = arith.constant 0 : index
    %c0_59 = arith.constant 0 : index
    %39 = vector.load %arg4[%c0_58, %c0_59] : memref<6x256xf32, #tpu.memory_space<vmem>>, vector<1x256xf32>
    %40 = vector.broadcast %39 : vector<1x256xf32> to vector<64x256xf32>
    %41 = arith.addf %38, %40 : vector<64x256xf32>
    %c1_60 = arith.constant 1 : index
    %c0_61 = arith.constant 0 : index
    %42 = vector.load %arg4[%c1_60, %c0_61] : memref<6x256xf32, #tpu.memory_space<vmem>>, vector<1x256xf32>
    %c2_62 = arith.constant 2 : index
    %c0_63 = arith.constant 0 : index
    %43 = vector.load %arg4[%c2_62, %c0_63] : memref<6x256xf32, #tpu.memory_space<vmem>>, vector<1x256xf32>
    %c0_64 = arith.constant 0 : index
    %44 = memref.load %arg7[%c0_64] : memref<2xf32, #tpu.memory_space<smem>>
    %cst_65 = arith.constant dense<0.000000e+00> : vector<256xf32>
    %45 = vector.multi_reduction <add>, %41, %cst_65 [0] : vector<64x256xf32> to vector<256xf32>
    %46 = vector.shape_cast %45 : vector<256xf32> to vector<1x256xf32>
    %c0_66 = arith.constant 0 : index
    %c0_67 = arith.constant 0 : index
    %47 = vector.load %arg5[%c0_66, %c0_67] : memref<256x16xf32, #tpu.memory_space<vmem>>, vector<256x16xf32>
    %cst_68 = arith.constant dense<0.000000e+00> : vector<1x16xf32>
    %48 = tpu.matmul %46, %47, %cst_68 {dimension_numbers = #tpu.dot_dimension_numbers<[1], [0], [0], [1], [0, 0, 1, 1], [], []>} : vector<1x256xf32>, vector<256x16xf32>, vector<1x16xf32> -> vector<1x16xf32>
    %cst_69 = arith.constant 1.024000e+03 : f32
    %49 = vector.broadcast %cst_69 : f32 to vector<1x16xf32>
    %50 = arith.divf %48, %49 : vector<1x16xf32>
    %c0_70 = arith.constant 0 : index
    %c0_71 = arith.constant 0 : index
    %51 = vector.load %arg6[%c0_70, %c0_71] : memref<16x256xf32, #tpu.memory_space<vmem>>, vector<16x256xf32>
    %cst_72 = arith.constant dense<0.000000e+00> : vector<1x256xf32>
    %52 = tpu.matmul %50, %51, %cst_72 {dimension_numbers = #tpu.dot_dimension_numbers<[1], [0], [0], [1], [0, 0, 1, 1], [], []>} : vector<1x16xf32>, vector<16x256xf32>, vector<1x256xf32> -> vector<1x256xf32>
    %53 = vector.broadcast %52 : vector<1x256xf32> to vector<64x256xf32>
    %54 = arith.subf %41, %53 : vector<64x256xf32>
    %55 = arith.mulf %54, %54 : vector<64x256xf32>
    %cst_73 = arith.constant dense<0.000000e+00> : vector<256xf32>
    %56 = vector.multi_reduction <add>, %55, %cst_73 [0] : vector<64x256xf32> to vector<256xf32>
    %57 = vector.shape_cast %56 : vector<256xf32> to vector<1x256xf32>
    %c0_74 = arith.constant 0 : index
    %c0_75 = arith.constant 0 : index
    %58 = vector.load %arg5[%c0_74, %c0_75] : memref<256x16xf32, #tpu.memory_space<vmem>>, vector<256x16xf32>
    %cst_76 = arith.constant dense<0.000000e+00> : vector<1x16xf32>
    %59 = tpu.matmul %57, %58, %cst_76 {dimension_numbers = #tpu.dot_dimension_numbers<[1], [0], [0], [1], [0, 0, 1, 1], [], []>} : vector<1x256xf32>, vector<256x16xf32>, vector<1x16xf32> -> vector<1x16xf32>
    %cst_77 = arith.constant 1.024000e+03 : f32
    %60 = vector.broadcast %cst_77 : f32 to vector<1x16xf32>
    %61 = arith.divf %59, %60 : vector<1x16xf32>
    %cst_78 = arith.constant 9.99999974E-6 : f32
    %62 = vector.broadcast %cst_78 : f32 to vector<1x16xf32>
    %63 = arith.addf %61, %62 : vector<1x16xf32>
    %64 = math.rsqrt %63 : vector<1x16xf32>
    %c0_79 = arith.constant 0 : index
    %c0_80 = arith.constant 0 : index
    %65 = vector.load %arg6[%c0_79, %c0_80] : memref<16x256xf32, #tpu.memory_space<vmem>>, vector<16x256xf32>
    %cst_81 = arith.constant dense<0.000000e+00> : vector<1x256xf32>
    %66 = tpu.matmul %64, %65, %cst_81 {dimension_numbers = #tpu.dot_dimension_numbers<[1], [0], [0], [1], [0, 0, 1, 1], [], []>} : vector<1x16xf32>, vector<16x256xf32>, vector<1x256xf32> -> vector<1x256xf32>
    %67 = arith.mulf %66, %42 : vector<1x256xf32>
    %68 = vector.broadcast %67 : vector<1x256xf32> to vector<64x256xf32>
    %69 = arith.mulf %54, %68 : vector<64x256xf32>
    %70 = vector.broadcast %43 : vector<1x256xf32> to vector<64x256xf32>
    %71 = arith.addf %69, %70 : vector<64x256xf32>
    %cst_82 = arith.constant 0.000000e+00 : f32
    %72 = vector.broadcast %cst_82 : f32 to vector<64x256xf32>
    %73 = arith.cmpf oge, %71, %72 : vector<64x256xf32>
    %74 = vector.broadcast %44 : f32 to vector<64x256xf32>
    %75 = arith.mulf %74, %71 : vector<64x256xf32>
    %76 = arith.select %73, %71, %75 : vector<64x256xi1>, vector<64x256xf32>
    %cst_83 = arith.constant 0.000000e+00 : f32
    %77 = vector.broadcast %cst_83 : f32 to vector<1x10x256xf32>
    %c0_84 = arith.constant 0 : index
    %c0_85 = arith.constant 0 : index
    %c0_86 = arith.constant 0 : index
    %78 = vector.load %arg11[%c0_84, %c0_85, %c0_86] : memref<10x10x256xf32, #tpu.memory_space<vmem>>, vector<1x10x256xf32>
    tpu.vector_store %arg11[%c0_84, %c0_85, %c0_86], %77 {strides = array<i32>} : memref<10x10x256xf32, #tpu.memory_space<vmem>>, vector<1x10x256xf32>,
    %c9_87 = arith.constant 9 : index
    %c0_88 = arith.constant 0 : index
    %c0_89 = arith.constant 0 : index
    %79 = vector.load %arg11[%c9_87, %c0_88, %c0_89] : memref<10x10x256xf32, #tpu.memory_space<vmem>>, vector<1x10x256xf32>
    tpu.vector_store %arg11[%c9_87, %c0_88, %c0_89], %77 {strides = array<i32>} : memref<10x10x256xf32, #tpu.memory_space<vmem>>, vector<1x10x256xf32>,
    %cst_90 = arith.constant 0.000000e+00 : f32
    %80 = vector.broadcast %cst_90 : f32 to vector<8x1x256xf32>
    %c1_91 = arith.constant 1 : index
    %c0_92 = arith.constant 0 : index
    %c0_93 = arith.constant 0 : index
    %81 = vector.load %arg11[%c1_91, %c0_92, %c0_93] : memref<10x10x256xf32, #tpu.memory_space<vmem>>, vector<8x1x256xf32>
    tpu.vector_store %arg11[%c1_91, %c0_92, %c0_93], %80 {strides = array<i32>} : memref<10x10x256xf32, #tpu.memory_space<vmem>>, vector<8x1x256xf32>,
    %c1_94 = arith.constant 1 : index
    %c9_95 = arith.constant 9 : index
    %c0_96 = arith.constant 0 : index
    %82 = vector.load %arg11[%c1_94, %c9_95, %c0_96] : memref<10x10x256xf32, #tpu.memory_space<vmem>>, vector<8x1x256xf32>
    tpu.vector_store %arg11[%c1_94, %c9_95, %c0_96], %80 {strides = array<i32>} : memref<10x10x256xf32, #tpu.memory_space<vmem>>, vector<8x1x256xf32>,
    %83 = vector.shape_cast %76 : vector<64x256xf32> to vector<8x8x256xf32>
    %c1_97 = arith.constant 1 : index
    %c1_98 = arith.constant 1 : index
    %c0_99 = arith.constant 0 : index
    %84 = vector.load %arg11[%c1_97, %c1_98, %c0_99] : memref<10x10x256xf32, #tpu.memory_space<vmem>>, vector<8x8x256xf32>
    tpu.vector_store %arg11[%c1_97, %c1_98, %c0_99], %83 {strides = array<i32>} : memref<10x10x256xf32, #tpu.memory_space<vmem>>, vector<8x8x256xf32>,
    %c0_100 = arith.constant 0 : index
    %c0_101 = arith.constant 0 : index
    %c0_102 = arith.constant 0 : index
    %85 = vector.load %arg11[%c0_100, %c0_101, %c0_102] : memref<10x10x256xf32, #tpu.memory_space<vmem>>, vector<8x8x256xf32>
    %86 = vector.shape_cast %85 : vector<8x8x256xf32> to vector<64x256xf32>
    %c0_103 = arith.constant 0 : index
    %c0_104 = arith.constant 0 : index
    %87 = vector.load %arg12[%c0_103, %c0_104] : memref<64x2304xf32, #tpu.memory_space<vmem>>, vector<64x256xf32>
    tpu.vector_store %arg12[%c0_103, %c0_104], %86 {strides = array<i32>} : memref<64x2304xf32, #tpu.memory_space<vmem>>, vector<64x256xf32>,
    %c0_105 = arith.constant 0 : index
    %c1_106 = arith.constant 1 : index
    %c0_107 = arith.constant 0 : index
    %88 = vector.load %arg11[%c0_105, %c1_106, %c0_107] : memref<10x10x256xf32, #tpu.memory_space<vmem>>, vector<8x8x256xf32>
    %89 = vector.shape_cast %88 : vector<8x8x256xf32> to vector<64x256xf32>
    %c0_108 = arith.constant 0 : index
    %c256_109 = arith.constant 256 : index
    %90 = vector.load %arg12[%c0_108, %c256_109] : memref<64x2304xf32, #tpu.memory_space<vmem>>, vector<64x256xf32>
    tpu.vector_store %arg12[%c0_108, %c256_109], %89 {strides = array<i32>} : memref<64x2304xf32, #tpu.memory_space<vmem>>, vector<64x256xf32>,
    %c0_110 = arith.constant 0 : index
    %c2_111 = arith.constant 2 : index
    %c0_112 = arith.constant 0 : index
    %91 = vector.load %arg11[%c0_110, %c2_111, %c0_112] : memref<10x10x256xf32, #tpu.memory_space<vmem>>, vector<8x8x256xf32>
    %92 = vector.shape_cast %91 : vector<8x8x256xf32> to vector<64x256xf32>
    %c0_113 = arith.constant 0 : index
    %c512_114 = arith.constant 512 : index
    %93 = vector.load %arg12[%c0_113, %c512_114] : memref<64x2304xf32, #tpu.memory_space<vmem>>, vector<64x256xf32>
    tpu.vector_store %arg12[%c0_113, %c512_114], %92 {strides = array<i32>} : memref<64x2304xf32, #tpu.memory_space<vmem>>, vector<64x256xf32>,
    %c1_115 = arith.constant 1 : index
    %c0_116 = arith.constant 0 : index
    %c0_117 = arith.constant 0 : index
    %94 = vector.load %arg11[%c1_115, %c0_116, %c0_117] : memref<10x10x256xf32, #tpu.memory_space<vmem>>, vector<8x8x256xf32>
    %95 = vector.shape_cast %94 : vector<8x8x256xf32> to vector<64x256xf32>
    %c0_118 = arith.constant 0 : index
    %c768_119 = arith.constant 768 : index
    %96 = vector.load %arg12[%c0_118, %c768_119] : memref<64x2304xf32, #tpu.memory_space<vmem>>, vector<64x256xf32>
    tpu.vector_store %arg12[%c0_118, %c768_119], %95 {strides = array<i32>} : memref<64x2304xf32, #tpu.memory_space<vmem>>, vector<64x256xf32>,
    %c1_120 = arith.constant 1 : index
    %c1_121 = arith.constant 1 : index
    %c0_122 = arith.constant 0 : index
    %97 = vector.load %arg11[%c1_120, %c1_121, %c0_122] : memref<10x10x256xf32, #tpu.memory_space<vmem>>, vector<8x8x256xf32>
    %98 = vector.shape_cast %97 : vector<8x8x256xf32> to vector<64x256xf32>
    %c0_123 = arith.constant 0 : index
    %c1024_124 = arith.constant 1024 : index
    %99 = vector.load %arg12[%c0_123, %c1024_124] : memref<64x2304xf32, #tpu.memory_space<vmem>>, vector<64x256xf32>
    tpu.vector_store %arg12[%c0_123, %c1024_124], %98 {strides = array<i32>} : memref<64x2304xf32, #tpu.memory_space<vmem>>, vector<64x256xf32>,
    %c1_125 = arith.constant 1 : index
    %c2_126 = arith.constant 2 : index
    %c0_127 = arith.constant 0 : index
    %100 = vector.load %arg11[%c1_125, %c2_126, %c0_127] : memref<10x10x256xf32, #tpu.memory_space<vmem>>, vector<8x8x256xf32>
    %101 = vector.shape_cast %100 : vector<8x8x256xf32> to vector<64x256xf32>
    %c0_128 = arith.constant 0 : index
    %c1280 = arith.constant 1280 : index
    %102 = vector.load %arg12[%c0_128, %c1280] : memref<64x2304xf32, #tpu.memory_space<vmem>>, vector<64x256xf32>
    tpu.vector_store %arg12[%c0_128, %c1280], %101 {strides = array<i32>} : memref<64x2304xf32, #tpu.memory_space<vmem>>, vector<64x256xf32>,
    %c2_129 = arith.constant 2 : index
    %c0_130 = arith.constant 0 : index
    %c0_131 = arith.constant 0 : index
    %103 = vector.load %arg11[%c2_129, %c0_130, %c0_131] : memref<10x10x256xf32, #tpu.memory_space<vmem>>, vector<8x8x256xf32>
    %104 = vector.shape_cast %103 : vector<8x8x256xf32> to vector<64x256xf32>
    %c0_132 = arith.constant 0 : index
    %c1536 = arith.constant 1536 : index
    %105 = vector.load %arg12[%c0_132, %c1536] : memref<64x2304xf32, #tpu.memory_space<vmem>>, vector<64x256xf32>
    tpu.vector_store %arg12[%c0_132, %c1536], %104 {strides = array<i32>} : memref<64x2304xf32, #tpu.memory_space<vmem>>, vector<64x256xf32>,
    %c2_133 = arith.constant 2 : index
    %c1_134 = arith.constant 1 : index
    %c0_135 = arith.constant 0 : index
    %106 = vector.load %arg11[%c2_133, %c1_134, %c0_135] : memref<10x10x256xf32, #tpu.memory_space<vmem>>, vector<8x8x256xf32>
    %107 = vector.shape_cast %106 : vector<8x8x256xf32> to vector<64x256xf32>
    %c0_136 = arith.constant 0 : index
    %c1792 = arith.constant 1792 : index
    %108 = vector.load %arg12[%c0_136, %c1792] : memref<64x2304xf32, #tpu.memory_space<vmem>>, vector<64x256xf32>
    tpu.vector_store %arg12[%c0_136, %c1792], %107 {strides = array<i32>} : memref<64x2304xf32, #tpu.memory_space<vmem>>, vector<64x256xf32>,
    %c2_137 = arith.constant 2 : index
    %c2_138 = arith.constant 2 : index
    %c0_139 = arith.constant 0 : index
    %109 = vector.load %arg11[%c2_137, %c2_138, %c0_139] : memref<10x10x256xf32, #tpu.memory_space<vmem>>, vector<8x8x256xf32>
    %110 = vector.shape_cast %109 : vector<8x8x256xf32> to vector<64x256xf32>
    %c0_140 = arith.constant 0 : index
    %c2048 = arith.constant 2048 : index
    %111 = vector.load %arg12[%c0_140, %c2048] : memref<64x2304xf32, #tpu.memory_space<vmem>>, vector<64x256xf32>
    tpu.vector_store %arg12[%c0_140, %c2048], %110 {strides = array<i32>} : memref<64x2304xf32, #tpu.memory_space<vmem>>, vector<64x256xf32>,
    %c0_141 = arith.constant 0 : index
    %c0_142 = arith.constant 0 : index
    %112 = vector.load %arg12[%c0_141, %c0_142] : memref<64x2304xf32, #tpu.memory_space<vmem>>, vector<64x2304xf32>
    %c0_143 = arith.constant 0 : index
    %c0_144 = arith.constant 0 : index
    %113 = vector.load %arg3[%c0_143, %c0_144] : memref<2304x256xf32, #tpu.memory_space<vmem>>, vector<2304x256xf32>
    %cst_145 = arith.constant dense<0.000000e+00> : vector<64x256xf32>
    %114 = tpu.matmul %112, %113, %cst_145 {dimension_numbers = #tpu.dot_dimension_numbers<[1], [0], [0], [1], [0, 0, 1, 1], [], []>} : vector<64x2304xf32>, vector<2304x256xf32>, vector<64x256xf32> -> vector<64x256xf32>
    %c3 = arith.constant 3 : index
    %c0_146 = arith.constant 0 : index
    %115 = vector.load %arg4[%c3, %c0_146] : memref<6x256xf32, #tpu.memory_space<vmem>>, vector<1x256xf32>
    %116 = vector.broadcast %115 : vector<1x256xf32> to vector<64x256xf32>
    %117 = arith.addf %114, %116 : vector<64x256xf32>
    %c4 = arith.constant 4 : index
    %c0_147 = arith.constant 0 : index
    %118 = vector.load %arg4[%c4, %c0_147] : memref<6x256xf32, #tpu.memory_space<vmem>>, vector<1x256xf32>
    %c5 = arith.constant 5 : index
    %c0_148 = arith.constant 0 : index
    %119 = vector.load %arg4[%c5, %c0_148] : memref<6x256xf32, #tpu.memory_space<vmem>>, vector<1x256xf32>
    %c1_149 = arith.constant 1 : index
    %120 = memref.load %arg7[%c1_149] : memref<2xf32, #tpu.memory_space<smem>>
    %cst_150 = arith.constant dense<0.000000e+00> : vector<256xf32>
    %121 = vector.multi_reduction <add>, %117, %cst_150 [0] : vector<64x256xf32> to vector<256xf32>
    %122 = vector.shape_cast %121 : vector<256xf32> to vector<1x256xf32>
    %c0_151 = arith.constant 0 : index
    %c0_152 = arith.constant 0 : index
    %123 = vector.load %arg5[%c0_151, %c0_152] : memref<256x16xf32, #tpu.memory_space<vmem>>, vector<256x16xf32>
    %cst_153 = arith.constant dense<0.000000e+00> : vector<1x16xf32>
    %124 = tpu.matmul %122, %123, %cst_153 {dimension_numbers = #tpu.dot_dimension_numbers<[1], [0], [0], [1], [0, 0, 1, 1], [], []>} : vector<1x256xf32>, vector<256x16xf32>, vector<1x16xf32> -> vector<1x16xf32>
    %cst_154 = arith.constant 1.024000e+03 : f32
    %125 = vector.broadcast %cst_154 : f32 to vector<1x16xf32>
    %126 = arith.divf %124, %125 : vector<1x16xf32>
    %c0_155 = arith.constant 0 : index
    %c0_156 = arith.constant 0 : index
    %127 = vector.load %arg6[%c0_155, %c0_156] : memref<16x256xf32, #tpu.memory_space<vmem>>, vector<16x256xf32>
    %cst_157 = arith.constant dense<0.000000e+00> : vector<1x256xf32>
    %128 = tpu.matmul %126, %127, %cst_157 {dimension_numbers = #tpu.dot_dimension_numbers<[1], [0], [0], [1], [0, 0, 1, 1], [], []>} : vector<1x16xf32>, vector<16x256xf32>, vector<1x256xf32> -> vector<1x256xf32>
    %129 = vector.broadcast %128 : vector<1x256xf32> to vector<64x256xf32>
    %130 = arith.subf %117, %129 : vector<64x256xf32>
    %131 = arith.mulf %130, %130 : vector<64x256xf32>
    %cst_158 = arith.constant dense<0.000000e+00> : vector<256xf32>
    %132 = vector.multi_reduction <add>, %131, %cst_158 [0] : vector<64x256xf32> to vector<256xf32>
    %133 = vector.shape_cast %132 : vector<256xf32> to vector<1x256xf32>
    %c0_159 = arith.constant 0 : index
    %c0_160 = arith.constant 0 : index
    %134 = vector.load %arg5[%c0_159, %c0_160] : memref<256x16xf32, #tpu.memory_space<vmem>>, vector<256x16xf32>
    %cst_161 = arith.constant dense<0.000000e+00> : vector<1x16xf32>
    %135 = tpu.matmul %133, %134, %cst_161 {dimension_numbers = #tpu.dot_dimension_numbers<[1], [0], [0], [1], [0, 0, 1, 1], [], []>} : vector<1x256xf32>, vector<256x16xf32>, vector<1x16xf32> -> vector<1x16xf32>
    %cst_162 = arith.constant 1.024000e+03 : f32
    %136 = vector.broadcast %cst_162 : f32 to vector<1x16xf32>
    %137 = arith.divf %135, %136 : vector<1x16xf32>
    %cst_163 = arith.constant 9.99999974E-6 : f32
    %138 = vector.broadcast %cst_163 : f32 to vector<1x16xf32>
    %139 = arith.addf %137, %138 : vector<1x16xf32>
    %140 = math.rsqrt %139 : vector<1x16xf32>
    %c0_164 = arith.constant 0 : index
    %c0_165 = arith.constant 0 : index
    %141 = vector.load %arg6[%c0_164, %c0_165] : memref<16x256xf32, #tpu.memory_space<vmem>>, vector<16x256xf32>
    %cst_166 = arith.constant dense<0.000000e+00> : vector<1x256xf32>
    %142 = tpu.matmul %140, %141, %cst_166 {dimension_numbers = #tpu.dot_dimension_numbers<[1], [0], [0], [1], [0, 0, 1, 1], [], []>} : vector<1x16xf32>, vector<16x256xf32>, vector<1x256xf32> -> vector<1x256xf32>
    %143 = arith.mulf %142, %118 : vector<1x256xf32>
    %144 = vector.broadcast %143 : vector<1x256xf32> to vector<64x256xf32>
    %145 = arith.mulf %130, %144 : vector<64x256xf32>
    %146 = vector.broadcast %119 : vector<1x256xf32> to vector<64x256xf32>
    %147 = arith.addf %145, %146 : vector<64x256xf32>
    %cst_167 = arith.constant 0.000000e+00 : f32
    %148 = vector.broadcast %cst_167 : f32 to vector<64x256xf32>
    %149 = arith.cmpf oge, %147, %148 : vector<64x256xf32>
    %150 = vector.broadcast %120 : f32 to vector<64x256xf32>
    %151 = arith.mulf %150, %147 : vector<64x256xf32>
    %152 = arith.select %149, %147, %151 : vector<64x256xi1>, vector<64x256xf32>
    %153 = vector.shape_cast %152 : vector<64x256xf32> to vector<8x8x256xf32>
    %c0_168 = arith.constant 0 : index
    %c0_169 = arith.constant 0 : index
    %c0_170 = arith.constant 0 : index
    %c0_171 = arith.constant 0 : index
    %154 = vector.load %arg8[%c0_168, %c0_169, %c0_170, %c0_171] : memref<1x8x8x256xf32, #tpu.memory_space<vmem>>, vector<1x8x8x256xf32>
    %155 = vector.shape_cast %154 : vector<1x8x8x256xf32> to vector<8x8x256xf32>
    %156 = vector.shape_cast %153 : vector<8x8x256xf32> to vector<1x8x8x256xf32>
    tpu.vector_store %arg8[%c0_168, %c0_169, %c0_170, %c0_171], %156 {strides = array<i32>} : memref<1x8x8x256xf32, #tpu.memory_space<vmem>>, vector<1x8x8x256xf32>,
    return
  }
  func.func @transform_0(%arg0: i32) -> (i32, i32, i32, i32) {
    %c0_i32 = arith.constant 0 : i32
    %c0_i32_0 = arith.constant 0 : i32
    %c0_i32_1 = arith.constant 0 : i32
    %c0_i32_2 = arith.constant 0 : i32
    return %arg0, %c0_i32, %c0_i32_0, %c0_i32_1 : i32, i32, i32, i32
  }
  func.func @transform_1(%arg0: i32) -> (i32, i32) {
    %c0_i32 = arith.constant 0 : i32
    %c0_i32_0 = arith.constant 0 : i32
    %c0_i32_1 = arith.constant 0 : i32
    return %c0_i32, %c0_i32_0 : i32, i32
  }
  func.func @transform_2(%arg0: i32) -> (i32, i32) {
    %c0_i32 = arith.constant 0 : i32
    %c0_i32_0 = arith.constant 0 : i32
    %c0_i32_1 = arith.constant 0 : i32
    return %c0_i32, %c0_i32_0 : i32, i32
  }
  func.func @transform_3(%arg0: i32) -> (i32, i32) {
    %c0_i32 = arith.constant 0 : i32
    %c0_i32_0 = arith.constant 0 : i32
    %c0_i32_1 = arith.constant 0 : i32
    return %c0_i32, %c0_i32_0 : i32, i32
  }
  func.func @transform_4(%arg0: i32) -> (i32, i32) {
    %c0_i32 = arith.constant 0 : i32
    %c0_i32_0 = arith.constant 0 : i32
    %c0_i32_1 = arith.constant 0 : i32
    return %c0_i32, %c0_i32_0 : i32, i32
  }
  func.func @transform_5(%arg0: i32) -> (i32, i32) {
    %c0_i32 = arith.constant 0 : i32
    %c0_i32_0 = arith.constant 0 : i32
    %c0_i32_1 = arith.constant 0 : i32
    return %c0_i32, %c0_i32_0 : i32, i32
  }
  func.func @transform_6(%arg0: i32) -> i32 {
    %c0_i32 = arith.constant 0 : i32
    %c0_i32_0 = arith.constant 0 : i32
    return %c0_i32 : i32
  }
  func.func @transform_7(%arg0: i32) -> (i32, i32, i32, i32) {
    %c0_i32 = arith.constant 0 : i32
    %c0_i32_0 = arith.constant 0 : i32
    %c0_i32_1 = arith.constant 0 : i32
    %c0_i32_2 = arith.constant 0 : i32
    return %arg0, %c0_i32, %c0_i32_0, %c0_i32_1 : i32, i32, i32, i32
  }
}

</mosaic_0001>

<llo_original>
// kernel: tile.33
$region0: #{tile.33}
  #allocation0 [shape = 's32[1]{0}', space=sflag, size = 0x4, scoped, tag = 'scoped memory for tile.33']
  %s0 = inlined_call_operand.vmem [shape: f32[32], index: 0, kind: input, shape index: {}]
  %s1 = inlined_call_operand.vmem [shape: f32[8,32], index: 1, kind: output, shape index: {}]
  // Predicated region
  $region2: #{tile.33} parent=0 // pred_check
    _
  $region3: #{tile.33} parent=0 // pred_check_branch
    %3 = sbr.rel (0) target = $region5
  $region4: #{tile.33} parent=0 // pred_region
    _
  $region5: #{tile.33} parent=0 // pred_fallthru
    _
  %v4 = vld [vmem:[%s0] ss:$0 sm:$0xff]
  %5 = vst [vmem:[%s1] sm:$0xff] %v4

// kernel: tile.54
$region0: #{tile.54}
  %s0 = inlined_call_operand.vmem [shape: f32[8,32], index: 0, kind: input, shape index: {}]
  %s1 = inlined_call_operand.vmem [shape: f32[1,256], index: 1, kind: output, shape index: {}]
  $region1: #{tile.54} parent=0
    #allocation0 [shape = 'u8[8192]{0}', space=vmem, size = 0x2000, scoped, tag = 'scoped mem for output reshape']
    %s2 = smov 3
    %v3 = vld [vmem:[%s0] ss:$4 sm:%s2]
    %vm4 = vcmask 261120
    %5 = vst.msk [vmem:[#allocation0] ss:$8 sm:$0x3] %vm4, %v3
    %s6 = scalar_lea.vmem %s0, 3
    %s7 = smov 3
    %v8 = vld [vmem:[%s6] ss:$4 sm:%s7]
    %9 = vrot.lane.b32.xlu0 %v8, 96
    %v10 = vpop.permute.xlu0 %9
    %vm11 = vcmask 1048320
    %12 = vst.msk [vmem:[#allocation0] ss:$8 sm:$0x3] %vm11, %v10
    %s13 = scalar_lea.vmem %s0, 2
    %s14 = smov 3
    %v15 = vld [vmem:[%s13] ss:$4 sm:%s14]
    %16 = vrot.lane.b32.xlu0 %v15, 64
    %v17 = vpop.permute.xlu0 %16
    %vm18 = vcmask 785920
    %19 = vst.msk [vmem:[#allocation0] ss:$8 sm:$0x3] %vm18, %v17
    %s20 = scalar_lea.vmem %s0, 1
    %s21 = smov 3
    %v22 = vld [vmem:[%s20] ss:$4 sm:%s21]
    %23 = vrot.lane.b32.xlu0 %v22, 32
    %v24 = vpop.permute.xlu0 %23
    %vm25 = vcmask 523520
    %26 = vst.msk [vmem:[#allocation0] ss:$8 sm:$0x3] %vm25, %v24
    %s28 = ssub.s32 2, 1
    %v29 = vld [vmem:[#allocation0] sm:%s28]
    %s31 = ssub.s32 2, 1
    %32 = vst [vmem:[%s1] sm:%s31] %v29
    %s33 = scalar_lea.vmem [#allocation0], 8
    %v34 = vld [vmem:[%s33] sm:%s28]
    %s36 = ssub.s32 2, 1
    %s37 = scalar_lea.vmem %s1, 1
    %38 = vst [vmem:[%s37] sm:%s36] %v34

// kernel: conv_block_forward.1
$region0: #{conv_block_forward.1}
  #allocation0 [shape = 'u32[]', space=smem, size = 0x4, offset = 0x4, fixed_abs, tag = 'smem constant byte address 0x4 - core index']
  #allocation1 [shape = 'u32[72,128]{1,0:T(1,128)}', space=vmem, size = 0x9000, scoped, tag = 'internal scratch']
  #allocation2 [shape = 'f32[10,10,128]{2,1,0:T(8,128)}', space=vmem, size = 0x14000, scoped, tag = 'scratch operand']
  #allocation3 [shape = 'f32[64,1152]{1,0:T(8,128)}', space=vmem, size = 0x48000, scoped, tag = 'scratch operand']
  #allocation4 [shape = 'f32[10,10,256]{2,1,0:T(8,128)}', space=vmem, size = 0x28000, scoped, tag = 'scratch operand']
  #allocation5 [shape = 'f32[64,2304]{1,0:T(8,128)}', space=vmem, size = 0x90000, scoped, tag = 'scratch operand']
  %s0 = inlined_call_operand.vmem [shape: f32[2,8,8,128], index: 0, kind: input, shape index: {}]
  %s1 = inlined_call_operand.vmem [shape: f32[1152,256], index: 1, kind: input, shape index: {}]
  %s2 = inlined_call_operand.vmem [shape: f32[2304,256], index: 2, kind: input, shape index: {}]
  %s3 = inlined_call_operand.vmem [shape: f32[6,256], index: 3, kind: input, shape index: {}]
  %s4 = inlined_call_operand.vmem [shape: f32[256,16], index: 4, kind: input, shape index: {}]
  %s5 = inlined_call_operand.vmem [shape: f32[16,256], index: 5, kind: input, shape index: {}]
  %s6 = inlined_call_operand.vmem [shape: f32[2], index: 6, kind: input, shape index: {}]
  %s7 = inlined_call_operand.vmem [shape: f32[2,8,8,256], index: 7, kind: output, shape index: {}]
  %s8 = sld [smem:[#allocation0]]
  $region65: #{conv_block_forward.1} parent=0
    _
  %s10 = ssub.s32 1, %s8
  %s11 = scalar_select 0, %s10, %s8
  $region1: #{conv_block_forward.1} parent=0
    #allocation6 [shape = 'u8[512]{0}', space=smem, size = 0x200, scoped, tag = 'input window, operand 6, single buffered']
    #allocation7 [shape = 's32[2]{0}', space=sflag, size = 0x8, scoped, tag = 'scoped memory for conv_block_forward.1']
    %12 = vsyncpa [#allocation7], 0
    loop: start=0, step=1, limit=4
    $region2: #{conv_block_forward.1} parent=1 // loop_pre_header
      _
    $region3: #{conv_block_forward.1} parent=1 // loop_header
      %s14 = sphi 0, %s18
      %p15 = scmp.ge.s32.totalorder %s14, 4
      %s24 = sphi 0, %s26
      %s27 = sphi 0, %s24
      %s28 = sphi 0, %s27
      %s44 = sphi 0, %s28
      %s48 = sphi 0, %s48
      %s50 = sphi 0, %s48
      %s51 = sphi 0, %s50
      %s65 = sphi 0, %s51
      %s69 = sphi 0, %s69
      %s71 = sphi 0, %s69
      %s72 = sphi 0, %s71
      %s86 = sphi 0, %s72
      %s90 = sphi 0, %s90
      %s92 = sphi 0, %s90
      %s93 = sphi 0, %s92
      %s107 = sphi 0, %s93
      %s111 = sphi 0, %s111
      %s113 = sphi 0, %s111
      %s114 = sphi 0, %s113
      %s128 = sphi 0, %s114
      %s132 = sphi 0, %s132
      %s134 = sphi 0, %s132
      %s135 = sphi 0, %s134
      %s149 = sphi 0, %s135
      %s153 = sphi 0, %s153
      %s155 = sphi 0, %s153
      %s156 = sphi 0, %s155
      %s170 = sphi 0, %s156
      %s176 = sphi 0, %s178
      %s179 = sphi 0, %s176
      %s180 = sphi 0, %s179
      %s196 = sphi 0, %s180
    $region4: #{conv_block_forward.1} parent=1 // loop_header_branch
      %17 = sbr.rel (%p15) target = $region8
    $region5: #{conv_block_forward.1} parent=1 // loop_body
      %s19 = ssub.s32 %s14, 1
      %s20 = ssub.s32 %s14, 2
      %s21 = sadd.s32 %s14, 1
      %s22 = ssub.s32 %s14, %s21
      %p23 = scmp.eq.s32.totalorder %s22, 0
      %s25 = sadd.s32 %s24, 1
      %s26 = scalar_select %p23, %s24, %s25
      %p29 = pneg %p23
      %p30 = scmp.eq.s32.totalorder %s14, 1
      %p31 = por %p29, %p30
      %p32 = scmp.ne.s32.totalorder %s24, %s27
      %p33 = scmp.eq.s32.totalorder %s14, 0
      %p34 = por %p32, %p33
      %p35 = scmp.ne.s32.totalorder %s24, %s27
      %p36 = scmp.eq.s32.totalorder %s19, 1
      %p37 = por %p35, %p36
      %p38 = scmp.ne.s32.totalorder %s27, %s28
      %p39 = scmp.eq.s32.totalorder %s19, 0
      %p40 = por %p38, %p39
      %p41 = scmp.ne.s32.totalorder %s27, %s28
      %p42 = scmp.eq.s32.totalorder %s20, 1
      %p43 = por %p41, %p42
      %p45 = scmp.ne.s32.totalorder %s28, %s44
      %p46 = scmp.eq.s32.totalorder %s20, 0
      %p47 = por %p45, %p46
      %s49 = sadd.s32 %s48, 1
      %p52 = scmp.eq.s32.totalorder %s14, 1
      %p53 = scmp.ne.s32.totalorder %s48, %s50
      %p54 = scmp.eq.s32.totalorder %s14, 0
      %p55 = por %p53, %p54
      %p56 = scmp.ne.s32.totalorder %s48, %s50
      %p57 = scmp.eq.s32.totalorder %s19, 1
      %p58 = por %p56, %p57
      %p59 = scmp.ne.s32.totalorder %s50, %s51
      %p60 = scmp.eq.s32.totalorder %s19, 0
      %p61 = por %p59, %p60
      %p62 = scmp.ne.s32.totalorder %s50, %s51
      %p63 = scmp.eq.s32.totalorder %s20, 1
      %p64 = por %p62, %p63
      %p66 = scmp.ne.s32.totalorder %s51, %s65
      %p67 = scmp.eq.s32.totalorder %s20, 0
      %p68 = por %p66, %p67
      %s70 = sadd.s32 %s69, 1
      %p73 = scmp.eq.s32.totalorder %s14, 1
      %p74 = scmp.ne.s32.totalorder %s69, %s71
      %p75 = scmp.eq.s32.totalorder %s14, 0
      %p76 = por %p74, %p75
      %p77 = scmp.ne.s32.totalorder %s69, %s71
      %p78 = scmp.eq.s32.totalorder %s19, 1
      %p79 = por %p77, %p78
      %p80 = scmp.ne.s32.totalorder %s71, %s72
      %p81 = scmp.eq.s32.totalorder %s19, 0
      %p82 = por %p80, %p81
      %p83 = scmp.ne.s32.totalorder %s71, %s72
      %p84 = scmp.eq.s32.totalorder %s20, 1
      %p85 = por %p83, %p84
      %p87 = scmp.ne.s32.totalorder %s72, %s86
      %p88 = scmp.eq.s32.totalorder %s20, 0
      %p89 = por %p87, %p88
      %s91 = sadd.s32 %s90, 1
      %p94 = scmp.eq.s32.totalorder %s14, 1
      %p95 = scmp.ne.s32.totalorder %s90, %s92
      %p96 = scmp.eq.s32.totalorder %s14, 0
      %p97 = por %p95, %p96
      %p98 = scmp.ne.s32.totalorder %s90, %s92
      %p99 = scmp.eq.s32.totalorder %s19, 1
      %p100 = por %p98, %p99
      %p101 = scmp.ne.s32.totalorder %s92, %s93
      %p102 = scmp.eq.s32.totalorder %s19, 0
      %p103 = por %p101, %p102
      %p104 = scmp.ne.s32.totalorder %s92, %s93
      %p105 = scmp.eq.s32.totalorder %s20, 1
      %p106 = por %p104, %p105
      %p108 = scmp.ne.s32.totalorder %s93, %s107
      %p109 = scmp.eq.s32.totalorder %s20, 0
      %p110 = por %p108, %p109
      %s112 = sadd.s32 %s111, 1
      %p115 = scmp.eq.s32.totalorder %s14, 1
      %p116 = scmp.ne.s32.totalorder %s111, %s113
      %p117 = scmp.eq.s32.totalorder %s14, 0
      %p118 = por %p116, %p117
      %p119 = scmp.ne.s32.totalorder %s111, %s113
      %p120 = scmp.eq.s32.totalorder %s19, 1
      %p121 = por %p119, %p120
      %p122 = scmp.ne.s32.totalorder %s113, %s114
      %p123 = scmp.eq.s32.totalorder %s19, 0
      %p124 = por %p122, %p123
      %p125 = scmp.ne.s32.totalorder %s113, %s114
      %p126 = scmp.eq.s32.totalorder %s20, 1
      %p127 = por %p125, %p126
      %p129 = scmp.ne.s32.totalorder %s114, %s128
      %p130 = scmp.eq.s32.totalorder %s20, 0
      %p131 = por %p129, %p130
      %s133 = sadd.s32 %s132, 1
      %p136 = scmp.eq.s32.totalorder %s14, 1
      %p137 = scmp.ne.s32.totalorder %s132, %s134
      %p138 = scmp.eq.s32.totalorder %s14, 0
      %p139 = por %p137, %p138
      %p140 = scmp.ne.s32.totalorder %s132, %s134
      %p141 = scmp.eq.s32.totalorder %s19, 1
      %p142 = por %p140, %p141
      %p143 = scmp.ne.s32.totalorder %s134, %s135
      %p144 = scmp.eq.s32.totalorder %s19, 0
      %p145 = por %p143, %p144
      %p146 = scmp.ne.s32.totalorder %s134, %s135
      %p147 = scmp.eq.s32.totalorder %s20, 1
      %p148 = por %p146, %p147
      %p150 = scmp.ne.s32.totalorder %s135, %s149
      %p151 = scmp.eq.s32.totalorder %s20, 0
      %p152 = por %p150, %p151
      %s154 = sadd.s32 %s153, 1
      %p157 = scmp.eq.s32.totalorder %s14, 1
      %p158 = scmp.ne.s32.totalorder %s153, %s155
      %p159 = scmp.eq.s32.totalorder %s14, 0
      %p160 = por %p158, %p159
      %p161 = scmp.ne.s32.totalorder %s153, %s155
      %p162 = scmp.eq.s32.totalorder %s19, 1
      %p163 = por %p161, %p162
      %p164 = scmp.ne.s32.totalorder %s155, %s156
      %p165 = scmp.eq.s32.totalorder %s19, 0
      %p166 = por %p164, %p165
      %p167 = scmp.ne.s32.totalorder %s155, %s156
      %p168 = scmp.eq.s32.totalorder %s20, 1
      %p169 = por %p167, %p168
      %p171 = scmp.ne.s32.totalorder %s156, %s170
      %p172 = scmp.eq.s32.totalorder %s20, 0
      %p173 = por %p171, %p172
      %s174 = ssub.s32 %s14, %s21
      %p175 = scmp.eq.s32.totalorder %s174, 0
      %s177 = sadd.s32 %s176, 1
      %s178 = scalar_select %p175, %s176, %s177
      %p181 = pneg %p175
      %p182 = scmp.eq.s32.totalorder %s14, 1
      %p183 = por %p181, %p182
      %p184 = scmp.ne.s32.totalorder %s176, %s179
      %p185 = scmp.eq.s32.totalorder %s14, 0
      %p186 = por %p184, %p185
      %p187 = scmp.ne.s32.totalorder %s176, %s179
      %p188 = scmp.eq.s32.totalorder %s19, 1
      %p189 = por %p187, %p188
      %p190 = scmp.ne.s32.totalorder %s179, %s180
      %p191 = scmp.eq.s32.totalorder %s19, 0
      %p192 = por %p190, %p191
      %p193 = scmp.ne.s32.totalorder %s179, %s180
      %p194 = scmp.eq.s32.totalorder %s20, 1
      %p195 = por %p193, %p194
      %p197 = scmp.ne.s32.totalorder %s180, %s196
      %p198 = scmp.eq.s32.totalorder %s20, 0
      %p199 = por %p197, %p198
      %p200 = scmp.le.s32.totalorder 1, %s14
      %p201 = scmp.lt.s32.totalorder %s14, 3
      %p202 = pnand %p200, %p201
      %p203 = pneg %p202
      // Predicated region
      $region9: #{conv_block_forward.1} parent=5 // pred_check
        _
      $region10: #{conv_block_forward.1} parent=5 // pred_check_branch
        %205 = sbr.rel (%p202) target = $region12
      $region11: #{conv_block_forward.1} parent=5 // pred_region
        %s206 = ssub.s32 %s14, 1
        // Predicated region
        $region13: #{conv_block_forward.1} parent=11 // pred_check
          %p207 = pneg %p61
        $region14: #{conv_block_forward.1} parent=11 // pred_check_branch
          %209 = sbr.rel (%p207) target = $region16
        $region15: #{conv_block_forward.1} parent=11 // pred_region
          _
        $region16: #{conv_block_forward.1} parent=11 // pred_fallthru
          _
        // Predicated region
        $region17: #{conv_block_forward.1} parent=11 // pred_check
          %p210 = pneg %p82
        $region18: #{conv_block_forward.1} parent=11 // pred_check_branch
          %212 = sbr.rel (%p210) target = $region20
        $region19: #{conv_block_forward.1} parent=11 // pred_region
          _
        $region20: #{conv_block_forward.1} parent=11 // pred_fallthru
          _
        // Predicated region
        $region21: #{conv_block_forward.1} parent=11 // pred_check
          %p213 = pneg %p103
        $region22: #{conv_block_forward.1} parent=11 // pred_check_branch
          %215 = sbr.rel (%p213) target = $region24
        $region23: #{conv_block_forward.1} parent=11 // pred_region
          _
        $region24: #{conv_block_forward.1} parent=11 // pred_fallthru
          _
        // Predicated region
        $region25: #{conv_block_forward.1} parent=11 // pred_check
          %p216 = pneg %p124
        $region26: #{conv_block_forward.1} parent=11 // pred_check_branch
          %218 = sbr.rel (%p216) target = $region28
        $region27: #{conv_block_forward.1} parent=11 // pred_region
          _
        $region28: #{conv_block_forward.1} parent=11 // pred_fallthru
          _
        // Predicated region
        $region29: #{conv_block_forward.1} parent=11 // pred_check
          %p219 = pneg %p145
        $region30: #{conv_block_forward.1} parent=11 // pred_check_branch
          %221 = sbr.rel (%p219) target = $region32
        $region31: #{conv_block_forward.1} parent=11 // pred_region
          _
        $region32: #{conv_block_forward.1} parent=11 // pred_fallthru
          _
        // Predicated region
        $region33: #{conv_block_forward.1} parent=11 // pred_check
          %p222 = pneg %p166
        $region34: #{conv_block_forward.1} parent=11 // pred_check_branch
          %224 = sbr.rel (%p222) target = $region36
        $region35: #{conv_block_forward.1} parent=11 // pred_region
          %226 = vsyncadd [#allocation7], 0
          %s228 = sshll.u32 %s6, 4
          %s229 = int_to_ptr.vmem [resolvable:$true] %s228
          %231 = dma.vmem_to_smem %s229, 16, [#allocation6], [#allocation7]
        $region36: #{conv_block_forward.1} parent=11 // pred_fallthru
          _
      $region12: #{conv_block_forward.1} parent=5 // pred_fallthru
        _
      %p232 = scmp.lt.s32.totalorder %s14, 2
      // Predicated region
      $region37: #{conv_block_forward.1} parent=5 // pred_check
        %p233 = pneg %p232
      $region38: #{conv_block_forward.1} parent=5 // pred_check_branch
        %235 = sbr.rel (%p233) target = $region40
      $region39: #{conv_block_forward.1} parent=5 // pred_region
        // Predicated region
        $region41: #{conv_block_forward.1} parent=39 // pred_check
          %p236 = pneg %p34
        $region42: #{conv_block_forward.1} parent=39 // pred_check_branch
          %238 = sbr.rel (%p236) target = $region44
        $region43: #{conv_block_forward.1} parent=39 // pred_region
          %p239 = scmp.lt.s32.totalorder %s14, 1
          %s240 = scalar_select %p239, %s14, 1
          %s241 = smul.addr %s240, 8
          %s242 = smul.addr %s241, 8
          %s243 = scalar_lea.vmem %s0, %s242
        $region44: #{conv_block_forward.1} parent=39 // pred_fallthru
          _
      $region40: #{conv_block_forward.1} parent=5 // pred_fallthru
        _
      %p244 = scmp.le.s32.totalorder 1, %s14
      %p245 = scmp.lt.s32.totalorder %s14, 3
      %p246 = pnand %p244, %p245
      %p247 = pneg %p246
      // Predicated region
      $region45: #{conv_block_forward.1} parent=5 // pred_check
        _
      $region46: #{conv_block_forward.1} parent=5 // pred_check_branch
        %249 = sbr.rel (%p246) target = $region48
      $region47: #{conv_block_forward.1} parent=5 // pred_region
        %s250 = ssub.s32 %s14, 1
        // Predicated region
        $region49: #{conv_block_forward.1} parent=47 // pred_check
          %p251 = pneg %p166
        $region50: #{conv_block_forward.1} parent=47 // pred_check_branch
          %253 = sbr.rel (%p251) target = $region52
        $region51: #{conv_block_forward.1} parent=47 // pred_region
          %255 = dma.done [#allocation7], 16
        $region52: #{conv_block_forward.1} parent=47 // pred_fallthru
          _
        %256 = sfence
        %p257 = scmp.lt.s32.totalorder %s19, 1
        %s258 = scalar_select %p257, %s19, 1
        %s259 = smul.addr %s258, 8
        %s260 = smul.addr %s259, 8
        %s261 = scalar_lea.vmem %s0, %s260
        %p262 = pneg %p40
        %p263 = pneg %p37
        %p264 = pneg %p61
        %p265 = pneg %p58
        %p266 = pneg %p82
        %p267 = pneg %p79
        %p268 = pneg %p103
        %p269 = pneg %p100
        %p270 = pneg %p124
        %p271 = pneg %p121
        %p272 = pneg %p145
        %p273 = pneg %p142
        %p274 = pneg %p166
        %p275 = pneg %p163
        %p276 = pneg %p192
        %p277 = pneg %p189
        %p278 = scmp.lt.s32.totalorder %s19, 1
        %s279 = scalar_select %p278, %s19, 1
        %s280 = smul.addr %s279, 16
        %s281 = smul.addr %s280, 8
        %s282 = scalar_lea.vmem %s7, %s281
        %p283 = scmp.lt.s32.totalorder %s19, 1
        %s284 = scalar_select %p283, %s19, 1
        %s285 = smul.addr %s284, 8
        %s286 = smul.addr %s285, 8
        %s287 = scalar_lea.vmem %s0, %s286
        %p288 = scmp.lt.s32.totalorder %s19, 1
        %s289 = scalar_select %p288, %s19, 1
        %s290 = smul.addr %s289, 16
        %s291 = smul.addr %s290, 8
        %s292 = scalar_lea.vmem %s7, %s291
        %293 = vst [vmem:[#allocation2] sm:$0xff] 0.0
        %294 = vst [vmem:[#allocation2 + $0x8] sm:$0x3] 0.0
        %s295 = scalar_lea.vmem [#allocation2], 144
        %296 = vst [vmem:[%s295] sm:$0xff] 0.0
        %297 = vst [vmem:[%s295 + $0x8] sm:$0x3] 0.0
        %s298 = scalar_lea.vmem [#allocation2], 16
        %299 = vst [vmem:[%s298] sm:$0x1] 0.0
        %300 = vst [vmem:[%s298 + $0x10] sm:$0x1] 0.0
        %301 = vst [vmem:[%s298 + $0x20] sm:$0x1] 0.0
        %302 = vst [vmem:[%s298 + $0x30] sm:$0x1] 0.0
        %303 = vst [vmem:[%s298 + $0x40] sm:$0x1] 0.0
        %304 = vst [vmem:[%s298 + $0x50] sm:$0x1] 0.0
        %305 = vst [vmem:[%s298 + $0x60] sm:$0x1] 0.0
        %306 = vst [vmem:[%s298 + $0x70] sm:$0x1] 0.0
        %307 = vst [vmem:[%s298 + $0x9] sm:$0x1] 0.0
        %308 = vst [vmem:[%s298 + $0x19] sm:$0x1] 0.0
        %309 = vst [vmem:[%s298 + $0x29] sm:$0x1] 0.0
        %310 = vst [vmem:[%s298 + $0x39] sm:$0x1] 0.0
        %311 = vst [vmem:[%s298 + $0x49] sm:$0x1] 0.0
        %312 = vst [vmem:[%s298 + $0x59] sm:$0x1] 0.0
        %313 = vst [vmem:[%s298 + $0x69] sm:$0x1] 0.0
        %314 = vst [vmem:[%s298 + $0x79] sm:$0x1] 0.0
        %v315 = vld [vmem:[%s287] sm:$0xff]
        %v316 = vld [vmem:[%s287 + $0x8] sm:$0xff]
        %v317 = vld [vmem:[%s287 + $0x10] sm:$0xff]
        %v318 = vld [vmem:[%s287 + $0x18] sm:$0xff]
        %v319 = vld [vmem:[%s287 + $0x20] sm:$0xff]
        %v320 = vld [vmem:[%s287 + $0x28] sm:$0xff]
        %v321 = vld [vmem:[%s287 + $0x30] sm:$0xff]
        %v322 = vld [vmem:[%s287 + $0x38] sm:$0xff]
        %323 = vst [vmem:[%s298 + $0x1] sm:$0xff] %v315
        %324 = vst [vmem:[%s298 + $0x11] sm:$0xff] %v316
        %325 = vst [vmem:[%s298 + $0x21] sm:$0xff] %v317
        %326 = vst [vmem:[%s298 + $0x31] sm:$0xff] %v318
        %327 = vst [vmem:[%s298 + $0x41] sm:$0xff] %v319
        %328 = vst [vmem:[%s298 + $0x51] sm:$0xff] %v320
        %329 = vst [vmem:[%s298 + $0x61] sm:$0xff] %v321
        %330 = vst [vmem:[%s298 + $0x71] sm:$0xff] %v322
        %v331 = vld [vmem:[#allocation2] sm:$0xff]
        %v332 = vld [vmem:[#allocation2 + $0x10] sm:$0xff]
        %v333 = vld [vmem:[#allocation2 + $0x20] sm:$0xff]
        %v334 = vld [vmem:[#allocation2 + $0x30] sm:$0xff]
        %v335 = vld [vmem:[#allocation2 + $0x40] sm:$0xff]
        %v336 = vld [vmem:[#allocation2 + $0x50] sm:$0xff]
        %v337 = vld [vmem:[#allocation2 + $0x60] sm:$0xff]
        %v338 = vld [vmem:[#allocation2 + $0x70] sm:$0xff]
        %339 = vst [vmem:[#allocation3] sm:$0xff] %v331
        %340 = vst [vmem:[#allocation3 + $0x48] sm:$0xff] %v332
        %341 = vst [vmem:[#allocation3 + $0x90] sm:$0xff] %v333
        %342 = vst [vmem:[#allocation3 + $0xd8] sm:$0xff] %v334
        %343 = vst [vmem:[#allocation3 + $0x120] sm:$0xff] %v335
        %344 = vst [vmem:[#allocation3 + $0x168] sm:$0xff] %v336
        %345 = vst [vmem:[#allocation3 + $0x1b0] sm:$0xff] %v337
        %346 = vst [vmem:[#allocation3 + $0x1f8] sm:$0xff] %v338
        %v347 = vld [vmem:[#allocation2 + $0x1] sm:$0xff]
        %v348 = vld [vmem:[#allocation2 + $0x11] sm:$0xff]
        %v349 = vld [vmem:[#allocation2 + $0x21] sm:$0xff]
        %v350 = vld [vmem:[#allocation2 + $0x31] sm:$0xff]
        %v351 = vld [vmem:[#allocation2 + $0x41] sm:$0xff]
        %v352 = vld [vmem:[#allocation2 + $0x51] sm:$0xff]
        %v353 = vld [vmem:[#allocation2 + $0x61] sm:$0xff]
        %v354 = vld [vmem:[#allocation2 + $0x71] sm:$0xff]
        %355 = vst [vmem:[#allocation3 + $0x8] sm:$0xff] %v347
        %356 = vst [vmem:[#allocation3 + $0x50] sm:$0xff] %v348
        %357 = vst [vmem:[#allocation3 + $0x98] sm:$0xff] %v349
        %358 = vst [vmem:[#allocation3 + $0xe0] sm:$0xff] %v350
        %359 = vst [vmem:[#allocation3 + $0x128] sm:$0xff] %v351
        %360 = vst [vmem:[#allocation3 + $0x170] sm:$0xff] %v352
        %361 = vst [vmem:[#allocation3 + $0x1b8] sm:$0xff] %v353
        %362 = vst [vmem:[#allocation3 + $0x200] sm:$0xff] %v354
        %v363 = vld [vmem:[#allocation2 + $0x2] sm:$0xff]
        %v364 = vld [vmem:[#allocation2 + $0x12] sm:$0xff]
        %v365 = vld [vmem:[#allocation2 + $0x22] sm:$0xff]
        %v366 = vld [vmem:[#allocation2 + $0x32] sm:$0xff]
        %v367 = vld [vmem:[#allocation2 + $0x42] sm:$0xff]
        %v368 = vld [vmem:[#allocation2 + $0x52] sm:$0xff]
        %v369 = vld [vmem:[#allocation2 + $0x62] sm:$0xff]
        %v370 = vld [vmem:[#allocation2 + $0x72] sm:$0xff]
        %371 = vst [vmem:[#allocation3 + $0x10] sm:$0xff] %v363
        %372 = vst [vmem:[#allocation3 + $0x58] sm:$0xff] %v364
        %373 = vst [vmem:[#allocation3 + $0xa0] sm:$0xff] %v365
        %374 = vst [vmem:[#allocation3 + $0xe8] sm:$0xff] %v366
        %375 = vst [vmem:[#allocation3 + $0x130] sm:$0xff] %v367
        %376 = vst [vmem:[#allocation3 + $0x178] sm:$0xff] %v368
        %377 = vst [vmem:[#allocation3 + $0x1c0] sm:$0xff] %v369
        %378 = vst [vmem:[#allocation3 + $0x208] sm:$0xff] %v370
        %v379 = vld [vmem:[%s298] sm:$0xff]
        %v380 = vld [vmem:[%s298 + $0x10] sm:$0xff]
        %v381 = vld [vmem:[%s298 + $0x20] sm:$0xff]
        %v382 = vld [vmem:[%s298 + $0x30] sm:$0xff]
        %v383 = vld [vmem:[%s298 + $0x40] sm:$0xff]
        %v384 = vld [vmem:[%s298 + $0x50] sm:$0xff]
        %v385 = vld [vmem:[%s298 + $0x60] sm:$0xff]
        %v386 = vld [vmem:[%s298 + $0x70] sm:$0xff]
        %387 = vst [vmem:[#allocation3 + $0x18] sm:$0xff] %v379
        %388 = vst [vmem:[#allocation3 + $0x60] sm:$0xff] %v380
        %389 = vst [vmem:[#allocation3 + $0xa8] sm:$0xff] %v381
        %390 = vst [vmem:[#allocation3 + $0xf0] sm:$0xff] %v382
        %391 = vst [vmem:[#allocation3 + $0x138] sm:$0xff] %v383
        %392 = vst [vmem:[#allocation3 + $0x180] sm:$0xff] %v384
        %393 = vst [vmem:[#allocation3 + $0x1c8] sm:$0xff] %v385
        %394 = vst [vmem:[#allocation3 + $0x210] sm:$0xff] %v386
        %v395 = vld [vmem:[%s298 + $0x1] sm:$0xff]
        %v396 = vld [vmem:[%s298 + $0x11] sm:$0xff]
        %v397 = vld [vmem:[%s298 + $0x21] sm:$0xff]
        %v398 = vld [vmem:[%s298 + $0x31] sm:$0xff]
        %v399 = vld [vmem:[%s298 + $0x41] sm:$0xff]
        %v400 = vld [vmem:[%s298 + $0x51] sm:$0xff]
        %v401 = vld [vmem:[%s298 + $0x61] sm:$0xff]
        %v402 = vld [vmem:[%s298 + $0x71] sm:$0xff]
        %403 = vst [vmem:[#allocation3 + $0x20] sm:$0xff] %v395
        %404 = vst [vmem:[#allocation3 + $0x68] sm:$0xff] %v396
        %405 = vst [vmem:[#allocation3 + $0xb0] sm:$0xff] %v397
        %406 = vst [vmem:[#allocation3 + $0xf8] sm:$0xff] %v398
        %407 = vst [vmem:[#allocation3 + $0x140] sm:$0xff] %v399
        %408 = vst [vmem:[#allocation3 + $0x188] sm:$0xff] %v400
        %409 = vst [vmem:[#allocation3 + $0x1d0] sm:$0xff] %v401
        %410 = vst [vmem:[#allocation3 + $0x218] sm:$0xff] %v402
        %v411 = vld [vmem:[%s298 + $0x2] sm:$0xff]
        %v412 = vld [vmem:[%s298 + $0x12] sm:$0xff]
        %v413 = vld [vmem:[%s298 + $0x22] sm:$0xff]
        %v414 = vld [vmem:[%s298 + $0x32] sm:$0xff]
        %v415 = vld [vmem:[%s298 + $0x42] sm:$0xff]
        %v416 = vld [vmem:[%s298 + $0x52] sm:$0xff]
        %v417 = vld [vmem:[%s298 + $0x62] sm:$0xff]
        %v418 = vld [vmem:[%s298 + $0x72] sm:$0xff]
        %419 = vst [vmem:[#allocation3 + $0x28] sm:$0xff] %v411
        %420 = vst [vmem:[#allocation3 + $0x70] sm:$0xff] %v412
        %421 = vst [vmem:[#allocation3 + $0xb8] sm:$0xff] %v413
        %422 = vst [vmem:[#allocation3 + $0x100] sm:$0xff] %v414
        %423 = vst [vmem:[#allocation3 + $0x148] sm:$0xff] %v415
        %424 = vst [vmem:[#allocation3 + $0x190] sm:$0xff] %v416
        %425 = vst [vmem:[#allocation3 + $0x1d8] sm:$0xff] %v417
        %426 = vst [vmem:[#allocation3 + $0x220] sm:$0xff] %v418
        %s427 = scalar_lea.vmem [#allocation2], 32
        %v428 = vld [vmem:[%s427] sm:$0xff]
        %v429 = vld [vmem:[%s427 + $0x10] sm:$0xff]
        %v430 = vld [vmem:[%s427 + $0x20] sm:$0xff]
        %v431 = vld [vmem:[%s427 + $0x30] sm:$0xff]
        %v432 = vld [vmem:[%s427 + $0x40] sm:$0xff]
        %v433 = vld [vmem:[%s427 + $0x50] sm:$0xff]
        %v434 = vld [vmem:[%s427 + $0x60] sm:$0xff]
        %v435 = vld [vmem:[%s427 + $0x70] sm:$0xff]
        %436 = vst [vmem:[#allocation3 + $0x30] sm:$0xff] %v428
        %437 = vst [vmem:[#allocation3 + $0x78] sm:$0xff] %v429
        %438 = vst [vmem:[#allocation3 + $0xc0] sm:$0xff] %v430
        %439 = vst [vmem:[#allocation3 + $0x108] sm:$0xff] %v431
        %440 = vst [vmem:[#allocation3 + $0x150] sm:$0xff] %v432
        %441 = vst [vmem:[#allocation3 + $0x198] sm:$0xff] %v433
        %442 = vst [vmem:[#allocation3 + $0x1e0] sm:$0xff] %v434
        %443 = vst [vmem:[#allocation3 + $0x228] sm:$0xff] %v435
        %v444 = vld [vmem:[%s427 + $0x1] sm:$0xff]
        %v445 = vld [vmem:[%s427 + $0x11] sm:$0xff]
        %v446 = vld [vmem:[%s427 + $0x21] sm:$0xff]
        %v447 = vld [vmem:[%s427 + $0x31] sm:$0xff]
        %v448 = vld [vmem:[%s427 + $0x41] sm:$0xff]
        %v449 = vld [vmem:[%s427 + $0x51] sm:$0xff]
        %v450 = vld [vmem:[%s427 + $0x61] sm:$0xff]
        %v451 = vld [vmem:[%s427 + $0x71] sm:$0xff]
        %452 = vst [vmem:[#allocation3 + $0x38] sm:$0xff] %v444
        %453 = vst [vmem:[#allocation3 + $0x80] sm:$0xff] %v445
        %454 = vst [vmem:[#allocation3 + $0xc8] sm:$0xff] %v446
        %455 = vst [vmem:[#allocation3 + $0x110] sm:$0xff] %v447
        %456 = vst [vmem:[#allocation3 + $0x158] sm:$0xff] %v448
        %457 = vst [vmem:[#allocation3 + $0x1a0] sm:$0xff] %v449
        %458 = vst [vmem:[#allocation3 + $0x1e8] sm:$0xff] %v450
        %459 = vst [vmem:[#allocation3 + $0x230] sm:$0xff] %v451
        %v460 = vld [vmem:[%s427 + $0x2] sm:$0xff]
        %v461 = vld [vmem:[%s427 + $0x12] sm:$0xff]
        %v462 = vld [vmem:[%s427 + $0x22] sm:$0xff]
        %v463 = vld [vmem:[%s427 + $0x32] sm:$0xff]
        %v464 = vld [vmem:[%s427 + $0x42] sm:$0xff]
        %v465 = vld [vmem:[%s427 + $0x52] sm:$0xff]
        %v466 = vld [vmem:[%s427 + $0x62] sm:$0xff]
        %v467 = vld [vmem:[%s427 + $0x72] sm:$0xff]
        %468 = vst [vmem:[#allocation3 + $0x40] sm:$0xff] %v460
        %469 = vst [vmem:[#allocation3 + $0x88] sm:$0xff] %v461
        %470 = vst [vmem:[#allocation3 + $0xd0] sm:$0xff] %v462
        %471 = vst [vmem:[#allocation3 + $0x118] sm:$0xff] %v463
        %472 = vst [vmem:[#allocation3 + $0x160] sm:$0xff] %v464
        %473 = vst [vmem:[#allocation3 + $0x1a8] sm:$0xff] %v465
        %474 = vst [vmem:[#allocation3 + $0x1f0] sm:$0xff] %v466
        %475 = vst [vmem:[#allocation3 + $0x238] sm:$0xff] %v467
        %v476 = vld [vmem:[#allocation3] sm:$0xff]
        %v477 = vld [vmem:[#allocation3 + $0x8] sm:$0xff]
        %v478 = vld [vmem:[#allocation3 + $0x10] sm:$0xff]
        %v479 = vld [vmem:[#allocation3 + $0x18] sm:$0xff]
        %v480 = vld [vmem:[#allocation3 + $0x20] sm:$0xff]
        %v481 = vld [vmem:[#allocation3 + $0x28] sm:$0xff]
        %v482 = vld [vmem:[#allocation3 + $0x30] sm:$0xff]
        %v483 = vld [vmem:[#allocation3 + $0x38] sm:$0xff]
        %v484 = vld [vmem:[#allocation3 + $0x40] sm:$0xff]
        %v485 = vld [vmem:[#allocation3 + $0x48] sm:$0xff]
        %v486 = vld [vmem:[#allocation3 + $0x50] sm:$0xff]
        %v487 = vld [vmem:[#allocation3 + $0x58] sm:$0xff]
        %v488 = vld [vmem:[#allocation3 + $0x60] sm:$0xff]
        %v489 = vld [vmem:[#allocation3 + $0x68] sm:$0xff]
        %v490 = vld [vmem:[#allocation3 + $0x70] sm:$0xff]
        %v491 = vld [vmem:[#allocation3 + $0x78] sm:$0xff]
        %v492 = vld [vmem:[#allocation3 + $0x80] sm:$0xff]
        %v493 = vld [vmem:[#allocation3 + $0x88] sm:$0xff]
        %v494 = vld [vmem:[#allocation3 + $0x90] sm:$0xff]
        %v495 = vld [vmem:[#allocation3 + $0x98] sm:$0xff]
        %v496 = vld [vmem:[#allocation3 + $0xa0] sm:$0xff]
        %v497 = vld [vmem:[#allocation3 + $0xa8] sm:$0xff]
        %v498 = vld [vmem:[#allocation3 + $0xb0] sm:$0xff]
        %v499 = vld [vmem:[#allocation3 + $0xb8] sm:$0xff]
        %v500 = vld [vmem:[#allocation3 + $0xc0] sm:$0xff]
        %v501 = vld [vmem:[#allocation3 + $0xc8] sm:$0xff]
        %v502 = vld [vmem:[#allocation3 + $0xd0] sm:$0xff]
        %v503 = vld [vmem:[#allocation3 + $0xd8] sm:$0xff]
        %v504 = vld [vmem:[#allocation3 + $0xe0] sm:$0xff]
        %v505 = vld [vmem:[#allocation3 + $0xe8] sm:$0xff]
        %v506 = vld [vmem:[#allocation3 + $0xf0] sm:$0xff]
        %v507 = vld [vmem:[#allocation3 + $0xf8] sm:$0xff]
        %v508 = vld [vmem:[#allocation3 + $0x100] sm:$0xff]
        %v509 = vld [vmem:[#allocation3 + $0x108] sm:$0xff]
        %v510 = vld [vmem:[#allocation3 + $0x110] sm:$0xff]
        %v511 = vld [vmem:[#allocation3 + $0x118] sm:$0xff]
        %v512 = vld [vmem:[#allocation3 + $0x120] sm:$0xff]
        %v513 = vld [vmem:[#allocation3 + $0x128] sm:$0xff]
        %v514 = vld [vmem:[#allocation3 + $0x130] sm:$0xff]
        %v515 = vld [vmem:[#allocation3 + $0x138] sm:$0xff]
        %v516 = vld [vmem:[#allocation3 + $0x140] sm:$0xff]
        %v517 = vld [vmem:[#allocation3 + $0x148] sm:$0xff]
        %v518 = vld [vmem:[#allocation3 + $0x150] sm:$0xff]
        %v519 = vld [vmem:[#allocation3 + $0x158] sm:$0xff]
        %v520 = vld [vmem:[#allocation3 + $0x160] sm:$0xff]
        %v521 = vld [vmem:[#allocation3 + $0x168] sm:$0xff]
        %v522 = vld [vmem:[#allocation3 + $0x170] sm:$0xff]
        %v523 = vld [vmem:[#allocation3 + $0x178] sm:$0xff]
        %v524 = vld [vmem:[#allocation3 + $0x180] sm:$0xff]
        %v525 = vld [vmem:[#allocation3 + $0x188] sm:$0xff]
        %v526 = vld [vmem:[#allocation3 + $0x190] sm:$0xff]
        %v527 = vld [vmem:[#allocation3 + $0x198] sm:$0xff]
        %v528 = vld [vmem:[#allocation3 + $0x1a0] sm:$0xff]
        %v529 = vld [vmem:[#allocation3 + $0x1a8] sm:$0xff]
        %v530 = vld [vmem:[#allocation3 + $0x1b0] sm:$0xff]
        %v531 = vld [vmem:[#allocation3 + $0x1b8] sm:$0xff]
        %v532 = vld [vmem:[#allocation3 + $0x1c0] sm:$0xff]
        %v533 = vld [vmem:[#allocation3 + $0x1c8] sm:$0xff]
        %v534 = vld [vmem:[#allocation3 + $0x1d0] sm:$0xff]
        %v535 = vld [vmem:[#allocation3 + $0x1d8] sm:$0xff]
        %v536 = vld [vmem:[#allocation3 + $0x1e0] sm:$0xff]
        %v537 = vld [vmem:[#allocation3 + $0x1e8] sm:$0xff]
        %v538 = vld [vmem:[#allocation3 + $0x1f0] sm:$0xff]
        %v539 = vld [vmem:[#allocation3 + $0x1f8] sm:$0xff]
        %v540 = vld [vmem:[#allocation3 + $0x200] sm:$0xff]
        %v541 = vld [vmem:[#allocation3 + $0x208] sm:$0xff]
        %v542 = vld [vmem:[#allocation3 + $0x210] sm:$0xff]
        %v543 = vld [vmem:[#allocation3 + $0x218] sm:$0xff]
        %v544 = vld [vmem:[#allocation3 + $0x220] sm:$0xff]
        %v545 = vld [vmem:[#allocation3 + $0x228] sm:$0xff]
        %v546 = vld [vmem:[#allocation3 + $0x230] sm:$0xff]
        %v547 = vld [vmem:[#allocation3 + $0x238] sm:$0xff]
        %v548 = vld [vmem:[%s1] sm:$0xff]
        %v549 = vld [vmem:[%s1 + $0x8] sm:$0xff]
        %v550 = vld [vmem:[%s1 + $0x10] sm:$0xff]
        %v551 = vld [vmem:[%s1 + $0x18] sm:$0xff]
        %v552 = vld [vmem:[%s1 + $0x20] sm:$0xff]
        %v553 = vld [vmem:[%s1 + $0x28] sm:$0xff]
        %v554 = vld [vmem:[%s1 + $0x30] sm:$0xff]
        %v555 = vld [vmem:[%s1 + $0x38] sm:$0xff]
        %v556 = vld [vmem:[%s1 + $0x40] sm:$0xff]
        %v557 = vld [vmem:[%s1 + $0x48] sm:$0xff]
        %v558 = vld [vmem:[%s1 + $0x50] sm:$0xff]
        %v559 = vld [vmem:[%s1 + $0x58] sm:$0xff]
        %v560 = vld [vmem:[%s1 + $0x60] sm:$0xff]
        %v561 = vld [vmem:[%s1 + $0x68] sm:$0xff]
        %v562 = vld [vmem:[%s1 + $0x70] sm:$0xff]
        %v563 = vld [vmem:[%s1 + $0x78] sm:$0xff]
        %v564 = vld [vmem:[%s1 + $0x80] sm:$0xff]
        %v565 = vld [vmem:[%s1 + $0x88] sm:$0xff]
        %v566 = vld [vmem:[%s1 + $0x90] sm:$0xff]
        %v567 = vld [vmem:[%s1 + $0x98] sm:$0xff]
        %v568 = vld [vmem:[%s1 + $0xa0] sm:$0xff]
        %v569 = vld [vmem:[%s1 + $0xa8] sm:$0xff]
        %v570 = vld [vmem:[%s1 + $0xb0] sm:$0xff]
        %v571 = vld [vmem:[%s1 + $0xb8] sm:$0xff]
        %v572 = vld [vmem:[%s1 + $0xc0] sm:$0xff]
        %v573 = vld [vmem:[%s1 + $0xc8] sm:$0xff]
        %v574 = vld [vmem:[%s1 + $0xd0] sm:$0xff]
        %v575 = vld [vmem:[%s1 + $0xd8] sm:$0xff]
        %v576 = vld [vmem:[%s1 + $0xe0] sm:$0xff]
        %v577 = vld [vmem:[%s1 + $0xe8] sm:$0xff]
        %v578 = vld [vmem:[%s1 + $0xf0] sm:$0xff]
        %v579 = vld [vmem:[%s1 + $0xf8] sm:$0xff]
        %v580 = vld [vmem:[%s1 + $0x100] sm:$0xff]
        %v581 = vld [vmem:[%s1 + $0x108] sm:$0xff]
        %v582 = vld [vmem:[%s1 + $0x110] sm:$0xff]
        %v583 = vld [vmem:[%s1 + $0x118] sm:$0xff]
        %v584 = vld [vmem:[%s1 + $0x120] sm:$0xff]
        %v585 = vld [vmem:[%s1 + $0x128] sm:$0xff]
        %v586 = vld [vmem:[%s1 + $0x130] sm:$0xff]
        %v587 = vld [vmem:[%s1 + $0x138] sm:$0xff]
        %v588 = vld [vmem:[%s1 + $0x140] sm:$0xff]
        %v589 = vld [vmem:[%s1 + $0x148] sm:$0xff]
        %v590 = vld [vmem:[%s1 + $0x150] sm:$0xff]
        %v591 = vld [vmem:[%s1 + $0x158] sm:$0xff]
        %v592 = vld [vmem:[%s1 + $0x160] sm:$0xff]
        %v593 = vld [vmem:[%s1 + $0x168] sm:$0xff]
        %v594 = vld [vmem:[%s1 + $0x170] sm:$0xff]
        %v595 = vld [vmem:[%s1 + $0x178] sm:$0xff]
        %v596 = vld [vmem:[%s1 + $0x180] sm:$0xff]
        %v597 = vld [vmem:[%s1 + $0x188] sm:$0xff]
        %v598 = vld [vmem:[%s1 + $0x190] sm:$0xff]
        %v599 = vld [vmem:[%s1 + $0x198] sm:$0xff]
        %v600 = vld [vmem:[%s1 + $0x1a0] sm:$0xff]
        %v601 = vld [vmem:[%s1 + $0x1a8] sm:$0xff]
        %v602 = vld [vmem:[%s1 + $0x1b0] sm:$0xff]
        %v603 = vld [vmem:[%s1 + $0x1b8] sm:$0xff]
        %v604 = vld [vmem:[%s1 + $0x1c0] sm:$0xff]
        %v605 = vld [vmem:[%s1 + $0x1c8] sm:$0xff]
        %v606 = vld [vmem:[%s1 + $0x1d0] sm:$0xff]
        %v607 = vld [vmem:[%s1 + $0x1d8] sm:$0xff]
        %v608 = vld [vmem:[%s1 + $0x1e0] sm:$0xff]
        %v609 = vld [vmem:[%s1 + $0x1e8] sm:$0xff]
        %v610 = vld [vmem:[%s1 + $0x1f0] sm:$0xff]
        %v611 = vld [vmem:[%s1 + $0x1f8] sm:$0xff]
        %v612 = vld [vmem:[%s1 + $0x200] sm:$0xff]
        %v613 = vld [vmem:[%s1 + $0x208] sm:$0xff]
        %v614 = vld [vmem:[%s1 + $0x210] sm:$0xff]
        %v615 = vld [vmem:[%s1 + $0x218] sm:$0xff]
        %v616 = vld [vmem:[%s1 + $0x220] sm:$0xff]
        %v617 = vld [vmem:[%s1 + $0x228] sm:$0xff]
        %v618 = vld [vmem:[%s1 + $0x230] sm:$0xff]
        %v619 = vld [vmem:[%s1 + $0x238] sm:$0xff]
        %v620 = vld [vmem:[%s1 + $0x240] sm:$0xff]
        %v621 = vld [vmem:[%s1 + $0x248] sm:$0xff]
        %v622 = vld [vmem:[%s1 + $0x250] sm:$0xff]
        %v623 = vld [vmem:[%s1 + $0x258] sm:$0xff]
        %v624 = vld [vmem:[%s1 + $0x260] sm:$0xff]
        %v625 = vld [vmem:[%s1 + $0x268] sm:$0xff]
        %v626 = vld [vmem:[%s1 + $0x270] sm:$0xff]
        %v627 = vld [vmem:[%s1 + $0x278] sm:$0xff]
        %v628 = vld [vmem:[%s1 + $0x280] sm:$0xff]
        %v629 = vld [vmem:[%s1 + $0x288] sm:$0xff]
        %v630 = vld [vmem:[%s1 + $0x290] sm:$0xff]
        %v631 = vld [vmem:[%s1 + $0x298] sm:$0xff]
        %v632 = vld [vmem:[%s1 + $0x2a0] sm:$0xff]
        %v633 = vld [vmem:[%s1 + $0x2a8] sm:$0xff]
        %v634 = vld [vmem:[%s1 + $0x2b0] sm:$0xff]
        %v635 = vld [vmem:[%s1 + $0x2b8] sm:$0xff]
        %v636 = vld [vmem:[%s1 + $0x2c0] sm:$0xff]
        %v637 = vld [vmem:[%s1 + $0x2c8] sm:$0xff]
        %v638 = vld [vmem:[%s1 + $0x2d0] sm:$0xff]
        %v639 = vld [vmem:[%s1 + $0x2d8] sm:$0xff]
        %v640 = vld [vmem:[%s1 + $0x2e0] sm:$0xff]
        %v641 = vld [vmem:[%s1 + $0x2e8] sm:$0xff]
        %v642 = vld [vmem:[%s1 + $0x2f0] sm:$0xff]
        %v643 = vld [vmem:[%s1 + $0x2f8] sm:$0xff]
        %v644 = vld [vmem:[%s1 + $0x300] sm:$0xff]
        %v645 = vld [vmem:[%s1 + $0x308] sm:$0xff]
        %v646 = vld [vmem:[%s1 + $0x310] sm:$0xff]
        %v647 = vld [vmem:[%s1 + $0x318] sm:$0xff]
        %v648 = vld [vmem:[%s1 + $0x320] sm:$0xff]
        %v649 = vld [vmem:[%s1 + $0x328] sm:$0xff]
        %v650 = vld [vmem:[%s1 + $0x330] sm:$0xff]
        %v651 = vld [vmem:[%s1 + $0x338] sm:$0xff]
        %v652 = vld [vmem:[%s1 + $0x340] sm:$0xff]
        %v653 = vld [vmem:[%s1 + $0x348] sm:$0xff]
        %v654 = vld [vmem:[%s1 + $0x350] sm:$0xff]
        %v655 = vld [vmem:[%s1 + $0x358] sm:$0xff]
        %v656 = vld [vmem:[%s1 + $0x360] sm:$0xff]
        %v657 = vld [vmem:[%s1 + $0x368] sm:$0xff]
        %v658 = vld [vmem:[%s1 + $0x370] sm:$0xff]
        %v659 = vld [vmem:[%s1 + $0x378] sm:$0xff]
        %v660 = vld [vmem:[%s1 + $0x380] sm:$0xff]
        %v661 = vld [vmem:[%s1 + $0x388] sm:$0xff]
        %v662 = vld [vmem:[%s1 + $0x390] sm:$0xff]
        %v663 = vld [vmem:[%s1 + $0x398] sm:$0xff]
        %v664 = vld [vmem:[%s1 + $0x3a0] sm:$0xff]
        %v665 = vld [vmem:[%s1 + $0x3a8] sm:$0xff]
        %v666 = vld [vmem:[%s1 + $0x3b0] sm:$0xff]
        %v667 = vld [vmem:[%s1 + $0x3b8] sm:$0xff]
        %v668 = vld [vmem:[%s1 + $0x3c0] sm:$0xff]
        %v669 = vld [vmem:[%s1 + $0x3c8] sm:$0xff]
        %v670 = vld [vmem:[%s1 + $0x3d0] sm:$0xff]
        %v671 = vld [vmem:[%s1 + $0x3d8] sm:$0xff]
        %v672 = vld [vmem:[%s1 + $0x3e0] sm:$0xff]
        %v673 = vld [vmem:[%s1 + $0x3e8] sm:$0xff]
        %v674 = vld [vmem:[%s1 + $0x3f0] sm:$0xff]
        %v675 = vld [vmem:[%s1 + $0x3f8] sm:$0xff]
        %v676 = vld [vmem:[%s1 + $0x400] sm:$0xff]
        %v677 = vld [vmem:[%s1 + $0x408] sm:$0xff]
        %v678 = vld [vmem:[%s1 + $0x410] sm:$0xff]
        %v679 = vld [vmem:[%s1 + $0x418] sm:$0xff]
        %v680 = vld [vmem:[%s1 + $0x420] sm:$0xff]
        %v681 = vld [vmem:[%s1 + $0x428] sm:$0xff]
        %v682 = vld [vmem:[%s1 + $0x430] sm:$0xff]
        %v683 = vld [vmem:[%s1 + $0x438] sm:$0xff]
        %v684 = vld [vmem:[%s1 + $0x440] sm:$0xff]
        %v685 = vld [vmem:[%s1 + $0x448] sm:$0xff]
        %v686 = vld [vmem:[%s1 + $0x450] sm:$0xff]
        %v687 = vld [vmem:[%s1 + $0x458] sm:$0xff]
        %v688 = vld [vmem:[%s1 + $0x460] sm:$0xff]
        %v689 = vld [vmem:[%s1 + $0x468] sm:$0xff]
        %v690 = vld [vmem:[%s1 + $0x470] sm:$0xff]
        %v691 = vld [vmem:[%s1 + $0x478] sm:$0xff]
        %v692 = vld [vmem:[%s1 + $0x480] sm:$0xff]
        %v693 = vld [vmem:[%s1 + $0x488] sm:$0xff]
        %v694 = vld [vmem:[%s1 + $0x490] sm:$0xff]
        %v695 = vld [vmem:[%s1 + $0x498] sm:$0xff]
        %v696 = vld [vmem:[%s1 + $0x4a0] sm:$0xff]
        %v697 = vld [vmem:[%s1 + $0x4a8] sm:$0xff]
        %v698 = vld [vmem:[%s1 + $0x4b0] sm:$0xff]
        %v699 = vld [vmem:[%s1 + $0x4b8] sm:$0xff]
        %v700 = vld [vmem:[%s1 + $0x4c0] sm:$0xff]
        %v701 = vld [vmem:[%s1 + $0x4c8] sm:$0xff]
        %v702 = vld [vmem:[%s1 + $0x4d0] sm:$0xff]
        %v703 = vld [vmem:[%s1 + $0x4d8] sm:$0xff]
        %v704 = vld [vmem:[%s1 + $0x4e0] sm:$0xff]
        %v705 = vld [vmem:[%s1 + $0x4e8] sm:$0xff]
        %v706 = vld [vmem:[%s1 + $0x4f0] sm:$0xff]
        %v707 = vld [vmem:[%s1 + $0x4f8] sm:$0xff]
        %v708 = vld [vmem:[%s1 + $0x500] sm:$0xff]
        %v709 = vld [vmem:[%s1 + $0x508] sm:$0xff]
        %v710 = vld [vmem:[%s1 + $0x510] sm:$0xff]
        %v711 = vld [vmem:[%s1 + $0x518] sm:$0xff]
        %v712 = vld [vmem:[%s1 + $0x520] sm:$0xff]
        %v713 = vld [vmem:[%s1 + $0x528] sm:$0xff]
        %v714 = vld [vmem:[%s1 + $0x530] sm:$0xff]
        %v715 = vld [vmem:[%s1 + $0x538] sm:$0xff]
        %v716 = vld [vmem:[%s1 + $0x540] sm:$0xff]
        %v717 = vld [vmem:[%s1 + $0x548] sm:$0xff]
        %v718 = vld [vmem:[%s1 + $0x550] sm:$0xff]
        %v719 = vld [vmem:[%s1 + $0x558] sm:$0xff]
        %v720 = vld [vmem:[%s1 + $0x560] sm:$0xff]
        %v721 = vld [vmem:[%s1 + $0x568] sm:$0xff]
        %v722 = vld [vmem:[%s1 + $0x570] sm:$0xff]
        %v723 = vld [vmem:[%s1 + $0x578] sm:$0xff]
        %v724 = vld [vmem:[%s1 + $0x580] sm:$0xff]
        %v725 = vld [vmem:[%s1 + $0x588] sm:$0xff]
        %v726 = vld [vmem:[%s1 + $0x590] sm:$0xff]
        %v727 = vld [vmem:[%s1 + $0x598] sm:$0xff]
        %v728 = vld [vmem:[%s1 + $0x5a0] sm:$0xff]
        %v729 = vld [vmem:[%s1 + $0x5a8] sm:$0xff]
        %v730 = vld [vmem:[%s1 + $0x5b0] sm:$0xff]
        %v731 = vld [vmem:[%s1 + $0x5b8] sm:$0xff]
        %v732 = vld [vmem:[%s1 + $0x5c0] sm:$0xff]
        %v733 = vld [vmem:[%s1 + $0x5c8] sm:$0xff]
        %v734 = vld [vmem:[%s1 + $0x5d0] sm:$0xff]
        %v735 = vld [vmem:[%s1 + $0x5d8] sm:$0xff]
        %v736 = vld [vmem:[%s1 + $0x5e0] sm:$0xff]
        %v737 = vld [vmem:[%s1 + $0x5e8] sm:$0xff]
        %v738 = vld [vmem:[%s1 + $0x5f0] sm:$0xff]
        %v739 = vld [vmem:[%s1 + $0x5f8] sm:$0xff]
        %v740 = vld [vmem:[%s1 + $0x600] sm:$0xff]
        %v741 = vld [vmem:[%s1 + $0x608] sm:$0xff]
        %v742 = vld [vmem:[%s1 + $0x610] sm:$0xff]
        %v743 = vld [vmem:[%s1 + $0x618] sm:$0xff]
        %v744 = vld [vmem:[%s1 + $0x620] sm:$0xff]
        %v745 = vld [vmem:[%s1 + $0x628] sm:$0xff]
        %v746 = vld [vmem:[%s1 + $0x630] sm:$0xff]
        %v747 = vld [vmem:[%s1 + $0x638] sm:$0xff]
        %v748 = vld [vmem:[%s1 + $0x640] sm:$0xff]
        %v749 = vld [vmem:[%s1 + $0x648] sm:$0xff]
        %v750 = vld [vmem:[%s1 + $0x650] sm:$0xff]
        %v751 = vld [vmem:[%s1 + $0x658] sm:$0xff]
        %v752 = vld [vmem:[%s1 + $0x660] sm:$0xff]
        %v753 = vld [vmem:[%s1 + $0x668] sm:$0xff]
        %v754 = vld [vmem:[%s1 + $0x670] sm:$0xff]
        %v755 = vld [vmem:[%s1 + $0x678] sm:$0xff]
        %v756 = vld [vmem:[%s1 + $0x680] sm:$0xff]
        %v757 = vld [vmem:[%s1 + $0x688] sm:$0xff]
        %v758 = vld [vmem:[%s1 + $0x690] sm:$0xff]
        %v759 = vld [vmem:[%s1 + $0x698] sm:$0xff]
        %v760 = vld [vmem:[%s1 + $0x6a0] sm:$0xff]
        %v761 = vld [vmem:[%s1 + $0x6a8] sm:$0xff]
        %v762 = vld [vmem:[%s1 + $0x6b0] sm:$0xff]
        %v763 = vld [vmem:[%s1 + $0x6b8] sm:$0xff]
        %v764 = vld [vmem:[%s1 + $0x6c0] sm:$0xff]
        %v765 = vld [vmem:[%s1 + $0x6c8] sm:$0xff]
        %v766 = vld [vmem:[%s1 + $0x6d0] sm:$0xff]
        %v767 = vld [vmem:[%s1 + $0x6d8] sm:$0xff]
        %v768 = vld [vmem:[%s1 + $0x6e0] sm:$0xff]
        %v769 = vld [vmem:[%s1 + $0x6e8] sm:$0xff]
        %v770 = vld [vmem:[%s1 + $0x6f0] sm:$0xff]
        %v771 = vld [vmem:[%s1 + $0x6f8] sm:$0xff]
        %v772 = vld [vmem:[%s1 + $0x700] sm:$0xff]
        %v773 = vld [vmem:[%s1 + $0x708] sm:$0xff]
        %v774 = vld [vmem:[%s1 + $0x710] sm:$0xff]
        %v775 = vld [vmem:[%s1 + $0x718] sm:$0xff]
        %v776 = vld [vmem:[%s1 + $0x720] sm:$0xff]
        %v777 = vld [vmem:[%s1 + $0x728] sm:$0xff]
        %v778 = vld [vmem:[%s1 + $0x730] sm:$0xff]
        %v779 = vld [vmem:[%s1 + $0x738] sm:$0xff]
        %v780 = vld [vmem:[%s1 + $0x740] sm:$0xff]
        %v781 = vld [vmem:[%s1 + $0x748] sm:$0xff]
        %v782 = vld [vmem:[%s1 + $0x750] sm:$0xff]
        %v783 = vld [vmem:[%s1 + $0x758] sm:$0xff]
        %v784 = vld [vmem:[%s1 + $0x760] sm:$0xff]
        %v785 = vld [vmem:[%s1 + $0x768] sm:$0xff]
        %v786 = vld [vmem:[%s1 + $0x770] sm:$0xff]
        %v787 = vld [vmem:[%s1 + $0x778] sm:$0xff]
        %v788 = vld [vmem:[%s1 + $0x780] sm:$0xff]
        %v789 = vld [vmem:[%s1 + $0x788] sm:$0xff]
        %v790 = vld [vmem:[%s1 + $0x790] sm:$0xff]
        %v791 = vld [vmem:[%s1 + $0x798] sm:$0xff]
        %v792 = vld [vmem:[%s1 + $0x7a0] sm:$0xff]
        %v793 = vld [vmem:[%s1 + $0x7a8] sm:$0xff]
        %v794 = vld [vmem:[%s1 + $0x7b0] sm:$0xff]
        %v795 = vld [vmem:[%s1 + $0x7b8] sm:$0xff]
        %v796 = vld [vmem:[%s1 + $0x7c0] sm:$0xff]
        %v797 = vld [vmem:[%s1 + $0x7c8] sm:$0xff]
        %v798 = vld [vmem:[%s1 + $0x7d0] sm:$0xff]
        %v799 = vld [vmem:[%s1 + $0x7d8] sm:$0xff]
        %v800 = vld [vmem:[%s1 + $0x7e0] sm:$0xff]
        %v801 = vld [vmem:[%s1 + $0x7e8] sm:$0xff]
        %v802 = vld [vmem:[%s1 + $0x7f0] sm:$0xff]
        %v803 = vld [vmem:[%s1 + $0x7f8] sm:$0xff]
        %v804 = vld [vmem:[%s1 + $0x800] sm:$0xff]
        %v805 = vld [vmem:[%s1 + $0x808] sm:$0xff]
        %v806 = vld [vmem:[%s1 + $0x810] sm:$0xff]
        %v807 = vld [vmem:[%s1 + $0x818] sm:$0xff]
        %v808 = vld [vmem:[%s1 + $0x820] sm:$0xff]
        %v809 = vld [vmem:[%s1 + $0x828] sm:$0xff]
        %v810 = vld [vmem:[%s1 + $0x830] sm:$0xff]
        %v811 = vld [vmem:[%s1 + $0x838] sm:$0xff]
        %v812 = vld [vmem:[%s1 + $0x840] sm:$0xff]
        %v813 = vld [vmem:[%s1 + $0x848] sm:$0xff]
        %v814 = vld [vmem:[%s1 + $0x850] sm:$0xff]
        %v815 = vld [vmem:[%s1 + $0x858] sm:$0xff]
        %v816 = vld [vmem:[%s1 + $0x860] sm:$0xff]
        %v817 = vld [vmem:[%s1 + $0x868] sm:$0xff]
        %v818 = vld [vmem:[%s1 + $0x870] sm:$0xff]
        %v819 = vld [vmem:[%s1 + $0x878] sm:$0xff]
        %v820 = vld [vmem:[%s1 + $0x880] sm:$0xff]
        %v821 = vld [vmem:[%s1 + $0x888] sm:$0xff]
        %v822 = vld [vmem:[%s1 + $0x890] sm:$0xff]
        %v823 = vld [vmem:[%s1 + $0x898] sm:$0xff]
        %v824 = vld [vmem:[%s1 + $0x8a0] sm:$0xff]
        %v825 = vld [vmem:[%s1 + $0x8a8] sm:$0xff]
        %v826 = vld [vmem:[%s1 + $0x8b0] sm:$0xff]
        %v827 = vld [vmem:[%s1 + $0x8b8] sm:$0xff]
        %v828 = vld [vmem:[%s1 + $0x8c0] sm:$0xff]
        %v829 = vld [vmem:[%s1 + $0x8c8] sm:$0xff]
        %v830 = vld [vmem:[%s1 + $0x8d0] sm:$0xff]
        %v831 = vld [vmem:[%s1 + $0x8d8] sm:$0xff]
        %v832 = vld [vmem:[%s1 + $0x8e0] sm:$0xff]
        %v833 = vld [vmem:[%s1 + $0x8e8] sm:$0xff]
        %v834 = vld [vmem:[%s1 + $0x8f0] sm:$0xff]
        %v835 = vld [vmem:[%s1 + $0x8f8] sm:$0xff]
        %v836 = vld [vmem:[%s3] ss:$8 sm:$0x3]
        %v838 = vperm.slane %v836, 0
        %v839 = vperm.slane %v836, 1
        %842 = vmatpush.msra.mxu0 %v578
        %843 = vmatpush.msra.mxu0 %v576
        %844 = vmatpush.msra.mxu0 %v574
        %845 = vmatpush.msra.mxu0 %v572
        %846 = vmatpush.msra.mxu0 %v570
        %847 = vmatpush.msra.mxu0 %v568
        %848 = vmatpush.msra.mxu0 %v566
        %849 = vmatpush.msra.mxu0 %v564
        %850 = vmatpush.msra.mxu0 %v562
        %851 = vmatpush.msra.mxu0 %v560
        %852 = vmatpush.msra.mxu0 %v558
        %853 = vmatpush.msra.mxu0 %v556
        %854 = vmatpush.msra.mxu0 %v554
        %855 = vmatpush.msra.mxu0 %v552
        %856 = vmatpush.msra.mxu0 %v550
        %857 = vmatpush.msra.mxu0 %v548
        %858 = vmatmul.f32.gmra.mxu0 %v476
        %v859 = vpop.f32.mrf.mxu0
        %v860 = vadd.f32 %v838, %v859
        %861 = vmatmul.f32.gmra.mxu0 %v485
        %v862 = vpop.f32.mrf.mxu0
        %v863 = vadd.f32 %v838, %v862
        %864 = vmatmul.f32.gmra.mxu0 %v494
        %v865 = vpop.f32.mrf.mxu0
        %v866 = vadd.f32 %v838, %v865
        %867 = vmatmul.f32.gmra.mxu0 %v503
        %v868 = vpop.f32.mrf.mxu0
        %v869 = vadd.f32 %v838, %v868
        %870 = vmatmul.f32.gmra.mxu0 %v512
        %v871 = vpop.f32.mrf.mxu0
        %v872 = vadd.f32 %v838, %v871
        %873 = vmatmul.f32.gmra.mxu0 %v521
        %v874 = vpop.f32.mrf.mxu0
        %v875 = vadd.f32 %v838, %v874
        %876 = vmatmul.f32.gmra.mxu0 %v530
        %v877 = vpop.f32.mrf.mxu0
        %v878 = vadd.f32 %v838, %v877
        %879 = vmatmul.f32.gmra.mxu0 %v539
        %v880 = vpop.f32.mrf.mxu0
        %v881 = vadd.f32 %v838, %v880
        %882 = vdwg.mxu0
        %883 = vmatpush.msra.mxu0 %v610
        %884 = vmatpush.msra.mxu0 %v608
        %885 = vmatpush.msra.mxu0 %v606
        %886 = vmatpush.msra.mxu0 %v604
        %887 = vmatpush.msra.mxu0 %v602
        %888 = vmatpush.msra.mxu0 %v600
        %889 = vmatpush.msra.mxu0 %v598
        %890 = vmatpush.msra.mxu0 %v596
        %891 = vmatpush.msra.mxu0 %v594
        %892 = vmatpush.msra.mxu0 %v592
        %893 = vmatpush.msra.mxu0 %v590
        %894 = vmatpush.msra.mxu0 %v588
        %895 = vmatpush.msra.mxu0 %v586
        %896 = vmatpush.msra.mxu0 %v584
        %897 = vmatpush.msra.mxu0 %v582
        %898 = vmatpush.msra.mxu0 %v580
        %899 = vmatmul.f32.gmra.mxu0 %v477
        %v900 = vpop.f32.mrf.mxu0
        %v901 = vadd.f32 %v860, %v900
        %902 = vmatmul.f32.gmra.mxu0 %v486
        %v903 = vpop.f32.mrf.mxu0
        %v904 = vadd.f32 %v863, %v903
        %905 = vmatmul.f32.gmra.mxu0 %v495
        %v906 = vpop.f32.mrf.mxu0
        %v907 = vadd.f32 %v866, %v906
        %908 = vmatmul.f32.gmra.mxu0 %v504
        %v909 = vpop.f32.mrf.mxu0
        %v910 = vadd.f32 %v869, %v909
        %911 = vmatmul.f32.gmra.mxu0 %v513
        %v912 = vpop.f32.mrf.mxu0
        %v913 = vadd.f32 %v872, %v912
        %914 = vmatmul.f32.gmra.mxu0 %v522
        %v915 = vpop.f32.mrf.mxu0
        %v916 = vadd.f32 %v875, %v915
        %917 = vmatmul.f32.gmra.mxu0 %v531
        %v918 = vpop.f32.mrf.mxu0
        %v919 = vadd.f32 %v878, %v918
        %920 = vmatmul.f32.gmra.mxu0 %v540
        %v921 = vpop.f32.mrf.mxu0
        %v922 = vadd.f32 %v881, %v921
        %923 = vdwg.mxu0
        %924 = vmatpush.msra.mxu0 %v642
        %925 = vmatpush.msra.mxu0 %v640
        %926 = vmatpush.msra.mxu0 %v638
        %927 = vmatpush.msra.mxu0 %v636
        %928 = vmatpush.msra.mxu0 %v634
        %929 = vmatpush.msra.mxu0 %v632
        %930 = vmatpush.msra.mxu0 %v630
        %931 = vmatpush.msra.mxu0 %v628
        %932 = vmatpush.msra.mxu0 %v626
        %933 = vmatpush.msra.mxu0 %v624
        %934 = vmatpush.msra.mxu0 %v622
        %935 = vmatpush.msra.mxu0 %v620
        %936 = vmatpush.msra.mxu0 %v618
        %937 = vmatpush.msra.mxu0 %v616
        %938 = vmatpush.msra.mxu0 %v614
        %939 = vmatpush.msra.mxu0 %v612
        %940 = vmatmul.f32.gmra.mxu0 %v478
        %v941 = vpop.f32.mrf.mxu0
        %v942 = vadd.f32 %v901, %v941
        %943 = vmatmul.f32.gmra.mxu0 %v487
        %v944 = vpop.f32.mrf.mxu0
        %v945 = vadd.f32 %v904, %v944
        %946 = vmatmul.f32.gmra.mxu0 %v496
        %v947 = vpop.f32.mrf.mxu0
        %v948 = vadd.f32 %v907, %v947
        %949 = vmatmul.f32.gmra.mxu0 %v505
        %v950 = vpop.f32.mrf.mxu0
        %v951 = vadd.f32 %v910, %v950
        %952 = vmatmul.f32.gmra.mxu0 %v514
        %v953 = vpop.f32.mrf.mxu0
        %v954 = vadd.f32 %v913, %v953
        %955 = vmatmul.f32.gmra.mxu0 %v523
        %v956 = vpop.f32.mrf.mxu0
        %v957 = vadd.f32 %v916, %v956
        %958 = vmatmul.f32.gmra.mxu0 %v532
        %v959 = vpop.f32.mrf.mxu0
        %v960 = vadd.f32 %v919, %v959
        %961 = vmatmul.f32.gmra.mxu0 %v541
        %v962 = vpop.f32.mrf.mxu0
        %v963 = vadd.f32 %v922, %v962
        %964 = vdwg.mxu0
        %965 = vmatpush.msra.mxu0 %v674
        %966 = vmatpush.msra.mxu0 %v672
        %967 = vmatpush.msra.mxu0 %v670
        %968 = vmatpush.msra.mxu0 %v668
        %969 = vmatpush.msra.mxu0 %v666
        %970 = vmatpush.msra.mxu0 %v664
        %971 = vmatpush.msra.mxu0 %v662
        %972 = vmatpush.msra.mxu0 %v660
        %973 = vmatpush.msra.mxu0 %v658
        %974 = vmatpush.msra.mxu0 %v656
        %975 = vmatpush.msra.mxu0 %v654
        %976 = vmatpush.msra.mxu0 %v652
        %977 = vmatpush.msra.mxu0 %v650
        %978 = vmatpush.msra.mxu0 %v648
        %979 = vmatpush.msra.mxu0 %v646
        %980 = vmatpush.msra.mxu0 %v644
        %981 = vmatmul.f32.gmra.mxu0 %v479
        %v982 = vpop.f32.mrf.mxu0
        %v983 = vadd.f32 %v942, %v982
        %984 = vmatmul.f32.gmra.mxu0 %v488
        %v985 = vpop.f32.mrf.mxu0
        %v986 = vadd.f32 %v945, %v985
        %987 = vmatmul.f32.gmra.mxu0 %v497
        %v988 = vpop.f32.mrf.mxu0
        %v989 = vadd.f32 %v948, %v988
        %990 = vmatmul.f32.gmra.mxu0 %v506
        %v991 = vpop.f32.mrf.mxu0
        %v992 = vadd.f32 %v951, %v991
        %993 = vmatmul.f32.gmra.mxu0 %v515
        %v994 = vpop.f32.mrf.mxu0
        %v995 = vadd.f32 %v954, %v994
        %996 = vmatmul.f32.gmra.mxu0 %v524
        %v997 = vpop.f32.mrf.mxu0
        %v998 = vadd.f32 %v957, %v997
        %999 = vmatmul.f32.gmra.mxu0 %v533
        %v1000 = vpop.f32.mrf.mxu0
        %v1001 = vadd.f32 %v960, %v1000
        %1002 = vmatmul.f32.gmra.mxu0 %v542
        %v1003 = vpop.f32.mrf.mxu0
        %v1004 = vadd.f32 %v963, %v1003
        %1005 = vdwg.mxu0
        %1006 = vmatpush.msra.mxu0 %v706
        %1007 = vmatpush.msra.mxu0 %v704
        %1008 = vmatpush.msra.mxu0 %v702
        %1009 = vmatpush.msra.mxu0 %v700
        %1010 = vmatpush.msra.mxu0 %v698
        %1011 = vmatpush.msra.mxu0 %v696
        %1012 = vmatpush.msra.mxu0 %v694
        %1013 = vmatpush.msra.mxu0 %v692
        %1014 = vmatpush.msra.mxu0 %v690
        %1015 = vmatpush.msra.mxu0 %v688
        %1016 = vmatpush.msra.mxu0 %v686
        %1017 = vmatpush.msra.mxu0 %v684
        %1018 = vmatpush.msra.mxu0 %v682
        %1019 = vmatpush.msra.mxu0 %v680
        %1020 = vmatpush.msra.mxu0 %v678
        %1021 = vmatpush.msra.mxu0 %v676
        %1022 = vmatmul.f32.gmra.mxu0 %v480
        %v1023 = vpop.f32.mrf.mxu0
        %v1024 = vadd.f32 %v983, %v1023
        %1025 = vmatmul.f32.gmra.mxu0 %v489
        %v1026 = vpop.f32.mrf.mxu0
        %v1027 = vadd.f32 %v986, %v1026
        %1028 = vmatmul.f32.gmra.mxu0 %v498
        %v1029 = vpop.f32.mrf.mxu0
        %v1030 = vadd.f32 %v989, %v1029
        %1031 = vmatmul.f32.gmra.mxu0 %v507
        %v1032 = vpop.f32.mrf.mxu0
        %v1033 = vadd.f32 %v992, %v1032
        %1034 = vmatmul.f32.gmra.mxu0 %v516
        %v1035 = vpop.f32.mrf.mxu0
        %v1036 = vadd.f32 %v995, %v1035
        %1037 = vmatmul.f32.gmra.mxu0 %v525
        %v1038 = vpop.f32.mrf.mxu0
        %v1039 = vadd.f32 %v998, %v1038
        %1040 = vmatmul.f32.gmra.mxu0 %v534
        %v1041 = vpop.f32.mrf.mxu0
        %v1042 = vadd.f32 %v1001, %v1041
        %1043 = vmatmul.f32.gmra.mxu0 %v543
        %v1044 = vpop.f32.mrf.mxu0
        %v1045 = vadd.f32 %v1004, %v1044
        %1046 = vdwg.mxu0
        %1047 = vmatpush.msra.mxu0 %v738
        %1048 = vmatpush.msra.mxu0 %v736
        %1049 = vmatpush.msra.mxu0 %v734
        %1050 = vmatpush.msra.mxu0 %v732
        %1051 = vmatpush.msra.mxu0 %v730
        %1052 = vmatpush.msra.mxu0 %v728
        %1053 = vmatpush.msra.mxu0 %v726
        %1054 = vmatpush.msra.mxu0 %v724
        %1055 = vmatpush.msra.mxu0 %v722
        %1056 = vmatpush.msra.mxu0 %v720
        %1057 = vmatpush.msra.mxu0 %v718
        %1058 = vmatpush.msra.mxu0 %v716
        %1059 = vmatpush.msra.mxu0 %v714
        %1060 = vmatpush.msra.mxu0 %v712
        %1061 = vmatpush.msra.mxu0 %v710
        %1062 = vmatpush.msra.mxu0 %v708
        %1063 = vmatmul.f32.gmra.mxu0 %v481
        %v1064 = vpop.f32.mrf.mxu0
        %v1065 = vadd.f32 %v1024, %v1064
        %1066 = vmatmul.f32.gmra.mxu0 %v490
        %v1067 = vpop.f32.mrf.mxu0
        %v1068 = vadd.f32 %v1027, %v1067
        %1069 = vmatmul.f32.gmra.mxu0 %v499
        %v1070 = vpop.f32.mrf.mxu0
        %v1071 = vadd.f32 %v1030, %v1070
        %1072 = vmatmul.f32.gmra.mxu0 %v508
        %v1073 = vpop.f32.mrf.mxu0
        %v1074 = vadd.f32 %v1033, %v1073
        %1075 = vmatmul.f32.gmra.mxu0 %v517
        %v1076 = vpop.f32.mrf.mxu0
        %v1077 = vadd.f32 %v1036, %v1076
        %1078 = vmatmul.f32.gmra.mxu0 %v526
        %v1079 = vpop.f32.mrf.mxu0
        %v1080 = vadd.f32 %v1039, %v1079
        %1081 = vmatmul.f32.gmra.mxu0 %v535
        %v1082 = vpop.f32.mrf.mxu0
        %v1083 = vadd.f32 %v1042, %v1082
        %1084 = vmatmul.f32.gmra.mxu0 %v544
        %v1085 = vpop.f32.mrf.mxu0
        %v1086 = vadd.f32 %v1045, %v1085
        %1087 = vdwg.mxu0
        %1088 = vmatpush.msra.mxu0 %v770
        %1089 = vmatpush.msra.mxu0 %v768
        %1090 = vmatpush.msra.mxu0 %v766
        %1091 = vmatpush.msra.mxu0 %v764
        %1092 = vmatpush.msra.mxu0 %v762
        %1093 = vmatpush.msra.mxu0 %v760
        %1094 = vmatpush.msra.mxu0 %v758
        %1095 = vmatpush.msra.mxu0 %v756
        %1096 = vmatpush.msra.mxu0 %v754
        %1097 = vmatpush.msra.mxu0 %v752
        %1098 = vmatpush.msra.mxu0 %v750
        %1099 = vmatpush.msra.mxu0 %v748
        %1100 = vmatpush.msra.mxu0 %v746
        %1101 = vmatpush.msra.mxu0 %v744
        %1102 = vmatpush.msra.mxu0 %v742
        %1103 = vmatpush.msra.mxu0 %v740
        %1104 = vmatmul.f32.gmra.mxu0 %v482
        %v1105 = vpop.f32.mrf.mxu0
        %v1106 = vadd.f32 %v1065, %v1105
        %1107 = vmatmul.f32.gmra.mxu0 %v491
        %v1108 = vpop.f32.mrf.mxu0
        %v1109 = vadd.f32 %v1068, %v1108
        %1110 = vmatmul.f32.gmra.mxu0 %v500
        %v1111 = vpop.f32.mrf.mxu0
        %v1112 = vadd.f32 %v1071, %v1111
        %1113 = vmatmul.f32.gmra.mxu0 %v509
        %v1114 = vpop.f32.mrf.mxu0
        %v1115 = vadd.f32 %v1074, %v1114
        %1116 = vmatmul.f32.gmra.mxu0 %v518
        %v1117 = vpop.f32.mrf.mxu0
        %v1118 = vadd.f32 %v1077, %v1117
        %1119 = vmatmul.f32.gmra.mxu0 %v527
        %v1120 = vpop.f32.mrf.mxu0
        %v1121 = vadd.f32 %v1080, %v1120
        %1122 = vmatmul.f32.gmra.mxu0 %v536
        %v1123 = vpop.f32.mrf.mxu0
        %v1124 = vadd.f32 %v1083, %v1123
        %1125 = vmatmul.f32.gmra.mxu0 %v545
        %v1126 = vpop.f32.mrf.mxu0
        %v1127 = vadd.f32 %v1086, %v1126
        %1128 = vdwg.mxu0
        %1129 = vmatpush.msra.mxu0 %v802
        %1130 = vmatpush.msra.mxu0 %v800
        %1131 = vmatpush.msra.mxu0 %v798
        %1132 = vmatpush.msra.mxu0 %v796
        %1133 = vmatpush.msra.mxu0 %v794
        %1134 = vmatpush.msra.mxu0 %v792
        %1135 = vmatpush.msra.mxu0 %v790
        %1136 = vmatpush.msra.mxu0 %v788
        %1137 = vmatpush.msra.mxu0 %v786
        %1138 = vmatpush.msra.mxu0 %v784
        %1139 = vmatpush.msra.mxu0 %v782
        %1140 = vmatpush.msra.mxu0 %v780
        %1141 = vmatpush.msra.mxu0 %v778
        %1142 = vmatpush.msra.mxu0 %v776
        %1143 = vmatpush.msra.mxu0 %v774
        %1144 = vmatpush.msra.mxu0 %v772
        %1145 = vmatmul.f32.gmra.mxu0 %v483
        %v1146 = vpop.f32.mrf.mxu0
        %v1147 = vadd.f32 %v1106, %v1146
        %1148 = vmatmul.f32.gmra.mxu0 %v492
        %v1149 = vpop.f32.mrf.mxu0
        %v1150 = vadd.f32 %v1109, %v1149
        %1151 = vmatmul.f32.gmra.mxu0 %v501
        %v1152 = vpop.f32.mrf.mxu0
        %v1153 = vadd.f32 %v1112, %v1152
        %1154 = vmatmul.f32.gmra.mxu0 %v510
        %v1155 = vpop.f32.mrf.mxu0
        %v1156 = vadd.f32 %v1115, %v1155
        %1157 = vmatmul.f32.gmra.mxu0 %v519
        %v1158 = vpop.f32.mrf.mxu0
        %v1159 = vadd.f32 %v1118, %v1158
        %1160 = vmatmul.f32.gmra.mxu0 %v528
        %v1161 = vpop.f32.mrf.mxu0
        %v1162 = vadd.f32 %v1121, %v1161
        %1163 = vmatmul.f32.gmra.mxu0 %v537
        %v1164 = vpop.f32.mrf.mxu0
        %v1165 = vadd.f32 %v1124, %v1164
        %1166 = vmatmul.f32.gmra.mxu0 %v546
        %v1167 = vpop.f32.mrf.mxu0
        %v1168 = vadd.f32 %v1127, %v1167
        %1169 = vdwg.mxu0
        %1170 = vmatpush.msra.mxu0 %v834
        %1171 = vmatpush.msra.mxu0 %v832
        %1172 = vmatpush.msra.mxu0 %v830
        %1173 = vmatpush.msra.mxu0 %v828
        %1174 = vmatpush.msra.mxu0 %v826
        %1175 = vmatpush.msra.mxu0 %v824
        %1176 = vmatpush.msra.mxu0 %v822
        %1177 = vmatpush.msra.mxu0 %v820
        %1178 = vmatpush.msra.mxu0 %v818
        %1179 = vmatpush.msra.mxu0 %v816
        %1180 = vmatpush.msra.mxu0 %v814
        %1181 = vmatpush.msra.mxu0 %v812
        %1182 = vmatpush.msra.mxu0 %v810
        %1183 = vmatpush.msra.mxu0 %v808
        %1184 = vmatpush.msra.mxu0 %v806
        %1185 = vmatpush.msra.mxu0 %v804
        %1186 = vmatmul.f32.gmra.mxu0 %v484
        %v1187 = vpop.f32.mrf.mxu0
        %v1188 = vadd.f32 %v1147, %v1187
        %1189 = vmatmul.f32.gmra.mxu0 %v493
        %v1190 = vpop.f32.mrf.mxu0
        %v1191 = vadd.f32 %v1150, %v1190
        %1192 = vmatmul.f32.gmra.mxu0 %v502
        %v1193 = vpop.f32.mrf.mxu0
        %v1194 = vadd.f32 %v1153, %v1193
        %1195 = vmatmul.f32.gmra.mxu0 %v511
        %v1196 = vpop.f32.mrf.mxu0
        %v1197 = vadd.f32 %v1156, %v1196
        %1198 = vmatmul.f32.gmra.mxu0 %v520
        %v1199 = vpop.f32.mrf.mxu0
        %v1200 = vadd.f32 %v1159, %v1199
        %1201 = vmatmul.f32.gmra.mxu0 %v529
        %v1202 = vpop.f32.mrf.mxu0
        %v1203 = vadd.f32 %v1162, %v1202
        %1204 = vmatmul.f32.gmra.mxu0 %v538
        %v1205 = vpop.f32.mrf.mxu0
        %v1206 = vadd.f32 %v1165, %v1205
        %1207 = vmatmul.f32.gmra.mxu0 %v547
        %v1208 = vpop.f32.mrf.mxu0
        %v1209 = vadd.f32 %v1168, %v1208
        %1210 = vdwg.mxu0
        %1211 = vmatpush.msra.mxu0 %v579
        %1212 = vmatpush.msra.mxu0 %v577
        %1213 = vmatpush.msra.mxu0 %v575
        %1214 = vmatpush.msra.mxu0 %v573
        %1215 = vmatpush.msra.mxu0 %v571
        %1216 = vmatpush.msra.mxu0 %v569
        %1217 = vmatpush.msra.mxu0 %v567
        %1218 = vmatpush.msra.mxu0 %v565
        %1219 = vmatpush.msra.mxu0 %v563
        %1220 = vmatpush.msra.mxu0 %v561
        %1221 = vmatpush.msra.mxu0 %v559
        %1222 = vmatpush.msra.mxu0 %v557
        %1223 = vmatpush.msra.mxu0 %v555
        %1224 = vmatpush.msra.mxu0 %v553
        %1225 = vmatpush.msra.mxu0 %v551
        %1226 = vmatpush.msra.mxu0 %v549
        %1227 = vmatmul.f32.gmra.mxu0 %v476
        %v1228 = vpop.f32.mrf.mxu0
        %v1229 = vadd.f32 %v839, %v1228
        %1230 = vmatmul.f32.gmra.mxu0 %v485
        %v1231 = vpop.f32.mrf.mxu0
        %v1232 = vadd.f32 %v839, %v1231
        %1233 = vmatmul.f32.gmra.mxu0 %v494
        %v1234 = vpop.f32.mrf.mxu0
        %v1235 = vadd.f32 %v839, %v1234
        %1236 = vmatmul.f32.gmra.mxu0 %v503
        %v1237 = vpop.f32.mrf.mxu0
        %v1238 = vadd.f32 %v839, %v1237
        %1239 = vmatmul.f32.gmra.mxu0 %v512
        %v1240 = vpop.f32.mrf.mxu0
        %v1241 = vadd.f32 %v839, %v1240
        %1242 = vmatmul.f32.gmra.mxu0 %v521
        %v1243 = vpop.f32.mrf.mxu0
        %v1244 = vadd.f32 %v839, %v1243
        %1245 = vmatmul.f32.gmra.mxu0 %v530
        %v1246 = vpop.f32.mrf.mxu0
        %v1247 = vadd.f32 %v839, %v1246
        %1248 = vmatmul.f32.gmra.mxu0 %v539
        %v1249 = vpop.f32.mrf.mxu0
        %v1250 = vadd.f32 %v839, %v1249
        %1251 = vdwg.mxu0
        %1252 = vmatpush.msra.mxu0 %v611
        %1253 = vmatpush.msra.mxu0 %v609
        %1254 = vmatpush.msra.mxu0 %v607
        %1255 = vmatpush.msra.mxu0 %v605
        %1256 = vmatpush.msra.mxu0 %v603
        %1257 = vmatpush.msra.mxu0 %v601
        %1258 = vmatpush.msra.mxu0 %v599
        %1259 = vmatpush.msra.mxu0 %v597
        %1260 = vmatpush.msra.mxu0 %v595
        %1261 = vmatpush.msra.mxu0 %v593
        %1262 = vmatpush.msra.mxu0 %v591
        %1263 = vmatpush.msra.mxu0 %v589
        %1264 = vmatpush.msra.mxu0 %v587
        %1265 = vmatpush.msra.mxu0 %v585
        %1266 = vmatpush.msra.mxu0 %v583
        %1267 = vmatpush.msra.mxu0 %v581
        %1268 = vmatmul.f32.gmra.mxu0 %v477
        %v1269 = vpop.f32.mrf.mxu0
        %v1270 = vadd.f32 %v1229, %v1269
        %1271 = vmatmul.f32.gmra.mxu0 %v486
        %v1272 = vpop.f32.mrf.mxu0
        %v1273 = vadd.f32 %v1232, %v1272
        %1274 = vmatmul.f32.gmra.mxu0 %v495
        %v1275 = vpop.f32.mrf.mxu0
        %v1276 = vadd.f32 %v1235, %v1275
        %1277 = vmatmul.f32.gmra.mxu0 %v504
        %v1278 = vpop.f32.mrf.mxu0
        %v1279 = vadd.f32 %v1238, %v1278
        %1280 = vmatmul.f32.gmra.mxu0 %v513
        %v1281 = vpop.f32.mrf.mxu0
        %v1282 = vadd.f32 %v1241, %v1281
        %1283 = vmatmul.f32.gmra.mxu0 %v522
        %v1284 = vpop.f32.mrf.mxu0
        %v1285 = vadd.f32 %v1244, %v1284
        %1286 = vmatmul.f32.gmra.mxu0 %v531
        %v1287 = vpop.f32.mrf.mxu0
        %v1288 = vadd.f32 %v1247, %v1287
        %1289 = vmatmul.f32.gmra.mxu0 %v540
        %v1290 = vpop.f32.mrf.mxu0
        %v1291 = vadd.f32 %v1250, %v1290
        %1292 = vdwg.mxu0
        %1293 = vmatpush.msra.mxu0 %v643
        %1294 = vmatpush.msra.mxu0 %v641
        %1295 = vmatpush.msra.mxu0 %v639
        %1296 = vmatpush.msra.mxu0 %v637
        %1297 = vmatpush.msra.mxu0 %v635
        %1298 = vmatpush.msra.mxu0 %v633
        %1299 = vmatpush.msra.mxu0 %v631
        %1300 = vmatpush.msra.mxu0 %v629
        %1301 = vmatpush.msra.mxu0 %v627
        %1302 = vmatpush.msra.mxu0 %v625
        %1303 = vmatpush.msra.mxu0 %v623
        %1304 = vmatpush.msra.mxu0 %v621
        %1305 = vmatpush.msra.mxu0 %v619
        %1306 = vmatpush.msra.mxu0 %v617
        %1307 = vmatpush.msra.mxu0 %v615
        %1308 = vmatpush.msra.mxu0 %v613
        %1309 = vmatmul.f32.gmra.mxu0 %v478
        %v1310 = vpop.f32.mrf.mxu0
        %v1311 = vadd.f32 %v1270, %v1310
        %1312 = vmatmul.f32.gmra.mxu0 %v487
        %v1313 = vpop.f32.mrf.mxu0
        %v1314 = vadd.f32 %v1273, %v1313
        %1315 = vmatmul.f32.gmra.mxu0 %v496
        %v1316 = vpop.f32.mrf.mxu0
        %v1317 = vadd.f32 %v1276, %v1316
        %1318 = vmatmul.f32.gmra.mxu0 %v505
        %v1319 = vpop.f32.mrf.mxu0
        %v1320 = vadd.f32 %v1279, %v1319
        %1321 = vmatmul.f32.gmra.mxu0 %v514
        %v1322 = vpop.f32.mrf.mxu0
        %v1323 = vadd.f32 %v1282, %v1322
        %1324 = vmatmul.f32.gmra.mxu0 %v523
        %v1325 = vpop.f32.mrf.mxu0
        %v1326 = vadd.f32 %v1285, %v1325
        %1327 = vmatmul.f32.gmra.mxu0 %v532
        %v1328 = vpop.f32.mrf.mxu0
        %v1329 = vadd.f32 %v1288, %v1328
        %1330 = vmatmul.f32.gmra.mxu0 %v541
        %v1331 = vpop.f32.mrf.mxu0
        %v1332 = vadd.f32 %v1291, %v1331
        %1333 = vdwg.mxu0
        %1334 = vmatpush.msra.mxu0 %v675
        %1335 = vmatpush.msra.mxu0 %v673
        %1336 = vmatpush.msra.mxu0 %v671
        %1337 = vmatpush.msra.mxu0 %v669
        %1338 = vmatpush.msra.mxu0 %v667
        %1339 = vmatpush.msra.mxu0 %v665
        %1340 = vmatpush.msra.mxu0 %v663
        %1341 = vmatpush.msra.mxu0 %v661
        %1342 = vmatpush.msra.mxu0 %v659
        %1343 = vmatpush.msra.mxu0 %v657
        %1344 = vmatpush.msra.mxu0 %v655
        %1345 = vmatpush.msra.mxu0 %v653
        %1346 = vmatpush.msra.mxu0 %v651
        %1347 = vmatpush.msra.mxu0 %v649
        %1348 = vmatpush.msra.mxu0 %v647
        %1349 = vmatpush.msra.mxu0 %v645
        %1350 = vmatmul.f32.gmra.mxu0 %v479
        %v1351 = vpop.f32.mrf.mxu0
        %v1352 = vadd.f32 %v1311, %v1351
        %1353 = vmatmul.f32.gmra.mxu0 %v488
        %v1354 = vpop.f32.mrf.mxu0
        %v1355 = vadd.f32 %v1314, %v1354
        %1356 = vmatmul.f32.gmra.mxu0 %v497
        %v1357 = vpop.f32.mrf.mxu0
        %v1358 = vadd.f32 %v1317, %v1357
        %1359 = vmatmul.f32.gmra.mxu0 %v506
        %v1360 = vpop.f32.mrf.mxu0
        %v1361 = vadd.f32 %v1320, %v1360
        %1362 = vmatmul.f32.gmra.mxu0 %v515
        %v1363 = vpop.f32.mrf.mxu0
        %v1364 = vadd.f32 %v1323, %v1363
        %1365 = vmatmul.f32.gmra.mxu0 %v524
        %v1366 = vpop.f32.mrf.mxu0
        %v1367 = vadd.f32 %v1326, %v1366
        %1368 = vmatmul.f32.gmra.mxu0 %v533
        %v1369 = vpop.f32.mrf.mxu0
        %v1370 = vadd.f32 %v1329, %v1369
        %1371 = vmatmul.f32.gmra.mxu0 %v542
        %v1372 = vpop.f32.mrf.mxu0
        %v1373 = vadd.f32 %v1332, %v1372
        %1374 = vdwg.mxu0
        %1375 = vmatpush.msra.mxu0 %v707
        %1376 = vmatpush.msra.mxu0 %v705
        %1377 = vmatpush.msra.mxu0 %v703
        %1378 = vmatpush.msra.mxu0 %v701
        %1379 = vmatpush.msra.mxu0 %v699
        %1380 = vmatpush.msra.mxu0 %v697
        %1381 = vmatpush.msra.mxu0 %v695
        %1382 = vmatpush.msra.mxu0 %v693
        %1383 = vmatpush.msra.mxu0 %v691
        %1384 = vmatpush.msra.mxu0 %v689
        %1385 = vmatpush.msra.mxu0 %v687
        %1386 = vmatpush.msra.mxu0 %v685
        %1387 = vmatpush.msra.mxu0 %v683
        %1388 = vmatpush.msra.mxu0 %v681
        %1389 = vmatpush.msra.mxu0 %v679
        %1390 = vmatpush.msra.mxu0 %v677
        %1391 = vmatmul.f32.gmra.mxu0 %v480
        %v1392 = vpop.f32.mrf.mxu0
        %v1393 = vadd.f32 %v1352, %v1392
        %1394 = vmatmul.f32.gmra.mxu0 %v489
        %v1395 = vpop.f32.mrf.mxu0
        %v1396 = vadd.f32 %v1355, %v1395
        %1397 = vmatmul.f32.gmra.mxu0 %v498
        %v1398 = vpop.f32.mrf.mxu0
        %v1399 = vadd.f32 %v1358, %v1398
        %1400 = vmatmul.f32.gmra.mxu0 %v507
        %v1401 = vpop.f32.mrf.mxu0
        %v1402 = vadd.f32 %v1361, %v1401
        %1403 = vmatmul.f32.gmra.mxu0 %v516
        %v1404 = vpop.f32.mrf.mxu0
        %v1405 = vadd.f32 %v1364, %v1404
        %1406 = vmatmul.f32.gmra.mxu0 %v525
        %v1407 = vpop.f32.mrf.mxu0
        %v1408 = vadd.f32 %v1367, %v1407
        %1409 = vmatmul.f32.gmra.mxu0 %v534
        %v1410 = vpop.f32.mrf.mxu0
        %v1411 = vadd.f32 %v1370, %v1410
        %1412 = vmatmul.f32.gmra.mxu0 %v543
        %v1413 = vpop.f32.mrf.mxu0
        %v1414 = vadd.f32 %v1373, %v1413
        %1415 = vdwg.mxu0
        %1416 = vmatpush.msra.mxu0 %v739
        %1417 = vmatpush.msra.mxu0 %v737
        %1418 = vmatpush.msra.mxu0 %v735
        %1419 = vmatpush.msra.mxu0 %v733
        %1420 = vmatpush.msra.mxu0 %v731
        %1421 = vmatpush.msra.mxu0 %v729
        %1422 = vmatpush.msra.mxu0 %v727
        %1423 = vmatpush.msra.mxu0 %v725
        %1424 = vmatpush.msra.mxu0 %v723
        %1425 = vmatpush.msra.mxu0 %v721
        %1426 = vmatpush.msra.mxu0 %v719
        %1427 = vmatpush.msra.mxu0 %v717
        %1428 = vmatpush.msra.mxu0 %v715
        %1429 = vmatpush.msra.mxu0 %v713
        %1430 = vmatpush.msra.mxu0 %v711
        %1431 = vmatpush.msra.mxu0 %v709
        %1432 = vmatmul.f32.gmra.mxu0 %v481
        %v1433 = vpop.f32.mrf.mxu0
        %v1434 = vadd.f32 %v1393, %v1433
        %1435 = vmatmul.f32.gmra.mxu0 %v490
        %v1436 = vpop.f32.mrf.mxu0
        %v1437 = vadd.f32 %v1396, %v1436
        %1438 = vmatmul.f32.gmra.mxu0 %v499
        %v1439 = vpop.f32.mrf.mxu0
        %v1440 = vadd.f32 %v1399, %v1439
        %1441 = vmatmul.f32.gmra.mxu0 %v508
        %v1442 = vpop.f32.mrf.mxu0
        %v1443 = vadd.f32 %v1402, %v1442
        %1444 = vmatmul.f32.gmra.mxu0 %v517
        %v1445 = vpop.f32.mrf.mxu0
        %v1446 = vadd.f32 %v1405, %v1445
        %1447 = vmatmul.f32.gmra.mxu0 %v526
        %v1448 = vpop.f32.mrf.mxu0
        %v1449 = vadd.f32 %v1408, %v1448
        %1450 = vmatmul.f32.gmra.mxu0 %v535
        %v1451 = vpop.f32.mrf.mxu0
        %v1452 = vadd.f32 %v1411, %v1451
        %1453 = vmatmul.f32.gmra.mxu0 %v544
        %v1454 = vpop.f32.mrf.mxu0
        %v1455 = vadd.f32 %v1414, %v1454
        %1456 = vdwg.mxu0
        %1457 = vmatpush.msra.mxu0 %v771
        %1458 = vmatpush.msra.mxu0 %v769
        %1459 = vmatpush.msra.mxu0 %v767
        %1460 = vmatpush.msra.mxu0 %v765
        %1461 = vmatpush.msra.mxu0 %v763
        %1462 = vmatpush.msra.mxu0 %v761
        %1463 = vmatpush.msra.mxu0 %v759
        %1464 = vmatpush.msra.mxu0 %v757
        %1465 = vmatpush.msra.mxu0 %v755
        %1466 = vmatpush.msra.mxu0 %v753
        %1467 = vmatpush.msra.mxu0 %v751
        %1468 = vmatpush.msra.mxu0 %v749
        %1469 = vmatpush.msra.mxu0 %v747
        %1470 = vmatpush.msra.mxu0 %v745
        %1471 = vmatpush.msra.mxu0 %v743
        %1472 = vmatpush.msra.mxu0 %v741
        %1473 = vmatmul.f32.gmra.mxu0 %v482
        %v1474 = vpop.f32.mrf.mxu0
        %v1475 = vadd.f32 %v1434, %v1474
        %1476 = vmatmul.f32.gmra.mxu0 %v491
        %v1477 = vpop.f32.mrf.mxu0
        %v1478 = vadd.f32 %v1437, %v1477
        %1479 = vmatmul.f32.gmra.mxu0 %v500
        %v1480 = vpop.f32.mrf.mxu0
        %v1481 = vadd.f32 %v1440, %v1480
        %1482 = vmatmul.f32.gmra.mxu0 %v509
        %v1483 = vpop.f32.mrf.mxu0
        %v1484 = vadd.f32 %v1443, %v1483
        %1485 = vmatmul.f32.gmra.mxu0 %v518
        %v1486 = vpop.f32.mrf.mxu0
        %v1487 = vadd.f32 %v1446, %v1486
        %1488 = vmatmul.f32.gmra.mxu0 %v527
        %v1489 = vpop.f32.mrf.mxu0
        %v1490 = vadd.f32 %v1449, %v1489
        %1491 = vmatmul.f32.gmra.mxu0 %v536
        %v1492 = vpop.f32.mrf.mxu0
        %v1493 = vadd.f32 %v1452, %v1492
        %1494 = vmatmul.f32.gmra.mxu0 %v545
        %v1495 = vpop.f32.mrf.mxu0
        %v1496 = vadd.f32 %v1455, %v1495
        %1497 = vdwg.mxu0
        %1498 = vmatpush.msra.mxu0 %v803
        %1499 = vmatpush.msra.mxu0 %v801
        %1500 = vmatpush.msra.mxu0 %v799
        %1501 = vmatpush.msra.mxu0 %v797
        %1502 = vmatpush.msra.mxu0 %v795
        %1503 = vmatpush.msra.mxu0 %v793
        %1504 = vmatpush.msra.mxu0 %v791
        %1505 = vmatpush.msra.mxu0 %v789
        %1506 = vmatpush.msra.mxu0 %v787
        %1507 = vmatpush.msra.mxu0 %v785
        %1508 = vmatpush.msra.mxu0 %v783
        %1509 = vmatpush.msra.mxu0 %v781
        %1510 = vmatpush.msra.mxu0 %v779
        %1511 = vmatpush.msra.mxu0 %v777
        %1512 = vmatpush.msra.mxu0 %v775
        %1513 = vmatpush.msra.mxu0 %v773
        %1514 = vmatmul.f32.gmra.mxu0 %v483
        %v1515 = vpop.f32.mrf.mxu0
        %v1516 = vadd.f32 %v1475, %v1515
        %1517 = vmatmul.f32.gmra.mxu0 %v492
        %v1518 = vpop.f32.mrf.mxu0
        %v1519 = vadd.f32 %v1478, %v1518
        %1520 = vmatmul.f32.gmra.mxu0 %v501
        %v1521 = vpop.f32.mrf.mxu0
        %v1522 = vadd.f32 %v1481, %v1521
        %1523 = vmatmul.f32.gmra.mxu0 %v510
        %v1524 = vpop.f32.mrf.mxu0
        %v1525 = vadd.f32 %v1484, %v1524
        %1526 = vmatmul.f32.gmra.mxu0 %v519
        %v1527 = vpop.f32.mrf.mxu0
        %v1528 = vadd.f32 %v1487, %v1527
        %1529 = vmatmul.f32.gmra.mxu0 %v528
        %v1530 = vpop.f32.mrf.mxu0
        %v1531 = vadd.f32 %v1490, %v1530
        %1532 = vmatmul.f32.gmra.mxu0 %v537
        %v1533 = vpop.f32.mrf.mxu0
        %v1534 = vadd.f32 %v1493, %v1533
        %1535 = vmatmul.f32.gmra.mxu0 %v546
        %v1536 = vpop.f32.mrf.mxu0
        %v1537 = vadd.f32 %v1496, %v1536
        %1538 = vdwg.mxu0
        %1539 = vmatpush.msra.mxu0 %v835
        %1540 = vmatpush.msra.mxu0 %v833
        %1541 = vmatpush.msra.mxu0 %v831
        %1542 = vmatpush.msra.mxu0 %v829
        %1543 = vmatpush.msra.mxu0 %v827
        %1544 = vmatpush.msra.mxu0 %v825
        %1545 = vmatpush.msra.mxu0 %v823
        %1546 = vmatpush.msra.mxu0 %v821
        %1547 = vmatpush.msra.mxu0 %v819
        %1548 = vmatpush.msra.mxu0 %v817
        %1549 = vmatpush.msra.mxu0 %v815
        %1550 = vmatpush.msra.mxu0 %v813
        %1551 = vmatpush.msra.mxu0 %v811
        %1552 = vmatpush.msra.mxu0 %v809
        %1553 = vmatpush.msra.mxu0 %v807
        %1554 = vmatpush.msra.mxu0 %v805
        %1555 = vmatmul.f32.gmra.mxu0 %v484
        %v1556 = vpop.f32.mrf.mxu0
        %v1557 = vadd.f32 %v1516, %v1556
        %1558 = vmatmul.f32.gmra.mxu0 %v493
        %v1559 = vpop.f32.mrf.mxu0
        %v1560 = vadd.f32 %v1519, %v1559
        %1561 = vmatmul.f32.gmra.mxu0 %v502
        %v1562 = vpop.f32.mrf.mxu0
        %v1563 = vadd.f32 %v1522, %v1562
        %1564 = vmatmul.f32.gmra.mxu0 %v511
        %v1565 = vpop.f32.mrf.mxu0
        %v1566 = vadd.f32 %v1525, %v1565
        %1567 = vmatmul.f32.gmra.mxu0 %v520
        %v1568 = vpop.f32.mrf.mxu0
        %v1569 = vadd.f32 %v1528, %v1568
        %1570 = vmatmul.f32.gmra.mxu0 %v529
        %v1571 = vpop.f32.mrf.mxu0
        %v1572 = vadd.f32 %v1531, %v1571
        %1573 = vmatmul.f32.gmra.mxu0 %v538
        %v1574 = vpop.f32.mrf.mxu0
        %v1575 = vadd.f32 %v1534, %v1574
        %1576 = vmatmul.f32.gmra.mxu0 %v547
        %v1577 = vpop.f32.mrf.mxu0
        %v1578 = vadd.f32 %v1537, %v1577
        %1579 = vdwg.mxu0
        %s1580 = scalar_lea.vmem %s3, 1
        %v1581 = vld [vmem:[%s1580] ss:$8 sm:$0x3]
        %s1582 = scalar_lea.vmem %s3, 2
        %v1583 = vld [vmem:[%s1582] ss:$8 sm:$0x3]
        %s1584 = sld [smem:[#allocation6]]
        %v1585 = vadd.f32 %v1188, %v1191
        %v1586 = vadd.f32 %v1585, %v1194
        %v1587 = vadd.f32 %v1586, %v1197
        %v1588 = vadd.f32 %v1587, %v1200
        %v1589 = vadd.f32 %v1588, %v1203
        %v1590 = vadd.f32 %v1589, %v1206
        %v1591 = vadd.f32 %v1590, %v1209
        %v1592 = vrot.slane %v1591, 4
        %v1593 = vadd.f32 %v1591, %v1592
        %v1594 = vrot.slane %v1593, 2
        %v1595 = vadd.f32 %v1593, %v1594
        %v1596 = vrot.slane %v1595, 1
        %v1597 = vadd.f32 %v1595, %v1596
        %v1598 = vadd.f32 %v1557, %v1560
        %v1599 = vadd.f32 %v1598, %v1563
        %v1600 = vadd.f32 %v1599, %v1566
        %v1601 = vadd.f32 %v1600, %v1569
        %v1602 = vadd.f32 %v1601, %v1572
        %v1603 = vadd.f32 %v1602, %v1575
        %v1604 = vadd.f32 %v1603, %v1578
        %v1605 = vrot.slane %v1604, 4
        %v1606 = vadd.f32 %v1604, %v1605
        %v1607 = vrot.slane %v1606, 2
        %v1608 = vadd.f32 %v1606, %v1607
        %v1609 = vrot.slane %v1608, 1
        %v1610 = vadd.f32 %v1608, %v1609
        %v1611 = vld [vmem:[%s4] sm:$0xff]
        %v1612 = vld [vmem:[%s4 + $0x8] sm:$0xff]
        %v1613 = vld [vmem:[%s4 + $0x10] sm:$0xff]
        %v1614 = vld [vmem:[%s4 + $0x18] sm:$0xff]
        %v1615 = vld [vmem:[%s4 + $0x20] sm:$0xff]
        %v1616 = vld [vmem:[%s4 + $0x28] sm:$0xff]
        %v1617 = vld [vmem:[%s4 + $0x30] sm:$0xff]
        %v1618 = vld [vmem:[%s4 + $0x38] sm:$0xff]
        %v1619 = vld [vmem:[%s4 + $0x40] sm:$0xff]
        %v1620 = vld [vmem:[%s4 + $0x48] sm:$0xff]
        %v1621 = vld [vmem:[%s4 + $0x50] sm:$0xff]
        %v1622 = vld [vmem:[%s4 + $0x58] sm:$0xff]
        %v1623 = vld [vmem:[%s4 + $0x60] sm:$0xff]
        %v1624 = vld [vmem:[%s4 + $0x68] sm:$0xff]
        %v1625 = vld [vmem:[%s4 + $0x70] sm:$0xff]
        %v1626 = vld [vmem:[%s4 + $0x78] sm:$0xff]
        %v1627 = vld [vmem:[%s4 + $0x80] sm:$0xff]
        %v1628 = vld [vmem:[%s4 + $0x88] sm:$0xff]
        %v1629 = vld [vmem:[%s4 + $0x90] sm:$0xff]
        %v1630 = vld [vmem:[%s4 + $0x98] sm:$0xff]
        %v1631 = vld [vmem:[%s4 + $0xa0] sm:$0xff]
        %v1632 = vld [vmem:[%s4 + $0xa8] sm:$0xff]
        %v1633 = vld [vmem:[%s4 + $0xb0] sm:$0xff]
        %v1634 = vld [vmem:[%s4 + $0xb8] sm:$0xff]
        %v1635 = vld [vmem:[%s4 + $0xc0] sm:$0xff]
        %v1636 = vld [vmem:[%s4 + $0xc8] sm:$0xff]
        %v1637 = vld [vmem:[%s4 + $0xd0] sm:$0xff]
        %v1638 = vld [vmem:[%s4 + $0xd8] sm:$0xff]
        %v1639 = vld [vmem:[%s4 + $0xe0] sm:$0xff]
        %v1640 = vld [vmem:[%s4 + $0xe8] sm:$0xff]
        %v1641 = vld [vmem:[%s4 + $0xf0] sm:$0xff]
        %v1642 = vld [vmem:[%s4 + $0xf8] sm:$0xff]
        %1643 = vmatpush.msra.mxu0 %v1626
        %1644 = vmatpush.msra.mxu0 %v1625
        %1645 = vmatpush.msra.mxu0 %v1624
        %1646 = vmatpush.msra.mxu0 %v1623
        %1647 = vmatpush.msra.mxu0 %v1622
        %1648 = vmatpush.msra.mxu0 %v1621
        %1649 = vmatpush.msra.mxu0 %v1620
        %1650 = vmatpush.msra.mxu0 %v1619
        %1651 = vmatpush.msra.mxu0 %v1618
        %1652 = vmatpush.msra.mxu0 %v1617
        %1653 = vmatpush.msra.mxu0 %v1616
        %1654 = vmatpush.msra.mxu0 %v1615
        %1655 = vmatpush.msra.mxu0 %v1614
        %1656 = vmatpush.msra.mxu0 %v1613
        %1657 = vmatpush.msra.mxu0 %v1612
        %1658 = vmatpush.msra.mxu0 %v1611
        %1659 = vmatmul.f32.gmra.mxu0 %v1597
        %v1660 = vpop.f32.mrf.mxu0
        %v1661 = vadd.f32 0.0, %v1660
        %1662 = vdwg.mxu0
        %1663 = vmatpush.msra.mxu0 %v1642
        %1664 = vmatpush.msra.mxu0 %v1641
        %1665 = vmatpush.msra.mxu0 %v1640
        %1666 = vmatpush.msra.mxu0 %v1639
        %1667 = vmatpush.msra.mxu0 %v1638
        %1668 = vmatpush.msra.mxu0 %v1637
        %1669 = vmatpush.msra.mxu0 %v1636
        %1670 = vmatpush.msra.mxu0 %v1635
        %1671 = vmatpush.msra.mxu0 %v1634
        %1672 = vmatpush.msra.mxu0 %v1633
        %1673 = vmatpush.msra.mxu0 %v1632
        %1674 = vmatpush.msra.mxu0 %v1631
        %1675 = vmatpush.msra.mxu0 %v1630
        %1676 = vmatpush.msra.mxu0 %v1629
        %1677 = vmatpush.msra.mxu0 %v1628
        %1678 = vmatpush.msra.mxu0 %v1627
        %1679 = vmatmul.f32.gmra.mxu0 %v1610
        %v1680 = vpop.f32.mrf.mxu0
        %v1681 = vadd.f32 %v1661, %v1680
        %1682 = vdwg.mxu0
        %v1683 = vrcp.pop 1024.0
        %v1684 = vmul.f32 1024.0, %v1683
        %v1685 = vsub.f32 1.0, %v1684
        %v1686 = vmul.f32 %v1683, %v1685
        %v1687 = vadd.f32 %v1683, %v1686
        %vm1688 = vweird.f32 %v1683
        %v1689 = vsel %vm1688, %v1683, %v1687
        %v1690 = vmul.f32 %v1681, %v1689
        %v1691 = vld [vmem:[%s5] sm:$0xff]
        %v1692 = vld [vmem:[%s5 + $0x8] sm:$0xff]
        %v1693 = vld [vmem:[%s5 + $0x10] sm:$0xff]
        %v1694 = vld [vmem:[%s5 + $0x18] sm:$0xff]
        %vm1695 = vcmask 130048
        %v1697 = vsel %vm1695, %v1690, 0
        %1699 = vmatpush.msra.mxu0 0.0
        %1700 = vmatpush.msra.mxu0 0.0
        %1701 = vmatpush.msra.mxu0 0.0
        %1702 = vmatpush.msra.mxu0 0.0
        %1703 = vmatpush.msra.mxu0 0.0
        %1704 = vmatpush.msra.mxu0 0.0
        %1705 = vmatpush.msra.mxu0 0.0
        %1706 = vmatpush.msra.mxu0 0.0
        %1707 = vmatpush.msra.mxu0 0.0
        %1708 = vmatpush.msra.mxu0 0.0
        %1709 = vmatpush.msra.mxu0 0.0
        %1710 = vmatpush.msra.mxu0 0.0
        %1711 = vmatpush.msra.mxu0 0.0
        %1712 = vmatpush.msra.mxu0 0.0
        %1713 = vmatpush.msra.mxu0 %v1693
        %1714 = vmatpush.msra.mxu0 %v1691
        %1715 = vmatmul.f32.gmra.mxu0 %v1697
        %v1716 = vpop.f32.mrf.mxu0
        %v1717 = vadd.f32 0.0, %v1716
        %1718 = vdwg.mxu0
        %1719 = vmatpush.msra.mxu0 0.0
        %1720 = vmatpush.msra.mxu0 0.0
        %1721 = vmatpush.msra.mxu0 0.0
        %1722 = vmatpush.msra.mxu0 0.0
        %1723 = vmatpush.msra.mxu0 0.0
        %1724 = vmatpush.msra.mxu0 0.0
        %1725 = vmatpush.msra.mxu0 0.0
        %1726 = vmatpush.msra.mxu0 0.0
        %1727 = vmatpush.msra.mxu0 0.0
        %1728 = vmatpush.msra.mxu0 0.0
        %1729 = vmatpush.msra.mxu0 0.0
        %1730 = vmatpush.msra.mxu0 0.0
        %1731 = vmatpush.msra.mxu0 0.0
        %1732 = vmatpush.msra.mxu0 0.0
        %1733 = vmatpush.msra.mxu0 %v1694
        %1734 = vmatpush.msra.mxu0 %v1692
        %1735 = vmatmul.f32.gmra.mxu0 %v1697
        %v1736 = vpop.f32.mrf.mxu0
        %v1737 = vadd.f32 0.0, %v1736
        %1738 = vdwg.mxu0
        %v1739 = vperm.slane %v1717, 0
        %v1740 = vperm.slane %v1737, 0
        %v1741 = vsub.f32 %v1188, %v1739
        %v1742 = vsub.f32 %v1557, %v1740
        %v1743 = vsub.f32 %v1191, %v1739
        %v1744 = vsub.f32 %v1560, %v1740
        %v1745 = vsub.f32 %v1194, %v1739
        %v1746 = vsub.f32 %v1563, %v1740
        %v1747 = vsub.f32 %v1197, %v1739
        %v1748 = vsub.f32 %v1566, %v1740
        %v1749 = vsub.f32 %v1200, %v1739
        %v1750 = vsub.f32 %v1569, %v1740
        %v1751 = vsub.f32 %v1203, %v1739
        %v1752 = vsub.f32 %v1572, %v1740
        %v1753 = vsub.f32 %v1206, %v1739
        %v1754 = vsub.f32 %v1575, %v1740
        %v1755 = vsub.f32 %v1209, %v1739
        %v1756 = vsub.f32 %v1578, %v1740
        %v1757 = vmul.f32 %v1741, %v1741
        %v1758 = vmul.f32 %v1742, %v1742
        %v1759 = vmul.f32 %v1743, %v1743
        %v1760 = vmul.f32 %v1744, %v1744
        %v1761 = vmul.f32 %v1745, %v1745
        %v1762 = vmul.f32 %v1746, %v1746
        %v1763 = vmul.f32 %v1747, %v1747
        %v1764 = vmul.f32 %v1748, %v1748
        %v1765 = vmul.f32 %v1749, %v1749
        %v1766 = vmul.f32 %v1750, %v1750
        %v1767 = vmul.f32 %v1751, %v1751
        %v1768 = vmul.f32 %v1752, %v1752
        %v1769 = vmul.f32 %v1753, %v1753
        %v1770 = vmul.f32 %v1754, %v1754
        %v1771 = vmul.f32 %v1755, %v1755
        %v1772 = vmul.f32 %v1756, %v1756
        %v1773 = vadd.f32 %v1757, %v1759
        %v1774 = vadd.f32 %v1773, %v1761
        %v1775 = vadd.f32 %v1774, %v1763
        %v1776 = vadd.f32 %v1775, %v1765
        %v1777 = vadd.f32 %v1776, %v1767
        %v1778 = vadd.f32 %v1777, %v1769
        %v1779 = vadd.f32 %v1778, %v1771
        %v1780 = vrot.slane %v1779, 4
        %v1781 = vadd.f32 %v1779, %v1780
        %v1782 = vrot.slane %v1781, 2
        %v1783 = vadd.f32 %v1781, %v1782
        %v1784 = vrot.slane %v1783, 1
        %v1785 = vadd.f32 %v1783, %v1784
        %v1786 = vadd.f32 %v1758, %v1760
        %v1787 = vadd.f32 %v1786, %v1762
        %v1788 = vadd.f32 %v1787, %v1764
        %v1789 = vadd.f32 %v1788, %v1766
        %v1790 = vadd.f32 %v1789, %v1768
        %v1791 = vadd.f32 %v1790, %v1770
        %v1792 = vadd.f32 %v1791, %v1772
        %v1793 = vrot.slane %v1792, 4
        %v1794 = vadd.f32 %v1792, %v1793
        %v1795 = vrot.slane %v1794, 2
        %v1796 = vadd.f32 %v1794, %v1795
        %v1797 = vrot.slane %v1796, 1
        %v1798 = vadd.f32 %v1796, %v1797
        %1799 = vmatpush.msra.mxu0 %v1626
        %1800 = vmatpush.msra.mxu0 %v1625
        %1801 = vmatpush.msra.mxu0 %v1624
        %1802 = vmatpush.msra.mxu0 %v1623
        %1803 = vmatpush.msra.mxu0 %v1622
        %1804 = vmatpush.msra.mxu0 %v1621
        %1805 = vmatpush.msra.mxu0 %v1620
        %1806 = vmatpush.msra.mxu0 %v1619
        %1807 = vmatpush.msra.mxu0 %v1618
        %1808 = vmatpush.msra.mxu0 %v1617
        %1809 = vmatpush.msra.mxu0 %v1616
        %1810 = vmatpush.msra.mxu0 %v1615
        %1811 = vmatpush.msra.mxu0 %v1614
        %1812 = vmatpush.msra.mxu0 %v1613
        %1813 = vmatpush.msra.mxu0 %v1612
        %1814 = vmatpush.msra.mxu0 %v1611
        %1815 = vmatmul.f32.gmra.mxu0 %v1785
        %v1816 = vpop.f32.mrf.mxu0
        %v1817 = vadd.f32 0.0, %v1816
        %1818 = vdwg.mxu0
        %1819 = vmatpush.msra.mxu0 %v1642
        %1820 = vmatpush.msra.mxu0 %v1641
        %1821 = vmatpush.msra.mxu0 %v1640
        %1822 = vmatpush.msra.mxu0 %v1639
        %1823 = vmatpush.msra.mxu0 %v1638
        %1824 = vmatpush.msra.mxu0 %v1637
        %1825 = vmatpush.msra.mxu0 %v1636
        %1826 = vmatpush.msra.mxu0 %v1635
        %1827 = vmatpush.msra.mxu0 %v1634
        %1828 = vmatpush.msra.mxu0 %v1633
        %1829 = vmatpush.msra.mxu0 %v1632
        %1830 = vmatpush.msra.mxu0 %v1631
        %1831 = vmatpush.msra.mxu0 %v1630
        %1832 = vmatpush.msra.mxu0 %v1629
        %1833 = vmatpush.msra.mxu0 %v1628
        %1834 = vmatpush.msra.mxu0 %v1627
        %1835 = vmatmul.f32.gmra.mxu0 %v1798
        %v1836 = vpop.f32.mrf.mxu0
        %v1837 = vadd.f32 %v1817, %v1836
        %1838 = vdwg.mxu0
        %v1839 = vmul.f32 %v1837, %v1689
        %v1840 = vadd.f32 %v1839, 1e-05
        %v1841 = vrsqrt.pop %v1840
        %v1842 = vmul.f32 %v1841, %v1840
        %v1843 = vmul.f32 %v1842, %v1841
        %v1844 = vmul.f32 0.5, %v1843
        %v1845 = vsub.f32 1.5, %v1844
        %v1846 = vmul.f32 %v1841, %v1845
        %vm1847 = vweird.f32 %v1840
        %vm1848 = vweird.f32 %v1841
        %vm1849 = vmor %vm1847, %vm1848
        %v1850 = vsel %vm1849, %v1841, %v1846
        %v1852 = vsel %vm1695, %v1850, 0
        %1854 = vmatpush.msra.mxu0 0.0
        %1855 = vmatpush.msra.mxu0 0.0
        %1856 = vmatpush.msra.mxu0 0.0
        %1857 = vmatpush.msra.mxu0 0.0
        %1858 = vmatpush.msra.mxu0 0.0
        %1859 = vmatpush.msra.mxu0 0.0
        %1860 = vmatpush.msra.mxu0 0.0
        %1861 = vmatpush.msra.mxu0 0.0
        %1862 = vmatpush.msra.mxu0 0.0
        %1863 = vmatpush.msra.mxu0 0.0
        %1864 = vmatpush.msra.mxu0 0.0
        %1865 = vmatpush.msra.mxu0 0.0
        %1866 = vmatpush.msra.mxu0 0.0
        %1867 = vmatpush.msra.mxu0 0.0
        %1868 = vmatpush.msra.mxu0 %v1693
        %1869 = vmatpush.msra.mxu0 %v1691
        %1870 = vmatmul.f32.gmra.mxu0 %v1852
        %v1871 = vpop.f32.mrf.mxu0
        %v1872 = vadd.f32 0.0, %v1871
        %1873 = vdwg.mxu0
        %1874 = vmatpush.msra.mxu0 0.0
        %1875 = vmatpush.msra.mxu0 0.0
        %1876 = vmatpush.msra.mxu0 0.0
        %1877 = vmatpush.msra.mxu0 0.0
        %1878 = vmatpush.msra.mxu0 0.0
        %1879 = vmatpush.msra.mxu0 0.0
        %1880 = vmatpush.msra.mxu0 0.0
        %1881 = vmatpush.msra.mxu0 0.0
        %1882 = vmatpush.msra.mxu0 0.0
        %1883 = vmatpush.msra.mxu0 0.0
        %1884 = vmatpush.msra.mxu0 0.0
        %1885 = vmatpush.msra.mxu0 0.0
        %1886 = vmatpush.msra.mxu0 0.0
        %1887 = vmatpush.msra.mxu0 0.0
        %1888 = vmatpush.msra.mxu0 %v1694
        %1889 = vmatpush.msra.mxu0 %v1692
        %1890 = vmatmul.f32.gmra.mxu0 %v1852
        %v1891 = vpop.f32.mrf.mxu0
        %v1892 = vadd.f32 0.0, %v1891
        %1893 = vdwg.mxu0
        %v1895 = vperm.slane %v1581, 0
        %v1896 = vperm.slane %v1581, 1
        %v1899 = vmul.f32 %v1872, %v1895
        %v1900 = vmul.f32 %v1892, %v1896
        %v1901 = vperm.slane %v1899, 0
        %v1902 = vperm.slane %v1900, 0
        %v1903 = vmul.f32 %v1741, %v1901
        %v1904 = vmul.f32 %v1742, %v1902
        %v1905 = vmul.f32 %v1743, %v1901
        %v1906 = vmul.f32 %v1744, %v1902
        %v1907 = vmul.f32 %v1745, %v1901
        %v1908 = vmul.f32 %v1746, %v1902
        %v1909 = vmul.f32 %v1747, %v1901
        %v1910 = vmul.f32 %v1748, %v1902
        %v1911 = vmul.f32 %v1749, %v1901
        %v1912 = vmul.f32 %v1750, %v1902
        %v1913 = vmul.f32 %v1751, %v1901
        %v1914 = vmul.f32 %v1752, %v1902
        %v1915 = vmul.f32 %v1753, %v1901
        %v1916 = vmul.f32 %v1754, %v1902
        %v1917 = vmul.f32 %v1755, %v1901
        %v1918 = vmul.f32 %v1756, %v1902
        %v1920 = vperm.slane %v1583, 0
        %v1921 = vperm.slane %v1583, 1
        %v1924 = vadd.f32 %v1903, %v1920
        %v1925 = vadd.f32 %v1904, %v1921
        %v1926 = vadd.f32 %v1905, %v1920
        %v1927 = vadd.f32 %v1906, %v1921
        %v1928 = vadd.f32 %v1907, %v1920
        %v1929 = vadd.f32 %v1908, %v1921
        %v1930 = vadd.f32 %v1909, %v1920
        %v1931 = vadd.f32 %v1910, %v1921
        %v1932 = vadd.f32 %v1911, %v1920
        %v1933 = vadd.f32 %v1912, %v1921
        %v1934 = vadd.f32 %v1913, %v1920
        %v1935 = vadd.f32 %v1914, %v1921
        %v1936 = vadd.f32 %v1915, %v1920
        %v1937 = vadd.f32 %v1916, %v1921
        %v1938 = vadd.f32 %v1917, %v1920
        %v1939 = vadd.f32 %v1918, %v1921
        %vm1940 = vcmp.ge.f32.partialorder %v1924, 0.0
        %vm1941 = vcmp.ge.f32.partialorder %v1925, 0.0
        %vm1942 = vcmp.ge.f32.partialorder %v1926, 0.0
        %vm1943 = vcmp.ge.f32.partialorder %v1927, 0.0
        %vm1944 = vcmp.ge.f32.partialorder %v1928, 0.0
        %vm1945 = vcmp.ge.f32.partialorder %v1929, 0.0
        %vm1946 = vcmp.ge.f32.partialorder %v1930, 0.0
        %vm1947 = vcmp.ge.f32.partialorder %v1931, 0.0
        %vm1948 = vcmp.ge.f32.partialorder %v1932, 0.0
        %vm1949 = vcmp.ge.f32.partialorder %v1933, 0.0
        %vm1950 = vcmp.ge.f32.partialorder %v1934, 0.0
        %vm1951 = vcmp.ge.f32.partialorder %v1935, 0.0
        %vm1952 = vcmp.ge.f32.partialorder %v1936, 0.0
        %vm1953 = vcmp.ge.f32.partialorder %v1937, 0.0
        %vm1954 = vcmp.ge.f32.partialorder %v1938, 0.0
        %vm1955 = vcmp.ge.f32.partialorder %v1939, 0.0
        %v1956 = vstv %s1584
        %v1957 = vmul.f32 %v1956, %v1924
        %v1958 = vmul.f32 %v1956, %v1925
        %v1959 = vmul.f32 %v1956, %v1926
        %v1960 = vmul.f32 %v1956, %v1927
        %v1961 = vmul.f32 %v1956, %v1928
        %v1962 = vmul.f32 %v1956, %v1929
        %v1963 = vmul.f32 %v1956, %v1930
        %v1964 = vmul.f32 %v1956, %v1931
        %v1965 = vmul.f32 %v1956, %v1932
        %v1966 = vmul.f32 %v1956, %v1933
        %v1967 = vmul.f32 %v1956, %v1934
        %v1968 = vmul.f32 %v1956, %v1935
        %v1969 = vmul.f32 %v1956, %v1936
        %v1970 = vmul.f32 %v1956, %v1937
        %v1971 = vmul.f32 %v1956, %v1938
        %v1972 = vmul.f32 %v1956, %v1939
        %v1973 = vsel %vm1940, %v1924, %v1957
        %v1974 = vsel %vm1941, %v1925, %v1958
        %v1975 = vsel %vm1942, %v1926, %v1959
        %v1976 = vsel %vm1943, %v1927, %v1960
        %v1977 = vsel %vm1944, %v1928, %v1961
        %v1978 = vsel %vm1945, %v1929, %v1962
        %v1979 = vsel %vm1946, %v1930, %v1963
        %v1980 = vsel %vm1947, %v1931, %v1964
        %v1981 = vsel %vm1948, %v1932, %v1965
        %v1982 = vsel %vm1949, %v1933, %v1966
        %v1983 = vsel %vm1950, %v1934, %v1967
        %v1984 = vsel %vm1951, %v1935, %v1968
        %v1985 = vsel %vm1952, %v1936, %v1969
        %v1986 = vsel %vm1953, %v1937, %v1970
        %v1987 = vsel %vm1954, %v1938, %v1971
        %v1988 = vsel %vm1955, %v1939, %v1972
        %1989 = vst [vmem:[#allocation4] sm:$0xff] 0.0
        %1990 = vst [vmem:[#allocation4 + $0x8] sm:$0xff] 0.0
        %1991 = vst [vmem:[#allocation4 + $0x10] sm:$0x3] 0.0
        %1992 = vst [vmem:[#allocation4 + $0x18] sm:$0x3] 0.0
        %s1993 = scalar_lea.vmem [#allocation4], 288
        %1994 = vst [vmem:[%s1993] sm:$0xff] 0.0
        %1995 = vst [vmem:[%s1993 + $0x8] sm:$0xff] 0.0
        %1996 = vst [vmem:[%s1993 + $0x10] sm:$0x3] 0.0
        %1997 = vst [vmem:[%s1993 + $0x18] sm:$0x3] 0.0
        %s1998 = scalar_lea.vmem [#allocation4], 32
        %v1999 = vlaneseq
        %vm2000 = vcmp.ge.s32.totalorder %v1999, 0
        %vm2001 = vcmp.lt.s32.totalorder %v1999, 256
        %vm2002 = vmand %vm2000, %vm2001
        %2003 = vst.msk [vmem:[%s1998] ss:$8 sm:$0x3] %vm2002, 0.0
        %2004 = vst.msk [vmem:[%s1998] ss:$8 sm:$0x0] %vm2002, 0.0
        %s2005 = scalar_lea.vmem %s1998, 32 [#allocation4]
        %2006 = vst.msk [vmem:[%s2005] ss:$8 sm:$0x3] %vm2002, 0.0
        %2007 = vst.msk [vmem:[%s2005] ss:$8 sm:$0x0] %vm2002, 0.0
        %s2008 = scalar_lea.vmem %s1998, 64 [#allocation4]
        %2009 = vst.msk [vmem:[%s2008] ss:$8 sm:$0x3] %vm2002, 0.0
        %2010 = vst.msk [vmem:[%s2008] ss:$8 sm:$0x0] %vm2002, 0.0
        %s2011 = scalar_lea.vmem %s1998, 96 [#allocation4]
        %2012 = vst.msk [vmem:[%s2011] ss:$8 sm:$0x3] %vm2002, 0.0
        %2013 = vst.msk [vmem:[%s2011] ss:$8 sm:$0x0] %vm2002, 0.0
        %s2014 = scalar_lea.vmem %s1998, 128 [#allocation4]
        %2015 = vst.msk [vmem:[%s2014] ss:$8 sm:$0x3] %vm2002, 0.0
        %2016 = vst.msk [vmem:[%s2014] ss:$8 sm:$0x0] %vm2002, 0.0
        %s2017 = scalar_lea.vmem %s1998, 160 [#allocation4]
        %2018 = vst.msk [vmem:[%s2017] ss:$8 sm:$0x3] %vm2002, 0.0
        %2019 = vst.msk [vmem:[%s2017] ss:$8 sm:$0x0] %vm2002, 0.0
        %s2020 = scalar_lea.vmem %s1998, 192 [#allocation4]
        %2021 = vst.msk [vmem:[%s2020] ss:$8 sm:$0x3] %vm2002, 0.0
        %2022 = vst.msk [vmem:[%s2020] ss:$8 sm:$0x0] %vm2002, 0.0
        %s2023 = scalar_lea.vmem %s1998, 224 [#allocation4]
        %2024 = vst.msk [vmem:[%s2023] ss:$8 sm:$0x3] %vm2002, 0.0
        %2025 = vst.msk [vmem:[%s2023] ss:$8 sm:$0x0] %vm2002, 0.0
        %s2026 = scalar_lea.vmem %s1998, 17 [#allocation4]
        %2027 = vst.msk [vmem:[%s2026] ss:$8 sm:$0x3] %vm2002, 0.0
        %2028 = vst.msk [vmem:[%s2026] ss:$8 sm:$0x0] %vm2002, 0.0
        %s2029 = scalar_lea.vmem %s1998, 49 [#allocation4]
        %2030 = vst.msk [vmem:[%s2029] ss:$8 sm:$0x3] %vm2002, 0.0
        %2031 = vst.msk [vmem:[%s2029] ss:$8 sm:$0x0] %vm2002, 0.0
        %s2032 = scalar_lea.vmem %s1998, 81 [#allocation4]
        %2033 = vst.msk [vmem:[%s2032] ss:$8 sm:$0x3] %vm2002, 0.0
        %2034 = vst.msk [vmem:[%s2032] ss:$8 sm:$0x0] %vm2002, 0.0
        %s2035 = scalar_lea.vmem %s1998, 113 [#allocation4]
        %2036 = vst.msk [vmem:[%s2035] ss:$8 sm:$0x3] %vm2002, 0.0
        %2037 = vst.msk [vmem:[%s2035] ss:$8 sm:$0x0] %vm2002, 0.0
        %s2038 = scalar_lea.vmem %s1998, 145 [#allocation4]
        %2039 = vst.msk [vmem:[%s2038] ss:$8 sm:$0x3] %vm2002, 0.0
        %2040 = vst.msk [vmem:[%s2038] ss:$8 sm:$0x0] %vm2002, 0.0
        %s2041 = scalar_lea.vmem %s1998, 177 [#allocation4]
        %2042 = vst.msk [vmem:[%s2041] ss:$8 sm:$0x3] %vm2002, 0.0
        %2043 = vst.msk [vmem:[%s2041] ss:$8 sm:$0x0] %vm2002, 0.0
        %s2044 = scalar_lea.vmem %s1998, 209 [#allocation4]
        %2045 = vst.msk [vmem:[%s2044] ss:$8 sm:$0x3] %vm2002, 0.0
        %2046 = vst.msk [vmem:[%s2044] ss:$8 sm:$0x0] %vm2002, 0.0
        %s2047 = scalar_lea.vmem %s1998, 241 [#allocation4]
        %2048 = vst.msk [vmem:[%s2047] ss:$8 sm:$0x3] %vm2002, 0.0
        %2049 = vst.msk [vmem:[%s2047] ss:$8 sm:$0x0] %vm2002, 0.0
        %v2066 = vrot.slane %v1973, 7
        %v2067 = vrot.slane %v1974, 7
        %v2068 = vrot.slane %v1975, 7
        %v2069 = vrot.slane %v1976, 7
        %v2070 = vrot.slane %v1977, 7
        %v2071 = vrot.slane %v1978, 7
        %v2072 = vrot.slane %v1979, 7
        %v2073 = vrot.slane %v1980, 7
        %v2074 = vrot.slane %v1981, 7
        %v2075 = vrot.slane %v1982, 7
        %v2076 = vrot.slane %v1983, 7
        %v2077 = vrot.slane %v1984, 7
        %v2078 = vrot.slane %v1985, 7
        %v2079 = vrot.slane %v1986, 7
        %v2080 = vrot.slane %v1987, 7
        %v2081 = vrot.slane %v1988, 7
        %2098 = vst [vmem:[%s1998] sm:$0xfe] %v2066
        %2099 = vst [vmem:[%s1998 + $0x8] sm:$0xfe] %v2067
        %2100 = vst [vmem:[%s1998 + $0x10] sm:$0x1] %v2066
        %2101 = vst [vmem:[%s1998 + $0x18] sm:$0x1] %v2067
        %2102 = vst [vmem:[%s1998 + $0x20] sm:$0xfe] %v2068
        %2103 = vst [vmem:[%s1998 + $0x28] sm:$0xfe] %v2069
        %2104 = vst [vmem:[%s1998 + $0x30] sm:$0x1] %v2068
        %2105 = vst [vmem:[%s1998 + $0x38] sm:$0x1] %v2069
        %2106 = vst [vmem:[%s1998 + $0x40] sm:$0xfe] %v2070
        %2107 = vst [vmem:[%s1998 + $0x48] sm:$0xfe] %v2071
        %2108 = vst [vmem:[%s1998 + $0x50] sm:$0x1] %v2070
        %2109 = vst [vmem:[%s1998 + $0x58] sm:$0x1] %v2071
        %2110 = vst [vmem:[%s1998 + $0x60] sm:$0xfe] %v2072
        %2111 = vst [vmem:[%s1998 + $0x68] sm:$0xfe] %v2073
        %2112 = vst [vmem:[%s1998 + $0x70] sm:$0x1] %v2072
        %2113 = vst [vmem:[%s1998 + $0x78] sm:$0x1] %v2073
        %2114 = vst [vmem:[%s1998 + $0x80] sm:$0xfe] %v2074
        %2115 = vst [vmem:[%s1998 + $0x88] sm:$0xfe] %v2075
        %2116 = vst [vmem:[%s1998 + $0x90] sm:$0x1] %v2074
        %2117 = vst [vmem:[%s1998 + $0x98] sm:$0x1] %v2075
        %2118 = vst [vmem:[%s1998 + $0xa0] sm:$0xfe] %v2076
        %2119 = vst [vmem:[%s1998 + $0xa8] sm:$0xfe] %v2077
        %2120 = vst [vmem:[%s1998 + $0xb0] sm:$0x1] %v2076
        %2121 = vst [vmem:[%s1998 + $0xb8] sm:$0x1] %v2077
        %2122 = vst [vmem:[%s1998 + $0xc0] sm:$0xfe] %v2078
        %2123 = vst [vmem:[%s1998 + $0xc8] sm:$0xfe] %v2079
        %2124 = vst [vmem:[%s1998 + $0xd0] sm:$0x1] %v2078
        %2125 = vst [vmem:[%s1998 + $0xd8] sm:$0x1] %v2079
        %2126 = vst [vmem:[%s1998 + $0xe0] sm:$0xfe] %v2080
        %2127 = vst [vmem:[%s1998 + $0xe8] sm:$0xfe] %v2081
        %2128 = vst [vmem:[%s1998 + $0xf0] sm:$0x1] %v2080
        %2129 = vst [vmem:[%s1998 + $0xf8] sm:$0x1] %v2081
        %v2130 = vld [vmem:[#allocation4] sm:$0xff]
        %v2131 = vld [vmem:[#allocation4 + $0x8] sm:$0xff]
        %v2132 = vld [vmem:[#allocation4 + $0x20] sm:$0xff]
        %v2133 = vld [vmem:[#allocation4 + $0x28] sm:$0xff]
        %v2134 = vld [vmem:[#allocation4 + $0x40] sm:$0xff]
        %v2135 = vld [vmem:[#allocation4 + $0x48] sm:$0xff]
        %v2136 = vld [vmem:[#allocation4 + $0x60] sm:$0xff]
        %v2137 = vld [vmem:[#allocation4 + $0x68] sm:$0xff]
        %v2138 = vld [vmem:[#allocation4 + $0x80] sm:$0xff]
        %v2139 = vld [vmem:[#allocation4 + $0x88] sm:$0xff]
        %v2140 = vld [vmem:[#allocation4 + $0xa0] sm:$0xff]
        %v2141 = vld [vmem:[#allocation4 + $0xa8] sm:$0xff]
        %v2142 = vld [vmem:[#allocation4 + $0xc0] sm:$0xff]
        %v2143 = vld [vmem:[#allocation4 + $0xc8] sm:$0xff]
        %v2144 = vld [vmem:[#allocation4 + $0xe0] sm:$0xff]
        %v2145 = vld [vmem:[#allocation4 + $0xe8] sm:$0xff]
        %2146 = vst [vmem:[#allocation5] sm:$0xff] %v2130
        %2147 = vst [vmem:[#allocation5 + $0x8] sm:$0xff] %v2131
        %2148 = vst [vmem:[#allocation5 + $0x90] sm:$0xff] %v2132
        %2149 = vst [vmem:[#allocation5 + $0x98] sm:$0xff] %v2133
        %2150 = vst [vmem:[#allocation5 + $0x120] sm:$0xff] %v2134
        %2151 = vst [vmem:[#allocation5 + $0x128] sm:$0xff] %v2135
        %2152 = vst [vmem:[#allocation5 + $0x1b0] sm:$0xff] %v2136
        %2153 = vst [vmem:[#allocation5 + $0x1b8] sm:$0xff] %v2137
        %2154 = vst [vmem:[#allocation5 + $0x240] sm:$0xff] %v2138
        %2155 = vst [vmem:[#allocation5 + $0x248] sm:$0xff] %v2139
        %2156 = vst [vmem:[#allocation5 + $0x2d0] sm:$0xff] %v2140
        %2157 = vst [vmem:[#allocation5 + $0x2d8] sm:$0xff] %v2141
        %2158 = vst [vmem:[#allocation5 + $0x360] sm:$0xff] %v2142
        %2159 = vst [vmem:[#allocation5 + $0x368] sm:$0xff] %v2143
        %2160 = vst [vmem:[#allocation5 + $0x3f0] sm:$0xff] %v2144
        %2161 = vst [vmem:[#allocation5 + $0x3f8] sm:$0xff] %v2145
        %v2162 = vld [vmem:[#allocation4] sm:$0xfe]
        %v2163 = vld [vmem:[#allocation4 + $0x8] sm:$0xfe]
        %v2164 = vld [vmem:[#allocation4 + $0x10] sm:$0x1]
        %v2165 = vld [vmem:[#allocation4 + $0x18] sm:$0x1]
        %v2166 = vld [vmem:[#allocation4 + $0x20] sm:$0xfe]
        %v2167 = vld [vmem:[#allocation4 + $0x28] sm:$0xfe]
        %v2168 = vld [vmem:[#allocation4 + $0x30] sm:$0x1]
        %v2169 = vld [vmem:[#allocation4 + $0x38] sm:$0x1]
        %v2170 = vld [vmem:[#allocation4 + $0x40] sm:$0xfe]
        %v2171 = vld [vmem:[#allocation4 + $0x48] sm:$0xfe]
        %v2172 = vld [vmem:[#allocation4 + $0x50] sm:$0x1]
        %v2173 = vld [vmem:[#allocation4 + $0x58] sm:$0x1]
        %v2174 = vld [vmem:[#allocation4 + $0x60] sm:$0xfe]
        %v2175 = vld [vmem:[#allocation4 + $0x68] sm:$0xfe]
        %v2176 = vld [vmem:[#allocation4 + $0x70] sm:$0x1]
        %v2177 = vld [vmem:[#allocation4 + $0x78] sm:$0x1]
        %v2178 = vld [vmem:[#allocation4 + $0x80] sm:$0xfe]
        %v2179 = vld [vmem:[#allocation4 + $0x88] sm:$0xfe]
        %v2180 = vld [vmem:[#allocation4 + $0x90] sm:$0x1]
        %v2181 = vld [vmem:[#allocation4 + $0x98] sm:$0x1]
        %v2182 = vld [vmem:[#allocation4 + $0xa0] sm:$0xfe]
        %v2183 = vld [vmem:[#allocation4 + $0xa8] sm:$0xfe]
        %v2184 = vld [vmem:[#allocation4 + $0xb0] sm:$0x1]
        %v2185 = vld [vmem:[#allocation4 + $0xb8] sm:$0x1]
        %v2186 = vld [vmem:[#allocation4 + $0xc0] sm:$0xfe]
        %v2187 = vld [vmem:[#allocation4 + $0xc8] sm:$0xfe]
        %v2188 = vld [vmem:[#allocation4 + $0xd0] sm:$0x1]
        %v2189 = vld [vmem:[#allocation4 + $0xd8] sm:$0x1]
        %v2190 = vld [vmem:[#allocation4 + $0xe0] sm:$0xfe]
        %v2191 = vld [vmem:[#allocation4 + $0xe8] sm:$0xfe]
        %v2192 = vld [vmem:[#allocation4 + $0xf0] sm:$0x1]
        %v2193 = vld [vmem:[#allocation4 + $0xf8] sm:$0x1]
        %vm2226 = vcmask 1046528
        %v2227 = vrot.slane %v2162, 1
        %v2228 = vrot.slane %v2164, 1
        %v2229 = vsel %vm2226, %v2227, %v2228
        %v2230 = vrot.slane %v2163, 1
        %v2231 = vrot.slane %v2165, 1
        %v2232 = vsel %vm2226, %v2230, %v2231
        %v2233 = vrot.slane %v2166, 1
        %v2234 = vrot.slane %v2168, 1
        %v2235 = vsel %vm2226, %v2233, %v2234
        %v2236 = vrot.slane %v2167, 1
        %v2237 = vrot.slane %v2169, 1
        %v2238 = vsel %vm2226, %v2236, %v2237
        %v2239 = vrot.slane %v2170, 1
        %v2240 = vrot.slane %v2172, 1
        %v2241 = vsel %vm2226, %v2239, %v2240
        %v2242 = vrot.slane %v2171, 1
        %v2243 = vrot.slane %v2173, 1
        %v2244 = vsel %vm2226, %v2242, %v2243
        %v2245 = vrot.slane %v2174, 1
        %v2246 = vrot.slane %v2176, 1
        %v2247 = vsel %vm2226, %v2245, %v2246
        %v2248 = vrot.slane %v2175, 1
        %v2249 = vrot.slane %v2177, 1
        %v2250 = vsel %vm2226, %v2248, %v2249
        %v2251 = vrot.slane %v2178, 1
        %v2252 = vrot.slane %v2180, 1
        %v2253 = vsel %vm2226, %v2251, %v2252
        %v2254 = vrot.slane %v2179, 1
        %v2255 = vrot.slane %v2181, 1
        %v2256 = vsel %vm2226, %v2254, %v2255
        %v2257 = vrot.slane %v2182, 1
        %v2258 = vrot.slane %v2184, 1
        %v2259 = vsel %vm2226, %v2257, %v2258
        %v2260 = vrot.slane %v2183, 1
        %v2261 = vrot.slane %v2185, 1
        %v2262 = vsel %vm2226, %v2260, %v2261
        %v2263 = vrot.slane %v2186, 1
        %v2264 = vrot.slane %v2188, 1
        %v2265 = vsel %vm2226, %v2263, %v2264
        %v2266 = vrot.slane %v2187, 1
        %v2267 = vrot.slane %v2189, 1
        %v2268 = vsel %vm2226, %v2266, %v2267
        %v2269 = vrot.slane %v2190, 1
        %v2270 = vrot.slane %v2192, 1
        %v2271 = vsel %vm2226, %v2269, %v2270
        %v2272 = vrot.slane %v2191, 1
        %v2273 = vrot.slane %v2193, 1
        %v2274 = vsel %vm2226, %v2272, %v2273
        %2291 = vst [vmem:[#allocation5 + $0x10] sm:$0xff] %v2229
        %2292 = vst [vmem:[#allocation5 + $0x18] sm:$0xff] %v2232
        %2293 = vst [vmem:[#allocation5 + $0xa0] sm:$0xff] %v2235
        %2294 = vst [vmem:[#allocation5 + $0xa8] sm:$0xff] %v2238
        %2295 = vst [vmem:[#allocation5 + $0x130] sm:$0xff] %v2241
        %2296 = vst [vmem:[#allocation5 + $0x138] sm:$0xff] %v2244
        %2297 = vst [vmem:[#allocation5 + $0x1c0] sm:$0xff] %v2247
        %2298 = vst [vmem:[#allocation5 + $0x1c8] sm:$0xff] %v2250
        %2299 = vst [vmem:[#allocation5 + $0x250] sm:$0xff] %v2253
        %2300 = vst [vmem:[#allocation5 + $0x258] sm:$0xff] %v2256
        %2301 = vst [vmem:[#allocation5 + $0x2e0] sm:$0xff] %v2259
        %2302 = vst [vmem:[#allocation5 + $0x2e8] sm:$0xff] %v2262
        %2303 = vst [vmem:[#allocation5 + $0x370] sm:$0xff] %v2265
        %2304 = vst [vmem:[#allocation5 + $0x378] sm:$0xff] %v2268
        %2305 = vst [vmem:[#allocation5 + $0x400] sm:$0xff] %v2271
        %2306 = vst [vmem:[#allocation5 + $0x408] sm:$0xff] %v2274
        %v2307 = vld [vmem:[#allocation4] sm:$0xfc]
        %v2308 = vld [vmem:[#allocation4 + $0x8] sm:$0xfc]
        %v2309 = vld [vmem:[#allocation4 + $0x10] sm:$0x3]
        %v2310 = vld [vmem:[#allocation4 + $0x18] sm:$0x3]
        %v2311 = vld [vmem:[#allocation4 + $0x20] sm:$0xfc]
        %v2312 = vld [vmem:[#allocation4 + $0x28] sm:$0xfc]
        %v2313 = vld [vmem:[#allocation4 + $0x30] sm:$0x3]
        %v2314 = vld [vmem:[#allocation4 + $0x38] sm:$0x3]
        %v2315 = vld [vmem:[#allocation4 + $0x40] sm:$0xfc]
        %v2316 = vld [vmem:[#allocation4 + $0x48] sm:$0xfc]
        %v2317 = vld [vmem:[#allocation4 + $0x50] sm:$0x3]
        %v2318 = vld [vmem:[#allocation4 + $0x58] sm:$0x3]
        %v2319 = vld [vmem:[#allocation4 + $0x60] sm:$0xfc]
        %v2320 = vld [vmem:[#allocation4 + $0x68] sm:$0xfc]
        %v2321 = vld [vmem:[#allocation4 + $0x70] sm:$0x3]
        %v2322 = vld [vmem:[#allocation4 + $0x78] sm:$0x3]
        %v2323 = vld [vmem:[#allocation4 + $0x80] sm:$0xfc]
        %v2324 = vld [vmem:[#allocation4 + $0x88] sm:$0xfc]
        %v2325 = vld [vmem:[#allocation4 + $0x90] sm:$0x3]
        %v2326 = vld [vmem:[#allocation4 + $0x98] sm:$0x3]
        %v2327 = vld [vmem:[#allocation4 + $0xa0] sm:$0xfc]
        %v2328 = vld [vmem:[#allocation4 + $0xa8] sm:$0xfc]
        %v2329 = vld [vmem:[#allocation4 + $0xb0] sm:$0x3]
        %v2330 = vld [vmem:[#allocation4 + $0xb8] sm:$0x3]
        %v2331 = vld [vmem:[#allocation4 + $0xc0] sm:$0xfc]
        %v2332 = vld [vmem:[#allocation4 + $0xc8] sm:$0xfc]
        %v2333 = vld [vmem:[#allocation4 + $0xd0] sm:$0x3]
        %v2334 = vld [vmem:[#allocation4 + $0xd8] sm:$0x3]
        %v2335 = vld [vmem:[#allocation4 + $0xe0] sm:$0xfc]
        %v2336 = vld [vmem:[#allocation4 + $0xe8] sm:$0xfc]
        %v2337 = vld [vmem:[#allocation4 + $0xf0] sm:$0x3]
        %v2338 = vld [vmem:[#allocation4 + $0xf8] sm:$0x3]
        %vm2371 = vcmask 1045504
        %v2372 = vrot.slane %v2307, 2
        %v2373 = vrot.slane %v2309, 2
        %v2374 = vsel %vm2371, %v2372, %v2373
        %v2375 = vrot.slane %v2308, 2
        %v2376 = vrot.slane %v2310, 2
        %v2377 = vsel %vm2371, %v2375, %v2376
        %v2378 = vrot.slane %v2311, 2
        %v2379 = vrot.slane %v2313, 2
        %v2380 = vsel %vm2371, %v2378, %v2379
        %v2381 = vrot.slane %v2312, 2
        %v2382 = vrot.slane %v2314, 2
        %v2383 = vsel %vm2371, %v2381, %v2382
        %v2384 = vrot.slane %v2315, 2
        %v2385 = vrot.slane %v2317, 2
        %v2386 = vsel %vm2371, %v2384, %v2385
        %v2387 = vrot.slane %v2316, 2
        %v2388 = vrot.slane %v2318, 2
        %v2389 = vsel %vm2371, %v2387, %v2388
        %v2390 = vrot.slane %v2319, 2
        %v2391 = vrot.slane %v2321, 2
        %v2392 = vsel %vm2371, %v2390, %v2391
        %v2393 = vrot.slane %v2320, 2
        %v2394 = vrot.slane %v2322, 2
        %v2395 = vsel %vm2371, %v2393, %v2394
        %v2396 = vrot.slane %v2323, 2
        %v2397 = vrot.slane %v2325, 2
        %v2398 = vsel %vm2371, %v2396, %v2397
        %v2399 = vrot.slane %v2324, 2
        %v2400 = vrot.slane %v2326, 2
        %v2401 = vsel %vm2371, %v2399, %v2400
        %v2402 = vrot.slane %v2327, 2
        %v2403 = vrot.slane %v2329, 2
        %v2404 = vsel %vm2371, %v2402, %v2403
        %v2405 = vrot.slane %v2328, 2
        %v2406 = vrot.slane %v2330, 2
        %v2407 = vsel %vm2371, %v2405, %v2406
        %v2408 = vrot.slane %v2331, 2
        %v2409 = vrot.slane %v2333, 2
        %v2410 = vsel %vm2371, %v2408, %v2409
        %v2411 = vrot.slane %v2332, 2
        %v2412 = vrot.slane %v2334, 2
        %v2413 = vsel %vm2371, %v2411, %v2412
        %v2414 = vrot.slane %v2335, 2
        %v2415 = vrot.slane %v2337, 2
        %v2416 = vsel %vm2371, %v2414, %v2415
        %v2417 = vrot.slane %v2336, 2
        %v2418 = vrot.slane %v2338, 2
        %v2419 = vsel %vm2371, %v2417, %v2418
        %2436 = vst [vmem:[#allocation5 + $0x20] sm:$0xff] %v2374
        %2437 = vst [vmem:[#allocation5 + $0x28] sm:$0xff] %v2377
        %2438 = vst [vmem:[#allocation5 + $0xb0] sm:$0xff] %v2380
        %2439 = vst [vmem:[#allocation5 + $0xb8] sm:$0xff] %v2383
        %2440 = vst [vmem:[#allocation5 + $0x140] sm:$0xff] %v2386
        %2441 = vst [vmem:[#allocation5 + $0x148] sm:$0xff] %v2389
        %2442 = vst [vmem:[#allocation5 + $0x1d0] sm:$0xff] %v2392
        %2443 = vst [vmem:[#allocation5 + $0x1d8] sm:$0xff] %v2395
        %2444 = vst [vmem:[#allocation5 + $0x260] sm:$0xff] %v2398
        %2445 = vst [vmem:[#allocation5 + $0x268] sm:$0xff] %v2401
        %2446 = vst [vmem:[#allocation5 + $0x2f0] sm:$0xff] %v2404
        %2447 = vst [vmem:[#allocation5 + $0x2f8] sm:$0xff] %v2407
        %2448 = vst [vmem:[#allocation5 + $0x380] sm:$0xff] %v2410
        %2449 = vst [vmem:[#allocation5 + $0x388] sm:$0xff] %v2413
        %2450 = vst [vmem:[#allocation5 + $0x410] sm:$0xff] %v2416
        %2451 = vst [vmem:[#allocation5 + $0x418] sm:$0xff] %v2419
        %v2452 = vld [vmem:[%s1998] sm:$0xff]
        %v2453 = vld [vmem:[%s1998 + $0x8] sm:$0xff]
        %v2454 = vld [vmem:[%s1998 + $0x20] sm:$0xff]
        %v2455 = vld [vmem:[%s1998 + $0x28] sm:$0xff]
        %v2456 = vld [vmem:[%s1998 + $0x40] sm:$0xff]
        %v2457 = vld [vmem:[%s1998 + $0x48] sm:$0xff]
        %v2458 = vld [vmem:[%s1998 + $0x60] sm:$0xff]
        %v2459 = vld [vmem:[%s1998 + $0x68] sm:$0xff]
        %v2460 = vld [vmem:[%s1998 + $0x80] sm:$0xff]
        %v2461 = vld [vmem:[%s1998 + $0x88] sm:$0xff]
        %v2462 = vld [vmem:[%s1998 + $0xa0] sm:$0xff]
        %v2463 = vld [vmem:[%s1998 + $0xa8] sm:$0xff]
        %v2464 = vld [vmem:[%s1998 + $0xc0] sm:$0xff]
        %v2465 = vld [vmem:[%s1998 + $0xc8] sm:$0xff]
        %v2466 = vld [vmem:[%s1998 + $0xe0] sm:$0xff]
        %v2467 = vld [vmem:[%s1998 + $0xe8] sm:$0xff]
        %2468 = vst [vmem:[#allocation5 + $0x30] sm:$0xff] %v2452
        %2469 = vst [vmem:[#allocation5 + $0x38] sm:$0xff] %v2453
        %2470 = vst [vmem:[#allocation5 + $0xc0] sm:$0xff] %v2454
        %2471 = vst [vmem:[#allocation5 + $0xc8] sm:$0xff] %v2455
        %2472 = vst [vmem:[#allocation5 + $0x150] sm:$0xff] %v2456
        %2473 = vst [vmem:[#allocation5 + $0x158] sm:$0xff] %v2457
        %2474 = vst [vmem:[#allocation5 + $0x1e0] sm:$0xff] %v2458
        %2475 = vst [vmem:[#allocation5 + $0x1e8] sm:$0xff] %v2459
        %2476 = vst [vmem:[#allocation5 + $0x270] sm:$0xff] %v2460
        %2477 = vst [vmem:[#allocation5 + $0x278] sm:$0xff] %v2461
        %2478 = vst [vmem:[#allocation5 + $0x300] sm:$0xff] %v2462
        %2479 = vst [vmem:[#allocation5 + $0x308] sm:$0xff] %v2463
        %2480 = vst [vmem:[#allocation5 + $0x390] sm:$0xff] %v2464
        %2481 = vst [vmem:[#allocation5 + $0x398] sm:$0xff] %v2465
        %2482 = vst [vmem:[#allocation5 + $0x420] sm:$0xff] %v2466
        %2483 = vst [vmem:[#allocation5 + $0x428] sm:$0xff] %v2467
        %v2484 = vld [vmem:[%s1998] sm:$0xfe]
        %v2485 = vld [vmem:[%s1998 + $0x8] sm:$0xfe]
        %v2486 = vld [vmem:[%s1998 + $0x10] sm:$0x1]
        %v2487 = vld [vmem:[%s1998 + $0x18] sm:$0x1]
        %v2488 = vld [vmem:[%s1998 + $0x20] sm:$0xfe]
        %v2489 = vld [vmem:[%s1998 + $0x28] sm:$0xfe]
        %v2490 = vld [vmem:[%s1998 + $0x30] sm:$0x1]
        %v2491 = vld [vmem:[%s1998 + $0x38] sm:$0x1]
        %v2492 = vld [vmem:[%s1998 + $0x40] sm:$0xfe]
        %v2493 = vld [vmem:[%s1998 + $0x48] sm:$0xfe]
        %v2494 = vld [vmem:[%s1998 + $0x50] sm:$0x1]
        %v2495 = vld [vmem:[%s1998 + $0x58] sm:$0x1]
        %v2496 = vld [vmem:[%s1998 + $0x60] sm:$0xfe]
        %v2497 = vld [vmem:[%s1998 + $0x68] sm:$0xfe]
        %v2498 = vld [vmem:[%s1998 + $0x70] sm:$0x1]
        %v2499 = vld [vmem:[%s1998 + $0x78] sm:$0x1]
        %v2500 = vld [vmem:[%s1998 + $0x80] sm:$0xfe]
        %v2501 = vld [vmem:[%s1998 + $0x88] sm:$0xfe]
        %v2502 = vld [vmem:[%s1998 + $0x90] sm:$0x1]
        %v2503 = vld [vmem:[%s1998 + $0x98] sm:$0x1]
        %v2504 = vld [vmem:[%s1998 + $0xa0] sm:$0xfe]
        %v2505 = vld [vmem:[%s1998 + $0xa8] sm:$0xfe]
        %v2506 = vld [vmem:[%s1998 + $0xb0] sm:$0x1]
        %v2507 = vld [vmem:[%s1998 + $0xb8] sm:$0x1]
        %v2508 = vld [vmem:[%s1998 + $0xc0] sm:$0xfe]
        %v2509 = vld [vmem:[%s1998 + $0xc8] sm:$0xfe]
        %v2510 = vld [vmem:[%s1998 + $0xd0] sm:$0x1]
        %v2511 = vld [vmem:[%s1998 + $0xd8] sm:$0x1]
        %v2512 = vld [vmem:[%s1998 + $0xe0] sm:$0xfe]
        %v2513 = vld [vmem:[%s1998 + $0xe8] sm:$0xfe]
        %v2514 = vld [vmem:[%s1998 + $0xf0] sm:$0x1]
        %v2515 = vld [vmem:[%s1998 + $0xf8] sm:$0x1]
        %v2548 = vrot.slane %v2484, 1
        %v2549 = vrot.slane %v2486, 1
        %v2550 = vsel %vm2226, %v2548, %v2549
        %v2551 = vrot.slane %v2485, 1
        %v2552 = vrot.slane %v2487, 1
        %v2553 = vsel %vm2226, %v2551, %v2552
        %v2554 = vrot.slane %v2488, 1
        %v2555 = vrot.slane %v2490, 1
        %v2556 = vsel %vm2226, %v2554, %v2555
        %v2557 = vrot.slane %v2489, 1
        %v2558 = vrot.slane %v2491, 1
        %v2559 = vsel %vm2226, %v2557, %v2558
        %v2560 = vrot.slane %v2492, 1
        %v2561 = vrot.slane %v2494, 1
        %v2562 = vsel %vm2226, %v2560, %v2561
        %v2563 = vrot.slane %v2493, 1
        %v2564 = vrot.slane %v2495, 1
        %v2565 = vsel %vm2226, %v2563, %v2564
        %v2566 = vrot.slane %v2496, 1
        %v2567 = vrot.slane %v2498, 1
        %v2568 = vsel %vm2226, %v2566, %v2567
        %v2569 = vrot.slane %v2497, 1
        %v2570 = vrot.slane %v2499, 1
        %v2571 = vsel %vm2226, %v2569, %v2570
        %v2572 = vrot.slane %v2500, 1
        %v2573 = vrot.slane %v2502, 1
        %v2574 = vsel %vm2226, %v2572, %v2573
        %v2575 = vrot.slane %v2501, 1
        %v2576 = vrot.slane %v2503, 1
        %v2577 = vsel %vm2226, %v2575, %v2576
        %v2578 = vrot.slane %v2504, 1
        %v2579 = vrot.slane %v2506, 1
        %v2580 = vsel %vm2226, %v2578, %v2579
        %v2581 = vrot.slane %v2505, 1
        %v2582 = vrot.slane %v2507, 1
        %v2583 = vsel %vm2226, %v2581, %v2582
        %v2584 = vrot.slane %v2508, 1
        %v2585 = vrot.slane %v2510, 1
        %v2586 = vsel %vm2226, %v2584, %v2585
        %v2587 = vrot.slane %v2509, 1
        %v2588 = vrot.slane %v2511, 1
        %v2589 = vsel %vm2226, %v2587, %v2588
        %v2590 = vrot.slane %v2512, 1
        %v2591 = vrot.slane %v2514, 1
        %v2592 = vsel %vm2226, %v2590, %v2591
        %v2593 = vrot.slane %v2513, 1
        %v2594 = vrot.slane %v2515, 1
        %v2595 = vsel %vm2226, %v2593, %v2594
        %2612 = vst [vmem:[#allocation5 + $0x40] sm:$0xff] %v2550
        %2613 = vst [vmem:[#allocation5 + $0x48] sm:$0xff] %v2553
        %2614 = vst [vmem:[#allocation5 + $0xd0] sm:$0xff] %v2556
        %2615 = vst [vmem:[#allocation5 + $0xd8] sm:$0xff] %v2559
        %2616 = vst [vmem:[#allocation5 + $0x160] sm:$0xff] %v2562
        %2617 = vst [vmem:[#allocation5 + $0x168] sm:$0xff] %v2565
        %2618 = vst [vmem:[#allocation5 + $0x1f0] sm:$0xff] %v2568
        %2619 = vst [vmem:[#allocation5 + $0x1f8] sm:$0xff] %v2571
        %2620 = vst [vmem:[#allocation5 + $0x280] sm:$0xff] %v2574
        %2621 = vst [vmem:[#allocation5 + $0x288] sm:$0xff] %v2577
        %2622 = vst [vmem:[#allocation5 + $0x310] sm:$0xff] %v2580
        %2623 = vst [vmem:[#allocation5 + $0x318] sm:$0xff] %v2583
        %2624 = vst [vmem:[#allocation5 + $0x3a0] sm:$0xff] %v2586
        %2625 = vst [vmem:[#allocation5 + $0x3a8] sm:$0xff] %v2589
        %2626 = vst [vmem:[#allocation5 + $0x430] sm:$0xff] %v2592
        %2627 = vst [vmem:[#allocation5 + $0x438] sm:$0xff] %v2595
        %v2628 = vld [vmem:[%s1998] sm:$0xfc]
        %v2629 = vld [vmem:[%s1998 + $0x8] sm:$0xfc]
        %v2630 = vld [vmem:[%s1998 + $0x10] sm:$0x3]
        %v2631 = vld [vmem:[%s1998 + $0x18] sm:$0x3]
        %v2632 = vld [vmem:[%s1998 + $0x20] sm:$0xfc]
        %v2633 = vld [vmem:[%s1998 + $0x28] sm:$0xfc]
        %v2634 = vld [vmem:[%s1998 + $0x30] sm:$0x3]
        %v2635 = vld [vmem:[%s1998 + $0x38] sm:$0x3]
        %v2636 = vld [vmem:[%s1998 + $0x40] sm:$0xfc]
        %v2637 = vld [vmem:[%s1998 + $0x48] sm:$0xfc]
        %v2638 = vld [vmem:[%s1998 + $0x50] sm:$0x3]
        %v2639 = vld [vmem:[%s1998 + $0x58] sm:$0x3]
        %v2640 = vld [vmem:[%s1998 + $0x60] sm:$0xfc]
        %v2641 = vld [vmem:[%s1998 + $0x68] sm:$0xfc]
        %v2642 = vld [vmem:[%s1998 + $0x70] sm:$0x3]
        %v2643 = vld [vmem:[%s1998 + $0x78] sm:$0x3]
        %v2644 = vld [vmem:[%s1998 + $0x80] sm:$0xfc]
        %v2645 = vld [vmem:[%s1998 + $0x88] sm:$0xfc]
        %v2646 = vld [vmem:[%s1998 + $0x90] sm:$0x3]
        %v2647 = vld [vmem:[%s1998 + $0x98] sm:$0x3]
        %v2648 = vld [vmem:[%s1998 + $0xa0] sm:$0xfc]
        %v2649 = vld [vmem:[%s1998 + $0xa8] sm:$0xfc]
        %v2650 = vld [vmem:[%s1998 + $0xb0] sm:$0x3]
        %v2651 = vld [vmem:[%s1998 + $0xb8] sm:$0x3]
        %v2652 = vld [vmem:[%s1998 + $0xc0] sm:$0xfc]
        %v2653 = vld [vmem:[%s1998 + $0xc8] sm:$0xfc]
        %v2654 = vld [vmem:[%s1998 + $0xd0] sm:$0x3]
        %v2655 = vld [vmem:[%s1998 + $0xd8] sm:$0x3]
        %v2656 = vld [vmem:[%s1998 + $0xe0] sm:$0xfc]
        %v2657 = vld [vmem:[%s1998 + $0xe8] sm:$0xfc]
        %v2658 = vld [vmem:[%s1998 + $0xf0] sm:$0x3]
        %v2659 = vld [vmem:[%s1998 + $0xf8] sm:$0x3]
        %v2692 = vrot.slane %v2628, 2
        %v2693 = vrot.slane %v2630, 2
        %v2694 = vsel %vm2371, %v2692, %v2693
        %v2695 = vrot.slane %v2629, 2
        %v2696 = vrot.slane %v2631, 2
        %v2697 = vsel %vm2371, %v2695, %v2696
        %v2698 = vrot.slane %v2632, 2
        %v2699 = vrot.slane %v2634, 2
        %v2700 = vsel %vm2371, %v2698, %v2699
        %v2701 = vrot.slane %v2633, 2
        %v2702 = vrot.slane %v2635, 2
        %v2703 = vsel %vm2371, %v2701, %v2702
        %v2704 = vrot.slane %v2636, 2
        %v2705 = vrot.slane %v2638, 2
        %v2706 = vsel %vm2371, %v2704, %v2705
        %v2707 = vrot.slane %v2637, 2
        %v2708 = vrot.slane %v2639, 2
        %v2709 = vsel %vm2371, %v2707, %v2708
        %v2710 = vrot.slane %v2640, 2
        %v2711 = vrot.slane %v2642, 2
        %v2712 = vsel %vm2371, %v2710, %v2711
        %v2713 = vrot.slane %v2641, 2
        %v2714 = vrot.slane %v2643, 2
        %v2715 = vsel %vm2371, %v2713, %v2714
        %v2716 = vrot.slane %v2644, 2
        %v2717 = vrot.slane %v2646, 2
        %v2718 = vsel %vm2371, %v2716, %v2717
        %v2719 = vrot.slane %v2645, 2
        %v2720 = vrot.slane %v2647, 2
        %v2721 = vsel %vm2371, %v2719, %v2720
        %v2722 = vrot.slane %v2648, 2
        %v2723 = vrot.slane %v2650, 2
        %v2724 = vsel %vm2371, %v2722, %v2723
        %v2725 = vrot.slane %v2649, 2
        %v2726 = vrot.slane %v2651, 2
        %v2727 = vsel %vm2371, %v2725, %v2726
        %v2728 = vrot.slane %v2652, 2
        %v2729 = vrot.slane %v2654, 2
        %v2730 = vsel %vm2371, %v2728, %v2729
        %v2731 = vrot.slane %v2653, 2
        %v2732 = vrot.slane %v2655, 2
        %v2733 = vsel %vm2371, %v2731, %v2732
        %v2734 = vrot.slane %v2656, 2
        %v2735 = vrot.slane %v2658, 2
        %v2736 = vsel %vm2371, %v2734, %v2735
        %v2737 = vrot.slane %v2657, 2
        %v2738 = vrot.slane %v2659, 2
        %v2739 = vsel %vm2371, %v2737, %v2738
        %2756 = vst [vmem:[#allocation5 + $0x50] sm:$0xff] %v2694
        %2757 = vst [vmem:[#allocation5 + $0x58] sm:$0xff] %v2697
        %2758 = vst [vmem:[#allocation5 + $0xe0] sm:$0xff] %v2700
        %2759 = vst [vmem:[#allocation5 + $0xe8] sm:$0xff] %v2703
        %2760 = vst [vmem:[#allocation5 + $0x170] sm:$0xff] %v2706
        %2761 = vst [vmem:[#allocation5 + $0x178] sm:$0xff] %v2709
        %2762 = vst [vmem:[#allocation5 + $0x200] sm:$0xff] %v2712
        %2763 = vst [vmem:[#allocation5 + $0x208] sm:$0xff] %v2715
        %2764 = vst [vmem:[#allocation5 + $0x290] sm:$0xff] %v2718
        %2765 = vst [vmem:[#allocation5 + $0x298] sm:$0xff] %v2721
        %2766 = vst [vmem:[#allocation5 + $0x320] sm:$0xff] %v2724
        %2767 = vst [vmem:[#allocation5 + $0x328] sm:$0xff] %v2727
        %2768 = vst [vmem:[#allocation5 + $0x3b0] sm:$0xff] %v2730
        %2769 = vst [vmem:[#allocation5 + $0x3b8] sm:$0xff] %v2733
        %2770 = vst [vmem:[#allocation5 + $0x440] sm:$0xff] %v2736
        %2771 = vst [vmem:[#allocation5 + $0x448] sm:$0xff] %v2739
        %s2772 = scalar_lea.vmem [#allocation4], 64
        %v2773 = vld [vmem:[%s2772] sm:$0xff]
        %v2774 = vld [vmem:[%s2772 + $0x8] sm:$0xff]
        %v2775 = vld [vmem:[%s2772 + $0x20] sm:$0xff]
        %v2776 = vld [vmem:[%s2772 + $0x28] sm:$0xff]
        %v2777 = vld [vmem:[%s2772 + $0x40] sm:$0xff]
        %v2778 = vld [vmem:[%s2772 + $0x48] sm:$0xff]
        %v2779 = vld [vmem:[%s2772 + $0x60] sm:$0xff]
        %v2780 = vld [vmem:[%s2772 + $0x68] sm:$0xff]
        %v2781 = vld [vmem:[%s2772 + $0x80] sm:$0xff]
        %v2782 = vld [vmem:[%s2772 + $0x88] sm:$0xff]
        %v2783 = vld [vmem:[%s2772 + $0xa0] sm:$0xff]
        %v2784 = vld [vmem:[%s2772 + $0xa8] sm:$0xff]
        %v2785 = vld [vmem:[%s2772 + $0xc0] sm:$0xff]
        %v2786 = vld [vmem:[%s2772 + $0xc8] sm:$0xff]
        %v2787 = vld [vmem:[%s2772 + $0xe0] sm:$0xff]
        %v2788 = vld [vmem:[%s2772 + $0xe8] sm:$0xff]
        %2789 = vst [vmem:[#allocation5 + $0x60] sm:$0xff] %v2773
        %2790 = vst [vmem:[#allocation5 + $0x68] sm:$0xff] %v2774
        %2791 = vst [vmem:[#allocation5 + $0xf0] sm:$0xff] %v2775
        %2792 = vst [vmem:[#allocation5 + $0xf8] sm:$0xff] %v2776
        %2793 = vst [vmem:[#allocation5 + $0x180] sm:$0xff] %v2777
        %2794 = vst [vmem:[#allocation5 + $0x188] sm:$0xff] %v2778
        %2795 = vst [vmem:[#allocation5 + $0x210] sm:$0xff] %v2779
        %2796 = vst [vmem:[#allocation5 + $0x218] sm:$0xff] %v2780
        %2797 = vst [vmem:[#allocation5 + $0x2a0] sm:$0xff] %v2781
        %2798 = vst [vmem:[#allocation5 + $0x2a8] sm:$0xff] %v2782
        %2799 = vst [vmem:[#allocation5 + $0x330] sm:$0xff] %v2783
        %2800 = vst [vmem:[#allocation5 + $0x338] sm:$0xff] %v2784
        %2801 = vst [vmem:[#allocation5 + $0x3c0] sm:$0xff] %v2785
        %2802 = vst [vmem:[#allocation5 + $0x3c8] sm:$0xff] %v2786
        %2803 = vst [vmem:[#allocation5 + $0x450] sm:$0xff] %v2787
        %2804 = vst [vmem:[#allocation5 + $0x458] sm:$0xff] %v2788
        %v2805 = vld [vmem:[%s2772] sm:$0xfe]
        %v2806 = vld [vmem:[%s2772 + $0x8] sm:$0xfe]
        %v2807 = vld [vmem:[%s2772 + $0x10] sm:$0x1]
        %v2808 = vld [vmem:[%s2772 + $0x18] sm:$0x1]
        %v2809 = vld [vmem:[%s2772 + $0x20] sm:$0xfe]
        %v2810 = vld [vmem:[%s2772 + $0x28] sm:$0xfe]
        %v2811 = vld [vmem:[%s2772 + $0x30] sm:$0x1]
        %v2812 = vld [vmem:[%s2772 + $0x38] sm:$0x1]
        %v2813 = vld [vmem:[%s2772 + $0x40] sm:$0xfe]
        %v2814 = vld [vmem:[%s2772 + $0x48] sm:$0xfe]
        %v2815 = vld [vmem:[%s2772 + $0x50] sm:$0x1]
        %v2816 = vld [vmem:[%s2772 + $0x58] sm:$0x1]
        %v2817 = vld [vmem:[%s2772 + $0x60] sm:$0xfe]
        %v2818 = vld [vmem:[%s2772 + $0x68] sm:$0xfe]
        %v2819 = vld [vmem:[%s2772 + $0x70] sm:$0x1]
        %v2820 = vld [vmem:[%s2772 + $0x78] sm:$0x1]
        %v2821 = vld [vmem:[%s2772 + $0x80] sm:$0xfe]
        %v2822 = vld [vmem:[%s2772 + $0x88] sm:$0xfe]
        %v2823 = vld [vmem:[%s2772 + $0x90] sm:$0x1]
        %v2824 = vld [vmem:[%s2772 + $0x98] sm:$0x1]
        %v2825 = vld [vmem:[%s2772 + $0xa0] sm:$0xfe]
        %v2826 = vld [vmem:[%s2772 + $0xa8] sm:$0xfe]
        %v2827 = vld [vmem:[%s2772 + $0xb0] sm:$0x1]
        %v2828 = vld [vmem:[%s2772 + $0xb8] sm:$0x1]
        %v2829 = vld [vmem:[%s2772 + $0xc0] sm:$0xfe]
        %v2830 = vld [vmem:[%s2772 + $0xc8] sm:$0xfe]
        %v2831 = vld [vmem:[%s2772 + $0xd0] sm:$0x1]
        %v2832 = vld [vmem:[%s2772 + $0xd8] sm:$0x1]
        %v2833 = vld [vmem:[%s2772 + $0xe0] sm:$0xfe]
        %v2834 = vld [vmem:[%s2772 + $0xe8] sm:$0xfe]
        %v2835 = vld [vmem:[%s2772 + $0xf0] sm:$0x1]
        %v2836 = vld [vmem:[%s2772 + $0xf8] sm:$0x1]
        %v2869 = vrot.slane %v2805, 1
        %v2870 = vrot.slane %v2807, 1
        %v2871 = vsel %vm2226, %v2869, %v2870
        %v2872 = vrot.slane %v2806, 1
        %v2873 = vrot.slane %v2808, 1
        %v2874 = vsel %vm2226, %v2872, %v2873
        %v2875 = vrot.slane %v2809, 1
        %v2876 = vrot.slane %v2811, 1
        %v2877 = vsel %vm2226, %v2875, %v2876
        %v2878 = vrot.slane %v2810, 1
        %v2879 = vrot.slane %v2812, 1
        %v2880 = vsel %vm2226, %v2878, %v2879
        %v2881 = vrot.slane %v2813, 1
        %v2882 = vrot.slane %v2815, 1
        %v2883 = vsel %vm2226, %v2881, %v2882
        %v2884 = vrot.slane %v2814, 1
        %v2885 = vrot.slane %v2816, 1
        %v2886 = vsel %vm2226, %v2884, %v2885
        %v2887 = vrot.slane %v2817, 1
        %v2888 = vrot.slane %v2819, 1
        %v2889 = vsel %vm2226, %v2887, %v2888
        %v2890 = vrot.slane %v2818, 1
        %v2891 = vrot.slane %v2820, 1
        %v2892 = vsel %vm2226, %v2890, %v2891
        %v2893 = vrot.slane %v2821, 1
        %v2894 = vrot.slane %v2823, 1
        %v2895 = vsel %vm2226, %v2893, %v2894
        %v2896 = vrot.slane %v2822, 1
        %v2897 = vrot.slane %v2824, 1
        %v2898 = vsel %vm2226, %v2896, %v2897
        %v2899 = vrot.slane %v2825, 1
        %v2900 = vrot.slane %v2827, 1
        %v2901 = vsel %vm2226, %v2899, %v2900
        %v2902 = vrot.slane %v2826, 1
        %v2903 = vrot.slane %v2828, 1
        %v2904 = vsel %vm2226, %v2902, %v2903
        %v2905 = vrot.slane %v2829, 1
        %v2906 = vrot.slane %v2831, 1
        %v2907 = vsel %vm2226, %v2905, %v2906
        %v2908 = vrot.slane %v2830, 1
        %v2909 = vrot.slane %v2832, 1
        %v2910 = vsel %vm2226, %v2908, %v2909
        %v2911 = vrot.slane %v2833, 1
        %v2912 = vrot.slane %v2835, 1
        %v2913 = vsel %vm2226, %v2911, %v2912
        %v2914 = vrot.slane %v2834, 1
        %v2915 = vrot.slane %v2836, 1
        %v2916 = vsel %vm2226, %v2914, %v2915
        %2933 = vst [vmem:[#allocation5 + $0x70] sm:$0xff] %v2871
        %2934 = vst [vmem:[#allocation5 + $0x78] sm:$0xff] %v2874
        %2935 = vst [vmem:[#allocation5 + $0x100] sm:$0xff] %v2877
        %2936 = vst [vmem:[#allocation5 + $0x108] sm:$0xff] %v2880
        %2937 = vst [vmem:[#allocation5 + $0x190] sm:$0xff] %v2883
        %2938 = vst [vmem:[#allocation5 + $0x198] sm:$0xff] %v2886
        %2939 = vst [vmem:[#allocation5 + $0x220] sm:$0xff] %v2889
        %2940 = vst [vmem:[#allocation5 + $0x228] sm:$0xff] %v2892
        %2941 = vst [vmem:[#allocation5 + $0x2b0] sm:$0xff] %v2895
        %2942 = vst [vmem:[#allocation5 + $0x2b8] sm:$0xff] %v2898
        %2943 = vst [vmem:[#allocation5 + $0x340] sm:$0xff] %v2901
        %2944 = vst [vmem:[#allocation5 + $0x348] sm:$0xff] %v2904
        %2945 = vst [vmem:[#allocation5 + $0x3d0] sm:$0xff] %v2907
        %2946 = vst [vmem:[#allocation5 + $0x3d8] sm:$0xff] %v2910
        %2947 = vst [vmem:[#allocation5 + $0x460] sm:$0xff] %v2913
        %2948 = vst [vmem:[#allocation5 + $0x468] sm:$0xff] %v2916
        %v2949 = vld [vmem:[%s2772] sm:$0xfc]
        %v2950 = vld [vmem:[%s2772 + $0x8] sm:$0xfc]
        %v2951 = vld [vmem:[%s2772 + $0x10] sm:$0x3]
        %v2952 = vld [vmem:[%s2772 + $0x18] sm:$0x3]
        %v2953 = vld [vmem:[%s2772 + $0x20] sm:$0xfc]
        %v2954 = vld [vmem:[%s2772 + $0x28] sm:$0xfc]
        %v2955 = vld [vmem:[%s2772 + $0x30] sm:$0x3]
        %v2956 = vld [vmem:[%s2772 + $0x38] sm:$0x3]
        %v2957 = vld [vmem:[%s2772 + $0x40] sm:$0xfc]
        %v2958 = vld [vmem:[%s2772 + $0x48] sm:$0xfc]
        %v2959 = vld [vmem:[%s2772 + $0x50] sm:$0x3]
        %v2960 = vld [vmem:[%s2772 + $0x58] sm:$0x3]
        %v2961 = vld [vmem:[%s2772 + $0x60] sm:$0xfc]
        %v2962 = vld [vmem:[%s2772 + $0x68] sm:$0xfc]
        %v2963 = vld [vmem:[%s2772 + $0x70] sm:$0x3]
        %v2964 = vld [vmem:[%s2772 + $0x78] sm:$0x3]
        %v2965 = vld [vmem:[%s2772 + $0x80] sm:$0xfc]
        %v2966 = vld [vmem:[%s2772 + $0x88] sm:$0xfc]
        %v2967 = vld [vmem:[%s2772 + $0x90] sm:$0x3]
        %v2968 = vld [vmem:[%s2772 + $0x98] sm:$0x3]
        %v2969 = vld [vmem:[%s2772 + $0xa0] sm:$0xfc]
        %v2970 = vld [vmem:[%s2772 + $0xa8] sm:$0xfc]
        %v2971 = vld [vmem:[%s2772 + $0xb0] sm:$0x3]
        %v2972 = vld [vmem:[%s2772 + $0xb8] sm:$0x3]
        %v2973 = vld [vmem:[%s2772 + $0xc0] sm:$0xfc]
        %v2974 = vld [vmem:[%s2772 + $0xc8] sm:$0xfc]
        %v2975 = vld [vmem:[%s2772 + $0xd0] sm:$0x3]
        %v2976 = vld [vmem:[%s2772 + $0xd8] sm:$0x3]
        %v2977 = vld [vmem:[%s2772 + $0xe0] sm:$0xfc]
        %v2978 = vld [vmem:[%s2772 + $0xe8] sm:$0xfc]
        %v2979 = vld [vmem:[%s2772 + $0xf0] sm:$0x3]
        %v2980 = vld [vmem:[%s2772 + $0xf8] sm:$0x3]
        %v3013 = vrot.slane %v2949, 2
        %v3014 = vrot.slane %v2951, 2
        %v3015 = vsel %vm2371, %v3013, %v3014
        %v3016 = vrot.slane %v2950, 2
        %v3017 = vrot.slane %v2952, 2
        %v3018 = vsel %vm2371, %v3016, %v3017
        %v3019 = vrot.slane %v2953, 2
        %v3020 = vrot.slane %v2955, 2
        %v3021 = vsel %vm2371, %v3019, %v3020
        %v3022 = vrot.slane %v2954, 2
        %v3023 = vrot.slane %v2956, 2
        %v3024 = vsel %vm2371, %v3022, %v3023
        %v3025 = vrot.slane %v2957, 2
        %v3026 = vrot.slane %v2959, 2
        %v3027 = vsel %vm2371, %v3025, %v3026
        %v3028 = vrot.slane %v2958, 2
        %v3029 = vrot.slane %v2960, 2
        %v3030 = vsel %vm2371, %v3028, %v3029
        %v3031 = vrot.slane %v2961, 2
        %v3032 = vrot.slane %v2963, 2
        %v3033 = vsel %vm2371, %v3031, %v3032
        %v3034 = vrot.slane %v2962, 2
        %v3035 = vrot.slane %v2964, 2
        %v3036 = vsel %vm2371, %v3034, %v3035
        %v3037 = vrot.slane %v2965, 2
        %v3038 = vrot.slane %v2967, 2
        %v3039 = vsel %vm2371, %v3037, %v3038
        %v3040 = vrot.slane %v2966, 2
        %v3041 = vrot.slane %v2968, 2
        %v3042 = vsel %vm2371, %v3040, %v3041
        %v3043 = vrot.slane %v2969, 2
        %v3044 = vrot.slane %v2971, 2
        %v3045 = vsel %vm2371, %v3043, %v3044
        %v3046 = vrot.slane %v2970, 2
        %v3047 = vrot.slane %v2972, 2
        %v3048 = vsel %vm2371, %v3046, %v3047
        %v3049 = vrot.slane %v2973, 2
        %v3050 = vrot.slane %v2975, 2
        %v3051 = vsel %vm2371, %v3049, %v3050
        %v3052 = vrot.slane %v2974, 2
        %v3053 = vrot.slane %v2976, 2
        %v3054 = vsel %vm2371, %v3052, %v3053
        %v3055 = vrot.slane %v2977, 2
        %v3056 = vrot.slane %v2979, 2
        %v3057 = vsel %vm2371, %v3055, %v3056
        %v3058 = vrot.slane %v2978, 2
        %v3059 = vrot.slane %v2980, 2
        %v3060 = vsel %vm2371, %v3058, %v3059
        %3077 = vst [vmem:[#allocation5 + $0x80] sm:$0xff] %v3015
        %3078 = vst [vmem:[#allocation5 + $0x88] sm:$0xff] %v3018
        %3079 = vst [vmem:[#allocation5 + $0x110] sm:$0xff] %v3021
        %3080 = vst [vmem:[#allocation5 + $0x118] sm:$0xff] %v3024
        %3081 = vst [vmem:[#allocation5 + $0x1a0] sm:$0xff] %v3027
        %3082 = vst [vmem:[#allocation5 + $0x1a8] sm:$0xff] %v3030
        %3083 = vst [vmem:[#allocation5 + $0x230] sm:$0xff] %v3033
        %3084 = vst [vmem:[#allocation5 + $0x238] sm:$0xff] %v3036
        %3085 = vst [vmem:[#allocation5 + $0x2c0] sm:$0xff] %v3039
        %3086 = vst [vmem:[#allocation5 + $0x2c8] sm:$0xff] %v3042
        %3087 = vst [vmem:[#allocation5 + $0x350] sm:$0xff] %v3045
        %3088 = vst [vmem:[#allocation5 + $0x358] sm:$0xff] %v3048
        %3089 = vst [vmem:[#allocation5 + $0x3e0] sm:$0xff] %v3051
        %3090 = vst [vmem:[#allocation5 + $0x3e8] sm:$0xff] %v3054
        %3091 = vst [vmem:[#allocation5 + $0x470] sm:$0xff] %v3057
        %3092 = vst [vmem:[#allocation5 + $0x478] sm:$0xff] %v3060
        %v3093 = vld [vmem:[#allocation5] sm:$0xff]
        %v3094 = vld [vmem:[#allocation5 + $0x8] sm:$0xff]
        %v3095 = vld [vmem:[#allocation5 + $0x10] sm:$0xff]
        %v3096 = vld [vmem:[#allocation5 + $0x18] sm:$0xff]
        %v3097 = vld [vmem:[#allocation5 + $0x20] sm:$0xff]
        %v3098 = vld [vmem:[#allocation5 + $0x28] sm:$0xff]
        %v3099 = vld [vmem:[#allocation5 + $0x30] sm:$0xff]
        %v3100 = vld [vmem:[#allocation5 + $0x38] sm:$0xff]
        %v3101 = vld [vmem:[#allocation5 + $0x40] sm:$0xff]
        %v3102 = vld [vmem:[#allocation5 + $0x48] sm:$0xff]
        %v3103 = vld [vmem:[#allocation5 + $0x50] sm:$0xff]
        %v3104 = vld [vmem:[#allocation5 + $0x58] sm:$0xff]
        %v3105 = vld [vmem:[#allocation5 + $0x60] sm:$0xff]
        %v3106 = vld [vmem:[#allocation5 + $0x68] sm:$0xff]
        %v3107 = vld [vmem:[#allocation5 + $0x70] sm:$0xff]
        %v3108 = vld [vmem:[#allocation5 + $0x78] sm:$0xff]
        %v3109 = vld [vmem:[#allocation5 + $0x80] sm:$0xff]
        %v3110 = vld [vmem:[#allocation5 + $0x88] sm:$0xff]
        %v3111 = vld [vmem:[#allocation5 + $0x90] sm:$0xff]
        %v3112 = vld [vmem:[#allocation5 + $0x98] sm:$0xff]
        %v3113 = vld [vmem:[#allocation5 + $0xa0] sm:$0xff]
        %v3114 = vld [vmem:[#allocation5 + $0xa8] sm:$0xff]
        %v3115 = vld [vmem:[#allocation5 + $0xb0] sm:$0xff]
        %v3116 = vld [vmem:[#allocation5 + $0xb8] sm:$0xff]
        %v3117 = vld [vmem:[#allocation5 + $0xc0] sm:$0xff]
        %v3118 = vld [vmem:[#allocation5 + $0xc8] sm:$0xff]
        %v3119 = vld [vmem:[#allocation5 + $0xd0] sm:$0xff]
        %v3120 = vld [vmem:[#allocation5 + $0xd8] sm:$0xff]
        %v3121 = vld [vmem:[#allocation5 + $0xe0] sm:$0xff]
        %v3122 = vld [vmem:[#allocation5 + $0xe8] sm:$0xff]
        %v3123 = vld [vmem:[#allocation5 + $0xf0] sm:$0xff]
        %v3124 = vld [vmem:[#allocation5 + $0xf8] sm:$0xff]
        %v3125 = vld [vmem:[#allocation5 + $0x100] sm:$0xff]
        %v3126 = vld [vmem:[#allocation5 + $0x108] sm:$0xff]
        %v3127 = vld [vmem:[#allocation5 + $0x110] sm:$0xff]
        %v3128 = vld [vmem:[#allocation5 + $0x118] sm:$0xff]
        %v3129 = vld [vmem:[#allocation5 + $0x120] sm:$0xff]
        %v3130 = vld [vmem:[#allocation5 + $0x128] sm:$0xff]
        %v3131 = vld [vmem:[#allocation5 + $0x130] sm:$0xff]
        %v3132 = vld [vmem:[#allocation5 + $0x138] sm:$0xff]
        %v3133 = vld [vmem:[#allocation5 + $0x140] sm:$0xff]
        %v3134 = vld [vmem:[#allocation5 + $0x148] sm:$0xff]
        %v3135 = vld [vmem:[#allocation5 + $0x150] sm:$0xff]
        %v3136 = vld [vmem:[#allocation5 + $0x158] sm:$0xff]
        %v3137 = vld [vmem:[#allocation5 + $0x160] sm:$0xff]
        %v3138 = vld [vmem:[#allocation5 + $0x168] sm:$0xff]
        %v3139 = vld [vmem:[#allocation5 + $0x170] sm:$0xff]
        %v3140 = vld [vmem:[#allocation5 + $0x178] sm:$0xff]
        %v3141 = vld [vmem:[#allocation5 + $0x180] sm:$0xff]
        %v3142 = vld [vmem:[#allocation5 + $0x188] sm:$0xff]
        %v3143 = vld [vmem:[#allocation5 + $0x190] sm:$0xff]
        %v3144 = vld [vmem:[#allocation5 + $0x198] sm:$0xff]
        %v3145 = vld [vmem:[#allocation5 + $0x1a0] sm:$0xff]
        %v3146 = vld [vmem:[#allocation5 + $0x1a8] sm:$0xff]
        %v3147 = vld [vmem:[#allocation5 + $0x1b0] sm:$0xff]
        %v3148 = vld [vmem:[#allocation5 + $0x1b8] sm:$0xff]
        %v3149 = vld [vmem:[#allocation5 + $0x1c0] sm:$0xff]
        %v3150 = vld [vmem:[#allocation5 + $0x1c8] sm:$0xff]
        %v3151 = vld [vmem:[#allocation5 + $0x1d0] sm:$0xff]
        %v3152 = vld [vmem:[#allocation5 + $0x1d8] sm:$0xff]
        %v3153 = vld [vmem:[#allocation5 + $0x1e0] sm:$0xff]
        %v3154 = vld [vmem:[#allocation5 + $0x1e8] sm:$0xff]
        %v3155 = vld [vmem:[#allocation5 + $0x1f0] sm:$0xff]
        %v3156 = vld [vmem:[#allocation5 + $0x1f8] sm:$0xff]
        %v3157 = vld [vmem:[#allocation5 + $0x200] sm:$0xff]
        %v3158 = vld [vmem:[#allocation5 + $0x208] sm:$0xff]
        %v3159 = vld [vmem:[#allocation5 + $0x210] sm:$0xff]
        %v3160 = vld [vmem:[#allocation5 + $0x218] sm:$0xff]
        %v3161 = vld [vmem:[#allocation5 + $0x220] sm:$0xff]
        %v3162 = vld [vmem:[#allocation5 + $0x228] sm:$0xff]
        %v3163 = vld [vmem:[#allocation5 + $0x230] sm:$0xff]
        %v3164 = vld [vmem:[#allocation5 + $0x238] sm:$0xff]
        %v3165 = vld [vmem:[#allocation5 + $0x240] sm:$0xff]
        %v3166 = vld [vmem:[#allocation5 + $0x248] sm:$0xff]
        %v3167 = vld [vmem:[#allocation5 + $0x250] sm:$0xff]
        %v3168 = vld [vmem:[#allocation5 + $0x258] sm:$0xff]
        %v3169 = vld [vmem:[#allocation5 + $0x260] sm:$0xff]
        %v3170 = vld [vmem:[#allocation5 + $0x268] sm:$0xff]
        %v3171 = vld [vmem:[#allocation5 + $0x270] sm:$0xff]
        %v3172 = vld [vmem:[#allocation5 + $0x278] sm:$0xff]
        %v3173 = vld [vmem:[#allocation5 + $0x280] sm:$0xff]
        %v3174 = vld [vmem:[#allocation5 + $0x288] sm:$0xff]
        %v3175 = vld [vmem:[#allocation5 + $0x290] sm:$0xff]
        %v3176 = vld [vmem:[#allocation5 + $0x298] sm:$0xff]
        %v3177 = vld [vmem:[#allocation5 + $0x2a0] sm:$0xff]
        %v3178 = vld [vmem:[#allocation5 + $0x2a8] sm:$0xff]
        %v3179 = vld [vmem:[#allocation5 + $0x2b0] sm:$0xff]
        %v3180 = vld [vmem:[#allocation5 + $0x2b8] sm:$0xff]
        %v3181 = vld [vmem:[#allocation5 + $0x2c0] sm:$0xff]
        %v3182 = vld [vmem:[#allocation5 + $0x2c8] sm:$0xff]
        %v3183 = vld [vmem:[#allocation5 + $0x2d0] sm:$0xff]
        %v3184 = vld [vmem:[#allocation5 + $0x2d8] sm:$0xff]
        %v3185 = vld [vmem:[#allocation5 + $0x2e0] sm:$0xff]
        %v3186 = vld [vmem:[#allocation5 + $0x2e8] sm:$0xff]
        %v3187 = vld [vmem:[#allocation5 + $0x2f0] sm:$0xff]
        %v3188 = vld [vmem:[#allocation5 + $0x2f8] sm:$0xff]
        %v3189 = vld [vmem:[#allocation5 + $0x300] sm:$0xff]
        %v3190 = vld [vmem:[#allocation5 + $0x308] sm:$0xff]
        %v3191 = vld [vmem:[#allocation5 + $0x310] sm:$0xff]
        %v3192 = vld [vmem:[#allocation5 + $0x318] sm:$0xff]
        %v3193 = vld [vmem:[#allocation5 + $0x320] sm:$0xff]
        %v3194 = vld [vmem:[#allocation5 + $0x328] sm:$0xff]
        %v3195 = vld [vmem:[#allocation5 + $0x330] sm:$0xff]
        %v3196 = vld [vmem:[#allocation5 + $0x338] sm:$0xff]
        %v3197 = vld [vmem:[#allocation5 + $0x340] sm:$0xff]
        %v3198 = vld [vmem:[#allocation5 + $0x348] sm:$0xff]
        %v3199 = vld [vmem:[#allocation5 + $0x350] sm:$0xff]
        %v3200 = vld [vmem:[#allocation5 + $0x358] sm:$0xff]
        %v3201 = vld [vmem:[#allocation5 + $0x360] sm:$0xff]
        %v3202 = vld [vmem:[#allocation5 + $0x368] sm:$0xff]
        %v3203 = vld [vmem:[#allocation5 + $0x370] sm:$0xff]
        %v3204 = vld [vmem:[#allocation5 + $0x378] sm:$0xff]
        %v3205 = vld [vmem:[#allocation5 + $0x380] sm:$0xff]
        %v3206 = vld [vmem:[#allocation5 + $0x388] sm:$0xff]
        %v3207 = vld [vmem:[#allocation5 + $0x390] sm:$0xff]
        %v3208 = vld [vmem:[#allocation5 + $0x398] sm:$0xff]
        %v3209 = vld [vmem:[#allocation5 + $0x3a0] sm:$0xff]
        %v3210 = vld [vmem:[#allocation5 + $0x3a8] sm:$0xff]
        %v3211 = vld [vmem:[#allocation5 + $0x3b0] sm:$0xff]
        %v3212 = vld [vmem:[#allocation5 + $0x3b8] sm:$0xff]
        %v3213 = vld [vmem:[#allocation5 + $0x3c0] sm:$0xff]
        %v3214 = vld [vmem:[#allocation5 + $0x3c8] sm:$0xff]
        %v3215 = vld [vmem:[#allocation5 + $0x3d0] sm:$0xff]
        %v3216 = vld [vmem:[#allocation5 + $0x3d8] sm:$0xff]
        %v3217 = vld [vmem:[#allocation5 + $0x3e0] sm:$0xff]
        %v3218 = vld [vmem:[#allocation5 + $0x3e8] sm:$0xff]
        %v3219 = vld [vmem:[#allocation5 + $0x3f0] sm:$0xff]
        %v3220 = vld [vmem:[#allocation5 + $0x3f8] sm:$0xff]
        %v3221 = vld [vmem:[#allocation5 + $0x400] sm:$0xff]
        %v3222 = vld [vmem:[#allocation5 + $0x408] sm:$0xff]
        %v3223 = vld [vmem:[#allocation5 + $0x410] sm:$0xff]
        %v3224 = vld [vmem:[#allocation5 + $0x418] sm:$0xff]
        %v3225 = vld [vmem:[#allocation5 + $0x420] sm:$0xff]
        %v3226 = vld [vmem:[#allocation5 + $0x428] sm:$0xff]
        %v3227 = vld [vmem:[#allocation5 + $0x430] sm:$0xff]
        %v3228 = vld [vmem:[#allocation5 + $0x438] sm:$0xff]
        %v3229 = vld [vmem:[#allocation5 + $0x440] sm:$0xff]
        %v3230 = vld [vmem:[#allocation5 + $0x448] sm:$0xff]
        %v3231 = vld [vmem:[#allocation5 + $0x450] sm:$0xff]
        %v3232 = vld [vmem:[#allocation5 + $0x458] sm:$0xff]
        %v3233 = vld [vmem:[#allocation5 + $0x460] sm:$0xff]
        %v3234 = vld [vmem:[#allocation5 + $0x468] sm:$0xff]
        %v3235 = vld [vmem:[#allocation5 + $0x470] sm:$0xff]
        %v3236 = vld [vmem:[#allocation5 + $0x478] sm:$0xff]
        %v3237 = vld [vmem:[%s2] sm:$0xff]
        %v3238 = vld [vmem:[%s2 + $0x8] sm:$0xff]
        %v3239 = vld [vmem:[%s2 + $0x10] sm:$0xff]
        %v3240 = vld [vmem:[%s2 + $0x18] sm:$0xff]
        %v3241 = vld [vmem:[%s2 + $0x20] sm:$0xff]
        %v3242 = vld [vmem:[%s2 + $0x28] sm:$0xff]
        %v3243 = vld [vmem:[%s2 + $0x30] sm:$0xff]
        %v3244 = vld [vmem:[%s2 + $0x38] sm:$0xff]
        %v3245 = vld [vmem:[%s2 + $0x40] sm:$0xff]
        %v3246 = vld [vmem:[%s2 + $0x48] sm:$0xff]
        %v3247 = vld [vmem:[%s2 + $0x50] sm:$0xff]
        %v3248 = vld [vmem:[%s2 + $0x58] sm:$0xff]
        %v3249 = vld [vmem:[%s2 + $0x60] sm:$0xff]
        %v3250 = vld [vmem:[%s2 + $0x68] sm:$0xff]
        %v3251 = vld [vmem:[%s2 + $0x70] sm:$0xff]
        %v3252 = vld [vmem:[%s2 + $0x78] sm:$0xff]
        %v3253 = vld [vmem:[%s2 + $0x80] sm:$0xff]
        %v3254 = vld [vmem:[%s2 + $0x88] sm:$0xff]
        %v3255 = vld [vmem:[%s2 + $0x90] sm:$0xff]
        %v3256 = vld [vmem:[%s2 + $0x98] sm:$0xff]
        %v3257 = vld [vmem:[%s2 + $0xa0] sm:$0xff]
        %v3258 = vld [vmem:[%s2 + $0xa8] sm:$0xff]
        %v3259 = vld [vmem:[%s2 + $0xb0] sm:$0xff]
        %v3260 = vld [vmem:[%s2 + $0xb8] sm:$0xff]
        %v3261 = vld [vmem:[%s2 + $0xc0] sm:$0xff]
        %v3262 = vld [vmem:[%s2 + $0xc8] sm:$0xff]
        %v3263 = vld [vmem:[%s2 + $0xd0] sm:$0xff]
        %v3264 = vld [vmem:[%s2 + $0xd8] sm:$0xff]
        %v3265 = vld [vmem:[%s2 + $0xe0] sm:$0xff]
        %v3266 = vld [vmem:[%s2 + $0xe8] sm:$0xff]
        %v3267 = vld [vmem:[%s2 + $0xf0] sm:$0xff]
        %v3268 = vld [vmem:[%s2 + $0xf8] sm:$0xff]
        %v3269 = vld [vmem:[%s2 + $0x100] sm:$0xff]
        %v3270 = vld [vmem:[%s2 + $0x108] sm:$0xff]
        %v3271 = vld [vmem:[%s2 + $0x110] sm:$0xff]
        %v3272 = vld [vmem:[%s2 + $0x118] sm:$0xff]
        %v3273 = vld [vmem:[%s2 + $0x120] sm:$0xff]
        %v3274 = vld [vmem:[%s2 + $0x128] sm:$0xff]
        %v3275 = vld [vmem:[%s2 + $0x130] sm:$0xff]
        %v3276 = vld [vmem:[%s2 + $0x138] sm:$0xff]
        %v3277 = vld [vmem:[%s2 + $0x140] sm:$0xff]
        %v3278 = vld [vmem:[%s2 + $0x148] sm:$0xff]
        %v3279 = vld [vmem:[%s2 + $0x150] sm:$0xff]
        %v3280 = vld [vmem:[%s2 + $0x158] sm:$0xff]
        %v3281 = vld [vmem:[%s2 + $0x160] sm:$0xff]
        %v3282 = vld [vmem:[%s2 + $0x168] sm:$0xff]
        %v3283 = vld [vmem:[%s2 + $0x170] sm:$0xff]
        %v3284 = vld [vmem:[%s2 + $0x178] sm:$0xff]
        %v3285 = vld [vmem:[%s2 + $0x180] sm:$0xff]
        %v3286 = vld [vmem:[%s2 + $0x188] sm:$0xff]
        %v3287 = vld [vmem:[%s2 + $0x190] sm:$0xff]
        %v3288 = vld [vmem:[%s2 + $0x198] sm:$0xff]
        %v3289 = vld [vmem:[%s2 + $0x1a0] sm:$0xff]
        %v3290 = vld [vmem:[%s2 + $0x1a8] sm:$0xff]
        %v3291 = vld [vmem:[%s2 + $0x1b0] sm:$0xff]
        %v3292 = vld [vmem:[%s2 + $0x1b8] sm:$0xff]
        %v3293 = vld [vmem:[%s2 + $0x1c0] sm:$0xff]
        %v3294 = vld [vmem:[%s2 + $0x1c8] sm:$0xff]
        %v3295 = vld [vmem:[%s2 + $0x1d0] sm:$0xff]
        %v3296 = vld [vmem:[%s2 + $0x1d8] sm:$0xff]
        %v3297 = vld [vmem:[%s2 + $0x1e0] sm:$0xff]
        %v3298 = vld [vmem:[%s2 + $0x1e8] sm:$0xff]
        %v3299 = vld [vmem:[%s2 + $0x1f0] sm:$0xff]
        %v3300 = vld [vmem:[%s2 + $0x1f8] sm:$0xff]
        %v3301 = vld [vmem:[%s2 + $0x200] sm:$0xff]
        %v3302 = vld [vmem:[%s2 + $0x208] sm:$0xff]
        %v3303 = vld [vmem:[%s2 + $0x210] sm:$0xff]
        %v3304 = vld [vmem:[%s2 + $0x218] sm:$0xff]
        %v3305 = vld [vmem:[%s2 + $0x220] sm:$0xff]
        %v3306 = vld [vmem:[%s2 + $0x228] sm:$0xff]
        %v3307 = vld [vmem:[%s2 + $0x230] sm:$0xff]
        %v3308 = vld [vmem:[%s2 + $0x238] sm:$0xff]
        %v3309 = vld [vmem:[%s2 + $0x240] sm:$0xff]
        %v3310 = vld [vmem:[%s2 + $0x248] sm:$0xff]
        %v3311 = vld [vmem:[%s2 + $0x250] sm:$0xff]
        %v3312 = vld [vmem:[%s2 + $0x258] sm:$0xff]
        %v3313 = vld [vmem:[%s2 + $0x260] sm:$0xff]
        %v3314 = vld [vmem:[%s2 + $0x268] sm:$0xff]
        %v3315 = vld [vmem:[%s2 + $0x270] sm:$0xff]
        %v3316 = vld [vmem:[%s2 + $0x278] sm:$0xff]
        %v3317 = vld [vmem:[%s2 + $0x280] sm:$0xff]
        %v3318 = vld [vmem:[%s2 + $0x288] sm:$0xff]
        %v3319 = vld [vmem:[%s2 + $0x290] sm:$0xff]
        %v3320 = vld [vmem:[%s2 + $0x298] sm:$0xff]
        %v3321 = vld [vmem:[%s2 + $0x2a0] sm:$0xff]
        %v3322 = vld [vmem:[%s2 + $0x2a8] sm:$0xff]
        %v3323 = vld [vmem:[%s2 + $0x2b0] sm:$0xff]
        %v3324 = vld [vmem:[%s2 + $0x2b8] sm:$0xff]
        %v3325 = vld [vmem:[%s2 + $0x2c0] sm:$0xff]
        %v3326 = vld [vmem:[%s2 + $0x2c8] sm:$0xff]
        %v3327 = vld [vmem:[%s2 + $0x2d0] sm:$0xff]
        %v3328 = vld [vmem:[%s2 + $0x2d8] sm:$0xff]
        %v3329 = vld [vmem:[%s2 + $0x2e0] sm:$0xff]
        %v3330 = vld [vmem:[%s2 + $0x2e8] sm:$0xff]
        %v3331 = vld [vmem:[%s2 + $0x2f0] sm:$0xff]
        %v3332 = vld [vmem:[%s2 + $0x2f8] sm:$0xff]
        %v3333 = vld [vmem:[%s2 + $0x300] sm:$0xff]
        %v3334 = vld [vmem:[%s2 + $0x308] sm:$0xff]
        %v3335 = vld [vmem:[%s2 + $0x310] sm:$0xff]
        %v3336 = vld [vmem:[%s2 + $0x318] sm:$0xff]
        %v3337 = vld [vmem:[%s2 + $0x320] sm:$0xff]
        %v3338 = vld [vmem:[%s2 + $0x328] sm:$0xff]
        %v3339 = vld [vmem:[%s2 + $0x330] sm:$0xff]
        %v3340 = vld [vmem:[%s2 + $0x338] sm:$0xff]
        %v3341 = vld [vmem:[%s2 + $0x340] sm:$0xff]
        %v3342 = vld [vmem:[%s2 + $0x348] sm:$0xff]
        %v3343 = vld [vmem:[%s2 + $0x350] sm:$0xff]
        %v3344 = vld [vmem:[%s2 + $0x358] sm:$0xff]
        %v3345 = vld [vmem:[%s2 + $0x360] sm:$0xff]
        %v3346 = vld [vmem:[%s2 + $0x368] sm:$0xff]
        %v3347 = vld [vmem:[%s2 + $0x370] sm:$0xff]
        %v3348 = vld [vmem:[%s2 + $0x378] sm:$0xff]
        %v3349 = vld [vmem:[%s2 + $0x380] sm:$0xff]
        %v3350 = vld [vmem:[%s2 + $0x388] sm:$0xff]
        %v3351 = vld [vmem:[%s2 + $0x390] sm:$0xff]
        %v3352 = vld [vmem:[%s2 + $0x398] sm:$0xff]
        %v3353 = vld [vmem:[%s2 + $0x3a0] sm:$0xff]
        %v3354 = vld [vmem:[%s2 + $0x3a8] sm:$0xff]
        %v3355 = vld [vmem:[%s2 + $0x3b0] sm:$0xff]
        %v3356 = vld [vmem:[%s2 + $0x3b8] sm:$0xff]
        %v3357 = vld [vmem:[%s2 + $0x3c0] sm:$0xff]
        %v3358 = vld [vmem:[%s2 + $0x3c8] sm:$0xff]
        %v3359 = vld [vmem:[%s2 + $0x3d0] sm:$0xff]
        %v3360 = vld [vmem:[%s2 + $0x3d8] sm:$0xff]
        %v3361 = vld [vmem:[%s2 + $0x3e0] sm:$0xff]
        %v3362 = vld [vmem:[%s2 + $0x3e8] sm:$0xff]
        %v3363 = vld [vmem:[%s2 + $0x3f0] sm:$0xff]
        %v3364 = vld [vmem:[%s2 + $0x3f8] sm:$0xff]
        %v3365 = vld [vmem:[%s2 + $0x400] sm:$0xff]
        %v3366 = vld [vmem:[%s2 + $0x408] sm:$0xff]
        %v3367 = vld [vmem:[%s2 + $0x410] sm:$0xff]
        %v3368 = vld [vmem:[%s2 + $0x418] sm:$0xff]
        %v3369 = vld [vmem:[%s2 + $0x420] sm:$0xff]
        %v3370 = vld [vmem:[%s2 + $0x428] sm:$0xff]
        %v3371 = vld [vmem:[%s2 + $0x430] sm:$0xff]
        %v3372 = vld [vmem:[%s2 + $0x438] sm:$0xff]
        %v3373 = vld [vmem:[%s2 + $0x440] sm:$0xff]
        %v3374 = vld [vmem:[%s2 + $0x448] sm:$0xff]
        %v3375 = vld [vmem:[%s2 + $0x450] sm:$0xff]
        %v3376 = vld [vmem:[%s2 + $0x458] sm:$0xff]
        %v3377 = vld [vmem:[%s2 + $0x460] sm:$0xff]
        %v3378 = vld [vmem:[%s2 + $0x468] sm:$0xff]
        %v3379 = vld [vmem:[%s2 + $0x470] sm:$0xff]
        %v3380 = vld [vmem:[%s2 + $0x478] sm:$0xff]
        %v3381 = vld [vmem:[%s2 + $0x480] sm:$0xff]
        %v3382 = vld [vmem:[%s2 + $0x488] sm:$0xff]
        %v3383 = vld [vmem:[%s2 + $0x490] sm:$0xff]
        %v3384 = vld [vmem:[%s2 + $0x498] sm:$0xff]
        %v3385 = vld [vmem:[%s2 + $0x4a0] sm:$0xff]
        %v3386 = vld [vmem:[%s2 + $0x4a8] sm:$0xff]
        %v3387 = vld [vmem:[%s2 + $0x4b0] sm:$0xff]
        %v3388 = vld [vmem:[%s2 + $0x4b8] sm:$0xff]
        %v3389 = vld [vmem:[%s2 + $0x4c0] sm:$0xff]
        %v3390 = vld [vmem:[%s2 + $0x4c8] sm:$0xff]
        %v3391 = vld [vmem:[%s2 + $0x4d0] sm:$0xff]
        %v3392 = vld [vmem:[%s2 + $0x4d8] sm:$0xff]
        %v3393 = vld [vmem:[%s2 + $0x4e0] sm:$0xff]
        %v3394 = vld [vmem:[%s2 + $0x4e8] sm:$0xff]
        %v3395 = vld [vmem:[%s2 + $0x4f0] sm:$0xff]
        %v3396 = vld [vmem:[%s2 + $0x4f8] sm:$0xff]
        %v3397 = vld [vmem:[%s2 + $0x500] sm:$0xff]
        %v3398 = vld [vmem:[%s2 + $0x508] sm:$0xff]
        %v3399 = vld [vmem:[%s2 + $0x510] sm:$0xff]
        %v3400 = vld [vmem:[%s2 + $0x518] sm:$0xff]
        %v3401 = vld [vmem:[%s2 + $0x520] sm:$0xff]
        %v3402 = vld [vmem:[%s2 + $0x528] sm:$0xff]
        %v3403 = vld [vmem:[%s2 + $0x530] sm:$0xff]
        %v3404 = vld [vmem:[%s2 + $0x538] sm:$0xff]
        %v3405 = vld [vmem:[%s2 + $0x540] sm:$0xff]
        %v3406 = vld [vmem:[%s2 + $0x548] sm:$0xff]
        %v3407 = vld [vmem:[%s2 + $0x550] sm:$0xff]
        %v3408 = vld [vmem:[%s2 + $0x558] sm:$0xff]
        %v3409 = vld [vmem:[%s2 + $0x560] sm:$0xff]
        %v3410 = vld [vmem:[%s2 + $0x568] sm:$0xff]
        %v3411 = vld [vmem:[%s2 + $0x570] sm:$0xff]
        %v3412 = vld [vmem:[%s2 + $0x578] sm:$0xff]
        %v3413 = vld [vmem:[%s2 + $0x580] sm:$0xff]
        %v3414 = vld [vmem:[%s2 + $0x588] sm:$0xff]
        %v3415 = vld [vmem:[%s2 + $0x590] sm:$0xff]
        %v3416 = vld [vmem:[%s2 + $0x598] sm:$0xff]
        %v3417 = vld [vmem:[%s2 + $0x5a0] sm:$0xff]
        %v3418 = vld [vmem:[%s2 + $0x5a8] sm:$0xff]
        %v3419 = vld [vmem:[%s2 + $0x5b0] sm:$0xff]
        %v3420 = vld [vmem:[%s2 + $0x5b8] sm:$0xff]
        %v3421 = vld [vmem:[%s2 + $0x5c0] sm:$0xff]
        %v3422 = vld [vmem:[%s2 + $0x5c8] sm:$0xff]
        %v3423 = vld [vmem:[%s2 + $0x5d0] sm:$0xff]
        %v3424 = vld [vmem:[%s2 + $0x5d8] sm:$0xff]
        %v3425 = vld [vmem:[%s2 + $0x5e0] sm:$0xff]
        %v3426 = vld [vmem:[%s2 + $0x5e8] sm:$0xff]
        %v3427 = vld [vmem:[%s2 + $0x5f0] sm:$0xff]
        %v3428 = vld [vmem:[%s2 + $0x5f8] sm:$0xff]
        %v3429 = vld [vmem:[%s2 + $0x600] sm:$0xff]
        %v3430 = vld [vmem:[%s2 + $0x608] sm:$0xff]
        %v3431 = vld [vmem:[%s2 + $0x610] sm:$0xff]
        %v3432 = vld [vmem:[%s2 + $0x618] sm:$0xff]
        %v3433 = vld [vmem:[%s2 + $0x620] sm:$0xff]
        %v3434 = vld [vmem:[%s2 + $0x628] sm:$0xff]
        %v3435 = vld [vmem:[%s2 + $0x630] sm:$0xff]
        %v3436 = vld [vmem:[%s2 + $0x638] sm:$0xff]
        %v3437 = vld [vmem:[%s2 + $0x640] sm:$0xff]
        %v3438 = vld [vmem:[%s2 + $0x648] sm:$0xff]
        %v3439 = vld [vmem:[%s2 + $0x650] sm:$0xff]
        %v3440 = vld [vmem:[%s2 + $0x658] sm:$0xff]
        %v3441 = vld [vmem:[%s2 + $0x660] sm:$0xff]
        %v3442 = vld [vmem:[%s2 + $0x668] sm:$0xff]
        %v3443 = vld [vmem:[%s2 + $0x670] sm:$0xff]
        %v3444 = vld [vmem:[%s2 + $0x678] sm:$0xff]
        %v3445 = vld [vmem:[%s2 + $0x680] sm:$0xff]
        %v3446 = vld [vmem:[%s2 + $0x688] sm:$0xff]
        %v3447 = vld [vmem:[%s2 + $0x690] sm:$0xff]
        %v3448 = vld [vmem:[%s2 + $0x698] sm:$0xff]
        %v3449 = vld [vmem:[%s2 + $0x6a0] sm:$0xff]
        %v3450 = vld [vmem:[%s2 + $0x6a8] sm:$0xff]
        %v3451 = vld [vmem:[%s2 + $0x6b0] sm:$0xff]
        %v3452 = vld [vmem:[%s2 + $0x6b8] sm:$0xff]
        %v3453 = vld [vmem:[%s2 + $0x6c0] sm:$0xff]
        %v3454 = vld [vmem:[%s2 + $0x6c8] sm:$0xff]
        %v3455 = vld [vmem:[%s2 + $0x6d0] sm:$0xff]
        %v3456 = vld [vmem:[%s2 + $0x6d8] sm:$0xff]
        %v3457 = vld [vmem:[%s2 + $0x6e0] sm:$0xff]
        %v3458 = vld [vmem:[%s2 + $0x6e8] sm:$0xff]
        %v3459 = vld [vmem:[%s2 + $0x6f0] sm:$0xff]
        %v3460 = vld [vmem:[%s2 + $0x6f8] sm:$0xff]
        %v3461 = vld [vmem:[%s2 + $0x700] sm:$0xff]
        %v3462 = vld [vmem:[%s2 + $0x708] sm:$0xff]
        %v3463 = vld [vmem:[%s2 + $0x710] sm:$0xff]
        %v3464 = vld [vmem:[%s2 + $0x718] sm:$0xff]
        %v3465 = vld [vmem:[%s2 + $0x720] sm:$0xff]
        %v3466 = vld [vmem:[%s2 + $0x728] sm:$0xff]
        %v3467 = vld [vmem:[%s2 + $0x730] sm:$0xff]
        %v3468 = vld [vmem:[%s2 + $0x738] sm:$0xff]
        %v3469 = vld [vmem:[%s2 + $0x740] sm:$0xff]
        %v3470 = vld [vmem:[%s2 + $0x748] sm:$0xff]
        %v3471 = vld [vmem:[%s2 + $0x750] sm:$0xff]
        %v3472 = vld [vmem:[%s2 + $0x758] sm:$0xff]
        %v3473 = vld [vmem:[%s2 + $0x760] sm:$0xff]
        %v3474 = vld [vmem:[%s2 + $0x768] sm:$0xff]
        %v3475 = vld [vmem:[%s2 + $0x770] sm:$0xff]
        %v3476 = vld [vmem:[%s2 + $0x778] sm:$0xff]
        %v3477 = vld [vmem:[%s2 + $0x780] sm:$0xff]
        %v3478 = vld [vmem:[%s2 + $0x788] sm:$0xff]
        %v3479 = vld [vmem:[%s2 + $0x790] sm:$0xff]
        %v3480 = vld [vmem:[%s2 + $0x798] sm:$0xff]
        %v3481 = vld [vmem:[%s2 + $0x7a0] sm:$0xff]
        %v3482 = vld [vmem:[%s2 + $0x7a8] sm:$0xff]
        %v3483 = vld [vmem:[%s2 + $0x7b0] sm:$0xff]
        %v3484 = vld [vmem:[%s2 + $0x7b8] sm:$0xff]
        %v3485 = vld [vmem:[%s2 + $0x7c0] sm:$0xff]
        %v3486 = vld [vmem:[%s2 + $0x7c8] sm:$0xff]
        %v3487 = vld [vmem:[%s2 + $0x7d0] sm:$0xff]
        %v3488 = vld [vmem:[%s2 + $0x7d8] sm:$0xff]
        %v3489 = vld [vmem:[%s2 + $0x7e0] sm:$0xff]
        %v3490 = vld [vmem:[%s2 + $0x7e8] sm:$0xff]
        %v3491 = vld [vmem:[%s2 + $0x7f0] sm:$0xff]
        %v3492 = vld [vmem:[%s2 + $0x7f8] sm:$0xff]
        %v3493 = vld [vmem:[%s2 + $0x800] sm:$0xff]
        %v3494 = vld [vmem:[%s2 + $0x808] sm:$0xff]
        %v3495 = vld [vmem:[%s2 + $0x810] sm:$0xff]
        %v3496 = vld [vmem:[%s2 + $0x818] sm:$0xff]
        %v3497 = vld [vmem:[%s2 + $0x820] sm:$0xff]
        %v3498 = vld [vmem:[%s2 + $0x828] sm:$0xff]
        %v3499 = vld [vmem:[%s2 + $0x830] sm:$0xff]
        %v3500 = vld [vmem:[%s2 + $0x838] sm:$0xff]
        %v3501 = vld [vmem:[%s2 + $0x840] sm:$0xff]
        %v3502 = vld [vmem:[%s2 + $0x848] sm:$0xff]
        %v3503 = vld [vmem:[%s2 + $0x850] sm:$0xff]
        %v3504 = vld [vmem:[%s2 + $0x858] sm:$0xff]
        %v3505 = vld [vmem:[%s2 + $0x860] sm:$0xff]
        %v3506 = vld [vmem:[%s2 + $0x868] sm:$0xff]
        %v3507 = vld [vmem:[%s2 + $0x870] sm:$0xff]
        %v3508 = vld [vmem:[%s2 + $0x878] sm:$0xff]
        %v3509 = vld [vmem:[%s2 + $0x880] sm:$0xff]
        %v3510 = vld [vmem:[%s2 + $0x888] sm:$0xff]
        %v3511 = vld [vmem:[%s2 + $0x890] sm:$0xff]
        %v3512 = vld [vmem:[%s2 + $0x898] sm:$0xff]
        %v3513 = vld [vmem:[%s2 + $0x8a0] sm:$0xff]
        %v3514 = vld [vmem:[%s2 + $0x8a8] sm:$0xff]
        %v3515 = vld [vmem:[%s2 + $0x8b0] sm:$0xff]
        %v3516 = vld [vmem:[%s2 + $0x8b8] sm:$0xff]
        %v3517 = vld [vmem:[%s2 + $0x8c0] sm:$0xff]
        %v3518 = vld [vmem:[%s2 + $0x8c8] sm:$0xff]
        %v3519 = vld [vmem:[%s2 + $0x8d0] sm:$0xff]
        %v3520 = vld [vmem:[%s2 + $0x8d8] sm:$0xff]
        %v3521 = vld [vmem:[%s2 + $0x8e0] sm:$0xff]
        %v3522 = vld [vmem:[%s2 + $0x8e8] sm:$0xff]
        %v3523 = vld [vmem:[%s2 + $0x8f0] sm:$0xff]
        %v3524 = vld [vmem:[%s2 + $0x8f8] sm:$0xff]
        %v3525 = vld [vmem:[%s2 + $0x900] sm:$0xff]
        %v3526 = vld [vmem:[%s2 + $0x908] sm:$0xff]
        %v3527 = vld [vmem:[%s2 + $0x910] sm:$0xff]
        %v3528 = vld [vmem:[%s2 + $0x918] sm:$0xff]
        %v3529 = vld [vmem:[%s2 + $0x920] sm:$0xff]
        %v3530 = vld [vmem:[%s2 + $0x928] sm:$0xff]
        %v3531 = vld [vmem:[%s2 + $0x930] sm:$0xff]
        %v3532 = vld [vmem:[%s2 + $0x938] sm:$0xff]
        %v3533 = vld [vmem:[%s2 + $0x940] sm:$0xff]
        %v3534 = vld [vmem:[%s2 + $0x948] sm:$0xff]
        %v3535 = vld [vmem:[%s2 + $0x950] sm:$0xff]
        %v3536 = vld [vmem:[%s2 + $0x958] sm:$0xff]
        %v3537 = vld [vmem:[%s2 + $0x960] sm:$0xff]
        %v3538 = vld [vmem:[%s2 + $0x968] sm:$0xff]
        %v3539 = vld [vmem:[%s2 + $0x970] sm:$0xff]
        %v3540 = vld [vmem:[%s2 + $0x978] sm:$0xff]
        %v3541 = vld [vmem:[%s2 + $0x980] sm:$0xff]
        %v3542 = vld [vmem:[%s2 + $0x988] sm:$0xff]
        %v3543 = vld [vmem:[%s2 + $0x990] sm:$0xff]
        %v3544 = vld [vmem:[%s2 + $0x998] sm:$0xff]
        %v3545 = vld [vmem:[%s2 + $0x9a0] sm:$0xff]
        %v3546 = vld [vmem:[%s2 + $0x9a8] sm:$0xff]
        %v3547 = vld [vmem:[%s2 + $0x9b0] sm:$0xff]
        %v3548 = vld [vmem:[%s2 + $0x9b8] sm:$0xff]
        %v3549 = vld [vmem:[%s2 + $0x9c0] sm:$0xff]
        %v3550 = vld [vmem:[%s2 + $0x9c8] sm:$0xff]
        %v3551 = vld [vmem:[%s2 + $0x9d0] sm:$0xff]
        %v3552 = vld [vmem:[%s2 + $0x9d8] sm:$0xff]
        %v3553 = vld [vmem:[%s2 + $0x9e0] sm:$0xff]
        %v3554 = vld [vmem:[%s2 + $0x9e8] sm:$0xff]
        %v3555 = vld [vmem:[%s2 + $0x9f0] sm:$0xff]
        %v3556 = vld [vmem:[%s2 + $0x9f8] sm:$0xff]
        %v3557 = vld [vmem:[%s2 + $0xa00] sm:$0xff]
        %v3558 = vld [vmem:[%s2 + $0xa08] sm:$0xff]
        %v3559 = vld [vmem:[%s2 + $0xa10] sm:$0xff]
        %v3560 = vld [vmem:[%s2 + $0xa18] sm:$0xff]
        %v3561 = vld [vmem:[%s2 + $0xa20] sm:$0xff]
        %v3562 = vld [vmem:[%s2 + $0xa28] sm:$0xff]
        %v3563 = vld [vmem:[%s2 + $0xa30] sm:$0xff]
        %v3564 = vld [vmem:[%s2 + $0xa38] sm:$0xff]
        %v3565 = vld [vmem:[%s2 + $0xa40] sm:$0xff]
        %v3566 = vld [vmem:[%s2 + $0xa48] sm:$0xff]
        %v3567 = vld [vmem:[%s2 + $0xa50] sm:$0xff]
        %v3568 = vld [vmem:[%s2 + $0xa58] sm:$0xff]
        %v3569 = vld [vmem:[%s2 + $0xa60] sm:$0xff]
        %v3570 = vld [vmem:[%s2 + $0xa68] sm:$0xff]
        %v3571 = vld [vmem:[%s2 + $0xa70] sm:$0xff]
        %v3572 = vld [vmem:[%s2 + $0xa78] sm:$0xff]
        %v3573 = vld [vmem:[%s2 + $0xa80] sm:$0xff]
        %v3574 = vld [vmem:[%s2 + $0xa88] sm:$0xff]
        %v3575 = vld [vmem:[%s2 + $0xa90] sm:$0xff]
        %v3576 = vld [vmem:[%s2 + $0xa98] sm:$0xff]
        %v3577 = vld [vmem:[%s2 + $0xaa0] sm:$0xff]
        %v3578 = vld [vmem:[%s2 + $0xaa8] sm:$0xff]
        %v3579 = vld [vmem:[%s2 + $0xab0] sm:$0xff]
        %v3580 = vld [vmem:[%s2 + $0xab8] sm:$0xff]
        %v3581 = vld [vmem:[%s2 + $0xac0] sm:$0xff]
        %v3582 = vld [vmem:[%s2 + $0xac8] sm:$0xff]
        %v3583 = vld [vmem:[%s2 + $0xad0] sm:$0xff]
        %v3584 = vld [vmem:[%s2 + $0xad8] sm:$0xff]
        %v3585 = vld [vmem:[%s2 + $0xae0] sm:$0xff]
        %v3586 = vld [vmem:[%s2 + $0xae8] sm:$0xff]
        %v3587 = vld [vmem:[%s2 + $0xaf0] sm:$0xff]
        %v3588 = vld [vmem:[%s2 + $0xaf8] sm:$0xff]
        %v3589 = vld [vmem:[%s2 + $0xb00] sm:$0xff]
        %v3590 = vld [vmem:[%s2 + $0xb08] sm:$0xff]
        %v3591 = vld [vmem:[%s2 + $0xb10] sm:$0xff]
        %v3592 = vld [vmem:[%s2 + $0xb18] sm:$0xff]
        %v3593 = vld [vmem:[%s2 + $0xb20] sm:$0xff]
        %v3594 = vld [vmem:[%s2 + $0xb28] sm:$0xff]
        %v3595 = vld [vmem:[%s2 + $0xb30] sm:$0xff]
        %v3596 = vld [vmem:[%s2 + $0xb38] sm:$0xff]
        %v3597 = vld [vmem:[%s2 + $0xb40] sm:$0xff]
        %v3598 = vld [vmem:[%s2 + $0xb48] sm:$0xff]
        %v3599 = vld [vmem:[%s2 + $0xb50] sm:$0xff]
        %v3600 = vld [vmem:[%s2 + $0xb58] sm:$0xff]
        %v3601 = vld [vmem:[%s2 + $0xb60] sm:$0xff]
        %v3602 = vld [vmem:[%s2 + $0xb68] sm:$0xff]
        %v3603 = vld [vmem:[%s2 + $0xb70] sm:$0xff]
        %v3604 = vld [vmem:[%s2 + $0xb78] sm:$0xff]
        %v3605 = vld [vmem:[%s2 + $0xb80] sm:$0xff]
        %v3606 = vld [vmem:[%s2 + $0xb88] sm:$0xff]
        %v3607 = vld [vmem:[%s2 + $0xb90] sm:$0xff]
        %v3608 = vld [vmem:[%s2 + $0xb98] sm:$0xff]
        %v3609 = vld [vmem:[%s2 + $0xba0] sm:$0xff]
        %v3610 = vld [vmem:[%s2 + $0xba8] sm:$0xff]
        %v3611 = vld [vmem:[%s2 + $0xbb0] sm:$0xff]
        %v3612 = vld [vmem:[%s2 + $0xbb8] sm:$0xff]
        %v3613 = vld [vmem:[%s2 + $0xbc0] sm:$0xff]
        %v3614 = vld [vmem:[%s2 + $0xbc8] sm:$0xff]
        %v3615 = vld [vmem:[%s2 + $0xbd0] sm:$0xff]
        %v3616 = vld [vmem:[%s2 + $0xbd8] sm:$0xff]
        %v3617 = vld [vmem:[%s2 + $0xbe0] sm:$0xff]
        %v3618 = vld [vmem:[%s2 + $0xbe8] sm:$0xff]
        %v3619 = vld [vmem:[%s2 + $0xbf0] sm:$0xff]
        %v3620 = vld [vmem:[%s2 + $0xbf8] sm:$0xff]
        %v3621 = vld [vmem:[%s2 + $0xc00] sm:$0xff]
        %v3622 = vld [vmem:[%s2 + $0xc08] sm:$0xff]
        %v3623 = vld [vmem:[%s2 + $0xc10] sm:$0xff]
        %v3624 = vld [vmem:[%s2 + $0xc18] sm:$0xff]
        %v3625 = vld [vmem:[%s2 + $0xc20] sm:$0xff]
        %v3626 = vld [vmem:[%s2 + $0xc28] sm:$0xff]
        %v3627 = vld [vmem:[%s2 + $0xc30] sm:$0xff]
        %v3628 = vld [vmem:[%s2 + $0xc38] sm:$0xff]
        %v3629 = vld [vmem:[%s2 + $0xc40] sm:$0xff]
        %v3630 = vld [vmem:[%s2 + $0xc48] sm:$0xff]
        %v3631 = vld [vmem:[%s2 + $0xc50] sm:$0xff]
        %v3632 = vld [vmem:[%s2 + $0xc58] sm:$0xff]
        %v3633 = vld [vmem:[%s2 + $0xc60] sm:$0xff]
        %v3634 = vld [vmem:[%s2 + $0xc68] sm:$0xff]
        %v3635 = vld [vmem:[%s2 + $0xc70] sm:$0xff]
        %v3636 = vld [vmem:[%s2 + $0xc78] sm:$0xff]
        %v3637 = vld [vmem:[%s2 + $0xc80] sm:$0xff]
        %v3638 = vld [vmem:[%s2 + $0xc88] sm:$0xff]
        %v3639 = vld [vmem:[%s2 + $0xc90] sm:$0xff]
        %v3640 = vld [vmem:[%s2 + $0xc98] sm:$0xff]
        %v3641 = vld [vmem:[%s2 + $0xca0] sm:$0xff]
        %v3642 = vld [vmem:[%s2 + $0xca8] sm:$0xff]
        %v3643 = vld [vmem:[%s2 + $0xcb0] sm:$0xff]
        %v3644 = vld [vmem:[%s2 + $0xcb8] sm:$0xff]
        %v3645 = vld [vmem:[%s2 + $0xcc0] sm:$0xff]
        %v3646 = vld [vmem:[%s2 + $0xcc8] sm:$0xff]
        %v3647 = vld [vmem:[%s2 + $0xcd0] sm:$0xff]
        %v3648 = vld [vmem:[%s2 + $0xcd8] sm:$0xff]
        %v3649 = vld [vmem:[%s2 + $0xce0] sm:$0xff]
        %v3650 = vld [vmem:[%s2 + $0xce8] sm:$0xff]
        %v3651 = vld [vmem:[%s2 + $0xcf0] sm:$0xff]
        %v3652 = vld [vmem:[%s2 + $0xcf8] sm:$0xff]
        %v3653 = vld [vmem:[%s2 + $0xd00] sm:$0xff]
        %v3654 = vld [vmem:[%s2 + $0xd08] sm:$0xff]
        %v3655 = vld [vmem:[%s2 + $0xd10] sm:$0xff]
        %v3656 = vld [vmem:[%s2 + $0xd18] sm:$0xff]
        %v3657 = vld [vmem:[%s2 + $0xd20] sm:$0xff]
        %v3658 = vld [vmem:[%s2 + $0xd28] sm:$0xff]
        %v3659 = vld [vmem:[%s2 + $0xd30] sm:$0xff]
        %v3660 = vld [vmem:[%s2 + $0xd38] sm:$0xff]
        %v3661 = vld [vmem:[%s2 + $0xd40] sm:$0xff]
        %v3662 = vld [vmem:[%s2 + $0xd48] sm:$0xff]
        %v3663 = vld [vmem:[%s2 + $0xd50] sm:$0xff]
        %v3664 = vld [vmem:[%s2 + $0xd58] sm:$0xff]
        %v3665 = vld [vmem:[%s2 + $0xd60] sm:$0xff]
        %v3666 = vld [vmem:[%s2 + $0xd68] sm:$0xff]
        %v3667 = vld [vmem:[%s2 + $0xd70] sm:$0xff]
        %v3668 = vld [vmem:[%s2 + $0xd78] sm:$0xff]
        %v3669 = vld [vmem:[%s2 + $0xd80] sm:$0xff]
        %v3670 = vld [vmem:[%s2 + $0xd88] sm:$0xff]
        %v3671 = vld [vmem:[%s2 + $0xd90] sm:$0xff]
        %v3672 = vld [vmem:[%s2 + $0xd98] sm:$0xff]
        %v3673 = vld [vmem:[%s2 + $0xda0] sm:$0xff]
        %v3674 = vld [vmem:[%s2 + $0xda8] sm:$0xff]
        %v3675 = vld [vmem:[%s2 + $0xdb0] sm:$0xff]
        %v3676 = vld [vmem:[%s2 + $0xdb8] sm:$0xff]
        %v3677 = vld [vmem:[%s2 + $0xdc0] sm:$0xff]
        %v3678 = vld [vmem:[%s2 + $0xdc8] sm:$0xff]
        %v3679 = vld [vmem:[%s2 + $0xdd0] sm:$0xff]
        %v3680 = vld [vmem:[%s2 + $0xdd8] sm:$0xff]
        %v3681 = vld [vmem:[%s2 + $0xde0] sm:$0xff]
        %v3682 = vld [vmem:[%s2 + $0xde8] sm:$0xff]
        %v3683 = vld [vmem:[%s2 + $0xdf0] sm:$0xff]
        %v3684 = vld [vmem:[%s2 + $0xdf8] sm:$0xff]
        %v3685 = vld [vmem:[%s2 + $0xe00] sm:$0xff]
        %v3686 = vld [vmem:[%s2 + $0xe08] sm:$0xff]
        %v3687 = vld [vmem:[%s2 + $0xe10] sm:$0xff]
        %v3688 = vld [vmem:[%s2 + $0xe18] sm:$0xff]
        %v3689 = vld [vmem:[%s2 + $0xe20] sm:$0xff]
        %v3690 = vld [vmem:[%s2 + $0xe28] sm:$0xff]
        %v3691 = vld [vmem:[%s2 + $0xe30] sm:$0xff]
        %v3692 = vld [vmem:[%s2 + $0xe38] sm:$0xff]
        %v3693 = vld [vmem:[%s2 + $0xe40] sm:$0xff]
        %v3694 = vld [vmem:[%s2 + $0xe48] sm:$0xff]
        %v3695 = vld [vmem:[%s2 + $0xe50] sm:$0xff]
        %v3696 = vld [vmem:[%s2 + $0xe58] sm:$0xff]
        %v3697 = vld [vmem:[%s2 + $0xe60] sm:$0xff]
        %v3698 = vld [vmem:[%s2 + $0xe68] sm:$0xff]
        %v3699 = vld [vmem:[%s2 + $0xe70] sm:$0xff]
        %v3700 = vld [vmem:[%s2 + $0xe78] sm:$0xff]
        %v3701 = vld [vmem:[%s2 + $0xe80] sm:$0xff]
        %v3702 = vld [vmem:[%s2 + $0xe88] sm:$0xff]
        %v3703 = vld [vmem:[%s2 + $0xe90] sm:$0xff]
        %v3704 = vld [vmem:[%s2 + $0xe98] sm:$0xff]
        %v3705 = vld [vmem:[%s2 + $0xea0] sm:$0xff]
        %v3706 = vld [vmem:[%s2 + $0xea8] sm:$0xff]
        %v3707 = vld [vmem:[%s2 + $0xeb0] sm:$0xff]
        %v3708 = vld [vmem:[%s2 + $0xeb8] sm:$0xff]
        %v3709 = vld [vmem:[%s2 + $0xec0] sm:$0xff]
        %v3710 = vld [vmem:[%s2 + $0xec8] sm:$0xff]
        %v3711 = vld [vmem:[%s2 + $0xed0] sm:$0xff]
        %v3712 = vld [vmem:[%s2 + $0xed8] sm:$0xff]
        %v3713 = vld [vmem:[%s2 + $0xee0] sm:$0xff]
        %v3714 = vld [vmem:[%s2 + $0xee8] sm:$0xff]
        %v3715 = vld [vmem:[%s2 + $0xef0] sm:$0xff]
        %v3716 = vld [vmem:[%s2 + $0xef8] sm:$0xff]
        %v3717 = vld [vmem:[%s2 + $0xf00] sm:$0xff]
        %v3718 = vld [vmem:[%s2 + $0xf08] sm:$0xff]
        %v3719 = vld [vmem:[%s2 + $0xf10] sm:$0xff]
        %v3720 = vld [vmem:[%s2 + $0xf18] sm:$0xff]
        %v3721 = vld [vmem:[%s2 + $0xf20] sm:$0xff]
        %v3722 = vld [vmem:[%s2 + $0xf28] sm:$0xff]
        %v3723 = vld [vmem:[%s2 + $0xf30] sm:$0xff]
        %v3724 = vld [vmem:[%s2 + $0xf38] sm:$0xff]
        %v3725 = vld [vmem:[%s2 + $0xf40] sm:$0xff]
        %v3726 = vld [vmem:[%s2 + $0xf48] sm:$0xff]
        %v3727 = vld [vmem:[%s2 + $0xf50] sm:$0xff]
        %v3728 = vld [vmem:[%s2 + $0xf58] sm:$0xff]
        %v3729 = vld [vmem:[%s2 + $0xf60] sm:$0xff]
        %v3730 = vld [vmem:[%s2 + $0xf68] sm:$0xff]
        %v3731 = vld [vmem:[%s2 + $0xf70] sm:$0xff]
        %v3732 = vld [vmem:[%s2 + $0xf78] sm:$0xff]
        %v3733 = vld [vmem:[%s2 + $0xf80] sm:$0xff]
        %v3734 = vld [vmem:[%s2 + $0xf88] sm:$0xff]
        %v3735 = vld [vmem:[%s2 + $0xf90] sm:$0xff]
        %v3736 = vld [vmem:[%s2 + $0xf98] sm:$0xff]
        %v3737 = vld [vmem:[%s2 + $0xfa0] sm:$0xff]
        %v3738 = vld [vmem:[%s2 + $0xfa8] sm:$0xff]
        %v3739 = vld [vmem:[%s2 + $0xfb0] sm:$0xff]
        %v3740 = vld [vmem:[%s2 + $0xfb8] sm:$0xff]
        %v3741 = vld [vmem:[%s2 + $0xfc0] sm:$0xff]
        %v3742 = vld [vmem:[%s2 + $0xfc8] sm:$0xff]
        %v3743 = vld [vmem:[%s2 + $0xfd0] sm:$0xff]
        %v3744 = vld [vmem:[%s2 + $0xfd8] sm:$0xff]
        %v3745 = vld [vmem:[%s2 + $0xfe0] sm:$0xff]
        %v3746 = vld [vmem:[%s2 + $0xfe8] sm:$0xff]
        %v3747 = vld [vmem:[%s2 + $0xff0] sm:$0xff]
        %v3748 = vld [vmem:[%s2 + $0xff8] sm:$0xff]
        %v3749 = vld [vmem:[%s2 + $0x1000] sm:$0xff]
        %v3750 = vld [vmem:[%s2 + $0x1008] sm:$0xff]
        %v3751 = vld [vmem:[%s2 + $0x1010] sm:$0xff]
        %v3752 = vld [vmem:[%s2 + $0x1018] sm:$0xff]
        %v3753 = vld [vmem:[%s2 + $0x1020] sm:$0xff]
        %v3754 = vld [vmem:[%s2 + $0x1028] sm:$0xff]
        %v3755 = vld [vmem:[%s2 + $0x1030] sm:$0xff]
        %v3756 = vld [vmem:[%s2 + $0x1038] sm:$0xff]
        %v3757 = vld [vmem:[%s2 + $0x1040] sm:$0xff]
        %v3758 = vld [vmem:[%s2 + $0x1048] sm:$0xff]
        %v3759 = vld [vmem:[%s2 + $0x1050] sm:$0xff]
        %v3760 = vld [vmem:[%s2 + $0x1058] sm:$0xff]
        %v3761 = vld [vmem:[%s2 + $0x1060] sm:$0xff]
        %v3762 = vld [vmem:[%s2 + $0x1068] sm:$0xff]
        %v3763 = vld [vmem:[%s2 + $0x1070] sm:$0xff]
        %v3764 = vld [vmem:[%s2 + $0x1078] sm:$0xff]
        %v3765 = vld [vmem:[%s2 + $0x1080] sm:$0xff]
        %v3766 = vld [vmem:[%s2 + $0x1088] sm:$0xff]
        %v3767 = vld [vmem:[%s2 + $0x1090] sm:$0xff]
        %v3768 = vld [vmem:[%s2 + $0x1098] sm:$0xff]
        %v3769 = vld [vmem:[%s2 + $0x10a0] sm:$0xff]
        %v3770 = vld [vmem:[%s2 + $0x10a8] sm:$0xff]
        %v3771 = vld [vmem:[%s2 + $0x10b0] sm:$0xff]
        %v3772 = vld [vmem:[%s2 + $0x10b8] sm:$0xff]
        %v3773 = vld [vmem:[%s2 + $0x10c0] sm:$0xff]
        %v3774 = vld [vmem:[%s2 + $0x10c8] sm:$0xff]
        %v3775 = vld [vmem:[%s2 + $0x10d0] sm:$0xff]
        %v3776 = vld [vmem:[%s2 + $0x10d8] sm:$0xff]
        %v3777 = vld [vmem:[%s2 + $0x10e0] sm:$0xff]
        %v3778 = vld [vmem:[%s2 + $0x10e8] sm:$0xff]
        %v3779 = vld [vmem:[%s2 + $0x10f0] sm:$0xff]
        %v3780 = vld [vmem:[%s2 + $0x10f8] sm:$0xff]
        %v3781 = vld [vmem:[%s2 + $0x1100] sm:$0xff]
        %v3782 = vld [vmem:[%s2 + $0x1108] sm:$0xff]
        %v3783 = vld [vmem:[%s2 + $0x1110] sm:$0xff]
        %v3784 = vld [vmem:[%s2 + $0x1118] sm:$0xff]
        %v3785 = vld [vmem:[%s2 + $0x1120] sm:$0xff]
        %v3786 = vld [vmem:[%s2 + $0x1128] sm:$0xff]
        %v3787 = vld [vmem:[%s2 + $0x1130] sm:$0xff]
        %v3788 = vld [vmem:[%s2 + $0x1138] sm:$0xff]
        %v3789 = vld [vmem:[%s2 + $0x1140] sm:$0xff]
        %v3790 = vld [vmem:[%s2 + $0x1148] sm:$0xff]
        %v3791 = vld [vmem:[%s2 + $0x1150] sm:$0xff]
        %v3792 = vld [vmem:[%s2 + $0x1158] sm:$0xff]
        %v3793 = vld [vmem:[%s2 + $0x1160] sm:$0xff]
        %v3794 = vld [vmem:[%s2 + $0x1168] sm:$0xff]
        %v3795 = vld [vmem:[%s2 + $0x1170] sm:$0xff]
        %v3796 = vld [vmem:[%s2 + $0x1178] sm:$0xff]
        %v3797 = vld [vmem:[%s2 + $0x1180] sm:$0xff]
        %v3798 = vld [vmem:[%s2 + $0x1188] sm:$0xff]
        %v3799 = vld [vmem:[%s2 + $0x1190] sm:$0xff]
        %v3800 = vld [vmem:[%s2 + $0x1198] sm:$0xff]
        %v3801 = vld [vmem:[%s2 + $0x11a0] sm:$0xff]
        %v3802 = vld [vmem:[%s2 + $0x11a8] sm:$0xff]
        %v3803 = vld [vmem:[%s2 + $0x11b0] sm:$0xff]
        %v3804 = vld [vmem:[%s2 + $0x11b8] sm:$0xff]
        %v3805 = vld [vmem:[%s2 + $0x11c0] sm:$0xff]
        %v3806 = vld [vmem:[%s2 + $0x11c8] sm:$0xff]
        %v3807 = vld [vmem:[%s2 + $0x11d0] sm:$0xff]
        %v3808 = vld [vmem:[%s2 + $0x11d8] sm:$0xff]
        %v3809 = vld [vmem:[%s2 + $0x11e0] sm:$0xff]
        %v3810 = vld [vmem:[%s2 + $0x11e8] sm:$0xff]
        %v3811 = vld [vmem:[%s2 + $0x11f0] sm:$0xff]
        %v3812 = vld [vmem:[%s2 + $0x11f8] sm:$0xff]
        %s3813 = scalar_lea.vmem %s3, 3
        %v3814 = vld [vmem:[%s3813] ss:$8 sm:$0x3]
        %v3816 = vperm.slane %v3814, 0
        %v3817 = vperm.slane %v3814, 1
        %3820 = vmatpush.msra.mxu0 %v3267
        %3821 = vmatpush.msra.mxu0 %v3265
        %3822 = vmatpush.msra.mxu0 %v3263
        %3823 = vmatpush.msra.mxu0 %v3261
        %3824 = vmatpush.msra.mxu0 %v3259
        %3825 = vmatpush.msra.mxu0 %v3257
        %3826 = vmatpush.msra.mxu0 %v3255
        %3827 = vmatpush.msra.mxu0 %v3253
        %3828 = vmatpush.msra.mxu0 %v3251
        %3829 = vmatpush.msra.mxu0 %v3249
        %3830 = vmatpush.msra.mxu0 %v3247
        %3831 = vmatpush.msra.mxu0 %v3245
        %3832 = vmatpush.msra.mxu0 %v3243
        %3833 = vmatpush.msra.mxu0 %v3241
        %3834 = vmatpush.msra.mxu0 %v3239
        %3835 = vmatpush.msra.mxu0 %v3237
        %3836 = vmatmul.f32.gmra.mxu0 %v3093
        %v3837 = vpop.f32.mrf.mxu0
        %v3838 = vadd.f32 %v3816, %v3837
        %3839 = vmatmul.f32.gmra.mxu0 %v3111
        %v3840 = vpop.f32.mrf.mxu0
        %v3841 = vadd.f32 %v3816, %v3840
        %3842 = vmatmul.f32.gmra.mxu0 %v3129
        %v3843 = vpop.f32.mrf.mxu0
        %v3844 = vadd.f32 %v3816, %v3843
        %3845 = vmatmul.f32.gmra.mxu0 %v3147
        %v3846 = vpop.f32.mrf.mxu0
        %v3847 = vadd.f32 %v3816, %v3846
        %3848 = vmatmul.f32.gmra.mxu0 %v3165
        %v3849 = vpop.f32.mrf.mxu0
        %v3850 = vadd.f32 %v3816, %v3849
        %3851 = vmatmul.f32.gmra.mxu0 %v3183
        %v3852 = vpop.f32.mrf.mxu0
        %v3853 = vadd.f32 %v3816, %v3852
        %3854 = vmatmul.f32.gmra.mxu0 %v3201
        %v3855 = vpop.f32.mrf.mxu0
        %v3856 = vadd.f32 %v3816, %v3855
        %3857 = vmatmul.f32.gmra.mxu0 %v3219
        %v3858 = vpop.f32.mrf.mxu0
        %v3859 = vadd.f32 %v3816, %v3858
        %3860 = vdwg.mxu0
        %3861 = vmatpush.msra.mxu0 %v3299
        %3862 = vmatpush.msra.mxu0 %v3297
        %3863 = vmatpush.msra.mxu0 %v3295
        %3864 = vmatpush.msra.mxu0 %v3293
        %3865 = vmatpush.msra.mxu0 %v3291
        %3866 = vmatpush.msra.mxu0 %v3289
        %3867 = vmatpush.msra.mxu0 %v3287
        %3868 = vmatpush.msra.mxu0 %v3285
        %3869 = vmatpush.msra.mxu0 %v3283
        %3870 = vmatpush.msra.mxu0 %v3281
        %3871 = vmatpush.msra.mxu0 %v3279
        %3872 = vmatpush.msra.mxu0 %v3277
        %3873 = vmatpush.msra.mxu0 %v3275
        %3874 = vmatpush.msra.mxu0 %v3273
        %3875 = vmatpush.msra.mxu0 %v3271
        %3876 = vmatpush.msra.mxu0 %v3269
        %3877 = vmatmul.f32.gmra.mxu0 %v3094
        %v3878 = vpop.f32.mrf.mxu0
        %v3879 = vadd.f32 %v3838, %v3878
        %3880 = vmatmul.f32.gmra.mxu0 %v3112
        %v3881 = vpop.f32.mrf.mxu0
        %v3882 = vadd.f32 %v3841, %v3881
        %3883 = vmatmul.f32.gmra.mxu0 %v3130
        %v3884 = vpop.f32.mrf.mxu0
        %v3885 = vadd.f32 %v3844, %v3884
        %3886 = vmatmul.f32.gmra.mxu0 %v3148
        %v3887 = vpop.f32.mrf.mxu0
        %v3888 = vadd.f32 %v3847, %v3887
        %3889 = vmatmul.f32.gmra.mxu0 %v3166
        %v3890 = vpop.f32.mrf.mxu0
        %v3891 = vadd.f32 %v3850, %v3890
        %3892 = vmatmul.f32.gmra.mxu0 %v3184
        %v3893 = vpop.f32.mrf.mxu0
        %v3894 = vadd.f32 %v3853, %v3893
        %3895 = vmatmul.f32.gmra.mxu0 %v3202
        %v3896 = vpop.f32.mrf.mxu0
        %v3897 = vadd.f32 %v3856, %v3896
        %3898 = vmatmul.f32.gmra.mxu0 %v3220
        %v3899 = vpop.f32.mrf.mxu0
        %v3900 = vadd.f32 %v3859, %v3899
        %3901 = vdwg.mxu0
        %3902 = vmatpush.msra.mxu0 %v3331
        %3903 = vmatpush.msra.mxu0 %v3329
        %3904 = vmatpush.msra.mxu0 %v3327
        %3905 = vmatpush.msra.mxu0 %v3325
        %3906 = vmatpush.msra.mxu0 %v3323
        %3907 = vmatpush.msra.mxu0 %v3321
        %3908 = vmatpush.msra.mxu0 %v3319
        %3909 = vmatpush.msra.mxu0 %v3317
        %3910 = vmatpush.msra.mxu0 %v3315
        %3911 = vmatpush.msra.mxu0 %v3313
        %3912 = vmatpush.msra.mxu0 %v3311
        %3913 = vmatpush.msra.mxu0 %v3309
        %3914 = vmatpush.msra.mxu0 %v3307
        %3915 = vmatpush.msra.mxu0 %v3305
        %3916 = vmatpush.msra.mxu0 %v3303
        %3917 = vmatpush.msra.mxu0 %v3301
        %3918 = vmatmul.f32.gmra.mxu0 %v3095
        %v3919 = vpop.f32.mrf.mxu0
        %v3920 = vadd.f32 %v3879, %v3919
        %3921 = vmatmul.f32.gmra.mxu0 %v3113
        %v3922 = vpop.f32.mrf.mxu0
        %v3923 = vadd.f32 %v3882, %v3922
        %3924 = vmatmul.f32.gmra.mxu0 %v3131
        %v3925 = vpop.f32.mrf.mxu0
        %v3926 = vadd.f32 %v3885, %v3925
        %3927 = vmatmul.f32.gmra.mxu0 %v3149
        %v3928 = vpop.f32.mrf.mxu0
        %v3929 = vadd.f32 %v3888, %v3928
        %3930 = vmatmul.f32.gmra.mxu0 %v3167
        %v3931 = vpop.f32.mrf.mxu0
        %v3932 = vadd.f32 %v3891, %v3931
        %3933 = vmatmul.f32.gmra.mxu0 %v3185
        %v3934 = vpop.f32.mrf.mxu0
        %v3935 = vadd.f32 %v3894, %v3934
        %3936 = vmatmul.f32.gmra.mxu0 %v3203
        %v3937 = vpop.f32.mrf.mxu0
        %v3938 = vadd.f32 %v3897, %v3937
        %3939 = vmatmul.f32.gmra.mxu0 %v3221
        %v3940 = vpop.f32.mrf.mxu0
        %v3941 = vadd.f32 %v3900, %v3940
        %3942 = vdwg.mxu0
        %3943 = vmatpush.msra.mxu0 %v3363
        %3944 = vmatpush.msra.mxu0 %v3361
        %3945 = vmatpush.msra.mxu0 %v3359
        %3946 = vmatpush.msra.mxu0 %v3357
        %3947 = vmatpush.msra.mxu0 %v3355
        %3948 = vmatpush.msra.mxu0 %v3353
        %3949 = vmatpush.msra.mxu0 %v3351
        %3950 = vmatpush.msra.mxu0 %v3349
        %3951 = vmatpush.msra.mxu0 %v3347
        %3952 = vmatpush.msra.mxu0 %v3345
        %3953 = vmatpush.msra.mxu0 %v3343
        %3954 = vmatpush.msra.mxu0 %v3341
        %3955 = vmatpush.msra.mxu0 %v3339
        %3956 = vmatpush.msra.mxu0 %v3337
        %3957 = vmatpush.msra.mxu0 %v3335
        %3958 = vmatpush.msra.mxu0 %v3333
        %3959 = vmatmul.f32.gmra.mxu0 %v3096
        %v3960 = vpop.f32.mrf.mxu0
        %v3961 = vadd.f32 %v3920, %v3960
        %3962 = vmatmul.f32.gmra.mxu0 %v3114
        %v3963 = vpop.f32.mrf.mxu0
        %v3964 = vadd.f32 %v3923, %v3963
        %3965 = vmatmul.f32.gmra.mxu0 %v3132
        %v3966 = vpop.f32.mrf.mxu0
        %v3967 = vadd.f32 %v3926, %v3966
        %3968 = vmatmul.f32.gmra.mxu0 %v3150
        %v3969 = vpop.f32.mrf.mxu0
        %v3970 = vadd.f32 %v3929, %v3969
        %3971 = vmatmul.f32.gmra.mxu0 %v3168
        %v3972 = vpop.f32.mrf.mxu0
        %v3973 = vadd.f32 %v3932, %v3972
        %3974 = vmatmul.f32.gmra.mxu0 %v3186
        %v3975 = vpop.f32.mrf.mxu0
        %v3976 = vadd.f32 %v3935, %v3975
        %3977 = vmatmul.f32.gmra.mxu0 %v3204
        %v3978 = vpop.f32.mrf.mxu0
        %v3979 = vadd.f32 %v3938, %v3978
        %3980 = vmatmul.f32.gmra.mxu0 %v3222
        %v3981 = vpop.f32.mrf.mxu0
        %v3982 = vadd.f32 %v3941, %v3981
        %3983 = vdwg.mxu0
        %3984 = vmatpush.msra.mxu0 %v3395
        %3985 = vmatpush.msra.mxu0 %v3393
        %3986 = vmatpush.msra.mxu0 %v3391
        %3987 = vmatpush.msra.mxu0 %v3389
        %3988 = vmatpush.msra.mxu0 %v3387
        %3989 = vmatpush.msra.mxu0 %v3385
        %3990 = vmatpush.msra.mxu0 %v3383
        %3991 = vmatpush.msra.mxu0 %v3381
        %3992 = vmatpush.msra.mxu0 %v3379
        %3993 = vmatpush.msra.mxu0 %v3377
        %3994 = vmatpush.msra.mxu0 %v3375
        %3995 = vmatpush.msra.mxu0 %v3373
        %3996 = vmatpush.msra.mxu0 %v3371
        %3997 = vmatpush.msra.mxu0 %v3369
        %3998 = vmatpush.msra.mxu0 %v3367
        %3999 = vmatpush.msra.mxu0 %v3365
        %4000 = vmatmul.f32.gmra.mxu0 %v3097
        %v4001 = vpop.f32.mrf.mxu0
        %v4002 = vadd.f32 %v3961, %v4001
        %4003 = vmatmul.f32.gmra.mxu0 %v3115
        %v4004 = vpop.f32.mrf.mxu0
        %v4005 = vadd.f32 %v3964, %v4004
        %4006 = vmatmul.f32.gmra.mxu0 %v3133
        %v4007 = vpop.f32.mrf.mxu0
        %v4008 = vadd.f32 %v3967, %v4007
        %4009 = vmatmul.f32.gmra.mxu0 %v3151
        %v4010 = vpop.f32.mrf.mxu0
        %v4011 = vadd.f32 %v3970, %v4010
        %4012 = vmatmul.f32.gmra.mxu0 %v3169
        %v4013 = vpop.f32.mrf.mxu0
        %v4014 = vadd.f32 %v3973, %v4013
        %4015 = vmatmul.f32.gmra.mxu0 %v3187
        %v4016 = vpop.f32.mrf.mxu0
        %v4017 = vadd.f32 %v3976, %v4016
        %4018 = vmatmul.f32.gmra.mxu0 %v3205
        %v4019 = vpop.f32.mrf.mxu0
        %v4020 = vadd.f32 %v3979, %v4019
        %4021 = vmatmul.f32.gmra.mxu0 %v3223
        %v4022 = vpop.f32.mrf.mxu0
        %v4023 = vadd.f32 %v3982, %v4022
        %4024 = vdwg.mxu0
        %4025 = vmatpush.msra.mxu0 %v3427
        %4026 = vmatpush.msra.mxu0 %v3425
        %4027 = vmatpush.msra.mxu0 %v3423
        %4028 = vmatpush.msra.mxu0 %v3421
        %4029 = vmatpush.msra.mxu0 %v3419
        %4030 = vmatpush.msra.mxu0 %v3417
        %4031 = vmatpush.msra.mxu0 %v3415
        %4032 = vmatpush.msra.mxu0 %v3413
        %4033 = vmatpush.msra.mxu0 %v3411
        %4034 = vmatpush.msra.mxu0 %v3409
        %4035 = vmatpush.msra.mxu0 %v3407
        %4036 = vmatpush.msra.mxu0 %v3405
        %4037 = vmatpush.msra.mxu0 %v3403
        %4038 = vmatpush.msra.mxu0 %v3401
        %4039 = vmatpush.msra.mxu0 %v3399
        %4040 = vmatpush.msra.mxu0 %v3397
        %4041 = vmatmul.f32.gmra.mxu0 %v3098
        %v4042 = vpop.f32.mrf.mxu0
        %v4043 = vadd.f32 %v4002, %v4042
        %4044 = vmatmul.f32.gmra.mxu0 %v3116
        %v4045 = vpop.f32.mrf.mxu0
        %v4046 = vadd.f32 %v4005, %v4045
        %4047 = vmatmul.f32.gmra.mxu0 %v3134
        %v4048 = vpop.f32.mrf.mxu0
        %v4049 = vadd.f32 %v4008, %v4048
        %4050 = vmatmul.f32.gmra.mxu0 %v3152
        %v4051 = vpop.f32.mrf.mxu0
        %v4052 = vadd.f32 %v4011, %v4051
        %4053 = vmatmul.f32.gmra.mxu0 %v3170
        %v4054 = vpop.f32.mrf.mxu0
        %v4055 = vadd.f32 %v4014, %v4054
        %4056 = vmatmul.f32.gmra.mxu0 %v3188
        %v4057 = vpop.f32.mrf.mxu0
        %v4058 = vadd.f32 %v4017, %v4057
        %4059 = vmatmul.f32.gmra.mxu0 %v3206
        %v4060 = vpop.f32.mrf.mxu0
        %v4061 = vadd.f32 %v4020, %v4060
        %4062 = vmatmul.f32.gmra.mxu0 %v3224
        %v4063 = vpop.f32.mrf.mxu0
        %v4064 = vadd.f32 %v4023, %v4063
        %4065 = vdwg.mxu0
        %4066 = vmatpush.msra.mxu0 %v3459
        %4067 = vmatpush.msra.mxu0 %v3457
        %4068 = vmatpush.msra.mxu0 %v3455
        %4069 = vmatpush.msra.mxu0 %v3453
        %4070 = vmatpush.msra.mxu0 %v3451
        %4071 = vmatpush.msra.mxu0 %v3449
        %4072 = vmatpush.msra.mxu0 %v3447
        %4073 = vmatpush.msra.mxu0 %v3445
        %4074 = vmatpush.msra.mxu0 %v3443
        %4075 = vmatpush.msra.mxu0 %v3441
        %4076 = vmatpush.msra.mxu0 %v3439
        %4077 = vmatpush.msra.mxu0 %v3437
        %4078 = vmatpush.msra.mxu0 %v3435
        %4079 = vmatpush.msra.mxu0 %v3433
        %4080 = vmatpush.msra.mxu0 %v3431
        %4081 = vmatpush.msra.mxu0 %v3429
        %4082 = vmatmul.f32.gmra.mxu0 %v3099
        %v4083 = vpop.f32.mrf.mxu0
        %v4084 = vadd.f32 %v4043, %v4083
        %4085 = vmatmul.f32.gmra.mxu0 %v3117
        %v4086 = vpop.f32.mrf.mxu0
        %v4087 = vadd.f32 %v4046, %v4086
        %4088 = vmatmul.f32.gmra.mxu0 %v3135
        %v4089 = vpop.f32.mrf.mxu0
        %v4090 = vadd.f32 %v4049, %v4089
        %4091 = vmatmul.f32.gmra.mxu0 %v3153
        %v4092 = vpop.f32.mrf.mxu0
        %v4093 = vadd.f32 %v4052, %v4092
        %4094 = vmatmul.f32.gmra.mxu0 %v3171
        %v4095 = vpop.f32.mrf.mxu0
        %v4096 = vadd.f32 %v4055, %v4095
        %4097 = vmatmul.f32.gmra.mxu0 %v3189
        %v4098 = vpop.f32.mrf.mxu0
        %v4099 = vadd.f32 %v4058, %v4098
        %4100 = vmatmul.f32.gmra.mxu0 %v3207
        %v4101 = vpop.f32.mrf.mxu0
        %v4102 = vadd.f32 %v4061, %v4101
        %4103 = vmatmul.f32.gmra.mxu0 %v3225
        %v4104 = vpop.f32.mrf.mxu0
        %v4105 = vadd.f32 %v4064, %v4104
        %4106 = vdwg.mxu0
        %4107 = vmatpush.msra.mxu0 %v3491
        %4108 = vmatpush.msra.mxu0 %v3489
        %4109 = vmatpush.msra.mxu0 %v3487
        %4110 = vmatpush.msra.mxu0 %v3485
        %4111 = vmatpush.msra.mxu0 %v3483
        %4112 = vmatpush.msra.mxu0 %v3481
        %4113 = vmatpush.msra.mxu0 %v3479
        %4114 = vmatpush.msra.mxu0 %v3477
        %4115 = vmatpush.msra.mxu0 %v3475
        %4116 = vmatpush.msra.mxu0 %v3473
        %4117 = vmatpush.msra.mxu0 %v3471
        %4118 = vmatpush.msra.mxu0 %v3469
        %4119 = vmatpush.msra.mxu0 %v3467
        %4120 = vmatpush.msra.mxu0 %v3465
        %4121 = vmatpush.msra.mxu0 %v3463
        %4122 = vmatpush.msra.mxu0 %v3461
        %4123 = vmatmul.f32.gmra.mxu0 %v3100
        %v4124 = vpop.f32.mrf.mxu0
        %v4125 = vadd.f32 %v4084, %v4124
        %4126 = vmatmul.f32.gmra.mxu0 %v3118
        %v4127 = vpop.f32.mrf.mxu0
        %v4128 = vadd.f32 %v4087, %v4127
        %4129 = vmatmul.f32.gmra.mxu0 %v3136
        %v4130 = vpop.f32.mrf.mxu0
        %v4131 = vadd.f32 %v4090, %v4130
        %4132 = vmatmul.f32.gmra.mxu0 %v3154
        %v4133 = vpop.f32.mrf.mxu0
        %v4134 = vadd.f32 %v4093, %v4133
        %4135 = vmatmul.f32.gmra.mxu0 %v3172
        %v4136 = vpop.f32.mrf.mxu0
        %v4137 = vadd.f32 %v4096, %v4136
        %4138 = vmatmul.f32.gmra.mxu0 %v3190
        %v4139 = vpop.f32.mrf.mxu0
        %v4140 = vadd.f32 %v4099, %v4139
        %4141 = vmatmul.f32.gmra.mxu0 %v3208
        %v4142 = vpop.f32.mrf.mxu0
        %v4143 = vadd.f32 %v4102, %v4142
        %4144 = vmatmul.f32.gmra.mxu0 %v3226
        %v4145 = vpop.f32.mrf.mxu0
        %v4146 = vadd.f32 %v4105, %v4145
        %4147 = vdwg.mxu0
        %4148 = vmatpush.msra.mxu0 %v3523
        %4149 = vmatpush.msra.mxu0 %v3521
        %4150 = vmatpush.msra.mxu0 %v3519
        %4151 = vmatpush.msra.mxu0 %v3517
        %4152 = vmatpush.msra.mxu0 %v3515
        %4153 = vmatpush.msra.mxu0 %v3513
        %4154 = vmatpush.msra.mxu0 %v3511
        %4155 = vmatpush.msra.mxu0 %v3509
        %4156 = vmatpush.msra.mxu0 %v3507
        %4157 = vmatpush.msra.mxu0 %v3505
        %4158 = vmatpush.msra.mxu0 %v3503
        %4159 = vmatpush.msra.mxu0 %v3501
        %4160 = vmatpush.msra.mxu0 %v3499
        %4161 = vmatpush.msra.mxu0 %v3497
        %4162 = vmatpush.msra.mxu0 %v3495
        %4163 = vmatpush.msra.mxu0 %v3493
        %4164 = vmatmul.f32.gmra.mxu0 %v3101
        %v4165 = vpop.f32.mrf.mxu0
        %v4166 = vadd.f32 %v4125, %v4165
        %4167 = vmatmul.f32.gmra.mxu0 %v3119
        %v4168 = vpop.f32.mrf.mxu0
        %v4169 = vadd.f32 %v4128, %v4168
        %4170 = vmatmul.f32.gmra.mxu0 %v3137
        %v4171 = vpop.f32.mrf.mxu0
        %v4172 = vadd.f32 %v4131, %v4171
        %4173 = vmatmul.f32.gmra.mxu0 %v3155
        %v4174 = vpop.f32.mrf.mxu0
        %v4175 = vadd.f32 %v4134, %v4174
        %4176 = vmatmul.f32.gmra.mxu0 %v3173
        %v4177 = vpop.f32.mrf.mxu0
        %v4178 = vadd.f32 %v4137, %v4177
        %4179 = vmatmul.f32.gmra.mxu0 %v3191
        %v4180 = vpop.f32.mrf.mxu0
        %v4181 = vadd.f32 %v4140, %v4180
        %4182 = vmatmul.f32.gmra.mxu0 %v3209
        %v4183 = vpop.f32.mrf.mxu0
        %v4184 = vadd.f32 %v4143, %v4183
        %4185 = vmatmul.f32.gmra.mxu0 %v3227
        %v4186 = vpop.f32.mrf.mxu0
        %v4187 = vadd.f32 %v4146, %v4186
        %4188 = vdwg.mxu0
        %4189 = vmatpush.msra.mxu0 %v3555
        %4190 = vmatpush.msra.mxu0 %v3553
        %4191 = vmatpush.msra.mxu0 %v3551
        %4192 = vmatpush.msra.mxu0 %v3549
        %4193 = vmatpush.msra.mxu0 %v3547
        %4194 = vmatpush.msra.mxu0 %v3545
        %4195 = vmatpush.msra.mxu0 %v3543
        %4196 = vmatpush.msra.mxu0 %v3541
        %4197 = vmatpush.msra.mxu0 %v3539
        %4198 = vmatpush.msra.mxu0 %v3537
        %4199 = vmatpush.msra.mxu0 %v3535
        %4200 = vmatpush.msra.mxu0 %v3533
        %4201 = vmatpush.msra.mxu0 %v3531
        %4202 = vmatpush.msra.mxu0 %v3529
        %4203 = vmatpush.msra.mxu0 %v3527
        %4204 = vmatpush.msra.mxu0 %v3525
        %4205 = vmatmul.f32.gmra.mxu0 %v3102
        %v4206 = vpop.f32.mrf.mxu0
        %v4207 = vadd.f32 %v4166, %v4206
        %4208 = vmatmul.f32.gmra.mxu0 %v3120
        %v4209 = vpop.f32.mrf.mxu0
        %v4210 = vadd.f32 %v4169, %v4209
        %4211 = vmatmul.f32.gmra.mxu0 %v3138
        %v4212 = vpop.f32.mrf.mxu0
        %v4213 = vadd.f32 %v4172, %v4212
        %4214 = vmatmul.f32.gmra.mxu0 %v3156
        %v4215 = vpop.f32.mrf.mxu0
        %v4216 = vadd.f32 %v4175, %v4215
        %4217 = vmatmul.f32.gmra.mxu0 %v3174
        %v4218 = vpop.f32.mrf.mxu0
        %v4219 = vadd.f32 %v4178, %v4218
        %4220 = vmatmul.f32.gmra.mxu0 %v3192
        %v4221 = vpop.f32.mrf.mxu0
        %v4222 = vadd.f32 %v4181, %v4221
        %4223 = vmatmul.f32.gmra.mxu0 %v3210
        %v4224 = vpop.f32.mrf.mxu0
        %v4225 = vadd.f32 %v4184, %v4224
        %4226 = vmatmul.f32.gmra.mxu0 %v3228
        %v4227 = vpop.f32.mrf.mxu0
        %v4228 = vadd.f32 %v4187, %v4227
        %4229 = vdwg.mxu0
        %4230 = vmatpush.msra.mxu0 %v3587
        %4231 = vmatpush.msra.mxu0 %v3585
        %4232 = vmatpush.msra.mxu0 %v3583
        %4233 = vmatpush.msra.mxu0 %v3581
        %4234 = vmatpush.msra.mxu0 %v3579
        %4235 = vmatpush.msra.mxu0 %v3577
        %4236 = vmatpush.msra.mxu0 %v3575
        %4237 = vmatpush.msra.mxu0 %v3573
        %4238 = vmatpush.msra.mxu0 %v3571
        %4239 = vmatpush.msra.mxu0 %v3569
        %4240 = vmatpush.msra.mxu0 %v3567
        %4241 = vmatpush.msra.mxu0 %v3565
        %4242 = vmatpush.msra.mxu0 %v3563
        %4243 = vmatpush.msra.mxu0 %v3561
        %4244 = vmatpush.msra.mxu0 %v3559
        %4245 = vmatpush.msra.mxu0 %v3557
        %4246 = vmatmul.f32.gmra.mxu0 %v3103
        %v4247 = vpop.f32.mrf.mxu0
        %v4248 = vadd.f32 %v4207, %v4247
        %4249 = vmatmul.f32.gmra.mxu0 %v3121
        %v4250 = vpop.f32.mrf.mxu0
        %v4251 = vadd.f32 %v4210, %v4250
        %4252 = vmatmul.f32.gmra.mxu0 %v3139
        %v4253 = vpop.f32.mrf.mxu0
        %v4254 = vadd.f32 %v4213, %v4253
        %4255 = vmatmul.f32.gmra.mxu0 %v3157
        %v4256 = vpop.f32.mrf.mxu0
        %v4257 = vadd.f32 %v4216, %v4256
        %4258 = vmatmul.f32.gmra.mxu0 %v3175
        %v4259 = vpop.f32.mrf.mxu0
        %v4260 = vadd.f32 %v4219, %v4259
        %4261 = vmatmul.f32.gmra.mxu0 %v3193
        %v4262 = vpop.f32.mrf.mxu0
        %v4263 = vadd.f32 %v4222, %v4262
        %4264 = vmatmul.f32.gmra.mxu0 %v3211
        %v4265 = vpop.f32.mrf.mxu0
        %v4266 = vadd.f32 %v4225, %v4265
        %4267 = vmatmul.f32.gmra.mxu0 %v3229
        %v4268 = vpop.f32.mrf.mxu0
        %v4269 = vadd.f32 %v4228, %v4268
        %4270 = vdwg.mxu0
        %4271 = vmatpush.msra.mxu0 %v3619
        %4272 = vmatpush.msra.mxu0 %v3617
        %4273 = vmatpush.msra.mxu0 %v3615
        %4274 = vmatpush.msra.mxu0 %v3613
        %4275 = vmatpush.msra.mxu0 %v3611
        %4276 = vmatpush.msra.mxu0 %v3609
        %4277 = vmatpush.msra.mxu0 %v3607
        %4278 = vmatpush.msra.mxu0 %v3605
        %4279 = vmatpush.msra.mxu0 %v3603
        %4280 = vmatpush.msra.mxu0 %v3601
        %4281 = vmatpush.msra.mxu0 %v3599
        %4282 = vmatpush.msra.mxu0 %v3597
        %4283 = vmatpush.msra.mxu0 %v3595
        %4284 = vmatpush.msra.mxu0 %v3593
        %4285 = vmatpush.msra.mxu0 %v3591
        %4286 = vmatpush.msra.mxu0 %v3589
        %4287 = vmatmul.f32.gmra.mxu0 %v3104
        %v4288 = vpop.f32.mrf.mxu0
        %v4289 = vadd.f32 %v4248, %v4288
        %4290 = vmatmul.f32.gmra.mxu0 %v3122
        %v4291 = vpop.f32.mrf.mxu0
        %v4292 = vadd.f32 %v4251, %v4291
        %4293 = vmatmul.f32.gmra.mxu0 %v3140
        %v4294 = vpop.f32.mrf.mxu0
        %v4295 = vadd.f32 %v4254, %v4294
        %4296 = vmatmul.f32.gmra.mxu0 %v3158
        %v4297 = vpop.f32.mrf.mxu0
        %v4298 = vadd.f32 %v4257, %v4297
        %4299 = vmatmul.f32.gmra.mxu0 %v3176
        %v4300 = vpop.f32.mrf.mxu0
        %v4301 = vadd.f32 %v4260, %v4300
        %4302 = vmatmul.f32.gmra.mxu0 %v3194
        %v4303 = vpop.f32.mrf.mxu0
        %v4304 = vadd.f32 %v4263, %v4303
        %4305 = vmatmul.f32.gmra.mxu0 %v3212
        %v4306 = vpop.f32.mrf.mxu0
        %v4307 = vadd.f32 %v4266, %v4306
        %4308 = vmatmul.f32.gmra.mxu0 %v3230
        %v4309 = vpop.f32.mrf.mxu0
        %v4310 = vadd.f32 %v4269, %v4309
        %4311 = vdwg.mxu0
        %4312 = vmatpush.msra.mxu0 %v3651
        %4313 = vmatpush.msra.mxu0 %v3649
        %4314 = vmatpush.msra.mxu0 %v3647
        %4315 = vmatpush.msra.mxu0 %v3645
        %4316 = vmatpush.msra.mxu0 %v3643
        %4317 = vmatpush.msra.mxu0 %v3641
        %4318 = vmatpush.msra.mxu0 %v3639
        %4319 = vmatpush.msra.mxu0 %v3637
        %4320 = vmatpush.msra.mxu0 %v3635
        %4321 = vmatpush.msra.mxu0 %v3633
        %4322 = vmatpush.msra.mxu0 %v3631
        %4323 = vmatpush.msra.mxu0 %v3629
        %4324 = vmatpush.msra.mxu0 %v3627
        %4325 = vmatpush.msra.mxu0 %v3625
        %4326 = vmatpush.msra.mxu0 %v3623
        %4327 = vmatpush.msra.mxu0 %v3621
        %4328 = vmatmul.f32.gmra.mxu0 %v3105
        %v4329 = vpop.f32.mrf.mxu0
        %v4330 = vadd.f32 %v4289, %v4329
        %4331 = vmatmul.f32.gmra.mxu0 %v3123
        %v4332 = vpop.f32.mrf.mxu0
        %v4333 = vadd.f32 %v4292, %v4332
        %4334 = vmatmul.f32.gmra.mxu0 %v3141
        %v4335 = vpop.f32.mrf.mxu0
        %v4336 = vadd.f32 %v4295, %v4335
        %4337 = vmatmul.f32.gmra.mxu0 %v3159
        %v4338 = vpop.f32.mrf.mxu0
        %v4339 = vadd.f32 %v4298, %v4338
        %4340 = vmatmul.f32.gmra.mxu0 %v3177
        %v4341 = vpop.f32.mrf.mxu0
        %v4342 = vadd.f32 %v4301, %v4341
        %4343 = vmatmul.f32.gmra.mxu0 %v3195
        %v4344 = vpop.f32.mrf.mxu0
        %v4345 = vadd.f32 %v4304, %v4344
        %4346 = vmatmul.f32.gmra.mxu0 %v3213
        %v4347 = vpop.f32.mrf.mxu0
        %v4348 = vadd.f32 %v4307, %v4347
        %4349 = vmatmul.f32.gmra.mxu0 %v3231
        %v4350 = vpop.f32.mrf.mxu0
        %v4351 = vadd.f32 %v4310, %v4350
        %4352 = vdwg.mxu0
        %4353 = vmatpush.msra.mxu0 %v3683
        %4354 = vmatpush.msra.mxu0 %v3681
        %4355 = vmatpush.msra.mxu0 %v3679
        %4356 = vmatpush.msra.mxu0 %v3677
        %4357 = vmatpush.msra.mxu0 %v3675
        %4358 = vmatpush.msra.mxu0 %v3673
        %4359 = vmatpush.msra.mxu0 %v3671
        %4360 = vmatpush.msra.mxu0 %v3669
        %4361 = vmatpush.msra.mxu0 %v3667
        %4362 = vmatpush.msra.mxu0 %v3665
        %4363 = vmatpush.msra.mxu0 %v3663
        %4364 = vmatpush.msra.mxu0 %v3661
        %4365 = vmatpush.msra.mxu0 %v3659
        %4366 = vmatpush.msra.mxu0 %v3657
        %4367 = vmatpush.msra.mxu0 %v3655
        %4368 = vmatpush.msra.mxu0 %v3653
        %4369 = vmatmul.f32.gmra.mxu0 %v3106
        %v4370 = vpop.f32.mrf.mxu0
        %v4371 = vadd.f32 %v4330, %v4370
        %4372 = vmatmul.f32.gmra.mxu0 %v3124
        %v4373 = vpop.f32.mrf.mxu0
        %v4374 = vadd.f32 %v4333, %v4373
        %4375 = vmatmul.f32.gmra.mxu0 %v3142
        %v4376 = vpop.f32.mrf.mxu0
        %v4377 = vadd.f32 %v4336, %v4376
        %4378 = vmatmul.f32.gmra.mxu0 %v3160
        %v4379 = vpop.f32.mrf.mxu0
        %v4380 = vadd.f32 %v4339, %v4379
        %4381 = vmatmul.f32.gmra.mxu0 %v3178
        %v4382 = vpop.f32.mrf.mxu0
        %v4383 = vadd.f32 %v4342, %v4382
        %4384 = vmatmul.f32.gmra.mxu0 %v3196
        %v4385 = vpop.f32.mrf.mxu0
        %v4386 = vadd.f32 %v4345, %v4385
        %4387 = vmatmul.f32.gmra.mxu0 %v3214
        %v4388 = vpop.f32.mrf.mxu0
        %v4389 = vadd.f32 %v4348, %v4388
        %4390 = vmatmul.f32.gmra.mxu0 %v3232
        %v4391 = vpop.f32.mrf.mxu0
        %v4392 = vadd.f32 %v4351, %v4391
        %4393 = vdwg.mxu0
        %4394 = vmatpush.msra.mxu0 %v3715
        %4395 = vmatpush.msra.mxu0 %v3713
        %4396 = vmatpush.msra.mxu0 %v3711
        %4397 = vmatpush.msra.mxu0 %v3709
        %4398 = vmatpush.msra.mxu0 %v3707
        %4399 = vmatpush.msra.mxu0 %v3705
        %4400 = vmatpush.msra.mxu0 %v3703
        %4401 = vmatpush.msra.mxu0 %v3701
        %4402 = vmatpush.msra.mxu0 %v3699
        %4403 = vmatpush.msra.mxu0 %v3697
        %4404 = vmatpush.msra.mxu0 %v3695
        %4405 = vmatpush.msra.mxu0 %v3693
        %4406 = vmatpush.msra.mxu0 %v3691
        %4407 = vmatpush.msra.mxu0 %v3689
        %4408 = vmatpush.msra.mxu0 %v3687
        %4409 = vmatpush.msra.mxu0 %v3685
        %4410 = vmatmul.f32.gmra.mxu0 %v3107
        %v4411 = vpop.f32.mrf.mxu0
        %v4412 = vadd.f32 %v4371, %v4411
        %4413 = vmatmul.f32.gmra.mxu0 %v3125
        %v4414 = vpop.f32.mrf.mxu0
        %v4415 = vadd.f32 %v4374, %v4414
        %4416 = vmatmul.f32.gmra.mxu0 %v3143
        %v4417 = vpop.f32.mrf.mxu0
        %v4418 = vadd.f32 %v4377, %v4417
        %4419 = vmatmul.f32.gmra.mxu0 %v3161
        %v4420 = vpop.f32.mrf.mxu0
        %v4421 = vadd.f32 %v4380, %v4420
        %4422 = vmatmul.f32.gmra.mxu0 %v3179
        %v4423 = vpop.f32.mrf.mxu0
        %v4424 = vadd.f32 %v4383, %v4423
        %4425 = vmatmul.f32.gmra.mxu0 %v3197
        %v4426 = vpop.f32.mrf.mxu0
        %v4427 = vadd.f32 %v4386, %v4426
        %4428 = vmatmul.f32.gmra.mxu0 %v3215
        %v4429 = vpop.f32.mrf.mxu0
        %v4430 = vadd.f32 %v4389, %v4429
        %4431 = vmatmul.f32.gmra.mxu0 %v3233
        %v4432 = vpop.f32.mrf.mxu0
        %v4433 = vadd.f32 %v4392, %v4432
        %4434 = vdwg.mxu0
        %4435 = vmatpush.msra.mxu0 %v3747
        %4436 = vmatpush.msra.mxu0 %v3745
        %4437 = vmatpush.msra.mxu0 %v3743
        %4438 = vmatpush.msra.mxu0 %v3741
        %4439 = vmatpush.msra.mxu0 %v3739
        %4440 = vmatpush.msra.mxu0 %v3737
        %4441 = vmatpush.msra.mxu0 %v3735
        %4442 = vmatpush.msra.mxu0 %v3733
        %4443 = vmatpush.msra.mxu0 %v3731
        %4444 = vmatpush.msra.mxu0 %v3729
        %4445 = vmatpush.msra.mxu0 %v3727
        %4446 = vmatpush.msra.mxu0 %v3725
        %4447 = vmatpush.msra.mxu0 %v3723
        %4448 = vmatpush.msra.mxu0 %v3721
        %4449 = vmatpush.msra.mxu0 %v3719
        %4450 = vmatpush.msra.mxu0 %v3717
        %4451 = vmatmul.f32.gmra.mxu0 %v3108
        %v4452 = vpop.f32.mrf.mxu0
        %v4453 = vadd.f32 %v4412, %v4452
        %4454 = vmatmul.f32.gmra.mxu0 %v3126
        %v4455 = vpop.f32.mrf.mxu0
        %v4456 = vadd.f32 %v4415, %v4455
        %4457 = vmatmul.f32.gmra.mxu0 %v3144
        %v4458 = vpop.f32.mrf.mxu0
        %v4459 = vadd.f32 %v4418, %v4458
        %4460 = vmatmul.f32.gmra.mxu0 %v3162
        %v4461 = vpop.f32.mrf.mxu0
        %v4462 = vadd.f32 %v4421, %v4461
        %4463 = vmatmul.f32.gmra.mxu0 %v3180
        %v4464 = vpop.f32.mrf.mxu0
        %v4465 = vadd.f32 %v4424, %v4464
        %4466 = vmatmul.f32.gmra.mxu0 %v3198
        %v4467 = vpop.f32.mrf.mxu0
        %v4468 = vadd.f32 %v4427, %v4467
        %4469 = vmatmul.f32.gmra.mxu0 %v3216
        %v4470 = vpop.f32.mrf.mxu0
        %v4471 = vadd.f32 %v4430, %v4470
        %4472 = vmatmul.f32.gmra.mxu0 %v3234
        %v4473 = vpop.f32.mrf.mxu0
        %v4474 = vadd.f32 %v4433, %v4473
        %4475 = vdwg.mxu0
        %4476 = vmatpush.msra.mxu0 %v3779
        %4477 = vmatpush.msra.mxu0 %v3777
        %4478 = vmatpush.msra.mxu0 %v3775
        %4479 = vmatpush.msra.mxu0 %v3773
        %4480 = vmatpush.msra.mxu0 %v3771
        %4481 = vmatpush.msra.mxu0 %v3769
        %4482 = vmatpush.msra.mxu0 %v3767
        %4483 = vmatpush.msra.mxu0 %v3765
        %4484 = vmatpush.msra.mxu0 %v3763
        %4485 = vmatpush.msra.mxu0 %v3761
        %4486 = vmatpush.msra.mxu0 %v3759
        %4487 = vmatpush.msra.mxu0 %v3757
        %4488 = vmatpush.msra.mxu0 %v3755
        %4489 = vmatpush.msra.mxu0 %v3753
        %4490 = vmatpush.msra.mxu0 %v3751
        %4491 = vmatpush.msra.mxu0 %v3749
        %4492 = vmatmul.f32.gmra.mxu0 %v3109
        %v4493 = vpop.f32.mrf.mxu0
        %v4494 = vadd.f32 %v4453, %v4493
        %4495 = vmatmul.f32.gmra.mxu0 %v3127
        %v4496 = vpop.f32.mrf.mxu0
        %v4497 = vadd.f32 %v4456, %v4496
        %4498 = vmatmul.f32.gmra.mxu0 %v3145
        %v4499 = vpop.f32.mrf.mxu0
        %v4500 = vadd.f32 %v4459, %v4499
        %4501 = vmatmul.f32.gmra.mxu0 %v3163
        %v4502 = vpop.f32.mrf.mxu0
        %v4503 = vadd.f32 %v4462, %v4502
        %4504 = vmatmul.f32.gmra.mxu0 %v3181
        %v4505 = vpop.f32.mrf.mxu0
        %v4506 = vadd.f32 %v4465, %v4505
        %4507 = vmatmul.f32.gmra.mxu0 %v3199
        %v4508 = vpop.f32.mrf.mxu0
        %v4509 = vadd.f32 %v4468, %v4508
        %4510 = vmatmul.f32.gmra.mxu0 %v3217
        %v4511 = vpop.f32.mrf.mxu0
        %v4512 = vadd.f32 %v4471, %v4511
        %4513 = vmatmul.f32.gmra.mxu0 %v3235
        %v4514 = vpop.f32.mrf.mxu0
        %v4515 = vadd.f32 %v4474, %v4514
        %4516 = vdwg.mxu0
        %4517 = vmatpush.msra.mxu0 %v3811
        %4518 = vmatpush.msra.mxu0 %v3809
        %4519 = vmatpush.msra.mxu0 %v3807
        %4520 = vmatpush.msra.mxu0 %v3805
        %4521 = vmatpush.msra.mxu0 %v3803
        %4522 = vmatpush.msra.mxu0 %v3801
        %4523 = vmatpush.msra.mxu0 %v3799
        %4524 = vmatpush.msra.mxu0 %v3797
        %4525 = vmatpush.msra.mxu0 %v3795
        %4526 = vmatpush.msra.mxu0 %v3793
        %4527 = vmatpush.msra.mxu0 %v3791
        %4528 = vmatpush.msra.mxu0 %v3789
        %4529 = vmatpush.msra.mxu0 %v3787
        %4530 = vmatpush.msra.mxu0 %v3785
        %4531 = vmatpush.msra.mxu0 %v3783
        %4532 = vmatpush.msra.mxu0 %v3781
        %4533 = vmatmul.f32.gmra.mxu0 %v3110
        %v4534 = vpop.f32.mrf.mxu0
        %v4535 = vadd.f32 %v4494, %v4534
        %4536 = vmatmul.f32.gmra.mxu0 %v3128
        %v4537 = vpop.f32.mrf.mxu0
        %v4538 = vadd.f32 %v4497, %v4537
        %4539 = vmatmul.f32.gmra.mxu0 %v3146
        %v4540 = vpop.f32.mrf.mxu0
        %v4541 = vadd.f32 %v4500, %v4540
        %4542 = vmatmul.f32.gmra.mxu0 %v3164
        %v4543 = vpop.f32.mrf.mxu0
        %v4544 = vadd.f32 %v4503, %v4543
        %4545 = vmatmul.f32.gmra.mxu0 %v3182
        %v4546 = vpop.f32.mrf.mxu0
        %v4547 = vadd.f32 %v4506, %v4546
        %4548 = vmatmul.f32.gmra.mxu0 %v3200
        %v4549 = vpop.f32.mrf.mxu0
        %v4550 = vadd.f32 %v4509, %v4549
        %4551 = vmatmul.f32.gmra.mxu0 %v3218
        %v4552 = vpop.f32.mrf.mxu0
        %v4553 = vadd.f32 %v4512, %v4552
        %4554 = vmatmul.f32.gmra.mxu0 %v3236
        %v4555 = vpop.f32.mrf.mxu0
        %v4556 = vadd.f32 %v4515, %v4555
        %4557 = vdwg.mxu0
        %4558 = vmatpush.msra.mxu0 %v3268
        %4559 = vmatpush.msra.mxu0 %v3266
        %4560 = vmatpush.msra.mxu0 %v3264
        %4561 = vmatpush.msra.mxu0 %v3262
        %4562 = vmatpush.msra.mxu0 %v3260
        %4563 = vmatpush.msra.mxu0 %v3258
        %4564 = vmatpush.msra.mxu0 %v3256
        %4565 = vmatpush.msra.mxu0 %v3254
        %4566 = vmatpush.msra.mxu0 %v3252
        %4567 = vmatpush.msra.mxu0 %v3250
        %4568 = vmatpush.msra.mxu0 %v3248
        %4569 = vmatpush.msra.mxu0 %v3246
        %4570 = vmatpush.msra.mxu0 %v3244
        %4571 = vmatpush.msra.mxu0 %v3242
        %4572 = vmatpush.msra.mxu0 %v3240
        %4573 = vmatpush.msra.mxu0 %v3238
        %4574 = vmatmul.f32.gmra.mxu0 %v3093
        %v4575 = vpop.f32.mrf.mxu0
        %v4576 = vadd.f32 %v3817, %v4575
        %4577 = vmatmul.f32.gmra.mxu0 %v3111
        %v4578 = vpop.f32.mrf.mxu0
        %v4579 = vadd.f32 %v3817, %v4578
        %4580 = vmatmul.f32.gmra.mxu0 %v3129
        %v4581 = vpop.f32.mrf.mxu0
        %v4582 = vadd.f32 %v3817, %v4581
        %4583 = vmatmul.f32.gmra.mxu0 %v3147
        %v4584 = vpop.f32.mrf.mxu0
        %v4585 = vadd.f32 %v3817, %v4584
        %4586 = vmatmul.f32.gmra.mxu0 %v3165
        %v4587 = vpop.f32.mrf.mxu0
        %v4588 = vadd.f32 %v3817, %v4587
        %4589 = vmatmul.f32.gmra.mxu0 %v3183
        %v4590 = vpop.f32.mrf.mxu0
        %v4591 = vadd.f32 %v3817, %v4590
        %4592 = vmatmul.f32.gmra.mxu0 %v3201
        %v4593 = vpop.f32.mrf.mxu0
        %v4594 = vadd.f32 %v3817, %v4593
        %4595 = vmatmul.f32.gmra.mxu0 %v3219
        %v4596 = vpop.f32.mrf.mxu0
        %v4597 = vadd.f32 %v3817, %v4596
        %4598 = vdwg.mxu0
        %4599 = vmatpush.msra.mxu0 %v3300
        %4600 = vmatpush.msra.mxu0 %v3298
        %4601 = vmatpush.msra.mxu0 %v3296
        %4602 = vmatpush.msra.mxu0 %v3294
        %4603 = vmatpush.msra.mxu0 %v3292
        %4604 = vmatpush.msra.mxu0 %v3290
        %4605 = vmatpush.msra.mxu0 %v3288
        %4606 = vmatpush.msra.mxu0 %v3286
        %4607 = vmatpush.msra.mxu0 %v3284
        %4608 = vmatpush.msra.mxu0 %v3282
        %4609 = vmatpush.msra.mxu0 %v3280
        %4610 = vmatpush.msra.mxu0 %v3278
        %4611 = vmatpush.msra.mxu0 %v3276
        %4612 = vmatpush.msra.mxu0 %v3274
        %4613 = vmatpush.msra.mxu0 %v3272
        %4614 = vmatpush.msra.mxu0 %v3270
        %4615 = vmatmul.f32.gmra.mxu0 %v3094
        %v4616 = vpop.f32.mrf.mxu0
        %v4617 = vadd.f32 %v4576, %v4616
        %4618 = vmatmul.f32.gmra.mxu0 %v3112
        %v4619 = vpop.f32.mrf.mxu0
        %v4620 = vadd.f32 %v4579, %v4619
        %4621 = vmatmul.f32.gmra.mxu0 %v3130
        %v4622 = vpop.f32.mrf.mxu0
        %v4623 = vadd.f32 %v4582, %v4622
        %4624 = vmatmul.f32.gmra.mxu0 %v3148
        %v4625 = vpop.f32.mrf.mxu0
        %v4626 = vadd.f32 %v4585, %v4625
        %4627 = vmatmul.f32.gmra.mxu0 %v3166
        %v4628 = vpop.f32.mrf.mxu0
        %v4629 = vadd.f32 %v4588, %v4628
        %4630 = vmatmul.f32.gmra.mxu0 %v3184
        %v4631 = vpop.f32.mrf.mxu0
        %v4632 = vadd.f32 %v4591, %v4631
        %4633 = vmatmul.f32.gmra.mxu0 %v3202
        %v4634 = vpop.f32.mrf.mxu0
        %v4635 = vadd.f32 %v4594, %v4634
        %4636 = vmatmul.f32.gmra.mxu0 %v3220
        %v4637 = vpop.f32.mrf.mxu0
        %v4638 = vadd.f32 %v4597, %v4637
        %4639 = vdwg.mxu0
        %4640 = vmatpush.msra.mxu0 %v3332
        %4641 = vmatpush.msra.mxu0 %v3330
        %4642 = vmatpush.msra.mxu0 %v3328
        %4643 = vmatpush.msra.mxu0 %v3326
        %4644 = vmatpush.msra.mxu0 %v3324
        %4645 = vmatpush.msra.mxu0 %v3322
        %4646 = vmatpush.msra.mxu0 %v3320
        %4647 = vmatpush.msra.mxu0 %v3318
        %4648 = vmatpush.msra.mxu0 %v3316
        %4649 = vmatpush.msra.mxu0 %v3314
        %4650 = vmatpush.msra.mxu0 %v3312
        %4651 = vmatpush.msra.mxu0 %v3310
        %4652 = vmatpush.msra.mxu0 %v3308
        %4653 = vmatpush.msra.mxu0 %v3306
        %4654 = vmatpush.msra.mxu0 %v3304
        %4655 = vmatpush.msra.mxu0 %v3302
        %4656 = vmatmul.f32.gmra.mxu0 %v3095
        %v4657 = vpop.f32.mrf.mxu0
        %v4658 = vadd.f32 %v4617, %v4657
        %4659 = vmatmul.f32.gmra.mxu0 %v3113
        %v4660 = vpop.f32.mrf.mxu0
        %v4661 = vadd.f32 %v4620, %v4660
        %4662 = vmatmul.f32.gmra.mxu0 %v3131
        %v4663 = vpop.f32.mrf.mxu0
        %v4664 = vadd.f32 %v4623, %v4663
        %4665 = vmatmul.f32.gmra.mxu0 %v3149
        %v4666 = vpop.f32.mrf.mxu0
        %v4667 = vadd.f32 %v4626, %v4666
        %4668 = vmatmul.f32.gmra.mxu0 %v3167
        %v4669 = vpop.f32.mrf.mxu0
        %v4670 = vadd.f32 %v4629, %v4669
        %4671 = vmatmul.f32.gmra.mxu0 %v3185
        %v4672 = vpop.f32.mrf.mxu0
        %v4673 = vadd.f32 %v4632, %v4672
        %4674 = vmatmul.f32.gmra.mxu0 %v3203
        %v4675 = vpop.f32.mrf.mxu0
        %v4676 = vadd.f32 %v4635, %v4675
        %4677 = vmatmul.f32.gmra.mxu0 %v3221
        %v4678 = vpop.f32.mrf.mxu0
        %v4679 = vadd.f32 %v4638, %v4678
        %4680 = vdwg.mxu0
        %4681 = vmatpush.msra.mxu0 %v3364
        %4682 = vmatpush.msra.mxu0 %v3362
        %4683 = vmatpush.msra.mxu0 %v3360
        %4684 = vmatpush.msra.mxu0 %v3358
        %4685 = vmatpush.msra.mxu0 %v3356
        %4686 = vmatpush.msra.mxu0 %v3354
        %4687 = vmatpush.msra.mxu0 %v3352
        %4688 = vmatpush.msra.mxu0 %v3350
        %4689 = vmatpush.msra.mxu0 %v3348
        %4690 = vmatpush.msra.mxu0 %v3346
        %4691 = vmatpush.msra.mxu0 %v3344
        %4692 = vmatpush.msra.mxu0 %v3342
        %4693 = vmatpush.msra.mxu0 %v3340
        %4694 = vmatpush.msra.mxu0 %v3338
        %4695 = vmatpush.msra.mxu0 %v3336
        %4696 = vmatpush.msra.mxu0 %v3334
        %4697 = vmatmul.f32.gmra.mxu0 %v3096
        %v4698 = vpop.f32.mrf.mxu0
        %v4699 = vadd.f32 %v4658, %v4698
        %4700 = vmatmul.f32.gmra.mxu0 %v3114
        %v4701 = vpop.f32.mrf.mxu0
        %v4702 = vadd.f32 %v4661, %v4701
        %4703 = vmatmul.f32.gmra.mxu0 %v3132
        %v4704 = vpop.f32.mrf.mxu0
        %v4705 = vadd.f32 %v4664, %v4704
        %4706 = vmatmul.f32.gmra.mxu0 %v3150
        %v4707 = vpop.f32.mrf.mxu0
        %v4708 = vadd.f32 %v4667, %v4707
        %4709 = vmatmul.f32.gmra.mxu0 %v3168
        %v4710 = vpop.f32.mrf.mxu0
        %v4711 = vadd.f32 %v4670, %v4710
        %4712 = vmatmul.f32.gmra.mxu0 %v3186
        %v4713 = vpop.f32.mrf.mxu0
        %v4714 = vadd.f32 %v4673, %v4713
        %4715 = vmatmul.f32.gmra.mxu0 %v3204
        %v4716 = vpop.f32.mrf.mxu0
        %v4717 = vadd.f32 %v4676, %v4716
        %4718 = vmatmul.f32.gmra.mxu0 %v3222
        %v4719 = vpop.f32.mrf.mxu0
        %v4720 = vadd.f32 %v4679, %v4719
        %4721 = vdwg.mxu0
        %4722 = vmatpush.msra.mxu0 %v3396
        %4723 = vmatpush.msra.mxu0 %v3394
        %4724 = vmatpush.msra.mxu0 %v3392
        %4725 = vmatpush.msra.mxu0 %v3390
        %4726 = vmatpush.msra.mxu0 %v3388
        %4727 = vmatpush.msra.mxu0 %v3386
        %4728 = vmatpush.msra.mxu0 %v3384
        %4729 = vmatpush.msra.mxu0 %v3382
        %4730 = vmatpush.msra.mxu0 %v3380
        %4731 = vmatpush.msra.mxu0 %v3378
        %4732 = vmatpush.msra.mxu0 %v3376
        %4733 = vmatpush.msra.mxu0 %v3374
        %4734 = vmatpush.msra.mxu0 %v3372
        %4735 = vmatpush.msra.mxu0 %v3370
        %4736 = vmatpush.msra.mxu0 %v3368
        %4737 = vmatpush.msra.mxu0 %v3366
        %4738 = vmatmul.f32.gmra.mxu0 %v3097
        %v4739 = vpop.f32.mrf.mxu0
        %v4740 = vadd.f32 %v4699, %v4739
        %4741 = vmatmul.f32.gmra.mxu0 %v3115
        %v4742 = vpop.f32.mrf.mxu0
        %v4743 = vadd.f32 %v4702, %v4742
        %4744 = vmatmul.f32.gmra.mxu0 %v3133
        %v4745 = vpop.f32.mrf.mxu0
        %v4746 = vadd.f32 %v4705, %v4745
        %4747 = vmatmul.f32.gmra.mxu0 %v3151
        %v4748 = vpop.f32.mrf.mxu0
        %v4749 = vadd.f32 %v4708, %v4748
        %4750 = vmatmul.f32.gmra.mxu0 %v3169
        %v4751 = vpop.f32.mrf.mxu0
        %v4752 = vadd.f32 %v4711, %v4751
        %4753 = vmatmul.f32.gmra.mxu0 %v3187
        %v4754 = vpop.f32.mrf.mxu0
        %v4755 = vadd.f32 %v4714, %v4754
        %4756 = vmatmul.f32.gmra.mxu0 %v3205
        %v4757 = vpop.f32.mrf.mxu0
        %v4758 = vadd.f32 %v4717, %v4757
        %4759 = vmatmul.f32.gmra.mxu0 %v3223
        %v4760 = vpop.f32.mrf.mxu0
        %v4761 = vadd.f32 %v4720, %v4760
        %4762 = vdwg.mxu0
        %4763 = vmatpush.msra.mxu0 %v3428
        %4764 = vmatpush.msra.mxu0 %v3426
        %4765 = vmatpush.msra.mxu0 %v3424
        %4766 = vmatpush.msra.mxu0 %v3422
        %4767 = vmatpush.msra.mxu0 %v3420
        %4768 = vmatpush.msra.mxu0 %v3418
        %4769 = vmatpush.msra.mxu0 %v3416
        %4770 = vmatpush.msra.mxu0 %v3414
        %4771 = vmatpush.msra.mxu0 %v3412
        %4772 = vmatpush.msra.mxu0 %v3410
        %4773 = vmatpush.msra.mxu0 %v3408
        %4774 = vmatpush.msra.mxu0 %v3406
        %4775 = vmatpush.msra.mxu0 %v3404
        %4776 = vmatpush.msra.mxu0 %v3402
        %4777 = vmatpush.msra.mxu0 %v3400
        %4778 = vmatpush.msra.mxu0 %v3398
        %4779 = vmatmul.f32.gmra.mxu0 %v3098
        %v4780 = vpop.f32.mrf.mxu0
        %v4781 = vadd.f32 %v4740, %v4780
        %4782 = vmatmul.f32.gmra.mxu0 %v3116
        %v4783 = vpop.f32.mrf.mxu0
        %v4784 = vadd.f32 %v4743, %v4783
        %4785 = vmatmul.f32.gmra.mxu0 %v3134
        %v4786 = vpop.f32.mrf.mxu0
        %v4787 = vadd.f32 %v4746, %v4786
        %4788 = vmatmul.f32.gmra.mxu0 %v3152
        %v4789 = vpop.f32.mrf.mxu0
        %v4790 = vadd.f32 %v4749, %v4789
        %4791 = vmatmul.f32.gmra.mxu0 %v3170
        %v4792 = vpop.f32.mrf.mxu0
        %v4793 = vadd.f32 %v4752, %v4792
        %4794 = vmatmul.f32.gmra.mxu0 %v3188
        %v4795 = vpop.f32.mrf.mxu0
        %v4796 = vadd.f32 %v4755, %v4795
        %4797 = vmatmul.f32.gmra.mxu0 %v3206
        %v4798 = vpop.f32.mrf.mxu0
        %v4799 = vadd.f32 %v4758, %v4798
        %4800 = vmatmul.f32.gmra.mxu0 %v3224
        %v4801 = vpop.f32.mrf.mxu0
        %v4802 = vadd.f32 %v4761, %v4801
        %4803 = vdwg.mxu0
        %4804 = vmatpush.msra.mxu0 %v3460
        %4805 = vmatpush.msra.mxu0 %v3458
        %4806 = vmatpush.msra.mxu0 %v3456
        %4807 = vmatpush.msra.mxu0 %v3454
        %4808 = vmatpush.msra.mxu0 %v3452
        %4809 = vmatpush.msra.mxu0 %v3450
        %4810 = vmatpush.msra.mxu0 %v3448
        %4811 = vmatpush.msra.mxu0 %v3446
        %4812 = vmatpush.msra.mxu0 %v3444
        %4813 = vmatpush.msra.mxu0 %v3442
        %4814 = vmatpush.msra.mxu0 %v3440
        %4815 = vmatpush.msra.mxu0 %v3438
        %4816 = vmatpush.msra.mxu0 %v3436
        %4817 = vmatpush.msra.mxu0 %v3434
        %4818 = vmatpush.msra.mxu0 %v3432
        %4819 = vmatpush.msra.mxu0 %v3430
        %4820 = vmatmul.f32.gmra.mxu0 %v3099
        %v4821 = vpop.f32.mrf.mxu0
        %v4822 = vadd.f32 %v4781, %v4821
        %4823 = vmatmul.f32.gmra.mxu0 %v3117
        %v4824 = vpop.f32.mrf.mxu0
        %v4825 = vadd.f32 %v4784, %v4824
        %4826 = vmatmul.f32.gmra.mxu0 %v3135
        %v4827 = vpop.f32.mrf.mxu0
        %v4828 = vadd.f32 %v4787, %v4827
        %4829 = vmatmul.f32.gmra.mxu0 %v3153
        %v4830 = vpop.f32.mrf.mxu0
        %v4831 = vadd.f32 %v4790, %v4830
        %4832 = vmatmul.f32.gmra.mxu0 %v3171
        %v4833 = vpop.f32.mrf.mxu0
        %v4834 = vadd.f32 %v4793, %v4833
        %4835 = vmatmul.f32.gmra.mxu0 %v3189
        %v4836 = vpop.f32.mrf.mxu0
        %v4837 = vadd.f32 %v4796, %v4836
        %4838 = vmatmul.f32.gmra.mxu0 %v3207
        %v4839 = vpop.f32.mrf.mxu0
        %v4840 = vadd.f32 %v4799, %v4839
        %4841 = vmatmul.f32.gmra.mxu0 %v3225
        %v4842 = vpop.f32.mrf.mxu0
        %v4843 = vadd.f32 %v4802, %v4842
        %4844 = vdwg.mxu0
        %4845 = vmatpush.msra.mxu0 %v3492
        %4846 = vmatpush.msra.mxu0 %v3490
        %4847 = vmatpush.msra.mxu0 %v3488
        %4848 = vmatpush.msra.mxu0 %v3486
        %4849 = vmatpush.msra.mxu0 %v3484
        %4850 = vmatpush.msra.mxu0 %v3482
        %4851 = vmatpush.msra.mxu0 %v3480
        %4852 = vmatpush.msra.mxu0 %v3478
        %4853 = vmatpush.msra.mxu0 %v3476
        %4854 = vmatpush.msra.mxu0 %v3474
        %4855 = vmatpush.msra.mxu0 %v3472
        %4856 = vmatpush.msra.mxu0 %v3470
        %4857 = vmatpush.msra.mxu0 %v3468
        %4858 = vmatpush.msra.mxu0 %v3466
        %4859 = vmatpush.msra.mxu0 %v3464
        %4860 = vmatpush.msra.mxu0 %v3462
        %4861 = vmatmul.f32.gmra.mxu0 %v3100
        %v4862 = vpop.f32.mrf.mxu0
        %v4863 = vadd.f32 %v4822, %v4862
        %4864 = vmatmul.f32.gmra.mxu0 %v3118
        %v4865 = vpop.f32.mrf.mxu0
        %v4866 = vadd.f32 %v4825, %v4865
        %4867 = vmatmul.f32.gmra.mxu0 %v3136
        %v4868 = vpop.f32.mrf.mxu0
        %v4869 = vadd.f32 %v4828, %v4868
        %4870 = vmatmul.f32.gmra.mxu0 %v3154
        %v4871 = vpop.f32.mrf.mxu0
        %v4872 = vadd.f32 %v4831, %v4871
        %4873 = vmatmul.f32.gmra.mxu0 %v3172
        %v4874 = vpop.f32.mrf.mxu0
        %v4875 = vadd.f32 %v4834, %v4874
        %4876 = vmatmul.f32.gmra.mxu0 %v3190
        %v4877 = vpop.f32.mrf.mxu0
        %v4878 = vadd.f32 %v4837, %v4877
        %4879 = vmatmul.f32.gmra.mxu0 %v3208
        %v4880 = vpop.f32.mrf.mxu0
        %v4881 = vadd.f32 %v4840, %v4880
        %4882 = vmatmul.f32.gmra.mxu0 %v3226
        %v4883 = vpop.f32.mrf.mxu0
        %v4884 = vadd.f32 %v4843, %v4883
        %4885 = vdwg.mxu0
        %4886 = vmatpush.msra.mxu0 %v3524
        %4887 = vmatpush.msra.mxu0 %v3522
        %4888 = vmatpush.msra.mxu0 %v3520
        %4889 = vmatpush.msra.mxu0 %v3518
        %4890 = vmatpush.msra.mxu0 %v3516
        %4891 = vmatpush.msra.mxu0 %v3514
        %4892 = vmatpush.msra.mxu0 %v3512
        %4893 = vmatpush.msra.mxu0 %v3510
        %4894 = vmatpush.msra.mxu0 %v3508
        %4895 = vmatpush.msra.mxu0 %v3506
        %4896 = vmatpush.msra.mxu0 %v3504
        %4897 = vmatpush.msra.mxu0 %v3502
        %4898 = vmatpush.msra.mxu0 %v3500
        %4899 = vmatpush.msra.mxu0 %v3498
        %4900 = vmatpush.msra.mxu0 %v3496
        %4901 = vmatpush.msra.mxu0 %v3494
        %4902 = vmatmul.f32.gmra.mxu0 %v3101
        %v4903 = vpop.f32.mrf.mxu0
        %v4904 = vadd.f32 %v4863, %v4903
        %4905 = vmatmul.f32.gmra.mxu0 %v3119
        %v4906 = vpop.f32.mrf.mxu0
        %v4907 = vadd.f32 %v4866, %v4906
        %4908 = vmatmul.f32.gmra.mxu0 %v3137
        %v4909 = vpop.f32.mrf.mxu0
        %v4910 = vadd.f32 %v4869, %v4909
        %4911 = vmatmul.f32.gmra.mxu0 %v3155
        %v4912 = vpop.f32.mrf.mxu0
        %v4913 = vadd.f32 %v4872, %v4912
        %4914 = vmatmul.f32.gmra.mxu0 %v3173
        %v4915 = vpop.f32.mrf.mxu0
        %v4916 = vadd.f32 %v4875, %v4915
        %4917 = vmatmul.f32.gmra.mxu0 %v3191
        %v4918 = vpop.f32.mrf.mxu0
        %v4919 = vadd.f32 %v4878, %v4918
        %4920 = vmatmul.f32.gmra.mxu0 %v3209
        %v4921 = vpop.f32.mrf.mxu0
        %v4922 = vadd.f32 %v4881, %v4921
        %4923 = vmatmul.f32.gmra.mxu0 %v3227
        %v4924 = vpop.f32.mrf.mxu0
        %v4925 = vadd.f32 %v4884, %v4924
        %4926 = vdwg.mxu0
        %4927 = vmatpush.msra.mxu0 %v3556
        %4928 = vmatpush.msra.mxu0 %v3554
        %4929 = vmatpush.msra.mxu0 %v3552
        %4930 = vmatpush.msra.mxu0 %v3550
        %4931 = vmatpush.msra.mxu0 %v3548
        %4932 = vmatpush.msra.mxu0 %v3546
        %4933 = vmatpush.msra.mxu0 %v3544
        %4934 = vmatpush.msra.mxu0 %v3542
        %4935 = vmatpush.msra.mxu0 %v3540
        %4936 = vmatpush.msra.mxu0 %v3538
        %4937 = vmatpush.msra.mxu0 %v3536
        %4938 = vmatpush.msra.mxu0 %v3534
        %4939 = vmatpush.msra.mxu0 %v3532
        %4940 = vmatpush.msra.mxu0 %v3530
        %4941 = vmatpush.msra.mxu0 %v3528
        %4942 = vmatpush.msra.mxu0 %v3526
        %4943 = vmatmul.f32.gmra.mxu0 %v3102
        %v4944 = vpop.f32.mrf.mxu0
        %v4945 = vadd.f32 %v4904, %v4944
        %4946 = vmatmul.f32.gmra.mxu0 %v3120
        %v4947 = vpop.f32.mrf.mxu0
        %v4948 = vadd.f32 %v4907, %v4947
        %4949 = vmatmul.f32.gmra.mxu0 %v3138
        %v4950 = vpop.f32.mrf.mxu0
        %v4951 = vadd.f32 %v4910, %v4950
        %4952 = vmatmul.f32.gmra.mxu0 %v3156
        %v4953 = vpop.f32.mrf.mxu0
        %v4954 = vadd.f32 %v4913, %v4953
        %4955 = vmatmul.f32.gmra.mxu0 %v3174
        %v4956 = vpop.f32.mrf.mxu0
        %v4957 = vadd.f32 %v4916, %v4956
        %4958 = vmatmul.f32.gmra.mxu0 %v3192
        %v4959 = vpop.f32.mrf.mxu0
        %v4960 = vadd.f32 %v4919, %v4959
        %4961 = vmatmul.f32.gmra.mxu0 %v3210
        %v4962 = vpop.f32.mrf.mxu0
        %v4963 = vadd.f32 %v4922, %v4962
        %4964 = vmatmul.f32.gmra.mxu0 %v3228
        %v4965 = vpop.f32.mrf.mxu0
        %v4966 = vadd.f32 %v4925, %v4965
        %4967 = vdwg.mxu0
        %4968 = vmatpush.msra.mxu0 %v3588
        %4969 = vmatpush.msra.mxu0 %v3586
        %4970 = vmatpush.msra.mxu0 %v3584
        %4971 = vmatpush.msra.mxu0 %v3582
        %4972 = vmatpush.msra.mxu0 %v3580
        %4973 = vmatpush.msra.mxu0 %v3578
        %4974 = vmatpush.msra.mxu0 %v3576
        %4975 = vmatpush.msra.mxu0 %v3574
        %4976 = vmatpush.msra.mxu0 %v3572
        %4977 = vmatpush.msra.mxu0 %v3570
        %4978 = vmatpush.msra.mxu0 %v3568
        %4979 = vmatpush.msra.mxu0 %v3566
        %4980 = vmatpush.msra.mxu0 %v3564
        %4981 = vmatpush.msra.mxu0 %v3562
        %4982 = vmatpush.msra.mxu0 %v3560
        %4983 = vmatpush.msra.mxu0 %v3558
        %4984 = vmatmul.f32.gmra.mxu0 %v3103
        %v4985 = vpop.f32.mrf.mxu0
        %v4986 = vadd.f32 %v4945, %v4985
        %4987 = vmatmul.f32.gmra.mxu0 %v3121
        %v4988 = vpop.f32.mrf.mxu0
        %v4989 = vadd.f32 %v4948, %v4988
        %4990 = vmatmul.f32.gmra.mxu0 %v3139
        %v4991 = vpop.f32.mrf.mxu0
        %v4992 = vadd.f32 %v4951, %v4991
        %4993 = vmatmul.f32.gmra.mxu0 %v3157
        %v4994 = vpop.f32.mrf.mxu0
        %v4995 = vadd.f32 %v4954, %v4994
        %4996 = vmatmul.f32.gmra.mxu0 %v3175
        %v4997 = vpop.f32.mrf.mxu0
        %v4998 = vadd.f32 %v4957, %v4997
        %4999 = vmatmul.f32.gmra.mxu0 %v3193
        %v5000 = vpop.f32.mrf.mxu0
        %v5001 = vadd.f32 %v4960, %v5000
        %5002 = vmatmul.f32.gmra.mxu0 %v3211
        %v5003 = vpop.f32.mrf.mxu0
        %v5004 = vadd.f32 %v4963, %v5003
        %5005 = vmatmul.f32.gmra.mxu0 %v3229
        %v5006 = vpop.f32.mrf.mxu0
        %v5007 = vadd.f32 %v4966, %v5006
        %5008 = vdwg.mxu0
        %5009 = vmatpush.msra.mxu0 %v3620
        %5010 = vmatpush.msra.mxu0 %v3618
        %5011 = vmatpush.msra.mxu0 %v3616
        %5012 = vmatpush.msra.mxu0 %v3614
        %5013 = vmatpush.msra.mxu0 %v3612
        %5014 = vmatpush.msra.mxu0 %v3610
        %5015 = vmatpush.msra.mxu0 %v3608
        %5016 = vmatpush.msra.mxu0 %v3606
        %5017 = vmatpush.msra.mxu0 %v3604
        %5018 = vmatpush.msra.mxu0 %v3602
        %5019 = vmatpush.msra.mxu0 %v3600
        %5020 = vmatpush.msra.mxu0 %v3598
        %5021 = vmatpush.msra.mxu0 %v3596
        %5022 = vmatpush.msra.mxu0 %v3594
        %5023 = vmatpush.msra.mxu0 %v3592
        %5024 = vmatpush.msra.mxu0 %v3590
        %5025 = vmatmul.f32.gmra.mxu0 %v3104
        %v5026 = vpop.f32.mrf.mxu0
        %v5027 = vadd.f32 %v4986, %v5026
        %5028 = vmatmul.f32.gmra.mxu0 %v3122
        %v5029 = vpop.f32.mrf.mxu0
        %v5030 = vadd.f32 %v4989, %v5029
        %5031 = vmatmul.f32.gmra.mxu0 %v3140
        %v5032 = vpop.f32.mrf.mxu0
        %v5033 = vadd.f32 %v4992, %v5032
        %5034 = vmatmul.f32.gmra.mxu0 %v3158
        %v5035 = vpop.f32.mrf.mxu0
        %v5036 = vadd.f32 %v4995, %v5035
        %5037 = vmatmul.f32.gmra.mxu0 %v3176
        %v5038 = vpop.f32.mrf.mxu0
        %v5039 = vadd.f32 %v4998, %v5038
        %5040 = vmatmul.f32.gmra.mxu0 %v3194
        %v5041 = vpop.f32.mrf.mxu0
        %v5042 = vadd.f32 %v5001, %v5041
        %5043 = vmatmul.f32.gmra.mxu0 %v3212
        %v5044 = vpop.f32.mrf.mxu0
        %v5045 = vadd.f32 %v5004, %v5044
        %5046 = vmatmul.f32.gmra.mxu0 %v3230
        %v5047 = vpop.f32.mrf.mxu0
        %v5048 = vadd.f32 %v5007, %v5047
        %5049 = vdwg.mxu0
        %5050 = vmatpush.msra.mxu0 %v3652
        %5051 = vmatpush.msra.mxu0 %v3650
        %5052 = vmatpush.msra.mxu0 %v3648
        %5053 = vmatpush.msra.mxu0 %v3646
        %5054 = vmatpush.msra.mxu0 %v3644
        %5055 = vmatpush.msra.mxu0 %v3642
        %5056 = vmatpush.msra.mxu0 %v3640
        %5057 = vmatpush.msra.mxu0 %v3638
        %5058 = vmatpush.msra.mxu0 %v3636
        %5059 = vmatpush.msra.mxu0 %v3634
        %5060 = vmatpush.msra.mxu0 %v3632
        %5061 = vmatpush.msra.mxu0 %v3630
        %5062 = vmatpush.msra.mxu0 %v3628
        %5063 = vmatpush.msra.mxu0 %v3626
        %5064 = vmatpush.msra.mxu0 %v3624
        %5065 = vmatpush.msra.mxu0 %v3622
        %5066 = vmatmul.f32.gmra.mxu0 %v3105
        %v5067 = vpop.f32.mrf.mxu0
        %v5068 = vadd.f32 %v5027, %v5067
        %5069 = vmatmul.f32.gmra.mxu0 %v3123
        %v5070 = vpop.f32.mrf.mxu0
        %v5071 = vadd.f32 %v5030, %v5070
        %5072 = vmatmul.f32.gmra.mxu0 %v3141
        %v5073 = vpop.f32.mrf.mxu0
        %v5074 = vadd.f32 %v5033, %v5073
        %5075 = vmatmul.f32.gmra.mxu0 %v3159
        %v5076 = vpop.f32.mrf.mxu0
        %v5077 = vadd.f32 %v5036, %v5076
        %5078 = vmatmul.f32.gmra.mxu0 %v3177
        %v5079 = vpop.f32.mrf.mxu0
        %v5080 = vadd.f32 %v5039, %v5079
        %5081 = vmatmul.f32.gmra.mxu0 %v3195
        %v5082 = vpop.f32.mrf.mxu0
        %v5083 = vadd.f32 %v5042, %v5082
        %5084 = vmatmul.f32.gmra.mxu0 %v3213
        %v5085 = vpop.f32.mrf.mxu0
        %v5086 = vadd.f32 %v5045, %v5085
        %5087 = vmatmul.f32.gmra.mxu0 %v3231
        %v5088 = vpop.f32.mrf.mxu0
        %v5089 = vadd.f32 %v5048, %v5088
        %5090 = vdwg.mxu0
        %5091 = vmatpush.msra.mxu0 %v3684
        %5092 = vmatpush.msra.mxu0 %v3682
        %5093 = vmatpush.msra.mxu0 %v3680
        %5094 = vmatpush.msra.mxu0 %v3678
        %5095 = vmatpush.msra.mxu0 %v3676
        %5096 = vmatpush.msra.mxu0 %v3674
        %5097 = vmatpush.msra.mxu0 %v3672
        %5098 = vmatpush.msra.mxu0 %v3670
        %5099 = vmatpush.msra.mxu0 %v3668
        %5100 = vmatpush.msra.mxu0 %v3666
        %5101 = vmatpush.msra.mxu0 %v3664
        %5102 = vmatpush.msra.mxu0 %v3662
        %5103 = vmatpush.msra.mxu0 %v3660
        %5104 = vmatpush.msra.mxu0 %v3658
        %5105 = vmatpush.msra.mxu0 %v3656
        %5106 = vmatpush.msra.mxu0 %v3654
        %5107 = vmatmul.f32.gmra.mxu0 %v3106
        %v5108 = vpop.f32.mrf.mxu0
        %v5109 = vadd.f32 %v5068, %v5108
        %5110 = vmatmul.f32.gmra.mxu0 %v3124
        %v5111 = vpop.f32.mrf.mxu0
        %v5112 = vadd.f32 %v5071, %v5111
        %5113 = vmatmul.f32.gmra.mxu0 %v3142
        %v5114 = vpop.f32.mrf.mxu0
        %v5115 = vadd.f32 %v5074, %v5114
        %5116 = vmatmul.f32.gmra.mxu0 %v3160
        %v5117 = vpop.f32.mrf.mxu0
        %v5118 = vadd.f32 %v5077, %v5117
        %5119 = vmatmul.f32.gmra.mxu0 %v3178
        %v5120 = vpop.f32.mrf.mxu0
        %v5121 = vadd.f32 %v5080, %v5120
        %5122 = vmatmul.f32.gmra.mxu0 %v3196
        %v5123 = vpop.f32.mrf.mxu0
        %v5124 = vadd.f32 %v5083, %v5123
        %5125 = vmatmul.f32.gmra.mxu0 %v3214
        %v5126 = vpop.f32.mrf.mxu0
        %v5127 = vadd.f32 %v5086, %v5126
        %5128 = vmatmul.f32.gmra.mxu0 %v3232
        %v5129 = vpop.f32.mrf.mxu0
        %v5130 = vadd.f32 %v5089, %v5129
        %5131 = vdwg.mxu0
        %5132 = vmatpush.msra.mxu0 %v3716
        %5133 = vmatpush.msra.mxu0 %v3714
        %5134 = vmatpush.msra.mxu0 %v3712
        %5135 = vmatpush.msra.mxu0 %v3710
        %5136 = vmatpush.msra.mxu0 %v3708
        %5137 = vmatpush.msra.mxu0 %v3706
        %5138 = vmatpush.msra.mxu0 %v3704
        %5139 = vmatpush.msra.mxu0 %v3702
        %5140 = vmatpush.msra.mxu0 %v3700
        %5141 = vmatpush.msra.mxu0 %v3698
        %5142 = vmatpush.msra.mxu0 %v3696
        %5143 = vmatpush.msra.mxu0 %v3694
        %5144 = vmatpush.msra.mxu0 %v3692
        %5145 = vmatpush.msra.mxu0 %v3690
        %5146 = vmatpush.msra.mxu0 %v3688
        %5147 = vmatpush.msra.mxu0 %v3686
        %5148 = vmatmul.f32.gmra.mxu0 %v3107
        %v5149 = vpop.f32.mrf.mxu0
        %v5150 = vadd.f32 %v5109, %v5149
        %5151 = vmatmul.f32.gmra.mxu0 %v3125
        %v5152 = vpop.f32.mrf.mxu0
        %v5153 = vadd.f32 %v5112, %v5152
        %5154 = vmatmul.f32.gmra.mxu0 %v3143
        %v5155 = vpop.f32.mrf.mxu0
        %v5156 = vadd.f32 %v5115, %v5155
        %5157 = vmatmul.f32.gmra.mxu0 %v3161
        %v5158 = vpop.f32.mrf.mxu0
        %v5159 = vadd.f32 %v5118, %v5158
        %5160 = vmatmul.f32.gmra.mxu0 %v3179
        %v5161 = vpop.f32.mrf.mxu0
        %v5162 = vadd.f32 %v5121, %v5161
        %5163 = vmatmul.f32.gmra.mxu0 %v3197
        %v5164 = vpop.f32.mrf.mxu0
        %v5165 = vadd.f32 %v5124, %v5164
        %5166 = vmatmul.f32.gmra.mxu0 %v3215
        %v5167 = vpop.f32.mrf.mxu0
        %v5168 = vadd.f32 %v5127, %v5167
        %5169 = vmatmul.f32.gmra.mxu0 %v3233
        %v5170 = vpop.f32.mrf.mxu0
        %v5171 = vadd.f32 %v5130, %v5170
        %5172 = vdwg.mxu0
        %5173 = vmatpush.msra.mxu0 %v3748
        %5174 = vmatpush.msra.mxu0 %v3746
        %5175 = vmatpush.msra.mxu0 %v3744
        %5176 = vmatpush.msra.mxu0 %v3742
        %5177 = vmatpush.msra.mxu0 %v3740
        %5178 = vmatpush.msra.mxu0 %v3738
        %5179 = vmatpush.msra.mxu0 %v3736
        %5180 = vmatpush.msra.mxu0 %v3734
        %5181 = vmatpush.msra.mxu0 %v3732
        %5182 = vmatpush.msra.mxu0 %v3730
        %5183 = vmatpush.msra.mxu0 %v3728
        %5184 = vmatpush.msra.mxu0 %v3726
        %5185 = vmatpush.msra.mxu0 %v3724
        %5186 = vmatpush.msra.mxu0 %v3722
        %5187 = vmatpush.msra.mxu0 %v3720
        %5188 = vmatpush.msra.mxu0 %v3718
        %5189 = vmatmul.f32.gmra.mxu0 %v3108
        %v5190 = vpop.f32.mrf.mxu0
        %v5191 = vadd.f32 %v5150, %v5190
        %5192 = vmatmul.f32.gmra.mxu0 %v3126
        %v5193 = vpop.f32.mrf.mxu0
        %v5194 = vadd.f32 %v5153, %v5193
        %5195 = vmatmul.f32.gmra.mxu0 %v3144
        %v5196 = vpop.f32.mrf.mxu0
        %v5197 = vadd.f32 %v5156, %v5196
        %5198 = vmatmul.f32.gmra.mxu0 %v3162
        %v5199 = vpop.f32.mrf.mxu0
        %v5200 = vadd.f32 %v5159, %v5199
        %5201 = vmatmul.f32.gmra.mxu0 %v3180
        %v5202 = vpop.f32.mrf.mxu0
        %v5203 = vadd.f32 %v5162, %v5202
        %5204 = vmatmul.f32.gmra.mxu0 %v3198
        %v5205 = vpop.f32.mrf.mxu0
        %v5206 = vadd.f32 %v5165, %v5205
        %5207 = vmatmul.f32.gmra.mxu0 %v3216
        %v5208 = vpop.f32.mrf.mxu0
        %v5209 = vadd.f32 %v5168, %v5208
        %5210 = vmatmul.f32.gmra.mxu0 %v3234
        %v5211 = vpop.f32.mrf.mxu0
        %v5212 = vadd.f32 %v5171, %v5211
        %5213 = vdwg.mxu0
        %5214 = vmatpush.msra.mxu0 %v3780
        %5215 = vmatpush.msra.mxu0 %v3778
        %5216 = vmatpush.msra.mxu0 %v3776
        %5217 = vmatpush.msra.mxu0 %v3774
        %5218 = vmatpush.msra.mxu0 %v3772
        %5219 = vmatpush.msra.mxu0 %v3770
        %5220 = vmatpush.msra.mxu0 %v3768
        %5221 = vmatpush.msra.mxu0 %v3766
        %5222 = vmatpush.msra.mxu0 %v3764
        %5223 = vmatpush.msra.mxu0 %v3762
        %5224 = vmatpush.msra.mxu0 %v3760
        %5225 = vmatpush.msra.mxu0 %v3758
        %5226 = vmatpush.msra.mxu0 %v3756
        %5227 = vmatpush.msra.mxu0 %v3754
        %5228 = vmatpush.msra.mxu0 %v3752
        %5229 = vmatpush.msra.mxu0 %v3750
        %5230 = vmatmul.f32.gmra.mxu0 %v3109
        %v5231 = vpop.f32.mrf.mxu0
        %v5232 = vadd.f32 %v5191, %v5231
        %5233 = vmatmul.f32.gmra.mxu0 %v3127
        %v5234 = vpop.f32.mrf.mxu0
        %v5235 = vadd.f32 %v5194, %v5234
        %5236 = vmatmul.f32.gmra.mxu0 %v3145
        %v5237 = vpop.f32.mrf.mxu0
        %v5238 = vadd.f32 %v5197, %v5237
        %5239 = vmatmul.f32.gmra.mxu0 %v3163
        %v5240 = vpop.f32.mrf.mxu0
        %v5241 = vadd.f32 %v5200, %v5240
        %5242 = vmatmul.f32.gmra.mxu0 %v3181
        %v5243 = vpop.f32.mrf.mxu0
        %v5244 = vadd.f32 %v5203, %v5243
        %5245 = vmatmul.f32.gmra.mxu0 %v3199
        %v5246 = vpop.f32.mrf.mxu0
        %v5247 = vadd.f32 %v5206, %v5246
        %5248 = vmatmul.f32.gmra.mxu0 %v3217
        %v5249 = vpop.f32.mrf.mxu0
        %v5250 = vadd.f32 %v5209, %v5249
        %5251 = vmatmul.f32.gmra.mxu0 %v3235
        %v5252 = vpop.f32.mrf.mxu0
        %v5253 = vadd.f32 %v5212, %v5252
        %5254 = vdwg.mxu0
        %5255 = vmatpush.msra.mxu0 %v3812
        %5256 = vmatpush.msra.mxu0 %v3810
        %5257 = vmatpush.msra.mxu0 %v3808
        %5258 = vmatpush.msra.mxu0 %v3806
        %5259 = vmatpush.msra.mxu0 %v3804
        %5260 = vmatpush.msra.mxu0 %v3802
        %5261 = vmatpush.msra.mxu0 %v3800
        %5262 = vmatpush.msra.mxu0 %v3798
        %5263 = vmatpush.msra.mxu0 %v3796
        %5264 = vmatpush.msra.mxu0 %v3794
        %5265 = vmatpush.msra.mxu0 %v3792
        %5266 = vmatpush.msra.mxu0 %v3790
        %5267 = vmatpush.msra.mxu0 %v3788
        %5268 = vmatpush.msra.mxu0 %v3786
        %5269 = vmatpush.msra.mxu0 %v3784
        %5270 = vmatpush.msra.mxu0 %v3782
        %5271 = vmatmul.f32.gmra.mxu0 %v3110
        %v5272 = vpop.f32.mrf.mxu0
        %v5273 = vadd.f32 %v5232, %v5272
        %5274 = vmatmul.f32.gmra.mxu0 %v3128
        %v5275 = vpop.f32.mrf.mxu0
        %v5276 = vadd.f32 %v5235, %v5275
        %5277 = vmatmul.f32.gmra.mxu0 %v3146
        %v5278 = vpop.f32.mrf.mxu0
        %v5279 = vadd.f32 %v5238, %v5278
        %5280 = vmatmul.f32.gmra.mxu0 %v3164
        %v5281 = vpop.f32.mrf.mxu0
        %v5282 = vadd.f32 %v5241, %v5281
        %5283 = vmatmul.f32.gmra.mxu0 %v3182
        %v5284 = vpop.f32.mrf.mxu0
        %v5285 = vadd.f32 %v5244, %v5284
        %5286 = vmatmul.f32.gmra.mxu0 %v3200
        %v5287 = vpop.f32.mrf.mxu0
        %v5288 = vadd.f32 %v5247, %v5287
        %5289 = vmatmul.f32.gmra.mxu0 %v3218
        %v5290 = vpop.f32.mrf.mxu0
        %v5291 = vadd.f32 %v5250, %v5290
        %5292 = vmatmul.f32.gmra.mxu0 %v3236
        %v5293 = vpop.f32.mrf.mxu0
        %v5294 = vadd.f32 %v5253, %v5293
        %5295 = vdwg.mxu0
        %s5296 = scalar_lea.vmem %s3, 4
        %v5297 = vld [vmem:[%s5296] ss:$8 sm:$0x3]
        %s5298 = scalar_lea.vmem %s3, 5
        %v5299 = vld [vmem:[%s5298] ss:$8 sm:$0x3]
        %s5300 = sld [smem:[#allocation6 + $0x1]]
        %v5301 = vadd.f32 %v4535, %v4538
        %v5302 = vadd.f32 %v5301, %v4541
        %v5303 = vadd.f32 %v5302, %v4544
        %v5304 = vadd.f32 %v5303, %v4547
        %v5305 = vadd.f32 %v5304, %v4550
        %v5306 = vadd.f32 %v5305, %v4553
        %v5307 = vadd.f32 %v5306, %v4556
        %v5308 = vrot.slane %v5307, 4
        %v5309 = vadd.f32 %v5307, %v5308
        %v5310 = vrot.slane %v5309, 2
        %v5311 = vadd.f32 %v5309, %v5310
        %v5312 = vrot.slane %v5311, 1
        %v5313 = vadd.f32 %v5311, %v5312
        %v5314 = vadd.f32 %v5273, %v5276
        %v5315 = vadd.f32 %v5314, %v5279
        %v5316 = vadd.f32 %v5315, %v5282
        %v5317 = vadd.f32 %v5316, %v5285
        %v5318 = vadd.f32 %v5317, %v5288
        %v5319 = vadd.f32 %v5318, %v5291
        %v5320 = vadd.f32 %v5319, %v5294
        %v5321 = vrot.slane %v5320, 4
        %v5322 = vadd.f32 %v5320, %v5321
        %v5323 = vrot.slane %v5322, 2
        %v5324 = vadd.f32 %v5322, %v5323
        %v5325 = vrot.slane %v5324, 1
        %v5326 = vadd.f32 %v5324, %v5325
        %v5327 = vld [vmem:[%s4] sm:$0xff]
        %v5328 = vld [vmem:[%s4 + $0x8] sm:$0xff]
        %v5329 = vld [vmem:[%s4 + $0x10] sm:$0xff]
        %v5330 = vld [vmem:[%s4 + $0x18] sm:$0xff]
        %v5331 = vld [vmem:[%s4 + $0x20] sm:$0xff]
        %v5332 = vld [vmem:[%s4 + $0x28] sm:$0xff]
        %v5333 = vld [vmem:[%s4 + $0x30] sm:$0xff]
        %v5334 = vld [vmem:[%s4 + $0x38] sm:$0xff]
        %v5335 = vld [vmem:[%s4 + $0x40] sm:$0xff]
        %v5336 = vld [vmem:[%s4 + $0x48] sm:$0xff]
        %v5337 = vld [vmem:[%s4 + $0x50] sm:$0xff]
        %v5338 = vld [vmem:[%s4 + $0x58] sm:$0xff]
        %v5339 = vld [vmem:[%s4 + $0x60] sm:$0xff]
        %v5340 = vld [vmem:[%s4 + $0x68] sm:$0xff]
        %v5341 = vld [vmem:[%s4 + $0x70] sm:$0xff]
        %v5342 = vld [vmem:[%s4 + $0x78] sm:$0xff]
        %v5343 = vld [vmem:[%s4 + $0x80] sm:$0xff]
        %v5344 = vld [vmem:[%s4 + $0x88] sm:$0xff]
        %v5345 = vld [vmem:[%s4 + $0x90] sm:$0xff]
        %v5346 = vld [vmem:[%s4 + $0x98] sm:$0xff]
        %v5347 = vld [vmem:[%s4 + $0xa0] sm:$0xff]
        %v5348 = vld [vmem:[%s4 + $0xa8] sm:$0xff]
        %v5349 = vld [vmem:[%s4 + $0xb0] sm:$0xff]
        %v5350 = vld [vmem:[%s4 + $0xb8] sm:$0xff]
        %v5351 = vld [vmem:[%s4 + $0xc0] sm:$0xff]
        %v5352 = vld [vmem:[%s4 + $0xc8] sm:$0xff]
        %v5353 = vld [vmem:[%s4 + $0xd0] sm:$0xff]
        %v5354 = vld [vmem:[%s4 + $0xd8] sm:$0xff]
        %v5355 = vld [vmem:[%s4 + $0xe0] sm:$0xff]
        %v5356 = vld [vmem:[%s4 + $0xe8] sm:$0xff]
        %v5357 = vld [vmem:[%s4 + $0xf0] sm:$0xff]
        %v5358 = vld [vmem:[%s4 + $0xf8] sm:$0xff]
        %5359 = vmatpush.msra.mxu0 %v5342
        %5360 = vmatpush.msra.mxu0 %v5341
        %5361 = vmatpush.msra.mxu0 %v5340
        %5362 = vmatpush.msra.mxu0 %v5339
        %5363 = vmatpush.msra.mxu0 %v5338
        %5364 = vmatpush.msra.mxu0 %v5337
        %5365 = vmatpush.msra.mxu0 %v5336
        %5366 = vmatpush.msra.mxu0 %v5335
        %5367 = vmatpush.msra.mxu0 %v5334
        %5368 = vmatpush.msra.mxu0 %v5333
        %5369 = vmatpush.msra.mxu0 %v5332
        %5370 = vmatpush.msra.mxu0 %v5331
        %5371 = vmatpush.msra.mxu0 %v5330
        %5372 = vmatpush.msra.mxu0 %v5329
        %5373 = vmatpush.msra.mxu0 %v5328
        %5374 = vmatpush.msra.mxu0 %v5327
        %5375 = vmatmul.f32.gmra.mxu0 %v5313
        %v5376 = vpop.f32.mrf.mxu0
        %v5377 = vadd.f32 0.0, %v5376
        %5378 = vdwg.mxu0
        %5379 = vmatpush.msra.mxu0 %v5358
        %5380 = vmatpush.msra.mxu0 %v5357
        %5381 = vmatpush.msra.mxu0 %v5356
        %5382 = vmatpush.msra.mxu0 %v5355
        %5383 = vmatpush.msra.mxu0 %v5354
        %5384 = vmatpush.msra.mxu0 %v5353
        %5385 = vmatpush.msra.mxu0 %v5352
        %5386 = vmatpush.msra.mxu0 %v5351
        %5387 = vmatpush.msra.mxu0 %v5350
        %5388 = vmatpush.msra.mxu0 %v5349
        %5389 = vmatpush.msra.mxu0 %v5348
        %5390 = vmatpush.msra.mxu0 %v5347
        %5391 = vmatpush.msra.mxu0 %v5346
        %5392 = vmatpush.msra.mxu0 %v5345
        %5393 = vmatpush.msra.mxu0 %v5344
        %5394 = vmatpush.msra.mxu0 %v5343
        %5395 = vmatmul.f32.gmra.mxu0 %v5326
        %v5396 = vpop.f32.mrf.mxu0
        %v5397 = vadd.f32 %v5377, %v5396
        %5398 = vdwg.mxu0
        %v5399 = vmul.f32 %v5397, %v1689
        %v5400 = vld [vmem:[%s5] sm:$0xff]
        %v5401 = vld [vmem:[%s5 + $0x8] sm:$0xff]
        %v5402 = vld [vmem:[%s5 + $0x10] sm:$0xff]
        %v5403 = vld [vmem:[%s5 + $0x18] sm:$0xff]
        %v5405 = vsel %vm1695, %v5399, 0
        %5407 = vmatpush.msra.mxu0 0.0
        %5408 = vmatpush.msra.mxu0 0.0
        %5409 = vmatpush.msra.mxu0 0.0
        %5410 = vmatpush.msra.mxu0 0.0
        %5411 = vmatpush.msra.mxu0 0.0
        %5412 = vmatpush.msra.mxu0 0.0
        %5413 = vmatpush.msra.mxu0 0.0
        %5414 = vmatpush.msra.mxu0 0.0
        %5415 = vmatpush.msra.mxu0 0.0
        %5416 = vmatpush.msra.mxu0 0.0
        %5417 = vmatpush.msra.mxu0 0.0
        %5418 = vmatpush.msra.mxu0 0.0
        %5419 = vmatpush.msra.mxu0 0.0
        %5420 = vmatpush.msra.mxu0 0.0
        %5421 = vmatpush.msra.mxu0 %v5402
        %5422 = vmatpush.msra.mxu0 %v5400
        %5423 = vmatmul.f32.gmra.mxu0 %v5405
        %v5424 = vpop.f32.mrf.mxu0
        %v5425 = vadd.f32 0.0, %v5424
        %5426 = vdwg.mxu0
        %5427 = vmatpush.msra.mxu0 0.0
        %5428 = vmatpush.msra.mxu0 0.0
        %5429 = vmatpush.msra.mxu0 0.0
        %5430 = vmatpush.msra.mxu0 0.0
        %5431 = vmatpush.msra.mxu0 0.0
        %5432 = vmatpush.msra.mxu0 0.0
        %5433 = vmatpush.msra.mxu0 0.0
        %5434 = vmatpush.msra.mxu0 0.0
        %5435 = vmatpush.msra.mxu0 0.0
        %5436 = vmatpush.msra.mxu0 0.0
        %5437 = vmatpush.msra.mxu0 0.0
        %5438 = vmatpush.msra.mxu0 0.0
        %5439 = vmatpush.msra.mxu0 0.0
        %5440 = vmatpush.msra.mxu0 0.0
        %5441 = vmatpush.msra.mxu0 %v5403
        %5442 = vmatpush.msra.mxu0 %v5401
        %5443 = vmatmul.f32.gmra.mxu0 %v5405
        %v5444 = vpop.f32.mrf.mxu0
        %v5445 = vadd.f32 0.0, %v5444
        %5446 = vdwg.mxu0
        %v5447 = vperm.slane %v5425, 0
        %v5448 = vperm.slane %v5445, 0
        %v5449 = vsub.f32 %v4535, %v5447
        %v5450 = vsub.f32 %v5273, %v5448
        %v5451 = vsub.f32 %v4538, %v5447
        %v5452 = vsub.f32 %v5276, %v5448
        %v5453 = vsub.f32 %v4541, %v5447
        %v5454 = vsub.f32 %v5279, %v5448
        %v5455 = vsub.f32 %v4544, %v5447
        %v5456 = vsub.f32 %v5282, %v5448
        %v5457 = vsub.f32 %v4547, %v5447
        %v5458 = vsub.f32 %v5285, %v5448
        %v5459 = vsub.f32 %v4550, %v5447
        %v5460 = vsub.f32 %v5288, %v5448
        %v5461 = vsub.f32 %v4553, %v5447
        %v5462 = vsub.f32 %v5291, %v5448
        %v5463 = vsub.f32 %v4556, %v5447
        %v5464 = vsub.f32 %v5294, %v5448
        %v5465 = vmul.f32 %v5449, %v5449
        %v5466 = vmul.f32 %v5450, %v5450
        %v5467 = vmul.f32 %v5451, %v5451
        %v5468 = vmul.f32 %v5452, %v5452
        %v5469 = vmul.f32 %v5453, %v5453
        %v5470 = vmul.f32 %v5454, %v5454
        %v5471 = vmul.f32 %v5455, %v5455
        %v5472 = vmul.f32 %v5456, %v5456
        %v5473 = vmul.f32 %v5457, %v5457
        %v5474 = vmul.f32 %v5458, %v5458
        %v5475 = vmul.f32 %v5459, %v5459
        %v5476 = vmul.f32 %v5460, %v5460
        %v5477 = vmul.f32 %v5461, %v5461
        %v5478 = vmul.f32 %v5462, %v5462
        %v5479 = vmul.f32 %v5463, %v5463
        %v5480 = vmul.f32 %v5464, %v5464
        %v5481 = vadd.f32 %v5465, %v5467
        %v5482 = vadd.f32 %v5481, %v5469
        %v5483 = vadd.f32 %v5482, %v5471
        %v5484 = vadd.f32 %v5483, %v5473
        %v5485 = vadd.f32 %v5484, %v5475
        %v5486 = vadd.f32 %v5485, %v5477
        %v5487 = vadd.f32 %v5486, %v5479
        %v5488 = vrot.slane %v5487, 4
        %v5489 = vadd.f32 %v5487, %v5488
        %v5490 = vrot.slane %v5489, 2
        %v5491 = vadd.f32 %v5489, %v5490
        %v5492 = vrot.slane %v5491, 1
        %v5493 = vadd.f32 %v5491, %v5492
        %v5494 = vadd.f32 %v5466, %v5468
        %v5495 = vadd.f32 %v5494, %v5470
        %v5496 = vadd.f32 %v5495, %v5472
        %v5497 = vadd.f32 %v5496, %v5474
        %v5498 = vadd.f32 %v5497, %v5476
        %v5499 = vadd.f32 %v5498, %v5478
        %v5500 = vadd.f32 %v5499, %v5480
        %v5501 = vrot.slane %v5500, 4
        %v5502 = vadd.f32 %v5500, %v5501
        %v5503 = vrot.slane %v5502, 2
        %v5504 = vadd.f32 %v5502, %v5503
        %v5505 = vrot.slane %v5504, 1
        %v5506 = vadd.f32 %v5504, %v5505
        %5507 = vmatpush.msra.mxu0 %v5342
        %5508 = vmatpush.msra.mxu0 %v5341
        %5509 = vmatpush.msra.mxu0 %v5340
        %5510 = vmatpush.msra.mxu0 %v5339
        %5511 = vmatpush.msra.mxu0 %v5338
        %5512 = vmatpush.msra.mxu0 %v5337
        %5513 = vmatpush.msra.mxu0 %v5336
        %5514 = vmatpush.msra.mxu0 %v5335
        %5515 = vmatpush.msra.mxu0 %v5334
        %5516 = vmatpush.msra.mxu0 %v5333
        %5517 = vmatpush.msra.mxu0 %v5332
        %5518 = vmatpush.msra.mxu0 %v5331
        %5519 = vmatpush.msra.mxu0 %v5330
        %5520 = vmatpush.msra.mxu0 %v5329
        %5521 = vmatpush.msra.mxu0 %v5328
        %5522 = vmatpush.msra.mxu0 %v5327
        %5523 = vmatmul.f32.gmra.mxu0 %v5493
        %v5524 = vpop.f32.mrf.mxu0
        %v5525 = vadd.f32 0.0, %v5524
        %5526 = vdwg.mxu0
        %5527 = vmatpush.msra.mxu0 %v5358
        %5528 = vmatpush.msra.mxu0 %v5357
        %5529 = vmatpush.msra.mxu0 %v5356
        %5530 = vmatpush.msra.mxu0 %v5355
        %5531 = vmatpush.msra.mxu0 %v5354
        %5532 = vmatpush.msra.mxu0 %v5353
        %5533 = vmatpush.msra.mxu0 %v5352
        %5534 = vmatpush.msra.mxu0 %v5351
        %5535 = vmatpush.msra.mxu0 %v5350
        %5536 = vmatpush.msra.mxu0 %v5349
        %5537 = vmatpush.msra.mxu0 %v5348
        %5538 = vmatpush.msra.mxu0 %v5347
        %5539 = vmatpush.msra.mxu0 %v5346
        %5540 = vmatpush.msra.mxu0 %v5345
        %5541 = vmatpush.msra.mxu0 %v5344
        %5542 = vmatpush.msra.mxu0 %v5343
        %5543 = vmatmul.f32.gmra.mxu0 %v5506
        %v5544 = vpop.f32.mrf.mxu0
        %v5545 = vadd.f32 %v5525, %v5544
        %5546 = vdwg.mxu0
        %v5547 = vmul.f32 %v5545, %v1689
        %v5548 = vadd.f32 %v5547, 1e-05
        %v5549 = vrsqrt.pop %v5548
        %v5550 = vmul.f32 %v5549, %v5548
        %v5551 = vmul.f32 %v5550, %v5549
        %v5552 = vmul.f32 0.5, %v5551
        %v5553 = vsub.f32 1.5, %v5552
        %v5554 = vmul.f32 %v5549, %v5553
        %vm5555 = vweird.f32 %v5548
        %vm5556 = vweird.f32 %v5549
        %vm5557 = vmor %vm5555, %vm5556
        %v5558 = vsel %vm5557, %v5549, %v5554
        %v5560 = vsel %vm1695, %v5558, 0
        %5562 = vmatpush.msra.mxu0 0.0
        %5563 = vmatpush.msra.mxu0 0.0
        %5564 = vmatpush.msra.mxu0 0.0
        %5565 = vmatpush.msra.mxu0 0.0
        %5566 = vmatpush.msra.mxu0 0.0
        %5567 = vmatpush.msra.mxu0 0.0
        %5568 = vmatpush.msra.mxu0 0.0
        %5569 = vmatpush.msra.mxu0 0.0
        %5570 = vmatpush.msra.mxu0 0.0
        %5571 = vmatpush.msra.mxu0 0.0
        %5572 = vmatpush.msra.mxu0 0.0
        %5573 = vmatpush.msra.mxu0 0.0
        %5574 = vmatpush.msra.mxu0 0.0
        %5575 = vmatpush.msra.mxu0 0.0
        %5576 = vmatpush.msra.mxu0 %v5402
        %5577 = vmatpush.msra.mxu0 %v5400
        %5578 = vmatmul.f32.gmra.mxu0 %v5560
        %v5579 = vpop.f32.mrf.mxu0
        %v5580 = vadd.f32 0.0, %v5579
        %5581 = vdwg.mxu0
        %5582 = vmatpush.msra.mxu0 0.0
        %5583 = vmatpush.msra.mxu0 0.0
        %5584 = vmatpush.msra.mxu0 0.0
        %5585 = vmatpush.msra.mxu0 0.0
        %5586 = vmatpush.msra.mxu0 0.0
        %5587 = vmatpush.msra.mxu0 0.0
        %5588 = vmatpush.msra.mxu0 0.0
        %5589 = vmatpush.msra.mxu0 0.0
        %5590 = vmatpush.msra.mxu0 0.0
        %5591 = vmatpush.msra.mxu0 0.0
        %5592 = vmatpush.msra.mxu0 0.0
        %5593 = vmatpush.msra.mxu0 0.0
        %5594 = vmatpush.msra.mxu0 0.0
        %5595 = vmatpush.msra.mxu0 0.0
        %5596 = vmatpush.msra.mxu0 %v5403
        %5597 = vmatpush.msra.mxu0 %v5401
        %5598 = vmatmul.f32.gmra.mxu0 %v5560
        %v5599 = vpop.f32.mrf.mxu0
        %v5600 = vadd.f32 0.0, %v5599
        %5601 = vdwg.mxu0
        %v5603 = vperm.slane %v5297, 0
        %v5604 = vperm.slane %v5297, 1
        %v5607 = vmul.f32 %v5580, %v5603
        %v5608 = vmul.f32 %v5600, %v5604
        %v5609 = vperm.slane %v5607, 0
        %v5610 = vperm.slane %v5608, 0
        %v5611 = vmul.f32 %v5449, %v5609
        %v5612 = vmul.f32 %v5450, %v5610
        %v5613 = vmul.f32 %v5451, %v5609
        %v5614 = vmul.f32 %v5452, %v5610
        %v5615 = vmul.f32 %v5453, %v5609
        %v5616 = vmul.f32 %v5454, %v5610
        %v5617 = vmul.f32 %v5455, %v5609
        %v5618 = vmul.f32 %v5456, %v5610
        %v5619 = vmul.f32 %v5457, %v5609
        %v5620 = vmul.f32 %v5458, %v5610
        %v5621 = vmul.f32 %v5459, %v5609
        %v5622 = vmul.f32 %v5460, %v5610
        %v5623 = vmul.f32 %v5461, %v5609
        %v5624 = vmul.f32 %v5462, %v5610
        %v5625 = vmul.f32 %v5463, %v5609
        %v5626 = vmul.f32 %v5464, %v5610
        %v5628 = vperm.slane %v5299, 0
        %v5629 = vperm.slane %v5299, 1
        %v5632 = vadd.f32 %v5611, %v5628
        %v5633 = vadd.f32 %v5612, %v5629
        %v5634 = vadd.f32 %v5613, %v5628
        %v5635 = vadd.f32 %v5614, %v5629
        %v5636 = vadd.f32 %v5615, %v5628
        %v5637 = vadd.f32 %v5616, %v5629
        %v5638 = vadd.f32 %v5617, %v5628
        %v5639 = vadd.f32 %v5618, %v5629
        %v5640 = vadd.f32 %v5619, %v5628
        %v5641 = vadd.f32 %v5620, %v5629
        %v5642 = vadd.f32 %v5621, %v5628
        %v5643 = vadd.f32 %v5622, %v5629
        %v5644 = vadd.f32 %v5623, %v5628
        %v5645 = vadd.f32 %v5624, %v5629
        %v5646 = vadd.f32 %v5625, %v5628
        %v5647 = vadd.f32 %v5626, %v5629
        %vm5648 = vcmp.ge.f32.partialorder %v5632, 0.0
        %vm5649 = vcmp.ge.f32.partialorder %v5633, 0.0
        %vm5650 = vcmp.ge.f32.partialorder %v5634, 0.0
        %vm5651 = vcmp.ge.f32.partialorder %v5635, 0.0
        %vm5652 = vcmp.ge.f32.partialorder %v5636, 0.0
        %vm5653 = vcmp.ge.f32.partialorder %v5637, 0.0
        %vm5654 = vcmp.ge.f32.partialorder %v5638, 0.0
        %vm5655 = vcmp.ge.f32.partialorder %v5639, 0.0
        %vm5656 = vcmp.ge.f32.partialorder %v5640, 0.0
        %vm5657 = vcmp.ge.f32.partialorder %v5641, 0.0
        %vm5658 = vcmp.ge.f32.partialorder %v5642, 0.0
        %vm5659 = vcmp.ge.f32.partialorder %v5643, 0.0
        %vm5660 = vcmp.ge.f32.partialorder %v5644, 0.0
        %vm5661 = vcmp.ge.f32.partialorder %v5645, 0.0
        %vm5662 = vcmp.ge.f32.partialorder %v5646, 0.0
        %vm5663 = vcmp.ge.f32.partialorder %v5647, 0.0
        %v5664 = vstv %s5300
        %v5665 = vmul.f32 %v5664, %v5632
        %v5666 = vmul.f32 %v5664, %v5633
        %v5667 = vmul.f32 %v5664, %v5634
        %v5668 = vmul.f32 %v5664, %v5635
        %v5669 = vmul.f32 %v5664, %v5636
        %v5670 = vmul.f32 %v5664, %v5637
        %v5671 = vmul.f32 %v5664, %v5638
        %v5672 = vmul.f32 %v5664, %v5639
        %v5673 = vmul.f32 %v5664, %v5640
        %v5674 = vmul.f32 %v5664, %v5641
        %v5675 = vmul.f32 %v5664, %v5642
        %v5676 = vmul.f32 %v5664, %v5643
        %v5677 = vmul.f32 %v5664, %v5644
        %v5678 = vmul.f32 %v5664, %v5645
        %v5679 = vmul.f32 %v5664, %v5646
        %v5680 = vmul.f32 %v5664, %v5647
        %v5681 = vsel %vm5648, %v5632, %v5665
        %v5682 = vsel %vm5649, %v5633, %v5666
        %v5683 = vsel %vm5650, %v5634, %v5667
        %v5684 = vsel %vm5651, %v5635, %v5668
        %v5685 = vsel %vm5652, %v5636, %v5669
        %v5686 = vsel %vm5653, %v5637, %v5670
        %v5687 = vsel %vm5654, %v5638, %v5671
        %v5688 = vsel %vm5655, %v5639, %v5672
        %v5689 = vsel %vm5656, %v5640, %v5673
        %v5690 = vsel %vm5657, %v5641, %v5674
        %v5691 = vsel %vm5658, %v5642, %v5675
        %v5692 = vsel %vm5659, %v5643, %v5676
        %v5693 = vsel %vm5660, %v5644, %v5677
        %v5694 = vsel %vm5661, %v5645, %v5678
        %v5695 = vsel %vm5662, %v5646, %v5679
        %v5696 = vsel %vm5663, %v5647, %v5680
        %5697 = vst [vmem:[%s292] sm:$0xff] %v5681
        %5698 = vst [vmem:[%s292 + $0x8] sm:$0xff] %v5682
        %5699 = vst [vmem:[%s292 + $0x10] sm:$0xff] %v5683
        %5700 = vst [vmem:[%s292 + $0x18] sm:$0xff] %v5684
        %5701 = vst [vmem:[%s292 + $0x20] sm:$0xff] %v5685
        %5702 = vst [vmem:[%s292 + $0x28] sm:$0xff] %v5686
        %5703 = vst [vmem:[%s292 + $0x30] sm:$0xff] %v5687
        %5704 = vst [vmem:[%s292 + $0x38] sm:$0xff] %v5688
        %5705 = vst [vmem:[%s292 + $0x40] sm:$0xff] %v5689
        %5706 = vst [vmem:[%s292 + $0x48] sm:$0xff] %v5690
        %5707 = vst [vmem:[%s292 + $0x50] sm:$0xff] %v5691
        %5708 = vst [vmem:[%s292 + $0x58] sm:$0xff] %v5692
        %5709 = vst [vmem:[%s292 + $0x60] sm:$0xff] %v5693
        %5710 = vst [vmem:[%s292 + $0x68] sm:$0xff] %v5694
        %5711 = vst [vmem:[%s292 + $0x70] sm:$0xff] %v5695
        %5712 = vst [vmem:[%s292 + $0x78] sm:$0xff] %v5696
        %p5713 = scmp.lt.s32.totalorder %s19, 1
        %s5714 = scalar_select %p5713, %s19, 1
        %s5715 = smul.addr %s5714, 16
        %s5716 = smul.addr %s5715, 8
        %s5717 = scalar_lea.vmem %s7, %s5716
        // Predicated region
        $region53: #{conv_block_forward.1} parent=47 // pred_check
          %p5718 = pneg %p189
        $region54: #{conv_block_forward.1} parent=47 // pred_check_branch
          %5720 = sbr.rel (%p5718) target = $region56
        $region55: #{conv_block_forward.1} parent=47 // pred_region
          _
        $region56: #{conv_block_forward.1} parent=47 // pred_fallthru
          _
      $region48: #{conv_block_forward.1} parent=5 // pred_fallthru
        _
      %p5721 = scmp.le.s32.totalorder 2, %s14
      // Predicated region
      $region57: #{conv_block_forward.1} parent=5 // pred_check
        %p5722 = pneg %p5721
      $region58: #{conv_block_forward.1} parent=5 // pred_check_branch
        %5724 = sbr.rel (%p5722) target = $region60
      $region59: #{conv_block_forward.1} parent=5 // pred_region
        %s5725 = ssub.s32 %s14, 2
        // Predicated region
        $region61: #{conv_block_forward.1} parent=59 // pred_check
          %p5726 = pneg %p195
        $region62: #{conv_block_forward.1} parent=59 // pred_check_branch
          %5728 = sbr.rel (%p5726) target = $region64
        $region63: #{conv_block_forward.1} parent=59 // pred_region
          %p5729 = scmp.lt.s32.totalorder %s20, 1
          %s5730 = scalar_select %p5729, %s20, 1
          %s5731 = smul.addr %s5730, 16
          %s5732 = smul.addr %s5731, 8
          %s5733 = scalar_lea.vmem %s7, %s5732
        $region64: #{conv_block_forward.1} parent=59 // pred_fallthru
          _
      $region60: #{conv_block_forward.1} parent=5 // pred_fallthru
        _
    $region6: #{conv_block_forward.1} parent=1 // loop_footer
      %s18 = sadd.s32 1, %s14
    $region7: #{conv_block_forward.1} parent=1 // loop_footer_branch
      %13 = sbr.rel target = $region3
    $region8: #{conv_block_forward.1} parent=1 // loop_exit
      _
    %5734 = vsyncpa [#allocation7], 1
    %s5735 = scalar_lea.sflag [#allocation7], 1
    %5736 = vsyncpa %s5735, 1

</llo_original>
